<compile_context>
chip_gen: v7x
topology: tpu7x:2x2x1
jax: 0.10.0
libtpu: 0.0.40
codegen_flags: <defaults>
</compile_context>

<pallas_src>
import functools

import jax
import jax.numpy as jnp
from jax.experimental import pallas as pl
from jax.experimental.pallas import tpu as pltpu

EPS = 1e-5  # nn.BatchNorm2d default


# --------------------------------------------------------------------------- #
# Helpers
# --------------------------------------------------------------------------- #
def _pick_row_tile(h, w):
    """Largest divisor of H giving <= ~512 output pixels per MXU tile."""
    target = max(1, 512 // max(w, 1))
    cands = [d for d in range(1, h + 1) if h % d == 0 and d <= target]
    return max(cands) if cands else 1


def _fold_weight(w_oihw):
    """OIHW -> (9*Cin, Cout), ordered (kh, kw, cin) to match the tap loop."""
    return jnp.transpose(w_oihw, (2, 3, 1, 0)).reshape(
        9 * w_oihw.shape[1], w_oihw.shape[0])


def _block_bytes(shape, dtype):
    """Conservative (lane/sublane padded, 32-bit counted) VMEM block bytes."""
    del dtype  # count packed dtypes at full 32-bit width (conservative)
    s = list(shape)
    s[-1] = -(-s[-1] // 128) * 128
    if len(s) >= 2:
        s[-2] = -(-s[-2] // 8) * 8
    total = 4
    for d in s:
        total *= d
    return total


def _vmem_limit_bytes(parts):
    est = sum(parts)
    return int(min(64 << 20, max(32 << 20, 2 * est + (8 << 20))))


# --------------------------------------------------------------------------- #
# Kernel 1: conv3x3 stage (+ optional fused pre-BN/ReLU of the previous stage,
#           + per-batch partial BN statistics of this stage's output).
# --------------------------------------------------------------------------- #
def _conv_stage_kernel(*refs, th, h, w, cin, cout, fuse_pre):
    if fuse_pre:
        x_ref, w_ref, ps_ref, pb_ref, conv_ref, stats_ref, xpad_ref = refs
    else:
        x_ref, w_ref, conv_ref, stats_ref, xpad_ref = refs

    r = pl.program_id(1)

    # Once per batch element (row-tile axis is sequential/"arbitrary"):
    # optionally apply the previous stage's BN + ReLU and stage the image into
    # a zero-bordered VMEM scratch -> the halo never touches HBM.
    @pl.when(r == 0)
    def _prepare():
        img = x_ref[...].astype(jnp.float32)                 # (H, W, Cin)
        if fuse_pre:
            img = jnp.maximum(img * ps_ref[...] + pb_ref[...], 0.0)
        xpad_ref[...] = jnp.zeros_like(xpad_ref)
        xpad_ref[pl.ds(1, h), pl.ds(1, w), :] = img.astype(xpad_ref.dtype)
        stats_ref[...] = jnp.zeros_like(stats_ref)

    row0 = pl.multiple_of(r * th, th)
    acc = jnp.zeros((th * w, cout), jnp.float32)
    for k in range(9):                                       # unrolled 3x3 taps
        kh, kw = k // 3, k % 3
        tap = xpad_ref[pl.ds(row0 + kh, th), pl.ds(kw, w), :]   # (th, W, Cin)
        acc = acc + jnp.dot(tap.reshape(th * w, cin),
                            w_ref[k * cin:(k + 1) * cin, :],
                            preferred_element_type=jnp.float32)

    # Partial BN statistics from the exact f32 accumulator, accumulated in the
    # resident (2, Cout) output block across the row-tile axis.
    s = jnp.sum(acc, axis=0, keepdims=True)
    ss = jnp.sum(acc * acc, axis=0, keepdims=True)
    stats_ref[...] = stats_ref[...] + jnp.concatenate([s, ss], axis=0)

    # TODO(synk): a lane-dense folded (rows, 128) store here needs an in-kernel
    # lane<->sublane refold of the (th*W, Cout) accumulator; kept the
    # (th, W, Cout) block and fold at the XLA level for the epilogue instead.
    conv_ref[...] = acc.reshape(th, w, cout).astype(conv_ref.dtype)


def _conv_stage(x_img, w_fold, pre_scale, pre_shift, *, th, compute_dtype,
                out_dtype):
    """x_img: (N, H, W, Cin) activation (unpadded); w_fold: (9*Cin, Cout).

    Returns (conv_raw (N, H, W, Cout), stats (N, 2, Cout) = [sum; sumsq])."""
    n, h, w, cin = x_img.shape
    cout = w_fold.shape[1]
    n_rt = h // th
    fuse_pre = pre_scale is not None

    kernel = functools.partial(_conv_stage_kernel, th=th, h=h, w=w, cin=cin,
                               cout=cout, fuse_pre=fuse_pre)

    in_specs = [
        # Whole (unpadded) image per batch element: block index depends only on
        # b, so it is DMA'd once and stays VMEM-resident across its row tiles.
        # TODO(synk): switch to (th+2)-row halo tiles (manual DMA) for images
        # whose double-buffered copy would not fit v7x's 64 MiB VMEM.
        pl.BlockSpec((None, h, w, cin), lambda b, r: (b, 0, 0, 0)),
        pl.BlockSpec((9 * cin, cout), lambda b, r: (0, 0)),
    ]
    operands = [x_img, w_fold]
    if fuse_pre:
        in_specs += [pl.BlockSpec((1, cin), lambda b, r: (0, 0)),
                     pl.BlockSpec((1, cin), lambda b, r: (0, 0))]
        operands += [pre_scale.reshape(1, cin).astype(jnp.float32),
                     pre_shift.reshape(1, cin).astype(jnp.float32)]

    out_specs = [
        pl.BlockSpec((None, th, w, cout), lambda b, r: (b, r, 0, 0)),
        # Same block index for every r -> resident accumulator across the
        # "arbitrary" row-tile axis; one (2, Cout) stats row per batch element.
        pl.BlockSpec((None, 2, cout), lambda b, r: (b, 0, 0)),
    ]
    out_shape = [
        jax.ShapeDtypeStruct((n, h, w, cout), out_dtype),
        jax.ShapeDtypeStruct((n, 2, cout), jnp.float32),
    ]

    vmem_limit = _vmem_limit_bytes([
        2 * _block_bytes((h, w, cin), x_img.dtype),          # input (2 bufs)
        _block_bytes((9 * cin, cout), w_fold.dtype),
        2 * _block_bytes((th, w, cout), out_dtype),          # output (2 bufs)
        2 * _block_bytes((2, cout), jnp.float32),
        _block_bytes((h + 2, w + 2, cin), compute_dtype),    # xpad scratch
    ])

    return pl.pallas_call(
        kernel,
        grid=(n, n_rt),
        in_specs=in_specs,
        out_specs=out_specs,
        out_shape=out_shape,
        scratch_shapes=[pltpu.VMEM((h + 2, w + 2, cin), compute_dtype)],
        compiler_params=pltpu.CompilerParams(
            dimension_semantics=("parallel", "arbitrary"),
            vmem_limit_bytes=vmem_limit),
    )(*operands)


def _bn_scale_shift(stats, gamma, beta, m, eps):
    """Fold per-batch (sum, sumsq) into per-channel scale/shift (tiny JAX op).

    Biased variance (train-mode BatchNorm), E[x^2] - mean^2 clamped at 0; the
    partial sums were accumulated in f32 from the f32 conv accumulator."""
    tot = jnp.sum(stats.astype(jnp.float32), axis=0)   # (2, C)
    mean = tot[0] / m
    var = jnp.maximum(tot[1] / m - mean * mean, 0.0)
    inv = jax.lax.rsqrt(var + eps)
    scale = gamma.astype(jnp.float32) * inv
    shift = beta.astype(jnp.float32) - mean * scale
    return scale, shift


# --------------------------------------------------------------------------- #
# Kernel 2: lane-dense BN apply + residual + ReLU (final epilogue).
# --------------------------------------------------------------------------- #
def _bn_res_relu_kernel(y_ref, scale_ref, shift_ref, res_ref, out_ref):
    y = (y_ref[...].astype(jnp.float32) * scale_ref[...] + shift_ref[...]
         + res_ref[...].astype(jnp.float32))
    out_ref[...] = jnp.maximum(y, 0.0).astype(out_ref.dtype)


def _bn_residual_relu(conv_raw, scale, shift, residual_nhwc):
    """relu(conv*scale + shift + residual) on a lane-dense (rows, 128) view."""
    n, h, w, c = conv_raw.shape
    fold = 128                       # guaranteed by asserts in the wrapper
    rows = (n * h * w * c) // fold
    rep = fold // c
    conv_f = conv_raw.reshape(rows, fold)
    res_f = residual_nhwc.astype(jnp.float32).reshape(rows, fold)
    s_row = jnp.tile(scale.astype(jnp.float32), rep).reshape(1, fold)
    b_row = jnp.tile(shift.astype(jnp.float32), rep).reshape(1, fold)

    tr = rows if rows <= 4096 else 4096     # ~2 MiB f32 blocks at the cap
    row_spec = pl.BlockSpec((tr, fold), lambda i: (i, 0))
    vec_spec = pl.BlockSpec((1, fold), lambda i: (0, 0))
    out = pl.pallas_call(
        _bn_res_relu_kernel,
        grid=(pl.cdiv(rows, tr),),
        in_specs=[row_spec, vec_spec, vec_spec, row_spec],
        out_specs=row_spec,
        out_shape=jax.ShapeDtypeStruct((rows, fold), jnp.float32),
        compiler_params=pltpu.CompilerParams(
            dimension_semantics=("parallel",)),
    )(conv_f, s_row, b_row, res_f)
    return out.reshape(n, h, w, c)


# --------------------------------------------------------------------------- #
# BasicBlock forward.
# --------------------------------------------------------------------------- #
def basic_block_forward(x_nchw, params, *, compute_dtype=jnp.bfloat16):
    """BasicBlock with stride=1, downsample=None (train-mode BatchNorm):
       relu( bn2(conv2( relu(bn1(conv1(x))) )) + x )

    compute_dtype feeds the MXU and the stored conv intermediates; BN
    statistics, BN folding and the epilogue are always float32.  bfloat16
    (default) is the fast path on v5e/v6e/v7x; float32 matches the reference
    to ~1e-4.
    """
    n, c, h, w = x_nchw.shape
    planes, inplanes = params["w1"].shape[0], params["w1"].shape[1]
    assert inplanes == c and planes == c, \
        "BasicBlock with downsample=None requires inplanes == planes"
    # TODO(synk): channel counts not dividing 128 need a non-folded epilogue.
    assert 128 % c == 0 and (h * w * c) % 128 == 0, (c, h, w)

    x_nhwc = jnp.transpose(x_nchw, (0, 2, 3, 1)).astype(jnp.float32)
    th = _pick_row_tile(h, w)
    m = n * h * w
    inter_dtype = compute_dtype   # conv intermediates stored at MXU precision

    w1 = _fold_weight(params["w1"]).astype(compute_dtype)
    w2 = _fold_weight(params["w2"]).astype(compute_dtype)

    # Stage 1: conv1 (+ BN1 partial stats).  No pre-activation to fuse.
    conv1, stats1 = _conv_stage(x_nhwc, w1, None, None, th=th,
                                compute_dtype=compute_dtype,
                                out_dtype=inter_dtype)
    scale1, shift1 = _bn_scale_shift(stats1, params["gamma1"],
                                     params["beta1"], m, EPS)

    # Stage 2: BN1 + ReLU fused into conv2's input staging (no h1 HBM
    # round-trip, no padded copies), conv2 (+ BN2 partial stats).
    conv2, stats2 = _conv_stage(conv1, w2, scale1, shift1, th=th,
                                compute_dtype=compute_dtype,
                                out_dtype=inter_dtype)
    scale2, shift2 = _bn_scale_shift(stats2, params["gamma2"],
                                     params["beta2"], m, EPS)

    # Epilogue: BN2 + residual + ReLU on a lane-dense folded view.
    out_nhwc = _bn_residual_relu(conv2, scale2, shift2, x_nhwc)
    return jnp.transpose(out_nhwc, (0, 3, 1, 2))


# --------------------------------------------------------------------------- #
# Pure-JAX reference (same semantics) for the correctness check.
# --------------------------------------------------------------------------- #
def _ref_forward(x_nchw, params):
    x = jnp.transpose(x_nchw, (0, 2, 3, 1)).astype(jnp.float32)  # NHWC

    def conv_bn_relu(inp, w_oihw, gamma, beta, residual):
        w_hwio = jnp.transpose(w_oihw, (2, 3, 1, 0))
        y = jax.lax.conv_general_dilated(
            inp, w_hwio, window_strides=(1, 1), padding="SAME",
            dimension_numbers=("NHWC", "HWIO", "NHWC"))
        mean = jnp.mean(y, axis=(0, 1, 2), keepdims=True)
        var = jnp.mean((y - mean) ** 2, axis=(0, 1, 2), keepdims=True)
        y = (y - mean) * jax.lax.rsqrt(var + EPS) * gamma + beta
        return jnp.maximum(y + residual, 0.0)

    h1 = conv_bn_relu(x, params["w1"], params["gamma1"], params["beta1"], 0.0)
    out = conv_bn_relu(h1, params["w2"], params["gamma2"], params["beta2"], x)
    return jnp.transpose(out, (0, 3, 1, 2))


if __name__ == "__main__":
    key = jax.random.PRNGKey(0)
    kx, k1, k2, kg1, kb1, kg2, kb2 = jax.random.split(key, 7)
    # inplanes == planes (required with downsample=None), stride=1
    N, C, H, W = 2, 4, 16, 16
    params = {
        "w1": jax.random.normal(k1, (C, C, 3, 3), jnp.float32) * 0.2,   # OIHW
        "w2": jax.random.normal(k2, (C, C, 3, 3), jnp.float32) * 0.2,   # OIHW
        "gamma1": 1.0 + 0.1 * jax.random.normal(kg1, (C,), jnp.float32),
        "beta1": 0.1 * jax.random.normal(kb1, (C,), jnp.float32),
        "gamma2": 1.0 + 0.1 * jax.random.normal(kg2, (C,), jnp.float32),
        "beta2": 0.1 * jax.random.normal(kb2, (C,), jnp.float32),
    }
    x = jax.random.normal(kx, (N, C, H, W), jnp.float32)

    ref = jax.block_until_ready(_ref_forward(x, params))

    # Exact path: f32 MXU inputs / f32 intermediates vs. the JAX reference.
    fwd_f32 = jax.jit(functools.partial(basic_block_forward,
                                        compute_dtype=jnp.float32))
    out_f32 = jax.block_until_ready(fwd_f32(x, params))
    assert out_f32.shape == x.shape, (out_f32.shape, x.shape)
    if not jnp.allclose(out_f32, ref, atol=2e-4, rtol=2e-4):
        err = float(jnp.max(jnp.abs(out_f32 - ref)))
        raise AssertionError(
            f"Pallas BasicBlock (f32 path) mismatch vs JAX reference "
            f"(max abs err {err:.2e})")

    # Fast path (default): bf16 MXU inputs / bf16 conv intermediates.
    fwd_bf16 = jax.jit(basic_block_forward)
    out_bf16 = jax.block_until_ready(fwd_bf16(x, params))
    err_bf16 = float(jnp.max(jnp.abs(out_bf16 - ref)))
    if err_bf16 > 0.25:
        raise AssertionError(
            f"Pallas BasicBlock (bf16 path) mismatch vs JAX reference "
            f"(max abs err {err_bf16:.2e})")

    print("KERNEL_OK")
</pallas_src>

<mosaic_0001>
module attributes {stable_mosaic.version = 11 : i64} {
  func.func @_conv_stage_kernel(%arg0: i32, %arg1: i32, %arg2: memref<1x16x16x4xf32, #tpu.memory_space<vmem>>, %arg3: memref<36x4xf32, #tpu.memory_space<vmem>>, %arg4: memref<1x16x16x4xf32, #tpu.memory_space<vmem>>, %arg5: memref<1x2x4xf32, #tpu.memory_space<vmem>>, %arg6: memref<18x18x4xf32, #tpu.memory_space<vmem>>) attributes {dimension_semantics = [#tpu.dimension_semantics<parallel>, #tpu.dimension_semantics<arbitrary>], iteration_bounds = array<i64: 2, 1>, scalar_prefetch = 0 : i64, scratch_operands = 1 : i64, tpu.core_type = #tpu.core_type<tc>, window_params = [{transform_indices = @transform_0, window_bounds = array<i64: 1, 16, 16, 4>}, {pipeline_mode = #tpu.pipeline_mode<synchronous>, transform_indices = @transform_1, window_bounds = array<i64: 36, 4>}, {transform_indices = @transform_2, window_bounds = array<i64: 1, 16, 16, 4>}, {transform_indices = @transform_3, window_bounds = array<i64: 1, 2, 4>}]} {
    %c0_i32 = arith.constant 0 : i32
    %0 = arith.cmpi eq, %arg1, %c0_i32 : i32
    %1 = arith.extui %0 : i1 to i32
    %c0_i32_0 = arith.constant 0 : i32
    %2 = arith.cmpi ne, %1, %c0_i32_0 : i32
    scf.if %2 {
      %c0_54 = arith.constant 0 : index
      %c0_55 = arith.constant 0 : index
      %c0_56 = arith.constant 0 : index
      %c0_57 = arith.constant 0 : index
      %85 = vector.load %arg2[%c0_54, %c0_55, %c0_56, %c0_57] : memref<1x16x16x4xf32, #tpu.memory_space<vmem>>, vector<1x16x16x4xf32>
      %86 = vector.shape_cast %85 : vector<1x16x16x4xf32> to vector<16x16x4xf32>
      %cst_58 = arith.constant 0.000000e+00 : f32
      %87 = vector.broadcast %cst_58 : f32 to vector<18x18x4xf32>
      %c0_59 = arith.constant 0 : index
      %c0_60 = arith.constant 0 : index
      %c0_61 = arith.constant 0 : index
      %88 = vector.load %arg6[%c0_59, %c0_60, %c0_61] : memref<18x18x4xf32, #tpu.memory_space<vmem>>, vector<18x18x4xf32>
      tpu.vector_store %arg6[%c0_59, %c0_60, %c0_61], %87 {strides = array<i32>} : memref<18x18x4xf32, #tpu.memory_space<vmem>>, vector<18x18x4xf32>,
      %c1_62 = arith.constant 1 : index
      %c1_63 = arith.constant 1 : index
      %c0_64 = arith.constant 0 : index
      %89 = vector.load %arg6[%c1_62, %c1_63, %c0_64] : memref<18x18x4xf32, #tpu.memory_space<vmem>>, vector<16x16x4xf32>
      tpu.vector_store %arg6[%c1_62, %c1_63, %c0_64], %86 {strides = array<i32>} : memref<18x18x4xf32, #tpu.memory_space<vmem>>, vector<16x16x4xf32>,
      %cst_65 = arith.constant 0.000000e+00 : f32
      %90 = vector.broadcast %cst_65 : f32 to vector<2x4xf32>
      %c0_66 = arith.constant 0 : index
      %c0_67 = arith.constant 0 : index
      %c0_68 = arith.constant 0 : index
      %91 = vector.load %arg5[%c0_66, %c0_67, %c0_68] : memref<1x2x4xf32, #tpu.memory_space<vmem>>, vector<1x2x4xf32>
      %92 = vector.shape_cast %91 : vector<1x2x4xf32> to vector<2x4xf32>
      %93 = vector.shape_cast %90 : vector<2x4xf32> to vector<1x2x4xf32>
      tpu.vector_store %arg5[%c0_66, %c0_67, %c0_68], %93 {strides = array<i32>} : memref<1x2x4xf32, #tpu.memory_space<vmem>>, vector<1x2x4xf32>,
    } else {
    }
    %c16_i32 = arith.constant 16 : i32
    %3 = arith.muli %arg1, %c16_i32 : i32
    %4 = tpu.assume_multiple %3, 16 : i32
    %cst = arith.constant 0.000000e+00 : f32
    %5 = vector.broadcast %cst : f32 to vector<256x4xf32>
    %c0_i32_1 = arith.constant 0 : i32
    %6 = arith.addi %4, %c0_i32_1 : i32
    %7 = arith.index_cast %6 : i32 to index
    %c0 = arith.constant 0 : index
    %c0_2 = arith.constant 0 : index
    %8 = vector.load %arg6[%7, %c0, %c0_2] : memref<18x18x4xf32, #tpu.memory_space<vmem>>, vector<16x16x4xf32>
    %9 = vector.shape_cast %8 : vector<16x16x4xf32> to vector<256x4xf32>
    %c0_3 = arith.constant 0 : index
    %c0_4 = arith.constant 0 : index
    %10 = vector.load %arg3[%c0_3, %c0_4] : memref<36x4xf32, #tpu.memory_space<vmem>>, vector<4x4xf32>
    %cst_5 = arith.constant dense<0.000000e+00> : vector<256x4xf32>
    %11 = tpu.matmul %9, %10, %cst_5 {dimension_numbers = #tpu.dot_dimension_numbers<[1], [0], [0], [1], [0, 0, 1, 1], [], []>} : vector<256x4xf32>, vector<4x4xf32>, vector<256x4xf32> -> vector<256x4xf32>
    %12 = arith.addf %5, %11 : vector<256x4xf32>
    %c0_i32_6 = arith.constant 0 : i32
    %13 = arith.addi %4, %c0_i32_6 : i32
    %14 = arith.index_cast %13 : i32 to index
    %c1 = arith.constant 1 : index
    %c0_7 = arith.constant 0 : index
    %15 = vector.load %arg6[%14, %c1, %c0_7] : memref<18x18x4xf32, #tpu.memory_space<vmem>>, vector<16x16x4xf32>
    %16 = vector.shape_cast %15 : vector<16x16x4xf32> to vector<256x4xf32>
    %c4 = arith.constant 4 : index
    %c0_8 = arith.constant 0 : index
    %17 = vector.load %arg3[%c4, %c0_8] : memref<36x4xf32, #tpu.memory_space<vmem>>, vector<4x4xf32>
    %cst_9 = arith.constant dense<0.000000e+00> : vector<256x4xf32>
    %18 = tpu.matmul %16, %17, %cst_9 {dimension_numbers = #tpu.dot_dimension_numbers<[1], [0], [0], [1], [0, 0, 1, 1], [], []>} : vector<256x4xf32>, vector<4x4xf32>, vector<256x4xf32> -> vector<256x4xf32>
    %19 = arith.addf %12, %18 : vector<256x4xf32>
    %c0_i32_10 = arith.constant 0 : i32
    %20 = arith.addi %4, %c0_i32_10 : i32
    %21 = arith.index_cast %20 : i32 to index
    %c2 = arith.constant 2 : index
    %c0_11 = arith.constant 0 : index
    %22 = vector.load %arg6[%21, %c2, %c0_11] : memref<18x18x4xf32, #tpu.memory_space<vmem>>, vector<16x16x4xf32>
    %23 = vector.shape_cast %22 : vector<16x16x4xf32> to vector<256x4xf32>
    %c8 = arith.constant 8 : index
    %c0_12 = arith.constant 0 : index
    %24 = vector.load %arg3[%c8, %c0_12] : memref<36x4xf32, #tpu.memory_space<vmem>>, vector<4x4xf32>
    %cst_13 = arith.constant dense<0.000000e+00> : vector<256x4xf32>
    %25 = tpu.matmul %23, %24, %cst_13 {dimension_numbers = #tpu.dot_dimension_numbers<[1], [0], [0], [1], [0, 0, 1, 1], [], []>} : vector<256x4xf32>, vector<4x4xf32>, vector<256x4xf32> -> vector<256x4xf32>
    %26 = arith.addf %19, %25 : vector<256x4xf32>
    %c1_i32 = arith.constant 1 : i32
    %27 = arith.addi %4, %c1_i32 : i32
    %28 = arith.index_cast %27 : i32 to index
    %c0_14 = arith.constant 0 : index
    %c0_15 = arith.constant 0 : index
    %29 = vector.load %arg6[%28, %c0_14, %c0_15] : memref<18x18x4xf32, #tpu.memory_space<vmem>>, vector<16x16x4xf32>
    %30 = vector.shape_cast %29 : vector<16x16x4xf32> to vector<256x4xf32>
    %c12 = arith.constant 12 : index
    %c0_16 = arith.constant 0 : index
    %31 = vector.load %arg3[%c12, %c0_16] : memref<36x4xf32, #tpu.memory_space<vmem>>, vector<4x4xf32>
    %cst_17 = arith.constant dense<0.000000e+00> : vector<256x4xf32>
    %32 = tpu.matmul %30, %31, %cst_17 {dimension_numbers = #tpu.dot_dimension_numbers<[1], [0], [0], [1], [0, 0, 1, 1], [], []>} : vector<256x4xf32>, vector<4x4xf32>, vector<256x4xf32> -> vector<256x4xf32>
    %33 = arith.addf %26, %32 : vector<256x4xf32>
    %c1_i32_18 = arith.constant 1 : i32
    %34 = arith.addi %4, %c1_i32_18 : i32
    %35 = arith.index_cast %34 : i32 to index
    %c1_19 = arith.constant 1 : index
    %c0_20 = arith.constant 0 : index
    %36 = vector.load %arg6[%35, %c1_19, %c0_20] : memref<18x18x4xf32, #tpu.memory_space<vmem>>, vector<16x16x4xf32>
    %37 = vector.shape_cast %36 : vector<16x16x4xf32> to vector<256x4xf32>
    %c16 = arith.constant 16 : index
    %c0_21 = arith.constant 0 : index
    %38 = vector.load %arg3[%c16, %c0_21] : memref<36x4xf32, #tpu.memory_space<vmem>>, vector<4x4xf32>
    %cst_22 = arith.constant dense<0.000000e+00> : vector<256x4xf32>
    %39 = tpu.matmul %37, %38, %cst_22 {dimension_numbers = #tpu.dot_dimension_numbers<[1], [0], [0], [1], [0, 0, 1, 1], [], []>} : vector<256x4xf32>, vector<4x4xf32>, vector<256x4xf32> -> vector<256x4xf32>
    %40 = arith.addf %33, %39 : vector<256x4xf32>
    %c1_i32_23 = arith.constant 1 : i32
    %41 = arith.addi %4, %c1_i32_23 : i32
    %42 = arith.index_cast %41 : i32 to index
    %c2_24 = arith.constant 2 : index
    %c0_25 = arith.constant 0 : index
    %43 = vector.load %arg6[%42, %c2_24, %c0_25] : memref<18x18x4xf32, #tpu.memory_space<vmem>>, vector<16x16x4xf32>
    %44 = vector.shape_cast %43 : vector<16x16x4xf32> to vector<256x4xf32>
    %c20 = arith.constant 20 : index
    %c0_26 = arith.constant 0 : index
    %45 = vector.load %arg3[%c20, %c0_26] : memref<36x4xf32, #tpu.memory_space<vmem>>, vector<4x4xf32>
    %cst_27 = arith.constant dense<0.000000e+00> : vector<256x4xf32>
    %46 = tpu.matmul %44, %45, %cst_27 {dimension_numbers = #tpu.dot_dimension_numbers<[1], [0], [0], [1], [0, 0, 1, 1], [], []>} : vector<256x4xf32>, vector<4x4xf32>, vector<256x4xf32> -> vector<256x4xf32>
    %47 = arith.addf %40, %46 : vector<256x4xf32>
    %c2_i32 = arith.constant 2 : i32
    %48 = arith.addi %4, %c2_i32 : i32
    %49 = arith.index_cast %48 : i32 to index
    %c0_28 = arith.constant 0 : index
    %c0_29 = arith.constant 0 : index
    %50 = vector.load %arg6[%49, %c0_28, %c0_29] : memref<18x18x4xf32, #tpu.memory_space<vmem>>, vector<16x16x4xf32>
    %51 = vector.shape_cast %50 : vector<16x16x4xf32> to vector<256x4xf32>
    %c24 = arith.constant 24 : index
    %c0_30 = arith.constant 0 : index
    %52 = vector.load %arg3[%c24, %c0_30] : memref<36x4xf32, #tpu.memory_space<vmem>>, vector<4x4xf32>
    %cst_31 = arith.constant dense<0.000000e+00> : vector<256x4xf32>
    %53 = tpu.matmul %51, %52, %cst_31 {dimension_numbers = #tpu.dot_dimension_numbers<[1], [0], [0], [1], [0, 0, 1, 1], [], []>} : vector<256x4xf32>, vector<4x4xf32>, vector<256x4xf32> -> vector<256x4xf32>
    %54 = arith.addf %47, %53 : vector<256x4xf32>
    %c2_i32_32 = arith.constant 2 : i32
    %55 = arith.addi %4, %c2_i32_32 : i32
    %56 = arith.index_cast %55 : i32 to index
    %c1_33 = arith.constant 1 : index
    %c0_34 = arith.constant 0 : index
    %57 = vector.load %arg6[%56, %c1_33, %c0_34] : memref<18x18x4xf32, #tpu.memory_space<vmem>>, vector<16x16x4xf32>
    %58 = vector.shape_cast %57 : vector<16x16x4xf32> to vector<256x4xf32>
    %c28 = arith.constant 28 : index
    %c0_35 = arith.constant 0 : index
    %59 = vector.load %arg3[%c28, %c0_35] : memref<36x4xf32, #tpu.memory_space<vmem>>, vector<4x4xf32>
    %cst_36 = arith.constant dense<0.000000e+00> : vector<256x4xf32>
    %60 = tpu.matmul %58, %59, %cst_36 {dimension_numbers = #tpu.dot_dimension_numbers<[1], [0], [0], [1], [0, 0, 1, 1], [], []>} : vector<256x4xf32>, vector<4x4xf32>, vector<256x4xf32> -> vector<256x4xf32>
    %61 = arith.addf %54, %60 : vector<256x4xf32>
    %c2_i32_37 = arith.constant 2 : i32
    %62 = arith.addi %4, %c2_i32_37 : i32
    %63 = arith.index_cast %62 : i32 to index
    %c2_38 = arith.constant 2 : index
    %c0_39 = arith.constant 0 : index
    %64 = vector.load %arg6[%63, %c2_38, %c0_39] : memref<18x18x4xf32, #tpu.memory_space<vmem>>, vector<16x16x4xf32>
    %65 = vector.shape_cast %64 : vector<16x16x4xf32> to vector<256x4xf32>
    %c32 = arith.constant 32 : index
    %c0_40 = arith.constant 0 : index
    %66 = vector.load %arg3[%c32, %c0_40] : memref<36x4xf32, #tpu.memory_space<vmem>>, vector<4x4xf32>
    %cst_41 = arith.constant dense<0.000000e+00> : vector<256x4xf32>
    %67 = tpu.matmul %65, %66, %cst_41 {dimension_numbers = #tpu.dot_dimension_numbers<[1], [0], [0], [1], [0, 0, 1, 1], [], []>} : vector<256x4xf32>, vector<4x4xf32>, vector<256x4xf32> -> vector<256x4xf32>
    %68 = arith.addf %61, %67 : vector<256x4xf32>
    %cst_42 = arith.constant dense<0.000000e+00> : vector<4xf32>
    %69 = vector.multi_reduction <add>, %68, %cst_42 [0] : vector<256x4xf32> to vector<4xf32>
    %70 = vector.shape_cast %69 : vector<4xf32> to vector<1x4xf32>
    %71 = arith.mulf %68, %68 : vector<256x4xf32>
    %cst_43 = arith.constant dense<0.000000e+00> : vector<4xf32>
    %72 = vector.multi_reduction <add>, %71, %cst_43 [0] : vector<256x4xf32> to vector<4xf32>
    %73 = vector.shape_cast %72 : vector<4xf32> to vector<1x4xf32>
    %c0_44 = arith.constant 0 : index
    %c0_45 = arith.constant 0 : index
    %c0_46 = arith.constant 0 : index
    %74 = vector.load %arg5[%c0_44, %c0_45, %c0_46] : memref<1x2x4xf32, #tpu.memory_space<vmem>>, vector<1x2x4xf32>
    %75 = vector.shape_cast %74 : vector<1x2x4xf32> to vector<2x4xf32>
    %76 = tpu.concatenate %70, %73 in 0 : vector<1x4xf32>, vector<1x4xf32> -> vector<2x4xf32>
    %77 = arith.addf %75, %76 : vector<2x4xf32>
    %c0_47 = arith.constant 0 : index
    %c0_48 = arith.constant 0 : index
    %c0_49 = arith.constant 0 : index
    %78 = vector.load %arg5[%c0_47, %c0_48, %c0_49] : memref<1x2x4xf32, #tpu.memory_space<vmem>>, vector<1x2x4xf32>
    %79 = vector.shape_cast %78 : vector<1x2x4xf32> to vector<2x4xf32>
    %80 = vector.shape_cast %77 : vector<2x4xf32> to vector<1x2x4xf32>
    tpu.vector_store %arg5[%c0_47, %c0_48, %c0_49], %80 {strides = array<i32>} : memref<1x2x4xf32, #tpu.memory_space<vmem>>, vector<1x2x4xf32>,
    %81 = vector.shape_cast %68 : vector<256x4xf32> to vector<16x16x4xf32>
    %c0_50 = arith.constant 0 : index
    %c0_51 = arith.constant 0 : index
    %c0_52 = arith.constant 0 : index
    %c0_53 = arith.constant 0 : index
    %82 = vector.load %arg4[%c0_50, %c0_51, %c0_52, %c0_53] : memref<1x16x16x4xf32, #tpu.memory_space<vmem>>, vector<1x16x16x4xf32>
    %83 = vector.shape_cast %82 : vector<1x16x16x4xf32> to vector<16x16x4xf32>
    %84 = vector.shape_cast %81 : vector<16x16x4xf32> to vector<1x16x16x4xf32>
    tpu.vector_store %arg4[%c0_50, %c0_51, %c0_52, %c0_53], %84 {strides = array<i32>} : memref<1x16x16x4xf32, #tpu.memory_space<vmem>>, vector<1x16x16x4xf32>,
    return
  }
  func.func @transform_0(%arg0: i32, %arg1: i32) -> (i32, i32, i32, i32) {
    %c0_i32 = arith.constant 0 : i32
    %c0_i32_0 = arith.constant 0 : i32
    %c0_i32_1 = arith.constant 0 : i32
    %c0_i32_2 = arith.constant 0 : i32
    return %arg0, %c0_i32, %c0_i32_0, %c0_i32_1 : i32, i32, i32, i32
  }
  func.func @transform_1(%arg0: i32, %arg1: i32) -> (i32, i32) {
    %c0_i32 = arith.constant 0 : i32
    %c0_i32_0 = arith.constant 0 : i32
    %c0_i32_1 = arith.constant 0 : i32
    return %c0_i32, %c0_i32_0 : i32, i32
  }
  func.func @transform_2(%arg0: i32, %arg1: i32) -> (i32, i32, i32, i32) {
    %c0_i32 = arith.constant 0 : i32
    %c0_i32_0 = arith.constant 0 : i32
    %c0_i32_1 = arith.constant 0 : i32
    return %arg0, %arg1, %c0_i32, %c0_i32_0 : i32, i32, i32, i32
  }
  func.func @transform_3(%arg0: i32, %arg1: i32) -> (i32, i32, i32) {
    %c0_i32 = arith.constant 0 : i32
    %c0_i32_0 = arith.constant 0 : i32
    %c0_i32_1 = arith.constant 0 : i32
    return %arg0, %c0_i32, %c0_i32_0 : i32, i32, i32
  }
}

module attributes {stable_mosaic.version = 11 : i64} {
  func.func @_conv_stage_kernel(%arg0: i32, %arg1: i32, %arg2: memref<1x16x16x4xf32, #tpu.memory_space<vmem>>, %arg3: memref<36x4xf32, #tpu.memory_space<vmem>>, %arg4: memref<1x4xf32, #tpu.memory_space<vmem>>, %arg5: memref<1x4xf32, #tpu.memory_space<vmem>>, %arg6: memref<1x16x16x4xf32, #tpu.memory_space<vmem>>, %arg7: memref<1x2x4xf32, #tpu.memory_space<vmem>>, %arg8: memref<18x18x4xf32, #tpu.memory_space<vmem>>) attributes {dimension_semantics = [#tpu.dimension_semantics<parallel>, #tpu.dimension_semantics<arbitrary>], iteration_bounds = array<i64: 2, 1>, scalar_prefetch = 0 : i64, scratch_operands = 1 : i64, tpu.core_type = #tpu.core_type<tc>, window_params = [{transform_indices = @transform_0, window_bounds = array<i64: 1, 16, 16, 4>}, {pipeline_mode = #tpu.pipeline_mode<synchronous>, transform_indices = @transform_1, window_bounds = array<i64: 36, 4>}, {pipeline_mode = #tpu.pipeline_mode<synchronous>, transform_indices = @transform_2, window_bounds = array<i64: 1, 4>}, {pipeline_mode = #tpu.pipeline_mode<synchronous>, transform_indices = @transform_3, window_bounds = array<i64: 1, 4>}, {transform_indices = @transform_4, window_bounds = array<i64: 1, 16, 16, 4>}, {transform_indices = @transform_5, window_bounds = array<i64: 1, 2, 4>}]} {
    %c0_i32 = arith.constant 0 : i32
    %0 = arith.cmpi eq, %arg1, %c0_i32 : i32
    %1 = arith.extui %0 : i1 to i32
    %c0_i32_0 = arith.constant 0 : i32
    %2 = arith.cmpi ne, %1, %c0_i32_0 : i32
    scf.if %2 {
      %c0_54 = arith.constant 0 : index
      %c0_55 = arith.constant 0 : index
      %c0_56 = arith.constant 0 : index
      %c0_57 = arith.constant 0 : index
      %85 = vector.load %arg2[%c0_54, %c0_55, %c0_56, %c0_57] : memref<1x16x16x4xf32, #tpu.memory_space<vmem>>, vector<1x16x16x4xf32>
      %86 = vector.shape_cast %85 : vector<1x16x16x4xf32> to vector<16x16x4xf32>
      %c0_58 = arith.constant 0 : index
      %c0_59 = arith.constant 0 : index
      %87 = vector.load %arg4[%c0_58, %c0_59] : memref<1x4xf32, #tpu.memory_space<vmem>>, vector<1x4xf32>
      %88 = vector.shape_cast %87 : vector<1x4xf32> to vector<1x1x4xf32>
      %89 = vector.broadcast %88 : vector<1x1x4xf32> to vector<16x16x4xf32>
      %90 = arith.mulf %86, %89 : vector<16x16x4xf32>
      %c0_60 = arith.constant 0 : index
      %c0_61 = arith.constant 0 : index
      %91 = vector.load %arg5[%c0_60, %c0_61] : memref<1x4xf32, #tpu.memory_space<vmem>>, vector<1x4xf32>
      %92 = vector.shape_cast %91 : vector<1x4xf32> to vector<1x1x4xf32>
      %93 = vector.broadcast %92 : vector<1x1x4xf32> to vector<16x16x4xf32>
      %94 = arith.addf %90, %93 : vector<16x16x4xf32>
      %cst_62 = arith.constant 0.000000e+00 : f32
      %95 = vector.broadcast %cst_62 : f32 to vector<16x16x4xf32>
      %96 = arith.maximumf %94, %95 : vector<16x16x4xf32>
      %cst_63 = arith.constant 0.000000e+00 : f32
      %97 = vector.broadcast %cst_63 : f32 to vector<18x18x4xf32>
      %c0_64 = arith.constant 0 : index
      %c0_65 = arith.constant 0 : index
      %c0_66 = arith.constant 0 : index
      %98 = vector.load %arg8[%c0_64, %c0_65, %c0_66] : memref<18x18x4xf32, #tpu.memory_space<vmem>>, vector<18x18x4xf32>
      tpu.vector_store %arg8[%c0_64, %c0_65, %c0_66], %97 {strides = array<i32>} : memref<18x18x4xf32, #tpu.memory_space<vmem>>, vector<18x18x4xf32>,
      %c1_67 = arith.constant 1 : index
      %c1_68 = arith.constant 1 : index
      %c0_69 = arith.constant 0 : index
      %99 = vector.load %arg8[%c1_67, %c1_68, %c0_69] : memref<18x18x4xf32, #tpu.memory_space<vmem>>, vector<16x16x4xf32>
      tpu.vector_store %arg8[%c1_67, %c1_68, %c0_69], %96 {strides = array<i32>} : memref<18x18x4xf32, #tpu.memory_space<vmem>>, vector<16x16x4xf32>,
      %cst_70 = arith.constant 0.000000e+00 : f32
      %100 = vector.broadcast %cst_70 : f32 to vector<2x4xf32>
      %c0_71 = arith.constant 0 : index
      %c0_72 = arith.constant 0 : index
      %c0_73 = arith.constant 0 : index
      %101 = vector.load %arg7[%c0_71, %c0_72, %c0_73] : memref<1x2x4xf32, #tpu.memory_space<vmem>>, vector<1x2x4xf32>
      %102 = vector.shape_cast %101 : vector<1x2x4xf32> to vector<2x4xf32>
      %103 = vector.shape_cast %100 : vector<2x4xf32> to vector<1x2x4xf32>
      tpu.vector_store %arg7[%c0_71, %c0_72, %c0_73], %103 {strides = array<i32>} : memref<1x2x4xf32, #tpu.memory_space<vmem>>, vector<1x2x4xf32>,
    } else {
    }
    %c16_i32 = arith.constant 16 : i32
    %3 = arith.muli %arg1, %c16_i32 : i32
    %4 = tpu.assume_multiple %3, 16 : i32
    %cst = arith.constant 0.000000e+00 : f32
    %5 = vector.broadcast %cst : f32 to vector<256x4xf32>
    %c0_i32_1 = arith.constant 0 : i32
    %6 = arith.addi %4, %c0_i32_1 : i32
    %7 = arith.index_cast %6 : i32 to index
    %c0 = arith.constant 0 : index
    %c0_2 = arith.constant 0 : index
    %8 = vector.load %arg8[%7, %c0, %c0_2] : memref<18x18x4xf32, #tpu.memory_space<vmem>>, vector<16x16x4xf32>
    %9 = vector.shape_cast %8 : vector<16x16x4xf32> to vector<256x4xf32>
    %c0_3 = arith.constant 0 : index
    %c0_4 = arith.constant 0 : index
    %10 = vector.load %arg3[%c0_3, %c0_4] : memref<36x4xf32, #tpu.memory_space<vmem>>, vector<4x4xf32>
    %cst_5 = arith.constant dense<0.000000e+00> : vector<256x4xf32>
    %11 = tpu.matmul %9, %10, %cst_5 {dimension_numbers = #tpu.dot_dimension_numbers<[1], [0], [0], [1], [0, 0, 1, 1], [], []>} : vector<256x4xf32>, vector<4x4xf32>, vector<256x4xf32> -> vector<256x4xf32>
    %12 = arith.addf %5, %11 : vector<256x4xf32>
    %c0_i32_6 = arith.constant 0 : i32
    %13 = arith.addi %4, %c0_i32_6 : i32
    %14 = arith.index_cast %13 : i32 to index
    %c1 = arith.constant 1 : index
    %c0_7 = arith.constant 0 : index
    %15 = vector.load %arg8[%14, %c1, %c0_7] : memref<18x18x4xf32, #tpu.memory_space<vmem>>, vector<16x16x4xf32>
    %16 = vector.shape_cast %15 : vector<16x16x4xf32> to vector<256x4xf32>
    %c4 = arith.constant 4 : index
    %c0_8 = arith.constant 0 : index
    %17 = vector.load %arg3[%c4, %c0_8] : memref<36x4xf32, #tpu.memory_space<vmem>>, vector<4x4xf32>
    %cst_9 = arith.constant dense<0.000000e+00> : vector<256x4xf32>
    %18 = tpu.matmul %16, %17, %cst_9 {dimension_numbers = #tpu.dot_dimension_numbers<[1], [0], [0], [1], [0, 0, 1, 1], [], []>} : vector<256x4xf32>, vector<4x4xf32>, vector<256x4xf32> -> vector<256x4xf32>
    %19 = arith.addf %12, %18 : vector<256x4xf32>
    %c0_i32_10 = arith.constant 0 : i32
    %20 = arith.addi %4, %c0_i32_10 : i32
    %21 = arith.index_cast %20 : i32 to index
    %c2 = arith.constant 2 : index
    %c0_11 = arith.constant 0 : index
    %22 = vector.load %arg8[%21, %c2, %c0_11] : memref<18x18x4xf32, #tpu.memory_space<vmem>>, vector<16x16x4xf32>
    %23 = vector.shape_cast %22 : vector<16x16x4xf32> to vector<256x4xf32>
    %c8 = arith.constant 8 : index
    %c0_12 = arith.constant 0 : index
    %24 = vector.load %arg3[%c8, %c0_12] : memref<36x4xf32, #tpu.memory_space<vmem>>, vector<4x4xf32>
    %cst_13 = arith.constant dense<0.000000e+00> : vector<256x4xf32>
    %25 = tpu.matmul %23, %24, %cst_13 {dimension_numbers = #tpu.dot_dimension_numbers<[1], [0], [0], [1], [0, 0, 1, 1], [], []>} : vector<256x4xf32>, vector<4x4xf32>, vector<256x4xf32> -> vector<256x4xf32>
    %26 = arith.addf %19, %25 : vector<256x4xf32>
    %c1_i32 = arith.constant 1 : i32
    %27 = arith.addi %4, %c1_i32 : i32
    %28 = arith.index_cast %27 : i32 to index
    %c0_14 = arith.constant 0 : index
    %c0_15 = arith.constant 0 : index
    %29 = vector.load %arg8[%28, %c0_14, %c0_15] : memref<18x18x4xf32, #tpu.memory_space<vmem>>, vector<16x16x4xf32>
    %30 = vector.shape_cast %29 : vector<16x16x4xf32> to vector<256x4xf32>
    %c12 = arith.constant 12 : index
    %c0_16 = arith.constant 0 : index
    %31 = vector.load %arg3[%c12, %c0_16] : memref<36x4xf32, #tpu.memory_space<vmem>>, vector<4x4xf32>
    %cst_17 = arith.constant dense<0.000000e+00> : vector<256x4xf32>
    %32 = tpu.matmul %30, %31, %cst_17 {dimension_numbers = #tpu.dot_dimension_numbers<[1], [0], [0], [1], [0, 0, 1, 1], [], []>} : vector<256x4xf32>, vector<4x4xf32>, vector<256x4xf32> -> vector<256x4xf32>
    %33 = arith.addf %26, %32 : vector<256x4xf32>
    %c1_i32_18 = arith.constant 1 : i32
    %34 = arith.addi %4, %c1_i32_18 : i32
    %35 = arith.index_cast %34 : i32 to index
    %c1_19 = arith.constant 1 : index
    %c0_20 = arith.constant 0 : index
    %36 = vector.load %arg8[%35, %c1_19, %c0_20] : memref<18x18x4xf32, #tpu.memory_space<vmem>>, vector<16x16x4xf32>
    %37 = vector.shape_cast %36 : vector<16x16x4xf32> to vector<256x4xf32>
    %c16 = arith.constant 16 : index
    %c0_21 = arith.constant 0 : index
    %38 = vector.load %arg3[%c16, %c0_21] : memref<36x4xf32, #tpu.memory_space<vmem>>, vector<4x4xf32>
    %cst_22 = arith.constant dense<0.000000e+00> : vector<256x4xf32>
    %39 = tpu.matmul %37, %38, %cst_22 {dimension_numbers = #tpu.dot_dimension_numbers<[1], [0], [0], [1], [0, 0, 1, 1], [], []>} : vector<256x4xf32>, vector<4x4xf32>, vector<256x4xf32> -> vector<256x4xf32>
    %40 = arith.addf %33, %39 : vector<256x4xf32>
    %c1_i32_23 = arith.constant 1 : i32
    %41 = arith.addi %4, %c1_i32_23 : i32
    %42 = arith.index_cast %41 : i32 to index
    %c2_24 = arith.constant 2 : index
    %c0_25 = arith.constant 0 : index
    %43 = vector.load %arg8[%42, %c2_24, %c0_25] : memref<18x18x4xf32, #tpu.memory_space<vmem>>, vector<16x16x4xf32>
    %44 = vector.shape_cast %43 : vector<16x16x4xf32> to vector<256x4xf32>
    %c20 = arith.constant 20 : index
    %c0_26 = arith.constant 0 : index
    %45 = vector.load %arg3[%c20, %c0_26] : memref<36x4xf32, #tpu.memory_space<vmem>>, vector<4x4xf32>
    %cst_27 = arith.constant dense<0.000000e+00> : vector<256x4xf32>
    %46 = tpu.matmul %44, %45, %cst_27 {dimension_numbers = #tpu.dot_dimension_numbers<[1], [0], [0], [1], [0, 0, 1, 1], [], []>} : vector<256x4xf32>, vector<4x4xf32>, vector<256x4xf32> -> vector<256x4xf32>
    %47 = arith.addf %40, %46 : vector<256x4xf32>
    %c2_i32 = arith.constant 2 : i32
    %48 = arith.addi %4, %c2_i32 : i32
    %49 = arith.index_cast %48 : i32 to index
    %c0_28 = arith.constant 0 : index
    %c0_29 = arith.constant 0 : index
    %50 = vector.load %arg8[%49, %c0_28, %c0_29] : memref<18x18x4xf32, #tpu.memory_space<vmem>>, vector<16x16x4xf32>
    %51 = vector.shape_cast %50 : vector<16x16x4xf32> to vector<256x4xf32>
    %c24 = arith.constant 24 : index
    %c0_30 = arith.constant 0 : index
    %52 = vector.load %arg3[%c24, %c0_30] : memref<36x4xf32, #tpu.memory_space<vmem>>, vector<4x4xf32>
    %cst_31 = arith.constant dense<0.000000e+00> : vector<256x4xf32>
    %53 = tpu.matmul %51, %52, %cst_31 {dimension_numbers = #tpu.dot_dimension_numbers<[1], [0], [0], [1], [0, 0, 1, 1], [], []>} : vector<256x4xf32>, vector<4x4xf32>, vector<256x4xf32> -> vector<256x4xf32>
    %54 = arith.addf %47, %53 : vector<256x4xf32>
    %c2_i32_32 = arith.constant 2 : i32
    %55 = arith.addi %4, %c2_i32_32 : i32
    %56 = arith.index_cast %55 : i32 to index
    %c1_33 = arith.constant 1 : index
    %c0_34 = arith.constant 0 : index
    %57 = vector.load %arg8[%56, %c1_33, %c0_34] : memref<18x18x4xf32, #tpu.memory_space<vmem>>, vector<16x16x4xf32>
    %58 = vector.shape_cast %57 : vector<16x16x4xf32> to vector<256x4xf32>
    %c28 = arith.constant 28 : index
    %c0_35 = arith.constant 0 : index
    %59 = vector.load %arg3[%c28, %c0_35] : memref<36x4xf32, #tpu.memory_space<vmem>>, vector<4x4xf32>
    %cst_36 = arith.constant dense<0.000000e+00> : vector<256x4xf32>
    %60 = tpu.matmul %58, %59, %cst_36 {dimension_numbers = #tpu.dot_dimension_numbers<[1], [0], [0], [1], [0, 0, 1, 1], [], []>} : vector<256x4xf32>, vector<4x4xf32>, vector<256x4xf32> -> vector<256x4xf32>
    %61 = arith.addf %54, %60 : vector<256x4xf32>
    %c2_i32_37 = arith.constant 2 : i32
    %62 = arith.addi %4, %c2_i32_37 : i32
    %63 = arith.index_cast %62 : i32 to index
    %c2_38 = arith.constant 2 : index
    %c0_39 = arith.constant 0 : index
    %64 = vector.load %arg8[%63, %c2_38, %c0_39] : memref<18x18x4xf32, #tpu.memory_space<vmem>>, vector<16x16x4xf32>
    %65 = vector.shape_cast %64 : vector<16x16x4xf32> to vector<256x4xf32>
    %c32 = arith.constant 32 : index
    %c0_40 = arith.constant 0 : index
    %66 = vector.load %arg3[%c32, %c0_40] : memref<36x4xf32, #tpu.memory_space<vmem>>, vector<4x4xf32>
    %cst_41 = arith.constant dense<0.000000e+00> : vector<256x4xf32>
    %67 = tpu.matmul %65, %66, %cst_41 {dimension_numbers = #tpu.dot_dimension_numbers<[1], [0], [0], [1], [0, 0, 1, 1], [], []>} : vector<256x4xf32>, vector<4x4xf32>, vector<256x4xf32> -> vector<256x4xf32>
    %68 = arith.addf %61, %67 : vector<256x4xf32>
    %cst_42 = arith.constant dense<0.000000e+00> : vector<4xf32>
    %69 = vector.multi_reduction <add>, %68, %cst_42 [0] : vector<256x4xf32> to vector<4xf32>
    %70 = vector.shape_cast %69 : vector<4xf32> to vector<1x4xf32>
    %71 = arith.mulf %68, %68 : vector<256x4xf32>
    %cst_43 = arith.constant dense<0.000000e+00> : vector<4xf32>
    %72 = vector.multi_reduction <add>, %71, %cst_43 [0] : vector<256x4xf32> to vector<4xf32>
    %73 = vector.shape_cast %72 : vector<4xf32> to vector<1x4xf32>
    %c0_44 = arith.constant 0 : index
    %c0_45 = arith.constant 0 : index
    %c0_46 = arith.constant 0 : index
    %74 = vector.load %arg7[%c0_44, %c0_45, %c0_46] : memref<1x2x4xf32, #tpu.memory_space<vmem>>, vector<1x2x4xf32>
    %75 = vector.shape_cast %74 : vector<1x2x4xf32> to vector<2x4xf32>
    %76 = tpu.concatenate %70, %73 in 0 : vector<1x4xf32>, vector<1x4xf32> -> vector<2x4xf32>
    %77 = arith.addf %75, %76 : vector<2x4xf32>
    %c0_47 = arith.constant 0 : index
    %c0_48 = arith.constant 0 : index
    %c0_49 = arith.constant 0 : index
    %78 = vector.load %arg7[%c0_47, %c0_48, %c0_49] : memref<1x2x4xf32, #tpu.memory_space<vmem>>, vector<1x2x4xf32>
    %79 = vector.shape_cast %78 : vector<1x2x4xf32> to vector<2x4xf32>
    %80 = vector.shape_cast %77 : vector<2x4xf32> to vector<1x2x4xf32>
    tpu.vector_store %arg7[%c0_47, %c0_48, %c0_49], %80 {strides = array<i32>} : memref<1x2x4xf32, #tpu.memory_space<vmem>>, vector<1x2x4xf32>,
    %81 = vector.shape_cast %68 : vector<256x4xf32> to vector<16x16x4xf32>
    %c0_50 = arith.constant 0 : index
    %c0_51 = arith.constant 0 : index
    %c0_52 = arith.constant 0 : index
    %c0_53 = arith.constant 0 : index
    %82 = vector.load %arg6[%c0_50, %c0_51, %c0_52, %c0_53] : memref<1x16x16x4xf32, #tpu.memory_space<vmem>>, vector<1x16x16x4xf32>
    %83 = vector.shape_cast %82 : vector<1x16x16x4xf32> to vector<16x16x4xf32>
    %84 = vector.shape_cast %81 : vector<16x16x4xf32> to vector<1x16x16x4xf32>
    tpu.vector_store %arg6[%c0_50, %c0_51, %c0_52, %c0_53], %84 {strides = array<i32>} : memref<1x16x16x4xf32, #tpu.memory_space<vmem>>, vector<1x16x16x4xf32>,
    return
  }
  func.func @transform_0(%arg0: i32, %arg1: i32) -> (i32, i32, i32, i32) {
    %c0_i32 = arith.constant 0 : i32
    %c0_i32_0 = arith.constant 0 : i32
    %c0_i32_1 = arith.constant 0 : i32
    %c0_i32_2 = arith.constant 0 : i32
    return %arg0, %c0_i32, %c0_i32_0, %c0_i32_1 : i32, i32, i32, i32
  }
  func.func @transform_1(%arg0: i32, %arg1: i32) -> (i32, i32) {
    %c0_i32 = arith.constant 0 : i32
    %c0_i32_0 = arith.constant 0 : i32
    %c0_i32_1 = arith.constant 0 : i32
    return %c0_i32, %c0_i32_0 : i32, i32
  }
  func.func @transform_2(%arg0: i32, %arg1: i32) -> (i32, i32) {
    %c0_i32 = arith.constant 0 : i32
    %c0_i32_0 = arith.constant 0 : i32
    %c0_i32_1 = arith.constant 0 : i32
    return %c0_i32, %c0_i32_0 : i32, i32
  }
  func.func @transform_3(%arg0: i32, %arg1: i32) -> (i32, i32) {
    %c0_i32 = arith.constant 0 : i32
    %c0_i32_0 = arith.constant 0 : i32
    %c0_i32_1 = arith.constant 0 : i32
    return %c0_i32, %c0_i32_0 : i32, i32
  }
  func.func @transform_4(%arg0: i32, %arg1: i32) -> (i32, i32, i32, i32) {
    %c0_i32 = arith.constant 0 : i32
    %c0_i32_0 = arith.constant 0 : i32
    %c0_i32_1 = arith.constant 0 : i32
    return %arg0, %arg1, %c0_i32, %c0_i32_0 : i32, i32, i32, i32
  }
  func.func @transform_5(%arg0: i32, %arg1: i32) -> (i32, i32, i32) {
    %c0_i32 = arith.constant 0 : i32
    %c0_i32_0 = arith.constant 0 : i32
    %c0_i32_1 = arith.constant 0 : i32
    return %arg0, %c0_i32, %c0_i32_0 : i32, i32, i32
  }
}

module attributes {stable_mosaic.version = 11 : i64} {
  func.func @_bn_res_relu_kernel(%arg0: i32, %arg1: memref<16x128xf32, #tpu.memory_space<vmem>>, %arg2: memref<1x128xf32, #tpu.memory_space<vmem>>, %arg3: memref<1x128xf32, #tpu.memory_space<vmem>>, %arg4: memref<16x128xf32, #tpu.memory_space<vmem>>, %arg5: memref<16x128xf32, #tpu.memory_space<vmem>>) attributes {dimension_semantics = [#tpu.dimension_semantics<parallel>], iteration_bounds = array<i64: 1>, scalar_prefetch = 0 : i64, scratch_operands = 0 : i64, tpu.core_type = #tpu.core_type<tc>, window_params = [{transform_indices = @transform_0, window_bounds = array<i64: 16, 128>}, {pipeline_mode = #tpu.pipeline_mode<synchronous>, transform_indices = @transform_1, window_bounds = array<i64: 1, 128>}, {pipeline_mode = #tpu.pipeline_mode<synchronous>, transform_indices = @transform_2, window_bounds = array<i64: 1, 128>}, {transform_indices = @transform_3, window_bounds = array<i64: 16, 128>}, {transform_indices = @transform_4, window_bounds = array<i64: 16, 128>}]} {
    %c0 = arith.constant 0 : index
    %c0_0 = arith.constant 0 : index
    %0 = vector.load %arg1[%c0, %c0_0] : memref<16x128xf32, #tpu.memory_space<vmem>>, vector<16x128xf32>
    %c0_1 = arith.constant 0 : index
    %c0_2 = arith.constant 0 : index
    %1 = vector.load %arg2[%c0_1, %c0_2] : memref<1x128xf32, #tpu.memory_space<vmem>>, vector<1x128xf32>
    %2 = vector.broadcast %1 : vector<1x128xf32> to vector<16x128xf32>
    %3 = arith.mulf %0, %2 : vector<16x128xf32>
    %c0_3 = arith.constant 0 : index
    %c0_4 = arith.constant 0 : index
    %4 = vector.load %arg3[%c0_3, %c0_4] : memref<1x128xf32, #tpu.memory_space<vmem>>, vector<1x128xf32>
    %5 = vector.broadcast %4 : vector<1x128xf32> to vector<16x128xf32>
    %6 = arith.addf %3, %5 : vector<16x128xf32>
    %c0_5 = arith.constant 0 : index
    %c0_6 = arith.constant 0 : index
    %7 = vector.load %arg4[%c0_5, %c0_6] : memref<16x128xf32, #tpu.memory_space<vmem>>, vector<16x128xf32>
    %8 = arith.addf %6, %7 : vector<16x128xf32>
    %cst = arith.constant 0.000000e+00 : f32
    %9 = vector.broadcast %cst : f32 to vector<16x128xf32>
    %10 = arith.maximumf %8, %9 : vector<16x128xf32>
    %c0_7 = arith.constant 0 : index
    %c0_8 = arith.constant 0 : index
    %11 = vector.load %arg5[%c0_7, %c0_8] : memref<16x128xf32, #tpu.memory_space<vmem>>, vector<16x128xf32>
    tpu.vector_store %arg5[%c0_7, %c0_8], %10 {strides = array<i32>} : memref<16x128xf32, #tpu.memory_space<vmem>>, vector<16x128xf32>,
    return
  }
  func.func @transform_0(%arg0: i32) -> (i32, i32) {
    %c0_i32 = arith.constant 0 : i32
    %c0_i32_0 = arith.constant 0 : i32
    return %arg0, %c0_i32 : i32, i32
  }
  func.func @transform_1(%arg0: i32) -> (i32, i32) {
    %c0_i32 = arith.constant 0 : i32
    %c0_i32_0 = arith.constant 0 : i32
    %c0_i32_1 = arith.constant 0 : i32
    return %c0_i32, %c0_i32_0 : i32, i32
  }
  func.func @transform_2(%arg0: i32) -> (i32, i32) {
    %c0_i32 = arith.constant 0 : i32
    %c0_i32_0 = arith.constant 0 : i32
    %c0_i32_1 = arith.constant 0 : i32
    return %c0_i32, %c0_i32_0 : i32, i32
  }
  func.func @transform_3(%arg0: i32) -> (i32, i32) {
    %c0_i32 = arith.constant 0 : i32
    %c0_i32_0 = arith.constant 0 : i32
    return %arg0, %c0_i32 : i32, i32
  }
  func.func @transform_4(%arg0: i32) -> (i32, i32) {
    %c0_i32 = arith.constant 0 : i32
    %c0_i32_0 = arith.constant 0 : i32
    return %arg0, %c0_i32 : i32, i32
  }
}

</mosaic_0001>

<llo_original>
// kernel: tile.18
$region0: #{tile.18}
  #allocation0 [shape = 's32[1]{0}', space=sflag, size = 0x4, scoped, tag = 'scoped memory for tile.18']
  %s0 = inlined_call_operand.vmem [shape: f32[4], index: 0, kind: input, shape index: {}]
  %s1 = inlined_call_operand.vmem [shape: f32[32,4], index: 1, kind: output, shape index: {}]
  // Predicated region
  $region2: #{tile.18} parent=0 // pred_check
    _
  $region3: #{tile.18} parent=0 // pred_check_branch
    %3 = sbr.rel (0) target = $region5
  $region4: #{tile.18} parent=0 // pred_region
    _
  $region5: #{tile.18} parent=0 // pred_fallthru
    _
  %v4 = vld [vmem:[%s0] ss:$0 sm:$0xff]
  %5 = vst [vmem:[%s1] sm:$0xff] %v4
  %s6 = scalar_lea.vmem %s1, 8
  %7 = vst [vmem:[%s6] sm:$0xff] %v4
  %s8 = scalar_lea.vmem %s1, 16
  %9 = vst [vmem:[%s8] sm:$0xff] %v4
  %s10 = scalar_lea.vmem %s1, 24
  %11 = vst [vmem:[%s10] sm:$0xff] %v4

// kernel: tile.19
$region0: #{tile.19}
  %s0 = inlined_call_operand.vmem [shape: f32[32,4], index: 0, kind: input, shape index: {}]
  %s1 = inlined_call_operand.vmem [shape: f32[1,128], index: 1, kind: output, shape index: {}]
  $region1: #{tile.19} parent=0
    #allocation0 [shape = 'u8[4096]{0}', space=vmem, size = 0x1000, scoped, tag = 'scoped mem for output reshape']
    %v2 = vld [vmem:[%s0] sm:$0x1]
    %vm3 = vcmask 31744
    %4 = vst.msk [vmem:[#allocation0] sm:$0x1] %vm3, %v2
    %s5 = scalar_lea.vmem %s0, 31
    %v6 = vld [vmem:[%s5] sm:$0x1]
    %7 = vrot.lane.b32.xlu0 %v6, 124
    %v8 = vpop.permute.xlu0 %7
    %vm9 = vcmask 1048544
    %10 = vst.msk [vmem:[#allocation0] sm:$0x1] %vm9, %v8
    %s11 = scalar_lea.vmem %s0, 30
    %v12 = vld [vmem:[%s11] sm:$0x1]
    %13 = vrot.lane.b32.xlu0 %v12, 120
    %v14 = vpop.permute.xlu0 %13
    %vm15 = vcmask 1015744
    %16 = vst.msk [vmem:[#allocation0] sm:$0x1] %vm15, %v14
    %s17 = scalar_lea.vmem %s0, 29
    %v18 = vld [vmem:[%s17] sm:$0x1]
    %19 = vrot.lane.b32.xlu0 %v18, 116
    %v20 = vpop.permute.xlu0 %19
    %vm21 = vcmask 982944
    %22 = vst.msk [vmem:[#allocation0] sm:$0x1] %vm21, %v20
    %s23 = scalar_lea.vmem %s0, 28
    %v24 = vld [vmem:[%s23] sm:$0x1]
    %25 = vrot.lane.b32.xlu0 %v24, 112
    %v26 = vpop.permute.xlu0 %25
    %vm27 = vcmask 950144
    %28 = vst.msk [vmem:[#allocation0] sm:$0x1] %vm27, %v26
    %s29 = scalar_lea.vmem %s0, 27
    %v30 = vld [vmem:[%s29] sm:$0x1]
    %31 = vrot.lane.b32.xlu0 %v30, 108
    %v32 = vpop.permute.xlu0 %31
    %vm33 = vcmask 917344
    %34 = vst.msk [vmem:[#allocation0] sm:$0x1] %vm33, %v32
    %s35 = scalar_lea.vmem %s0, 26
    %v36 = vld [vmem:[%s35] sm:$0x1]
    %37 = vrot.lane.b32.xlu0 %v36, 104
    %v38 = vpop.permute.xlu0 %37
    %vm39 = vcmask 884544
    %40 = vst.msk [vmem:[#allocation0] sm:$0x1] %vm39, %v38
    %s41 = scalar_lea.vmem %s0, 25
    %v42 = vld [vmem:[%s41] sm:$0x1]
    %43 = vrot.lane.b32.xlu0 %v42, 100
    %v44 = vpop.permute.xlu0 %43
    %vm45 = vcmask 851744
    %46 = vst.msk [vmem:[#allocation0] sm:$0x1] %vm45, %v44
    %s47 = scalar_lea.vmem %s0, 24
    %v48 = vld [vmem:[%s47] sm:$0x1]
    %49 = vrot.lane.b32.xlu0 %v48, 96
    %v50 = vpop.permute.xlu0 %49
    %vm51 = vcmask 818944
    %52 = vst.msk [vmem:[#allocation0] sm:$0x1] %vm51, %v50
    %s53 = scalar_lea.vmem %s0, 23
    %v54 = vld [vmem:[%s53] sm:$0x1]
    %55 = vrot.lane.b32.xlu0 %v54, 92
    %v56 = vpop.permute.xlu0 %55
    %vm57 = vcmask 786144
    %58 = vst.msk [vmem:[#allocation0] sm:$0x1] %vm57, %v56
    %s59 = scalar_lea.vmem %s0, 22
    %v60 = vld [vmem:[%s59] sm:$0x1]
    %61 = vrot.lane.b32.xlu0 %v60, 88
    %v62 = vpop.permute.xlu0 %61
    %vm63 = vcmask 753344
    %64 = vst.msk [vmem:[#allocation0] sm:$0x1] %vm63, %v62
    %s65 = scalar_lea.vmem %s0, 21
    %v66 = vld [vmem:[%s65] sm:$0x1]
    %67 = vrot.lane.b32.xlu0 %v66, 84
    %v68 = vpop.permute.xlu0 %67
    %vm69 = vcmask 720544
    %70 = vst.msk [vmem:[#allocation0] sm:$0x1] %vm69, %v68
    %s71 = scalar_lea.vmem %s0, 20
    %v72 = vld [vmem:[%s71] sm:$0x1]
    %73 = vrot.lane.b32.xlu0 %v72, 80
    %v74 = vpop.permute.xlu0 %73
    %vm75 = vcmask 687744
    %76 = vst.msk [vmem:[#allocation0] sm:$0x1] %vm75, %v74
    %s77 = scalar_lea.vmem %s0, 19
    %v78 = vld [vmem:[%s77] sm:$0x1]
    %79 = vrot.lane.b32.xlu0 %v78, 76
    %v80 = vpop.permute.xlu0 %79
    %vm81 = vcmask 654944
    %82 = vst.msk [vmem:[#allocation0] sm:$0x1] %vm81, %v80
    %s83 = scalar_lea.vmem %s0, 18
    %v84 = vld [vmem:[%s83] sm:$0x1]
    %85 = vrot.lane.b32.xlu0 %v84, 72
    %v86 = vpop.permute.xlu0 %85
    %vm87 = vcmask 622144
    %88 = vst.msk [vmem:[#allocation0] sm:$0x1] %vm87, %v86
    %s89 = scalar_lea.vmem %s0, 17
    %v90 = vld [vmem:[%s89] sm:$0x1]
    %91 = vrot.lane.b32.xlu0 %v90, 68
    %v92 = vpop.permute.xlu0 %91
    %vm93 = vcmask 589344
    %94 = vst.msk [vmem:[#allocation0] sm:$0x1] %vm93, %v92
    %s95 = scalar_lea.vmem %s0, 16
    %v96 = vld [vmem:[%s95] sm:$0x1]
    %97 = vrot.lane.b32.xlu0 %v96, 64
    %v98 = vpop.permute.xlu0 %97
    %vm99 = vcmask 556544
    %100 = vst.msk [vmem:[#allocation0] sm:$0x1] %vm99, %v98
    %s101 = scalar_lea.vmem %s0, 15
    %v102 = vld [vmem:[%s101] sm:$0x1]
    %103 = vrot.lane.b32.xlu0 %v102, 60
    %v104 = vpop.permute.xlu0 %103
    %vm105 = vcmask 523744
    %106 = vst.msk [vmem:[#allocation0] sm:$0x1] %vm105, %v104
    %s107 = scalar_lea.vmem %s0, 14
    %v108 = vld [vmem:[%s107] sm:$0x1]
    %109 = vrot.lane.b32.xlu0 %v108, 56
    %v110 = vpop.permute.xlu0 %109
    %vm111 = vcmask 490944
    %112 = vst.msk [vmem:[#allocation0] sm:$0x1] %vm111, %v110
    %s113 = scalar_lea.vmem %s0, 13
    %v114 = vld [vmem:[%s113] sm:$0x1]
    %115 = vrot.lane.b32.xlu0 %v114, 52
    %v116 = vpop.permute.xlu0 %115
    %vm117 = vcmask 458144
    %118 = vst.msk [vmem:[#allocation0] sm:$0x1] %vm117, %v116
    %s119 = scalar_lea.vmem %s0, 12
    %v120 = vld [vmem:[%s119] sm:$0x1]
    %121 = vrot.lane.b32.xlu0 %v120, 48
    %v122 = vpop.permute.xlu0 %121
    %vm123 = vcmask 425344
    %124 = vst.msk [vmem:[#allocation0] sm:$0x1] %vm123, %v122
    %s125 = scalar_lea.vmem %s0, 11
    %v126 = vld [vmem:[%s125] sm:$0x1]
    %127 = vrot.lane.b32.xlu0 %v126, 44
    %v128 = vpop.permute.xlu0 %127
    %vm129 = vcmask 392544
    %130 = vst.msk [vmem:[#allocation0] sm:$0x1] %vm129, %v128
    %s131 = scalar_lea.vmem %s0, 10
    %v132 = vld [vmem:[%s131] sm:$0x1]
    %133 = vrot.lane.b32.xlu0 %v132, 40
    %v134 = vpop.permute.xlu0 %133
    %vm135 = vcmask 359744
    %136 = vst.msk [vmem:[#allocation0] sm:$0x1] %vm135, %v134
    %s137 = scalar_lea.vmem %s0, 9
    %v138 = vld [vmem:[%s137] sm:$0x1]
    %139 = vrot.lane.b32.xlu0 %v138, 36
    %v140 = vpop.permute.xlu0 %139
    %vm141 = vcmask 326944
    %142 = vst.msk [vmem:[#allocation0] sm:$0x1] %vm141, %v140
    %s143 = scalar_lea.vmem %s0, 8
    %v144 = vld [vmem:[%s143] sm:$0x1]
    %145 = vrot.lane.b32.xlu0 %v144, 32
    %v146 = vpop.permute.xlu0 %145
    %vm147 = vcmask 294144
    %148 = vst.msk [vmem:[#allocation0] sm:$0x1] %vm147, %v146
    %s149 = scalar_lea.vmem %s0, 7
    %v150 = vld [vmem:[%s149] sm:$0x1]
    %151 = vrot.lane.b32.xlu0 %v150, 28
    %v152 = vpop.permute.xlu0 %151
    %vm153 = vcmask 261344
    %154 = vst.msk [vmem:[#allocation0] sm:$0x1] %vm153, %v152
    %s155 = scalar_lea.vmem %s0, 6
    %v156 = vld [vmem:[%s155] sm:$0x1]
    %157 = vrot.lane.b32.xlu0 %v156, 24
    %v158 = vpop.permute.xlu0 %157
    %vm159 = vcmask 228544
    %160 = vst.msk [vmem:[#allocation0] sm:$0x1] %vm159, %v158
    %s161 = scalar_lea.vmem %s0, 5
    %v162 = vld [vmem:[%s161] sm:$0x1]
    %163 = vrot.lane.b32.xlu0 %v162, 20
    %v164 = vpop.permute.xlu0 %163
    %vm165 = vcmask 195744
    %166 = vst.msk [vmem:[#allocation0] sm:$0x1] %vm165, %v164
    %s167 = scalar_lea.vmem %s0, 4
    %v168 = vld [vmem:[%s167] sm:$0x1]
    %169 = vrot.lane.b32.xlu0 %v168, 16
    %v170 = vpop.permute.xlu0 %169
    %vm171 = vcmask 162944
    %172 = vst.msk [vmem:[#allocation0] sm:$0x1] %vm171, %v170
    %s173 = scalar_lea.vmem %s0, 3
    %v174 = vld [vmem:[%s173] sm:$0x1]
    %175 = vrot.lane.b32.xlu0 %v174, 12
    %v176 = vpop.permute.xlu0 %175
    %vm177 = vcmask 130144
    %178 = vst.msk [vmem:[#allocation0] sm:$0x1] %vm177, %v176
    %s179 = scalar_lea.vmem %s0, 2
    %v180 = vld [vmem:[%s179] sm:$0x1]
    %181 = vrot.lane.b32.xlu0 %v180, 8
    %v182 = vpop.permute.xlu0 %181
    %vm183 = vcmask 97344
    %184 = vst.msk [vmem:[#allocation0] sm:$0x1] %vm183, %v182
    %s185 = scalar_lea.vmem %s0, 1
    %v186 = vld [vmem:[%s185] sm:$0x1]
    %187 = vrot.lane.b32.xlu0 %v186, 4
    %v188 = vpop.permute.xlu0 %187
    %vm189 = vcmask 64544
    %190 = vst.msk [vmem:[#allocation0] sm:$0x1] %vm189, %v188
    %s192 = sshllo.u32 0, 1
    %v194 = vld [vmem:[#allocation0] sm:%s192]
    %s195 = sshllo.u32 0, 1
    %196 = vst [vmem:[%s1] sm:%s195] %v194

// kernel: basic_block_forward.5
$region0: #{basic_block_forward.5}
  #allocation0 [shape = 'u32[]', space=smem, size = 0x4, offset = 0x4, fixed_abs, tag = 'smem constant byte address 0x4 - core index']
  #allocation1 [shape = 'u32[144,128]{1,0:T(1,128)}', space=vmem, size = 0x12000, scoped, tag = 'internal scratch']
  %s0 = inlined_call_operand.vmem [shape: f32[16,128], index: 0, kind: input, shape index: {}]
  %s1 = inlined_call_operand.vmem [shape: f32[1,128], index: 1, kind: input, shape index: {}]
  %s2 = inlined_call_operand.vmem [shape: f32[1,128], index: 2, kind: input, shape index: {}]
  %s3 = inlined_call_operand.vmem [shape: f32[16,128], index: 3, kind: input, shape index: {}]
  %s4 = inlined_call_operand.vmem [shape: f32[16,128], index: 4, kind: output, shape index: {}]
  %s5 = sld [smem:[#allocation0]]
  $region26: #{basic_block_forward.5} parent=0
    _
  %s7 = ssub.s32 1, %s5
  %s8 = scalar_select 0, %s7, %s5
  // Predicated region
  $region2: #{basic_block_forward.5} parent=0 // pred_check
    _
  $region3: #{basic_block_forward.5} parent=0 // pred_check_branch
    %10 = sbr.rel (0) target = $region5
  $region4: #{basic_block_forward.5} parent=0 // pred_region
    _
  $region5: #{basic_block_forward.5} parent=0 // pred_fallthru
    _
  // Predicated region
  $region6: #{basic_block_forward.5} parent=0 // pred_check
    _
  $region7: #{basic_block_forward.5} parent=0 // pred_check_branch
    %12 = sbr.rel (0) target = $region9
  $region8: #{basic_block_forward.5} parent=0 // pred_region
    _
  $region9: #{basic_block_forward.5} parent=0 // pred_fallthru
    _
  // Predicated region
  $region10: #{basic_block_forward.5} parent=0 // pred_check
    _
  $region11: #{basic_block_forward.5} parent=0 // pred_check_branch
    %14 = sbr.rel (0) target = $region13
  $region12: #{basic_block_forward.5} parent=0 // pred_region
    _
  $region13: #{basic_block_forward.5} parent=0 // pred_fallthru
    _
  // Predicated region
  $region14: #{basic_block_forward.5} parent=0 // pred_check
    _
  $region15: #{basic_block_forward.5} parent=0 // pred_check_branch
    %16 = sbr.rel (0) target = $region17
  $region16: #{basic_block_forward.5} parent=0 // pred_region
    _
  $region17: #{basic_block_forward.5} parent=0 // pred_fallthru
    _
  %v17 = vld [vmem:[%s0] sm:$0xff]
  %v18 = vld [vmem:[%s0 + $0x8] sm:$0xff]
  %v19 = vld [vmem:[%s1] sm:$0x1]
  %v21 = vlaneseq
  %v22 = vshrl.u32 %v21, 7
  %v23 = vsub.s32 0, %v22
  %v24 = vrot.slane %v19, %v23
  %v26 = vmul.f32 %v17, %v24
  %v27 = vmul.f32 %v18, %v24
  %v28 = vld [vmem:[%s2] sm:$0x1]
  %v30 = vlaneseq
  %v31 = vshrl.u32 %v30, 7
  %v32 = vsub.s32 0, %v31
  %v33 = vrot.slane %v28, %v32
  %v35 = vadd.f32 %v26, %v33
  %v36 = vadd.f32 %v27, %v33
  %v37 = vld [vmem:[%s3] sm:$0xff]
  %v38 = vld [vmem:[%s3 + $0x8] sm:$0xff]
  %v39 = vadd.f32 %v35, %v37
  %v40 = vadd.f32 %v36, %v38
  %v41 = vmax.f32 %v39, 0.0
  %v42 = vmax.f32 %v40, 0.0
  %43 = vst [vmem:[%s4] sm:$0xff] %v41
  %44 = vst [vmem:[%s4 + $0x8] sm:$0xff] %v42
  // Predicated region
  $region18: #{basic_block_forward.5} parent=0 // pred_check
    _
  $region19: #{basic_block_forward.5} parent=0 // pred_check_branch
    %46 = sbr.rel (0) target = $region21
  $region20: #{basic_block_forward.5} parent=0 // pred_region
    _
  $region21: #{basic_block_forward.5} parent=0 // pred_fallthru
    _
  // Predicated region
  $region22: #{basic_block_forward.5} parent=0 // pred_check
    _
  $region23: #{basic_block_forward.5} parent=0 // pred_check_branch
    %48 = sbr.rel (0) target = $region25
  $region24: #{basic_block_forward.5} parent=0 // pred_region
    _
  $region25: #{basic_block_forward.5} parent=0 // pred_fallthru
    _

// kernel: basic_block_forward.4
$region0: #{basic_block_forward.4}
  #allocation0 [shape = 'u32[]', space=smem, size = 0x4, offset = 0x4, fixed_abs, tag = 'smem constant byte address 0x4 - core index']
  #allocation1 [shape = 'u32[144,128]{1,0:T(1,128)}', space=vmem, size = 0x12000, scoped, tag = 'internal scratch']
  #allocation2 [shape = 'f32[18,18,4]{2,1,0:T(8,128)}', space=vmem, size = 0x36000, scoped, tag = 'scratch operand']
  %s0 = inlined_call_operand.vmem [shape: f32[2,16,16,4], index: 0, kind: input, shape index: {}]
  %s1 = inlined_call_operand.vmem [shape: f32[36,4], index: 1, kind: input, shape index: {}]
  %s2 = inlined_call_operand.vmem [shape: f32[1,4], index: 2, kind: input, shape index: {}]
  %s3 = inlined_call_operand.vmem [shape: f32[1,4], index: 3, kind: input, shape index: {}]
  %s4 = inlined_call_operand.vmem [shape: f32[2,16,16,4], index: 4, kind: output, shape index: {0}]
  %s5 = inlined_call_operand.vmem [shape: f32[2,2,4], index: 5, kind: output, shape index: {1}]
  %6 = xla_tuple %s4, %s5
  %s7 = sld [smem:[#allocation0]]
  $region61: #{basic_block_forward.4} parent=0
    _
  %s9 = ssub.s32 1, %s7
  %s10 = scalar_select 0, %s9, %s7
  loop: start=0, step=1, limit=4
  $region2: #{basic_block_forward.4} parent=0 // loop_pre_header
    _
  $region3: #{basic_block_forward.4} parent=0 // loop_header
    %s12 = sphi 0, %s16
    %p13 = scmp.ge.s32.totalorder %s12, 4
    %s19 = sphi 0, %s31
    %s20 = sphi 0, %s27
    %s21 = sphi 0, %s19
    %s22 = sphi 0, %s20
    %s23 = sphi 0, %s21
    %s24 = sphi 0, %s22
    %s34 = sphi 0, %s36
    %s37 = sphi 0, %s34
    %s38 = sphi 0, %s37
    %s54 = sphi 0, %s38
    %s58 = sphi 0, %s58
    %s60 = sphi 0, %s58
    %s61 = sphi 0, %s60
    %s75 = sphi 0, %s61
    %s79 = sphi 0, %s79
    %s81 = sphi 0, %s79
    %s82 = sphi 0, %s81
    %s96 = sphi 0, %s82
    %s100 = sphi 0, %s100
    %s102 = sphi 0, %s100
    %s103 = sphi 0, %s102
    %s117 = sphi 0, %s103
    %s125 = sphi 0, %s127
    %s128 = sphi 0, %s125
    %s129 = sphi 0, %s128
    %s145 = sphi 0, %s129
    %s151 = sphi 0, %s153
    %s154 = sphi 0, %s151
    %s155 = sphi 0, %s154
    %s171 = sphi 0, %s155
  $region4: #{basic_block_forward.4} parent=0 // loop_header_branch
    %15 = sbr.rel (%p13) target = $region8
  $region5: #{basic_block_forward.4} parent=0 // loop_body
    %s17 = ssub.s32 %s12, 1
    %s18 = ssub.s32 %s12, 2
    %s25 = sadd.s32 1, %s20
    %p26 = scmp.ge.s32.totalorder %s25, 1
    %s27 = scalar_select %p26, 0, %s25
    %s28 = sadd.s32 1, %s19
    %s29 = scalar_select %p26, %s28, %s19
    %p30 = scmp.ge.s32.totalorder %s29, 2
    %s31 = scalar_select %p30, 0, %s29
    %s32 = ssub.s32 %s19, %s31
    %p33 = scmp.eq.s32.totalorder %s32, 0
    %s35 = sadd.s32 %s34, 1
    %s36 = scalar_select %p33, %s34, %s35
    %p39 = pneg %p33
    %p40 = scmp.eq.s32.totalorder %s12, 1
    %p41 = por %p39, %p40
    %p42 = scmp.ne.s32.totalorder %s34, %s37
    %p43 = scmp.eq.s32.totalorder %s12, 0
    %p44 = por %p42, %p43
    %p45 = scmp.ne.s32.totalorder %s34, %s37
    %p46 = scmp.eq.s32.totalorder %s17, 1
    %p47 = por %p45, %p46
    %p48 = scmp.ne.s32.totalorder %s37, %s38
    %p49 = scmp.eq.s32.totalorder %s17, 0
    %p50 = por %p48, %p49
    %p51 = scmp.ne.s32.totalorder %s37, %s38
    %p52 = scmp.eq.s32.totalorder %s18, 1
    %p53 = por %p51, %p52
    %p55 = scmp.ne.s32.totalorder %s38, %s54
    %p56 = scmp.eq.s32.totalorder %s18, 0
    %p57 = por %p55, %p56
    %s59 = sadd.s32 %s58, 1
    %p62 = scmp.eq.s32.totalorder %s12, 1
    %p63 = scmp.ne.s32.totalorder %s58, %s60
    %p64 = scmp.eq.s32.totalorder %s12, 0
    %p65 = por %p63, %p64
    %p66 = scmp.ne.s32.totalorder %s58, %s60
    %p67 = scmp.eq.s32.totalorder %s17, 1
    %p68 = por %p66, %p67
    %p69 = scmp.ne.s32.totalorder %s60, %s61
    %p70 = scmp.eq.s32.totalorder %s17, 0
    %p71 = por %p69, %p70
    %p72 = scmp.ne.s32.totalorder %s60, %s61
    %p73 = scmp.eq.s32.totalorder %s18, 1
    %p74 = por %p72, %p73
    %p76 = scmp.ne.s32.totalorder %s61, %s75
    %p77 = scmp.eq.s32.totalorder %s18, 0
    %p78 = por %p76, %p77
    %s80 = sadd.s32 %s79, 1
    %p83 = scmp.eq.s32.totalorder %s12, 1
    %p84 = scmp.ne.s32.totalorder %s79, %s81
    %p85 = scmp.eq.s32.totalorder %s12, 0
    %p86 = por %p84, %p85
    %p87 = scmp.ne.s32.totalorder %s79, %s81
    %p88 = scmp.eq.s32.totalorder %s17, 1
    %p89 = por %p87, %p88
    %p90 = scmp.ne.s32.totalorder %s81, %s82
    %p91 = scmp.eq.s32.totalorder %s17, 0
    %p92 = por %p90, %p91
    %p93 = scmp.ne.s32.totalorder %s81, %s82
    %p94 = scmp.eq.s32.totalorder %s18, 1
    %p95 = por %p93, %p94
    %p97 = scmp.ne.s32.totalorder %s82, %s96
    %p98 = scmp.eq.s32.totalorder %s18, 0
    %p99 = por %p97, %p98
    %s101 = sadd.s32 %s100, 1
    %p104 = scmp.eq.s32.totalorder %s12, 1
    %p105 = scmp.ne.s32.totalorder %s100, %s102
    %p106 = scmp.eq.s32.totalorder %s12, 0
    %p107 = por %p105, %p106
    %p108 = scmp.ne.s32.totalorder %s100, %s102
    %p109 = scmp.eq.s32.totalorder %s17, 1
    %p110 = por %p108, %p109
    %p111 = scmp.ne.s32.totalorder %s102, %s103
    %p112 = scmp.eq.s32.totalorder %s17, 0
    %p113 = por %p111, %p112
    %p114 = scmp.ne.s32.totalorder %s102, %s103
    %p115 = scmp.eq.s32.totalorder %s18, 1
    %p116 = por %p114, %p115
    %p118 = scmp.ne.s32.totalorder %s103, %s117
    %p119 = scmp.eq.s32.totalorder %s18, 0
    %p120 = por %p118, %p119
    %s121 = ssub.s32 %s19, %s31
    %s122 = ssub.s32 %s20, %s27
    %s123 = sor.u32 %s121, %s122
    %p124 = scmp.eq.s32.totalorder %s123, 0
    %s126 = sadd.s32 %s125, 1
    %s127 = scalar_select %p124, %s125, %s126
    %p130 = pneg %p124
    %p131 = scmp.eq.s32.totalorder %s12, 1
    %p132 = por %p130, %p131
    %p133 = scmp.ne.s32.totalorder %s125, %s128
    %p134 = scmp.eq.s32.totalorder %s12, 0
    %p135 = por %p133, %p134
    %p136 = scmp.ne.s32.totalorder %s125, %s128
    %p137 = scmp.eq.s32.totalorder %s17, 1
    %p138 = por %p136, %p137
    %p139 = scmp.ne.s32.totalorder %s128, %s129
    %p140 = scmp.eq.s32.totalorder %s17, 0
    %p141 = por %p139, %p140
    %p142 = scmp.ne.s32.totalorder %s128, %s129
    %p143 = scmp.eq.s32.totalorder %s18, 1
    %p144 = por %p142, %p143
    %p146 = scmp.ne.s32.totalorder %s129, %s145
    %p147 = scmp.eq.s32.totalorder %s18, 0
    %p148 = por %p146, %p147
    %s149 = ssub.s32 %s19, %s31
    %p150 = scmp.eq.s32.totalorder %s149, 0
    %s152 = sadd.s32 %s151, 1
    %s153 = scalar_select %p150, %s151, %s152
    %p156 = pneg %p150
    %p157 = scmp.eq.s32.totalorder %s12, 1
    %p158 = por %p156, %p157
    %p159 = scmp.ne.s32.totalorder %s151, %s154
    %p160 = scmp.eq.s32.totalorder %s12, 0
    %p161 = por %p159, %p160
    %p162 = scmp.ne.s32.totalorder %s151, %s154
    %p163 = scmp.eq.s32.totalorder %s17, 1
    %p164 = por %p162, %p163
    %p165 = scmp.ne.s32.totalorder %s154, %s155
    %p166 = scmp.eq.s32.totalorder %s17, 0
    %p167 = por %p165, %p166
    %p168 = scmp.ne.s32.totalorder %s154, %s155
    %p169 = scmp.eq.s32.totalorder %s18, 1
    %p170 = por %p168, %p169
    %p172 = scmp.ne.s32.totalorder %s155, %s171
    %p173 = scmp.eq.s32.totalorder %s18, 0
    %p174 = por %p172, %p173
    %p175 = scmp.le.s32.totalorder 1, %s12
    %p176 = scmp.lt.s32.totalorder %s12, 3
    %p177 = pnand %p175, %p176
    %p178 = pneg %p177
    // Predicated region
    $region9: #{basic_block_forward.4} parent=5 // pred_check
      _
    $region10: #{basic_block_forward.4} parent=5 // pred_check_branch
      %180 = sbr.rel (%p177) target = $region12
    $region11: #{basic_block_forward.4} parent=5 // pred_region
      %s181 = ssub.s32 %s12, 1
      // Predicated region
      $region13: #{basic_block_forward.4} parent=11 // pred_check
        %p182 = pneg %p71
      $region14: #{basic_block_forward.4} parent=11 // pred_check_branch
        %184 = sbr.rel (%p182) target = $region16
      $region15: #{basic_block_forward.4} parent=11 // pred_region
        _
      $region16: #{basic_block_forward.4} parent=11 // pred_fallthru
        _
      // Predicated region
      $region17: #{basic_block_forward.4} parent=11 // pred_check
        %p185 = pneg %p92
      $region18: #{basic_block_forward.4} parent=11 // pred_check_branch
        %187 = sbr.rel (%p185) target = $region20
      $region19: #{basic_block_forward.4} parent=11 // pred_region
        _
      $region20: #{basic_block_forward.4} parent=11 // pred_fallthru
        _
      // Predicated region
      $region21: #{basic_block_forward.4} parent=11 // pred_check
        %p188 = pneg %p113
      $region22: #{basic_block_forward.4} parent=11 // pred_check_branch
        %190 = sbr.rel (%p188) target = $region24
      $region23: #{basic_block_forward.4} parent=11 // pred_region
        _
      $region24: #{basic_block_forward.4} parent=11 // pred_fallthru
        _
    $region12: #{basic_block_forward.4} parent=5 // pred_fallthru
      _
    %p191 = scmp.lt.s32.totalorder %s12, 2
    // Predicated region
    $region25: #{basic_block_forward.4} parent=5 // pred_check
      %p192 = pneg %p191
    $region26: #{basic_block_forward.4} parent=5 // pred_check_branch
      %194 = sbr.rel (%p192) target = $region28
    $region27: #{basic_block_forward.4} parent=5 // pred_region
      // Predicated region
      $region29: #{basic_block_forward.4} parent=27 // pred_check
        %p195 = pneg %p44
      $region30: #{basic_block_forward.4} parent=27 // pred_check_branch
        %197 = sbr.rel (%p195) target = $region32
      $region31: #{basic_block_forward.4} parent=27 // pred_region
        %p198 = scmp.lt.s32.totalorder %s19, 1
        %s199 = scalar_select %p198, %s19, 1
        %s200 = smul.addr %s199, 32
        %s201 = smul.addr %s200, 8
        %s202 = scalar_lea.vmem %s0, %s201
      $region32: #{basic_block_forward.4} parent=27 // pred_fallthru
        _
    $region28: #{basic_block_forward.4} parent=5 // pred_fallthru
      _
    %p203 = scmp.le.s32.totalorder 1, %s12
    %p204 = scmp.lt.s32.totalorder %s12, 3
    %p205 = pnand %p203, %p204
    %p206 = pneg %p205
    // Predicated region
    $region33: #{basic_block_forward.4} parent=5 // pred_check
      _
    $region34: #{basic_block_forward.4} parent=5 // pred_check_branch
      %208 = sbr.rel (%p205) target = $region36
    $region35: #{basic_block_forward.4} parent=5 // pred_region
      %s209 = ssub.s32 %s12, 1
      %p210 = scmp.lt.s32.totalorder %s21, 1
      %s211 = scalar_select %p210, %s21, 1
      %s212 = smul.addr %s211, 32
      %s213 = smul.addr %s212, 8
      %s214 = scalar_lea.vmem %s0, %s213
      %p215 = pneg %p50
      %p216 = pneg %p47
      %p217 = pneg %p71
      %p218 = pneg %p68
      %p219 = pneg %p92
      %p220 = pneg %p89
      %p221 = pneg %p113
      %p222 = pneg %p110
      %p223 = pneg %p141
      %p224 = pneg %p138
      %s225 = smul.u32 16, %s22
      %p226 = scmp.lt.s32.totalorder %s21, 1
      %s227 = scalar_select %p226, %s21, 1
      %p228 = scmp.lt.s32.totalorder %s225, 15
      %s229 = scalar_select %p228, %s225, 15
      %s230 = smul.addr %s229, 2
      %s231 = smul.addr %s227, 32
      %s232 = sadd.s32 %s230, %s231
      %s233 = smul.addr %s232, 8
      %s234 = scalar_lea.vmem %s4, %s233
      %p235 = pneg %p167
      %p236 = pneg %p164
      %p237 = scmp.lt.s32.totalorder %s21, 1
      %s238 = scalar_select %p237, %s21, 1
      %s239 = smul.addr %s238, 2
      %s240 = scalar_lea.vmem %s5, %s239
      %p241 = scmp.lt.s32.totalorder %s21, 1
      %s242 = scalar_select %p241, %s21, 1
      %s243 = smul.addr %s242, 32
      %s244 = smul.addr %s243, 8
      %s245 = scalar_lea.vmem %s0, %s244
      %s246 = smul.u32 16, %s22
      %p247 = scmp.lt.s32.totalorder %s21, 1
      %s248 = scalar_select %p247, %s21, 1
      %p249 = scmp.lt.s32.totalorder %s246, 15
      %s250 = scalar_select %p249, %s246, 15
      %s251 = smul.addr %s250, 2
      %s252 = smul.addr %s248, 32
      %s253 = sadd.s32 %s251, %s252
      %s254 = smul.addr %s253, 8
      %s255 = scalar_lea.vmem %s4, %s254
      %s256 = smul.u32 16, %s22
      %p257 = scmp.lt.s32.totalorder %s21, 1
      %s258 = scalar_select %p257, %s21, 1
      %s259 = smul.addr %s258, 2
      %s260 = scalar_lea.vmem %s5, %s259
      %p261 = scmp.eq.s32.totalorder %s22, 0
      // Predicated region
      $region37: #{basic_block_forward.4} parent=35 // pred_check
        %p262 = pneg %p261
      $region38: #{basic_block_forward.4} parent=35 // pred_check_branch
        %264 = sbr.rel (%p262) target = $region40
      $region39: #{basic_block_forward.4} parent=35 // pred_region
        %v265 = vld [vmem:[%s245] sm:$0xff]
        %v266 = vld [vmem:[%s245 + $0x8] sm:$0xff]
        %v267 = vld [vmem:[%s245 + $0x10] sm:$0xff]
        %v268 = vld [vmem:[%s245 + $0x18] sm:$0xff]
        %v269 = vld [vmem:[%s245 + $0x20] sm:$0xff]
        %v270 = vld [vmem:[%s245 + $0x28] sm:$0xff]
        %v271 = vld [vmem:[%s245 + $0x30] sm:$0xff]
        %v272 = vld [vmem:[%s245 + $0x38] sm:$0xff]
        %v273 = vld [vmem:[%s245 + $0x40] sm:$0xff]
        %v274 = vld [vmem:[%s245 + $0x48] sm:$0xff]
        %v275 = vld [vmem:[%s245 + $0x50] sm:$0xff]
        %v276 = vld [vmem:[%s245 + $0x58] sm:$0xff]
        %v277 = vld [vmem:[%s245 + $0x60] sm:$0xff]
        %v278 = vld [vmem:[%s245 + $0x68] sm:$0xff]
        %v279 = vld [vmem:[%s245 + $0x70] sm:$0xff]
        %v280 = vld [vmem:[%s245 + $0x78] sm:$0xff]
        %v281 = vld [vmem:[%s245 + $0x80] sm:$0xff]
        %v282 = vld [vmem:[%s245 + $0x88] sm:$0xff]
        %v283 = vld [vmem:[%s245 + $0x90] sm:$0xff]
        %v284 = vld [vmem:[%s245 + $0x98] sm:$0xff]
        %v285 = vld [vmem:[%s245 + $0xa0] sm:$0xff]
        %v286 = vld [vmem:[%s245 + $0xa8] sm:$0xff]
        %v287 = vld [vmem:[%s245 + $0xb0] sm:$0xff]
        %v288 = vld [vmem:[%s245 + $0xb8] sm:$0xff]
        %v289 = vld [vmem:[%s245 + $0xc0] sm:$0xff]
        %v290 = vld [vmem:[%s245 + $0xc8] sm:$0xff]
        %v291 = vld [vmem:[%s245 + $0xd0] sm:$0xff]
        %v292 = vld [vmem:[%s245 + $0xd8] sm:$0xff]
        %v293 = vld [vmem:[%s245 + $0xe0] sm:$0xff]
        %v294 = vld [vmem:[%s245 + $0xe8] sm:$0xff]
        %v295 = vld [vmem:[%s245 + $0xf0] sm:$0xff]
        %v296 = vld [vmem:[%s245 + $0xf8] sm:$0xff]
        %v297 = vld [vmem:[%s2] sm:$0x1]
        %v299 = vlaneseq
        %v300 = vshrl.u32 %v299, 7
        %v301 = vsub.s32 0, %v300
        %v302 = vrot.slane %v297, %v301
        %v304 = vmul.f32 %v265, %v302
        %v305 = vmul.f32 %v266, %v302
        %v306 = vmul.f32 %v267, %v302
        %v307 = vmul.f32 %v268, %v302
        %v308 = vmul.f32 %v269, %v302
        %v309 = vmul.f32 %v270, %v302
        %v310 = vmul.f32 %v271, %v302
        %v311 = vmul.f32 %v272, %v302
        %v312 = vmul.f32 %v273, %v302
        %v313 = vmul.f32 %v274, %v302
        %v314 = vmul.f32 %v275, %v302
        %v315 = vmul.f32 %v276, %v302
        %v316 = vmul.f32 %v277, %v302
        %v317 = vmul.f32 %v278, %v302
        %v318 = vmul.f32 %v279, %v302
        %v319 = vmul.f32 %v280, %v302
        %v320 = vmul.f32 %v281, %v302
        %v321 = vmul.f32 %v282, %v302
        %v322 = vmul.f32 %v283, %v302
        %v323 = vmul.f32 %v284, %v302
        %v324 = vmul.f32 %v285, %v302
        %v325 = vmul.f32 %v286, %v302
        %v326 = vmul.f32 %v287, %v302
        %v327 = vmul.f32 %v288, %v302
        %v328 = vmul.f32 %v289, %v302
        %v329 = vmul.f32 %v290, %v302
        %v330 = vmul.f32 %v291, %v302
        %v331 = vmul.f32 %v292, %v302
        %v332 = vmul.f32 %v293, %v302
        %v333 = vmul.f32 %v294, %v302
        %v334 = vmul.f32 %v295, %v302
        %v335 = vmul.f32 %v296, %v302
        %v336 = vld [vmem:[%s3] sm:$0x1]
        %v338 = vlaneseq
        %v339 = vshrl.u32 %v338, 7
        %v340 = vsub.s32 0, %v339
        %v341 = vrot.slane %v336, %v340
        %v343 = vadd.f32 %v304, %v341
        %v344 = vadd.f32 %v305, %v341
        %v345 = vadd.f32 %v306, %v341
        %v346 = vadd.f32 %v307, %v341
        %v347 = vadd.f32 %v308, %v341
        %v348 = vadd.f32 %v309, %v341
        %v349 = vadd.f32 %v310, %v341
        %v350 = vadd.f32 %v311, %v341
        %v351 = vadd.f32 %v312, %v341
        %v352 = vadd.f32 %v313, %v341
        %v353 = vadd.f32 %v314, %v341
        %v354 = vadd.f32 %v315, %v341
        %v355 = vadd.f32 %v316, %v341
        %v356 = vadd.f32 %v317, %v341
        %v357 = vadd.f32 %v318, %v341
        %v358 = vadd.f32 %v319, %v341
        %v359 = vadd.f32 %v320, %v341
        %v360 = vadd.f32 %v321, %v341
        %v361 = vadd.f32 %v322, %v341
        %v362 = vadd.f32 %v323, %v341
        %v363 = vadd.f32 %v324, %v341
        %v364 = vadd.f32 %v325, %v341
        %v365 = vadd.f32 %v326, %v341
        %v366 = vadd.f32 %v327, %v341
        %v367 = vadd.f32 %v328, %v341
        %v368 = vadd.f32 %v329, %v341
        %v369 = vadd.f32 %v330, %v341
        %v370 = vadd.f32 %v331, %v341
        %v371 = vadd.f32 %v332, %v341
        %v372 = vadd.f32 %v333, %v341
        %v373 = vadd.f32 %v334, %v341
        %v374 = vadd.f32 %v335, %v341
        %v375 = vmax.f32 %v343, 0.0
        %v376 = vmax.f32 %v344, 0.0
        %v377 = vmax.f32 %v345, 0.0
        %v378 = vmax.f32 %v346, 0.0
        %v379 = vmax.f32 %v347, 0.0
        %v380 = vmax.f32 %v348, 0.0
        %v381 = vmax.f32 %v349, 0.0
        %v382 = vmax.f32 %v350, 0.0
        %v383 = vmax.f32 %v351, 0.0
        %v384 = vmax.f32 %v352, 0.0
        %v385 = vmax.f32 %v353, 0.0
        %v386 = vmax.f32 %v354, 0.0
        %v387 = vmax.f32 %v355, 0.0
        %v388 = vmax.f32 %v356, 0.0
        %v389 = vmax.f32 %v357, 0.0
        %v390 = vmax.f32 %v358, 0.0
        %v391 = vmax.f32 %v359, 0.0
        %v392 = vmax.f32 %v360, 0.0
        %v393 = vmax.f32 %v361, 0.0
        %v394 = vmax.f32 %v362, 0.0
        %v395 = vmax.f32 %v363, 0.0
        %v396 = vmax.f32 %v364, 0.0
        %v397 = vmax.f32 %v365, 0.0
        %v398 = vmax.f32 %v366, 0.0
        %v399 = vmax.f32 %v367, 0.0
        %v400 = vmax.f32 %v368, 0.0
        %v401 = vmax.f32 %v369, 0.0
        %v402 = vmax.f32 %v370, 0.0
        %v403 = vmax.f32 %v371, 0.0
        %v404 = vmax.f32 %v372, 0.0
        %v405 = vmax.f32 %v373, 0.0
        %v406 = vmax.f32 %v374, 0.0
        %vm407 = vcmask 31744
        %408 = vst.msk [vmem:[#allocation2] sm:$0xff] %vm407, 0.0
        %409 = vst.msk [vmem:[#allocation2 + $0x8] sm:$0xff] %vm407, 0.0
        %vm410 = vcmask 25600
        %411 = vst.msk [vmem:[#allocation2 + $0x10] sm:$0x3] %vm410, 0.0
        %412 = vst.msk [vmem:[#allocation2 + $0x18] sm:$0xff] %vm407, 0.0
        %413 = vst.msk [vmem:[#allocation2 + $0x20] sm:$0xff] %vm407, 0.0
        %414 = vst.msk [vmem:[#allocation2 + $0x28] sm:$0x3] %vm410, 0.0
        %415 = vst.msk [vmem:[#allocation2 + $0x30] sm:$0xff] %vm407, 0.0
        %416 = vst.msk [vmem:[#allocation2 + $0x38] sm:$0xff] %vm407, 0.0
        %417 = vst.msk [vmem:[#allocation2 + $0x40] sm:$0x3] %vm410, 0.0
        %418 = vst.msk [vmem:[#allocation2 + $0x48] sm:$0xff] %vm407, 0.0
        %419 = vst.msk [vmem:[#allocation2 + $0x50] sm:$0xff] %vm407, 0.0
        %420 = vst.msk [vmem:[#allocation2 + $0x58] sm:$0x3] %vm410, 0.0
        %421 = vst.msk [vmem:[#allocation2 + $0x60] sm:$0xff] %vm407, 0.0
        %422 = vst.msk [vmem:[#allocation2 + $0x68] sm:$0xff] %vm407, 0.0
        %423 = vst.msk [vmem:[#allocation2 + $0x70] sm:$0x3] %vm410, 0.0
        %424 = vst.msk [vmem:[#allocation2 + $0x78] sm:$0xff] %vm407, 0.0
        %425 = vst.msk [vmem:[#allocation2 + $0x80] sm:$0xff] %vm407, 0.0
        %426 = vst.msk [vmem:[#allocation2 + $0x88] sm:$0x3] %vm410, 0.0
        %427 = vst.msk [vmem:[#allocation2 + $0x90] sm:$0xff] %vm407, 0.0
        %428 = vst.msk [vmem:[#allocation2 + $0x98] sm:$0xff] %vm407, 0.0
        %429 = vst.msk [vmem:[#allocation2 + $0xa0] sm:$0x3] %vm410, 0.0
        %430 = vst.msk [vmem:[#allocation2 + $0xa8] sm:$0xff] %vm407, 0.0
        %431 = vst.msk [vmem:[#allocation2 + $0xb0] sm:$0xff] %vm407, 0.0
        %432 = vst.msk [vmem:[#allocation2 + $0xb8] sm:$0x3] %vm410, 0.0
        %433 = vst.msk [vmem:[#allocation2 + $0xc0] sm:$0xff] %vm407, 0.0
        %434 = vst.msk [vmem:[#allocation2 + $0xc8] sm:$0xff] %vm407, 0.0
        %435 = vst.msk [vmem:[#allocation2 + $0xd0] sm:$0x3] %vm410, 0.0
        %436 = vst.msk [vmem:[#allocation2 + $0xd8] sm:$0xff] %vm407, 0.0
        %437 = vst.msk [vmem:[#allocation2 + $0xe0] sm:$0xff] %vm407, 0.0
        %438 = vst.msk [vmem:[#allocation2 + $0xe8] sm:$0x3] %vm410, 0.0
        %439 = vst.msk [vmem:[#allocation2 + $0xf0] sm:$0xff] %vm407, 0.0
        %440 = vst.msk [vmem:[#allocation2 + $0xf8] sm:$0xff] %vm407, 0.0
        %441 = vst.msk [vmem:[#allocation2 + $0x100] sm:$0x3] %vm410, 0.0
        %442 = vst.msk [vmem:[#allocation2 + $0x108] sm:$0xff] %vm407, 0.0
        %443 = vst.msk [vmem:[#allocation2 + $0x110] sm:$0xff] %vm407, 0.0
        %444 = vst.msk [vmem:[#allocation2 + $0x118] sm:$0x3] %vm410, 0.0
        %445 = vst.msk [vmem:[#allocation2 + $0x120] sm:$0xff] %vm407, 0.0
        %446 = vst.msk [vmem:[#allocation2 + $0x128] sm:$0xff] %vm407, 0.0
        %447 = vst.msk [vmem:[#allocation2 + $0x130] sm:$0x3] %vm410, 0.0
        %448 = vst.msk [vmem:[#allocation2 + $0x138] sm:$0xff] %vm407, 0.0
        %449 = vst.msk [vmem:[#allocation2 + $0x140] sm:$0xff] %vm407, 0.0
        %450 = vst.msk [vmem:[#allocation2 + $0x148] sm:$0x3] %vm410, 0.0
        %451 = vst.msk [vmem:[#allocation2 + $0x150] sm:$0xff] %vm407, 0.0
        %452 = vst.msk [vmem:[#allocation2 + $0x158] sm:$0xff] %vm407, 0.0
        %453 = vst.msk [vmem:[#allocation2 + $0x160] sm:$0x3] %vm410, 0.0
        %454 = vst.msk [vmem:[#allocation2 + $0x168] sm:$0xff] %vm407, 0.0
        %455 = vst.msk [vmem:[#allocation2 + $0x170] sm:$0xff] %vm407, 0.0
        %456 = vst.msk [vmem:[#allocation2 + $0x178] sm:$0x3] %vm410, 0.0
        %457 = vst.msk [vmem:[#allocation2 + $0x180] sm:$0xff] %vm407, 0.0
        %458 = vst.msk [vmem:[#allocation2 + $0x188] sm:$0xff] %vm407, 0.0
        %459 = vst.msk [vmem:[#allocation2 + $0x190] sm:$0x3] %vm410, 0.0
        %460 = vst.msk [vmem:[#allocation2 + $0x198] sm:$0xff] %vm407, 0.0
        %461 = vst.msk [vmem:[#allocation2 + $0x1a0] sm:$0xff] %vm407, 0.0
        %462 = vst.msk [vmem:[#allocation2 + $0x1a8] sm:$0x3] %vm410, 0.0
        %s463 = scalar_lea.vmem [#allocation2], 24
        %464 = vst.msk [vmem:[%s463 + $0x1] sm:$0xff] %vm407, %v375
        %465 = vst.msk [vmem:[%s463 + $0x9] sm:$0xff] %vm407, %v376
        %466 = vst.msk [vmem:[%s463 + $0x19] sm:$0xff] %vm407, %v377
        %467 = vst.msk [vmem:[%s463 + $0x21] sm:$0xff] %vm407, %v378
        %468 = vst.msk [vmem:[%s463 + $0x31] sm:$0xff] %vm407, %v379
        %469 = vst.msk [vmem:[%s463 + $0x39] sm:$0xff] %vm407, %v380
        %470 = vst.msk [vmem:[%s463 + $0x49] sm:$0xff] %vm407, %v381
        %471 = vst.msk [vmem:[%s463 + $0x51] sm:$0xff] %vm407, %v382
        %472 = vst.msk [vmem:[%s463 + $0x61] sm:$0xff] %vm407, %v383
        %473 = vst.msk [vmem:[%s463 + $0x69] sm:$0xff] %vm407, %v384
        %474 = vst.msk [vmem:[%s463 + $0x79] sm:$0xff] %vm407, %v385
        %475 = vst.msk [vmem:[%s463 + $0x81] sm:$0xff] %vm407, %v386
        %476 = vst.msk [vmem:[%s463 + $0x91] sm:$0xff] %vm407, %v387
        %477 = vst.msk [vmem:[%s463 + $0x99] sm:$0xff] %vm407, %v388
        %478 = vst.msk [vmem:[%s463 + $0xa9] sm:$0xff] %vm407, %v389
        %479 = vst.msk [vmem:[%s463 + $0xb1] sm:$0xff] %vm407, %v390
        %480 = vst.msk [vmem:[%s463 + $0xc1] sm:$0xff] %vm407, %v391
        %481 = vst.msk [vmem:[%s463 + $0xc9] sm:$0xff] %vm407, %v392
        %482 = vst.msk [vmem:[%s463 + $0xd9] sm:$0xff] %vm407, %v393
        %483 = vst.msk [vmem:[%s463 + $0xe1] sm:$0xff] %vm407, %v394
        %484 = vst.msk [vmem:[%s463 + $0xf1] sm:$0xff] %vm407, %v395
        %485 = vst.msk [vmem:[%s463 + $0xf9] sm:$0xff] %vm407, %v396
        %486 = vst.msk [vmem:[%s463 + $0x109] sm:$0xff] %vm407, %v397
        %487 = vst.msk [vmem:[%s463 + $0x111] sm:$0xff] %vm407, %v398
        %488 = vst.msk [vmem:[%s463 + $0x121] sm:$0xff] %vm407, %v399
        %489 = vst.msk [vmem:[%s463 + $0x129] sm:$0xff] %vm407, %v400
        %490 = vst.msk [vmem:[%s463 + $0x139] sm:$0xff] %vm407, %v401
        %491 = vst.msk [vmem:[%s463 + $0x141] sm:$0xff] %vm407, %v402
        %492 = vst.msk [vmem:[%s463 + $0x151] sm:$0xff] %vm407, %v403
        %493 = vst.msk [vmem:[%s463 + $0x159] sm:$0xff] %vm407, %v404
        %494 = vst.msk [vmem:[%s463 + $0x169] sm:$0xff] %vm407, %v405
        %495 = vst.msk [vmem:[%s463 + $0x171] sm:$0xff] %vm407, %v406
        %496 = vst.msk [vmem:[%s260] sm:$0x3] %vm410, 0.0
      $region40: #{basic_block_forward.4} parent=35 // pred_fallthru
        _
      %s497 = smul.u32 %s22, 16
      %s498 = smul.u32 %s497, 24
      %s499 = scalar_lea.vmem [#allocation2], %s498
      %v500 = vld [vmem:[%s499] sm:$0xff]
      %v501 = vld [vmem:[%s499 + $0x8] sm:$0xff]
      %v502 = vld [vmem:[%s499 + $0x18] sm:$0xff]
      %v503 = vld [vmem:[%s499 + $0x20] sm:$0xff]
      %v504 = vld [vmem:[%s499 + $0x30] sm:$0xff]
      %v505 = vld [vmem:[%s499 + $0x38] sm:$0xff]
      %v506 = vld [vmem:[%s499 + $0x48] sm:$0xff]
      %v507 = vld [vmem:[%s499 + $0x50] sm:$0xff]
      %v508 = vld [vmem:[%s499 + $0x60] sm:$0xff]
      %v509 = vld [vmem:[%s499 + $0x68] sm:$0xff]
      %v510 = vld [vmem:[%s499 + $0x78] sm:$0xff]
      %v511 = vld [vmem:[%s499 + $0x80] sm:$0xff]
      %v512 = vld [vmem:[%s499 + $0x90] sm:$0xff]
      %v513 = vld [vmem:[%s499 + $0x98] sm:$0xff]
      %v514 = vld [vmem:[%s499 + $0xa8] sm:$0xff]
      %v515 = vld [vmem:[%s499 + $0xb0] sm:$0xff]
      %v516 = vld [vmem:[%s499 + $0xc0] sm:$0xff]
      %v517 = vld [vmem:[%s499 + $0xc8] sm:$0xff]
      %v518 = vld [vmem:[%s499 + $0xd8] sm:$0xff]
      %v519 = vld [vmem:[%s499 + $0xe0] sm:$0xff]
      %v520 = vld [vmem:[%s499 + $0xf0] sm:$0xff]
      %v521 = vld [vmem:[%s499 + $0xf8] sm:$0xff]
      %v522 = vld [vmem:[%s499 + $0x108] sm:$0xff]
      %v523 = vld [vmem:[%s499 + $0x110] sm:$0xff]
      %v524 = vld [vmem:[%s499 + $0x120] sm:$0xff]
      %v525 = vld [vmem:[%s499 + $0x128] sm:$0xff]
      %v526 = vld [vmem:[%s499 + $0x138] sm:$0xff]
      %v527 = vld [vmem:[%s499 + $0x140] sm:$0xff]
      %v528 = vld [vmem:[%s499 + $0x150] sm:$0xff]
      %v529 = vld [vmem:[%s499 + $0x158] sm:$0xff]
      %v530 = vld [vmem:[%s499 + $0x168] sm:$0xff]
      %v531 = vld [vmem:[%s499 + $0x170] sm:$0xff]
      %v532 = vld [vmem:[%s1] sm:$0xf]
      %v533 = vld [vmem:[%s499 + $0x1] sm:$0xff]
      %v534 = vld [vmem:[%s499 + $0x9] sm:$0xff]
      %v535 = vld [vmem:[%s499 + $0x19] sm:$0xff]
      %v536 = vld [vmem:[%s499 + $0x21] sm:$0xff]
      %v537 = vld [vmem:[%s499 + $0x31] sm:$0xff]
      %v538 = vld [vmem:[%s499 + $0x39] sm:$0xff]
      %v539 = vld [vmem:[%s499 + $0x49] sm:$0xff]
      %v540 = vld [vmem:[%s499 + $0x51] sm:$0xff]
      %v541 = vld [vmem:[%s499 + $0x61] sm:$0xff]
      %v542 = vld [vmem:[%s499 + $0x69] sm:$0xff]
      %v543 = vld [vmem:[%s499 + $0x79] sm:$0xff]
      %v544 = vld [vmem:[%s499 + $0x81] sm:$0xff]
      %v545 = vld [vmem:[%s499 + $0x91] sm:$0xff]
      %v546 = vld [vmem:[%s499 + $0x99] sm:$0xff]
      %v547 = vld [vmem:[%s499 + $0xa9] sm:$0xff]
      %v548 = vld [vmem:[%s499 + $0xb1] sm:$0xff]
      %v549 = vld [vmem:[%s499 + $0xc1] sm:$0xff]
      %v550 = vld [vmem:[%s499 + $0xc9] sm:$0xff]
      %v551 = vld [vmem:[%s499 + $0xd9] sm:$0xff]
      %v552 = vld [vmem:[%s499 + $0xe1] sm:$0xff]
      %v553 = vld [vmem:[%s499 + $0xf1] sm:$0xff]
      %v554 = vld [vmem:[%s499 + $0xf9] sm:$0xff]
      %v555 = vld [vmem:[%s499 + $0x109] sm:$0xff]
      %v556 = vld [vmem:[%s499 + $0x111] sm:$0xff]
      %v557 = vld [vmem:[%s499 + $0x121] sm:$0xff]
      %v558 = vld [vmem:[%s499 + $0x129] sm:$0xff]
      %v559 = vld [vmem:[%s499 + $0x139] sm:$0xff]
      %v560 = vld [vmem:[%s499 + $0x141] sm:$0xff]
      %v561 = vld [vmem:[%s499 + $0x151] sm:$0xff]
      %v562 = vld [vmem:[%s499 + $0x159] sm:$0xff]
      %v563 = vld [vmem:[%s499 + $0x169] sm:$0xff]
      %v564 = vld [vmem:[%s499 + $0x171] sm:$0xff]
      %v565 = vld [vmem:[%s1 + $0x4] sm:$0xf]
      %vm566 = vcmask 31744
      %v568 = vsel %vm566, %v533, 0
      %v571 = vsel %vm566, %v534, 0
      %v574 = vsel %vm566, %v535, 0
      %v577 = vsel %vm566, %v536, 0
      %v580 = vsel %vm566, %v537, 0
      %v583 = vsel %vm566, %v538, 0
      %v586 = vsel %vm566, %v539, 0
      %v589 = vsel %vm566, %v540, 0
      %v592 = vsel %vm566, %v541, 0
      %v595 = vsel %vm566, %v542, 0
      %v598 = vsel %vm566, %v543, 0
      %v601 = vsel %vm566, %v544, 0
      %v604 = vsel %vm566, %v545, 0
      %v607 = vsel %vm566, %v546, 0
      %v610 = vsel %vm566, %v547, 0
      %v613 = vsel %vm566, %v548, 0
      %v616 = vsel %vm566, %v549, 0
      %v619 = vsel %vm566, %v550, 0
      %v622 = vsel %vm566, %v551, 0
      %v625 = vsel %vm566, %v552, 0
      %v628 = vsel %vm566, %v553, 0
      %v631 = vsel %vm566, %v554, 0
      %v634 = vsel %vm566, %v555, 0
      %v637 = vsel %vm566, %v556, 0
      %v640 = vsel %vm566, %v557, 0
      %v643 = vsel %vm566, %v558, 0
      %v646 = vsel %vm566, %v559, 0
      %v649 = vsel %vm566, %v560, 0
      %v652 = vsel %vm566, %v561, 0
      %v655 = vsel %vm566, %v562, 0
      %v658 = vsel %vm566, %v563, 0
      %v661 = vsel %vm566, %v564, 0
      %vm663 = vcmask 1043456
      %v665 = vsel %vm663, %v565, 0
      %667 = vmatprep.subr.mxu0 0.0
      %668 = vmatpush1.msra.mxu0 %v665
      %669 = vmatprep.subr.mxu0 0.0
      %670 = vmatpush1.msra.mxu0 0.0
      %671 = vmatprep.subr.mxu0 0.0
      %672 = vmatpush1.msra.mxu0 0.0
      %673 = vmatprep.subr.mxu0 0.0
      %674 = vmatpush1.msra.mxu0 0.0
      %675 = vmatprep.subr.mxu0 0.0
      %676 = vmatpush1.msra.mxu0 0.0
      %677 = vmatprep.subr.mxu0 0.0
      %678 = vmatpush1.msra.mxu0 0.0
      %679 = vmatprep.subr.mxu0 0.0
      %680 = vmatpush1.msra.mxu0 0.0
      %681 = vmatprep.subr.mxu0 0.0
      %682 = vmatpush1.msra.mxu0 0.0
      %683 = vmatprep.subr.mxu0 0.0
      %684 = vmatpush1.msra.mxu0 0.0
      %685 = vmatprep.subr.mxu0 0.0
      %686 = vmatpush1.msra.mxu0 0.0
      %687 = vmatprep.subr.mxu0 0.0
      %688 = vmatpush1.msra.mxu0 0.0
      %689 = vmatprep.subr.mxu0 0.0
      %690 = vmatpush1.msra.mxu0 0.0
      %691 = vmatprep.subr.mxu0 0.0
      %692 = vmatpush1.msra.mxu0 0.0
      %693 = vmatprep.subr.mxu0 0.0
      %694 = vmatpush1.msra.mxu0 0.0
      %695 = vmatprep.subr.mxu0 0.0
      %696 = vmatpush1.msra.mxu0 0.0
      %697 = vmatprep.subr.mxu0 0.0
      %698 = vmatpush1.msra.mxu0 0.0
      %699 = vmatprep.subr.mxu0 0.0
      %700 = vmatpush1.msra.mxu0 0.0
      %701 = vmatprep.subr.mxu0 0.0
      %702 = vmatpush1.msra.mxu0 0.0
      %703 = vmatprep.subr.mxu0 0.0
      %704 = vmatpush1.msra.mxu0 0.0
      %705 = vmatprep.subr.mxu0 0.0
      %706 = vmatpush1.msra.mxu0 0.0
      %707 = vmatprep.subr.mxu0 0.0
      %708 = vmatpush1.msra.mxu0 0.0
      %709 = vmatprep.subr.mxu0 0.0
      %710 = vmatpush1.msra.mxu0 0.0
      %711 = vmatprep.subr.mxu0 0.0
      %712 = vmatpush1.msra.mxu0 0.0
      %713 = vmatprep.subr.mxu0 0.0
      %714 = vmatpush1.msra.mxu0 0.0
      %715 = vmatprep.subr.mxu0 0.0
      %716 = vmatpush1.msra.mxu0 0.0
      %717 = vmatprep.subr.mxu0 0.0
      %718 = vmatpush1.msra.mxu0 0.0
      %719 = vmatprep.subr.mxu0 0.0
      %720 = vmatpush1.msra.mxu0 0.0
      %721 = vmatprep.subr.mxu0 0.0
      %722 = vmatpush1.msra.mxu0 0.0
      %723 = vmatprep.subr.mxu0 0.0
      %724 = vmatpush1.msra.mxu0 0.0
      %725 = vmatprep.subr.mxu0 0.0
      %726 = vmatpush1.msra.mxu0 0.0
      %727 = vmatprep.subr.mxu0 0.0
      %728 = vmatpush1.msra.mxu0 0.0
      %729 = vmatprep.subr.mxu0 0.0
      %730 = vmatpush1.msra.mxu0 0.0
      %731 = vmatprep.mubr.f32.mxu0 0.0
      %732 = vmatmul.mubr.f32.gmra.mrb[0].mxu0 %v568
      %v733 = vpop.f32.mrb[0].mxu0
      %v734 = vadd.f32 0.0, %v733
      %v735 = vpop.f32.mrb[0].mxu0
      %736 = vmatprep.mubr.f32.mxu0 0.0
      %737 = vmatmul.mubr.f32.gmra.mrb[0].mxu0 %v571
      %v738 = vpop.f32.mrb[0].mxu0
      %v739 = vadd.f32 0.0, %v738
      %v740 = vpop.f32.mrb[0].mxu0
      %741 = vmatprep.mubr.f32.mxu0 0.0
      %742 = vmatmul.mubr.f32.gmra.mrb[0].mxu0 %v574
      %v743 = vpop.f32.mrb[0].mxu0
      %v744 = vadd.f32 0.0, %v743
      %v745 = vpop.f32.mrb[0].mxu0
      %746 = vmatprep.mubr.f32.mxu0 0.0
      %747 = vmatmul.mubr.f32.gmra.mrb[0].mxu0 %v577
      %v748 = vpop.f32.mrb[0].mxu0
      %v749 = vadd.f32 0.0, %v748
      %v750 = vpop.f32.mrb[0].mxu0
      %751 = vmatprep.mubr.f32.mxu0 0.0
      %752 = vmatmul.mubr.f32.gmra.mrb[0].mxu0 %v580
      %v753 = vpop.f32.mrb[0].mxu0
      %v754 = vadd.f32 0.0, %v753
      %v755 = vpop.f32.mrb[0].mxu0
      %756 = vmatprep.mubr.f32.mxu0 0.0
      %757 = vmatmul.mubr.f32.gmra.mrb[0].mxu0 %v583
      %v758 = vpop.f32.mrb[0].mxu0
      %v759 = vadd.f32 0.0, %v758
      %v760 = vpop.f32.mrb[0].mxu0
      %761 = vmatprep.mubr.f32.mxu0 0.0
      %762 = vmatmul.mubr.f32.gmra.mrb[0].mxu0 %v586
      %v763 = vpop.f32.mrb[0].mxu0
      %v764 = vadd.f32 0.0, %v763
      %v765 = vpop.f32.mrb[0].mxu0
      %766 = vmatprep.mubr.f32.mxu0 0.0
      %767 = vmatmul.mubr.f32.gmra.mrb[0].mxu0 %v589
      %v768 = vpop.f32.mrb[0].mxu0
      %v769 = vadd.f32 0.0, %v768
      %v770 = vpop.f32.mrb[0].mxu0
      %771 = vmatprep.mubr.f32.mxu0 0.0
      %772 = vmatmul.mubr.f32.gmra.mrb[0].mxu0 %v592
      %v773 = vpop.f32.mrb[0].mxu0
      %v774 = vadd.f32 0.0, %v773
      %v775 = vpop.f32.mrb[0].mxu0
      %776 = vmatprep.mubr.f32.mxu0 0.0
      %777 = vmatmul.mubr.f32.gmra.mrb[0].mxu0 %v595
      %v778 = vpop.f32.mrb[0].mxu0
      %v779 = vadd.f32 0.0, %v778
      %v780 = vpop.f32.mrb[0].mxu0
      %781 = vmatprep.mubr.f32.mxu0 0.0
      %782 = vmatmul.mubr.f32.gmra.mrb[0].mxu0 %v598
      %v783 = vpop.f32.mrb[0].mxu0
      %v784 = vadd.f32 0.0, %v783
      %v785 = vpop.f32.mrb[0].mxu0
      %786 = vmatprep.mubr.f32.mxu0 0.0
      %787 = vmatmul.mubr.f32.gmra.mrb[0].mxu0 %v601
      %v788 = vpop.f32.mrb[0].mxu0
      %v789 = vadd.f32 0.0, %v788
      %v790 = vpop.f32.mrb[0].mxu0
      %791 = vmatprep.mubr.f32.mxu0 0.0
      %792 = vmatmul.mubr.f32.gmra.mrb[0].mxu0 %v604
      %v793 = vpop.f32.mrb[0].mxu0
      %v794 = vadd.f32 0.0, %v793
      %v795 = vpop.f32.mrb[0].mxu0
      %796 = vmatprep.mubr.f32.mxu0 0.0
      %797 = vmatmul.mubr.f32.gmra.mrb[0].mxu0 %v607
      %v798 = vpop.f32.mrb[0].mxu0
      %v799 = vadd.f32 0.0, %v798
      %v800 = vpop.f32.mrb[0].mxu0
      %801 = vmatprep.mubr.f32.mxu0 0.0
      %802 = vmatmul.mubr.f32.gmra.mrb[0].mxu0 %v610
      %v803 = vpop.f32.mrb[0].mxu0
      %v804 = vadd.f32 0.0, %v803
      %v805 = vpop.f32.mrb[0].mxu0
      %806 = vmatprep.mubr.f32.mxu0 0.0
      %807 = vmatmul.mubr.f32.gmra.mrb[0].mxu0 %v613
      %v808 = vpop.f32.mrb[0].mxu0
      %v809 = vadd.f32 0.0, %v808
      %v810 = vpop.f32.mrb[0].mxu0
      %811 = vmatprep.mubr.f32.mxu0 0.0
      %812 = vmatmul.mubr.f32.gmra.mrb[0].mxu0 %v616
      %v813 = vpop.f32.mrb[0].mxu0
      %v814 = vadd.f32 0.0, %v813
      %v815 = vpop.f32.mrb[0].mxu0
      %816 = vmatprep.mubr.f32.mxu0 0.0
      %817 = vmatmul.mubr.f32.gmra.mrb[0].mxu0 %v619
      %v818 = vpop.f32.mrb[0].mxu0
      %v819 = vadd.f32 0.0, %v818
      %v820 = vpop.f32.mrb[0].mxu0
      %821 = vmatprep.mubr.f32.mxu0 0.0
      %822 = vmatmul.mubr.f32.gmra.mrb[0].mxu0 %v622
      %v823 = vpop.f32.mrb[0].mxu0
      %v824 = vadd.f32 0.0, %v823
      %v825 = vpop.f32.mrb[0].mxu0
      %826 = vmatprep.mubr.f32.mxu0 0.0
      %827 = vmatmul.mubr.f32.gmra.mrb[0].mxu0 %v625
      %v828 = vpop.f32.mrb[0].mxu0
      %v829 = vadd.f32 0.0, %v828
      %v830 = vpop.f32.mrb[0].mxu0
      %831 = vmatprep.mubr.f32.mxu0 0.0
      %832 = vmatmul.mubr.f32.gmra.mrb[0].mxu0 %v628
      %v833 = vpop.f32.mrb[0].mxu0
      %v834 = vadd.f32 0.0, %v833
      %v835 = vpop.f32.mrb[0].mxu0
      %836 = vmatprep.mubr.f32.mxu0 0.0
      %837 = vmatmul.mubr.f32.gmra.mrb[0].mxu0 %v631
      %v838 = vpop.f32.mrb[0].mxu0
      %v839 = vadd.f32 0.0, %v838
      %v840 = vpop.f32.mrb[0].mxu0
      %841 = vmatprep.mubr.f32.mxu0 0.0
      %842 = vmatmul.mubr.f32.gmra.mrb[0].mxu0 %v634
      %v843 = vpop.f32.mrb[0].mxu0
      %v844 = vadd.f32 0.0, %v843
      %v845 = vpop.f32.mrb[0].mxu0
      %846 = vmatprep.mubr.f32.mxu0 0.0
      %847 = vmatmul.mubr.f32.gmra.mrb[0].mxu0 %v637
      %v848 = vpop.f32.mrb[0].mxu0
      %v849 = vadd.f32 0.0, %v848
      %v850 = vpop.f32.mrb[0].mxu0
      %851 = vmatprep.mubr.f32.mxu0 0.0
      %852 = vmatmul.mubr.f32.gmra.mrb[0].mxu0 %v640
      %v853 = vpop.f32.mrb[0].mxu0
      %v854 = vadd.f32 0.0, %v853
      %v855 = vpop.f32.mrb[0].mxu0
      %856 = vmatprep.mubr.f32.mxu0 0.0
      %857 = vmatmul.mubr.f32.gmra.mrb[0].mxu0 %v643
      %v858 = vpop.f32.mrb[0].mxu0
      %v859 = vadd.f32 0.0, %v858
      %v860 = vpop.f32.mrb[0].mxu0
      %861 = vmatprep.mubr.f32.mxu0 0.0
      %862 = vmatmul.mubr.f32.gmra.mrb[0].mxu0 %v646
      %v863 = vpop.f32.mrb[0].mxu0
      %v864 = vadd.f32 0.0, %v863
      %v865 = vpop.f32.mrb[0].mxu0
      %866 = vmatprep.mubr.f32.mxu0 0.0
      %867 = vmatmul.mubr.f32.gmra.mrb[0].mxu0 %v649
      %v868 = vpop.f32.mrb[0].mxu0
      %v869 = vadd.f32 0.0, %v868
      %v870 = vpop.f32.mrb[0].mxu0
      %871 = vmatprep.mubr.f32.mxu0 0.0
      %872 = vmatmul.mubr.f32.gmra.mrb[0].mxu0 %v652
      %v873 = vpop.f32.mrb[0].mxu0
      %v874 = vadd.f32 0.0, %v873
      %v875 = vpop.f32.mrb[0].mxu0
      %876 = vmatprep.mubr.f32.mxu0 0.0
      %877 = vmatmul.mubr.f32.gmra.mrb[0].mxu0 %v655
      %v878 = vpop.f32.mrb[0].mxu0
      %v879 = vadd.f32 0.0, %v878
      %v880 = vpop.f32.mrb[0].mxu0
      %881 = vmatprep.mubr.f32.mxu0 0.0
      %882 = vmatmul.mubr.f32.gmra.mrb[0].mxu0 %v658
      %v883 = vpop.f32.mrb[0].mxu0
      %v884 = vadd.f32 0.0, %v883
      %v885 = vpop.f32.mrb[0].mxu0
      %886 = vmatprep.mubr.f32.mxu0 0.0
      %887 = vmatmul.mubr.f32.gmra.mrb[0].mxu0 %v661
      %v888 = vpop.f32.mrb[0].mxu0
      %v889 = vadd.f32 0.0, %v888
      %v890 = vpop.f32.mrb[0].mxu0
      %891 = vdwg.mxu0
      %v893 = vsel %vm566, %v500, 0
      %v896 = vsel %vm566, %v501, 0
      %v899 = vsel %vm566, %v502, 0
      %v902 = vsel %vm566, %v503, 0
      %v905 = vsel %vm566, %v504, 0
      %v908 = vsel %vm566, %v505, 0
      %v911 = vsel %vm566, %v506, 0
      %v914 = vsel %vm566, %v507, 0
      %v917 = vsel %vm566, %v508, 0
      %v920 = vsel %vm566, %v509, 0
      %v923 = vsel %vm566, %v510, 0
      %v926 = vsel %vm566, %v511, 0
      %v929 = vsel %vm566, %v512, 0
      %v932 = vsel %vm566, %v513, 0
      %v935 = vsel %vm566, %v514, 0
      %v938 = vsel %vm566, %v515, 0
      %v941 = vsel %vm566, %v516, 0
      %v944 = vsel %vm566, %v517, 0
      %v947 = vsel %vm566, %v518, 0
      %v950 = vsel %vm566, %v519, 0
      %v953 = vsel %vm566, %v520, 0
      %v956 = vsel %vm566, %v521, 0
      %v959 = vsel %vm566, %v522, 0
      %v962 = vsel %vm566, %v523, 0
      %v965 = vsel %vm566, %v524, 0
      %v968 = vsel %vm566, %v525, 0
      %v971 = vsel %vm566, %v526, 0
      %v974 = vsel %vm566, %v527, 0
      %v977 = vsel %vm566, %v528, 0
      %v980 = vsel %vm566, %v529, 0
      %v983 = vsel %vm566, %v530, 0
      %v986 = vsel %vm566, %v531, 0
      %v989 = vsel %vm663, %v532, 0
      %991 = vmatprep.subr.mxu0 0.0
      %992 = vmatpush1.msra.mxu0 %v989
      %993 = vmatprep.subr.mxu0 0.0
      %994 = vmatpush1.msra.mxu0 0.0
      %995 = vmatprep.subr.mxu0 0.0
      %996 = vmatpush1.msra.mxu0 0.0
      %997 = vmatprep.subr.mxu0 0.0
      %998 = vmatpush1.msra.mxu0 0.0
      %999 = vmatprep.subr.mxu0 0.0
      %1000 = vmatpush1.msra.mxu0 0.0
      %1001 = vmatprep.subr.mxu0 0.0
      %1002 = vmatpush1.msra.mxu0 0.0
      %1003 = vmatprep.subr.mxu0 0.0
      %1004 = vmatpush1.msra.mxu0 0.0
      %1005 = vmatprep.subr.mxu0 0.0
      %1006 = vmatpush1.msra.mxu0 0.0
      %1007 = vmatprep.subr.mxu0 0.0
      %1008 = vmatpush1.msra.mxu0 0.0
      %1009 = vmatprep.subr.mxu0 0.0
      %1010 = vmatpush1.msra.mxu0 0.0
      %1011 = vmatprep.subr.mxu0 0.0
      %1012 = vmatpush1.msra.mxu0 0.0
      %1013 = vmatprep.subr.mxu0 0.0
      %1014 = vmatpush1.msra.mxu0 0.0
      %1015 = vmatprep.subr.mxu0 0.0
      %1016 = vmatpush1.msra.mxu0 0.0
      %1017 = vmatprep.subr.mxu0 0.0
      %1018 = vmatpush1.msra.mxu0 0.0
      %1019 = vmatprep.subr.mxu0 0.0
      %1020 = vmatpush1.msra.mxu0 0.0
      %1021 = vmatprep.subr.mxu0 0.0
      %1022 = vmatpush1.msra.mxu0 0.0
      %1023 = vmatprep.subr.mxu0 0.0
      %1024 = vmatpush1.msra.mxu0 0.0
      %1025 = vmatprep.subr.mxu0 0.0
      %1026 = vmatpush1.msra.mxu0 0.0
      %1027 = vmatprep.subr.mxu0 0.0
      %1028 = vmatpush1.msra.mxu0 0.0
      %1029 = vmatprep.subr.mxu0 0.0
      %1030 = vmatpush1.msra.mxu0 0.0
      %1031 = vmatprep.subr.mxu0 0.0
      %1032 = vmatpush1.msra.mxu0 0.0
      %1033 = vmatprep.subr.mxu0 0.0
      %1034 = vmatpush1.msra.mxu0 0.0
      %1035 = vmatprep.subr.mxu0 0.0
      %1036 = vmatpush1.msra.mxu0 0.0
      %1037 = vmatprep.subr.mxu0 0.0
      %1038 = vmatpush1.msra.mxu0 0.0
      %1039 = vmatprep.subr.mxu0 0.0
      %1040 = vmatpush1.msra.mxu0 0.0
      %1041 = vmatprep.subr.mxu0 0.0
      %1042 = vmatpush1.msra.mxu0 0.0
      %1043 = vmatprep.subr.mxu0 0.0
      %1044 = vmatpush1.msra.mxu0 0.0
      %1045 = vmatprep.subr.mxu0 0.0
      %1046 = vmatpush1.msra.mxu0 0.0
      %1047 = vmatprep.subr.mxu0 0.0
      %1048 = vmatpush1.msra.mxu0 0.0
      %1049 = vmatprep.subr.mxu0 0.0
      %1050 = vmatpush1.msra.mxu0 0.0
      %1051 = vmatprep.subr.mxu0 0.0
      %1052 = vmatpush1.msra.mxu0 0.0
      %1053 = vmatprep.subr.mxu0 0.0
      %1054 = vmatpush1.msra.mxu0 0.0
      %1055 = vmatprep.mubr.f32.mxu0 0.0
      %1056 = vmatmul.mubr.f32.gmra.mrb[0].mxu0 %v893
      %v1057 = vpop.f32.mrb[0].mxu0
      %v1058 = vadd.f32 %v734, %v1057
      %v1059 = vpop.f32.mrb[0].mxu0
      %1060 = vmatprep.mubr.f32.mxu0 0.0
      %1061 = vmatmul.mubr.f32.gmra.mrb[0].mxu0 %v896
      %v1062 = vpop.f32.mrb[0].mxu0
      %v1063 = vadd.f32 %v739, %v1062
      %v1064 = vpop.f32.mrb[0].mxu0
      %1065 = vmatprep.mubr.f32.mxu0 0.0
      %1066 = vmatmul.mubr.f32.gmra.mrb[0].mxu0 %v899
      %v1067 = vpop.f32.mrb[0].mxu0
      %v1068 = vadd.f32 %v744, %v1067
      %v1069 = vpop.f32.mrb[0].mxu0
      %1070 = vmatprep.mubr.f32.mxu0 0.0
      %1071 = vmatmul.mubr.f32.gmra.mrb[0].mxu0 %v902
      %v1072 = vpop.f32.mrb[0].mxu0
      %v1073 = vadd.f32 %v749, %v1072
      %v1074 = vpop.f32.mrb[0].mxu0
      %1075 = vmatprep.mubr.f32.mxu0 0.0
      %1076 = vmatmul.mubr.f32.gmra.mrb[0].mxu0 %v905
      %v1077 = vpop.f32.mrb[0].mxu0
      %v1078 = vadd.f32 %v754, %v1077
      %v1079 = vpop.f32.mrb[0].mxu0
      %1080 = vmatprep.mubr.f32.mxu0 0.0
      %1081 = vmatmul.mubr.f32.gmra.mrb[0].mxu0 %v908
      %v1082 = vpop.f32.mrb[0].mxu0
      %v1083 = vadd.f32 %v759, %v1082
      %v1084 = vpop.f32.mrb[0].mxu0
      %1085 = vmatprep.mubr.f32.mxu0 0.0
      %1086 = vmatmul.mubr.f32.gmra.mrb[0].mxu0 %v911
      %v1087 = vpop.f32.mrb[0].mxu0
      %v1088 = vadd.f32 %v764, %v1087
      %v1089 = vpop.f32.mrb[0].mxu0
      %1090 = vmatprep.mubr.f32.mxu0 0.0
      %1091 = vmatmul.mubr.f32.gmra.mrb[0].mxu0 %v914
      %v1092 = vpop.f32.mrb[0].mxu0
      %v1093 = vadd.f32 %v769, %v1092
      %v1094 = vpop.f32.mrb[0].mxu0
      %1095 = vmatprep.mubr.f32.mxu0 0.0
      %1096 = vmatmul.mubr.f32.gmra.mrb[0].mxu0 %v917
      %v1097 = vpop.f32.mrb[0].mxu0
      %v1098 = vadd.f32 %v774, %v1097
      %v1099 = vpop.f32.mrb[0].mxu0
      %1100 = vmatprep.mubr.f32.mxu0 0.0
      %1101 = vmatmul.mubr.f32.gmra.mrb[0].mxu0 %v920
      %v1102 = vpop.f32.mrb[0].mxu0
      %v1103 = vadd.f32 %v779, %v1102
      %v1104 = vpop.f32.mrb[0].mxu0
      %1105 = vmatprep.mubr.f32.mxu0 0.0
      %1106 = vmatmul.mubr.f32.gmra.mrb[0].mxu0 %v923
      %v1107 = vpop.f32.mrb[0].mxu0
      %v1108 = vadd.f32 %v784, %v1107
      %v1109 = vpop.f32.mrb[0].mxu0
      %1110 = vmatprep.mubr.f32.mxu0 0.0
      %1111 = vmatmul.mubr.f32.gmra.mrb[0].mxu0 %v926
      %v1112 = vpop.f32.mrb[0].mxu0
      %v1113 = vadd.f32 %v789, %v1112
      %v1114 = vpop.f32.mrb[0].mxu0
      %1115 = vmatprep.mubr.f32.mxu0 0.0
      %1116 = vmatmul.mubr.f32.gmra.mrb[0].mxu0 %v929
      %v1117 = vpop.f32.mrb[0].mxu0
      %v1118 = vadd.f32 %v794, %v1117
      %v1119 = vpop.f32.mrb[0].mxu0
      %1120 = vmatprep.mubr.f32.mxu0 0.0
      %1121 = vmatmul.mubr.f32.gmra.mrb[0].mxu0 %v932
      %v1122 = vpop.f32.mrb[0].mxu0
      %v1123 = vadd.f32 %v799, %v1122
      %v1124 = vpop.f32.mrb[0].mxu0
      %1125 = vmatprep.mubr.f32.mxu0 0.0
      %1126 = vmatmul.mubr.f32.gmra.mrb[0].mxu0 %v935
      %v1127 = vpop.f32.mrb[0].mxu0
      %v1128 = vadd.f32 %v804, %v1127
      %v1129 = vpop.f32.mrb[0].mxu0
      %1130 = vmatprep.mubr.f32.mxu0 0.0
      %1131 = vmatmul.mubr.f32.gmra.mrb[0].mxu0 %v938
      %v1132 = vpop.f32.mrb[0].mxu0
      %v1133 = vadd.f32 %v809, %v1132
      %v1134 = vpop.f32.mrb[0].mxu0
      %1135 = vmatprep.mubr.f32.mxu0 0.0
      %1136 = vmatmul.mubr.f32.gmra.mrb[0].mxu0 %v941
      %v1137 = vpop.f32.mrb[0].mxu0
      %v1138 = vadd.f32 %v814, %v1137
      %v1139 = vpop.f32.mrb[0].mxu0
      %1140 = vmatprep.mubr.f32.mxu0 0.0
      %1141 = vmatmul.mubr.f32.gmra.mrb[0].mxu0 %v944
      %v1142 = vpop.f32.mrb[0].mxu0
      %v1143 = vadd.f32 %v819, %v1142
      %v1144 = vpop.f32.mrb[0].mxu0
      %1145 = vmatprep.mubr.f32.mxu0 0.0
      %1146 = vmatmul.mubr.f32.gmra.mrb[0].mxu0 %v947
      %v1147 = vpop.f32.mrb[0].mxu0
      %v1148 = vadd.f32 %v824, %v1147
      %v1149 = vpop.f32.mrb[0].mxu0
      %1150 = vmatprep.mubr.f32.mxu0 0.0
      %1151 = vmatmul.mubr.f32.gmra.mrb[0].mxu0 %v950
      %v1152 = vpop.f32.mrb[0].mxu0
      %v1153 = vadd.f32 %v829, %v1152
      %v1154 = vpop.f32.mrb[0].mxu0
      %1155 = vmatprep.mubr.f32.mxu0 0.0
      %1156 = vmatmul.mubr.f32.gmra.mrb[0].mxu0 %v953
      %v1157 = vpop.f32.mrb[0].mxu0
      %v1158 = vadd.f32 %v834, %v1157
      %v1159 = vpop.f32.mrb[0].mxu0
      %1160 = vmatprep.mubr.f32.mxu0 0.0
      %1161 = vmatmul.mubr.f32.gmra.mrb[0].mxu0 %v956
      %v1162 = vpop.f32.mrb[0].mxu0
      %v1163 = vadd.f32 %v839, %v1162
      %v1164 = vpop.f32.mrb[0].mxu0
      %1165 = vmatprep.mubr.f32.mxu0 0.0
      %1166 = vmatmul.mubr.f32.gmra.mrb[0].mxu0 %v959
      %v1167 = vpop.f32.mrb[0].mxu0
      %v1168 = vadd.f32 %v844, %v1167
      %v1169 = vpop.f32.mrb[0].mxu0
      %1170 = vmatprep.mubr.f32.mxu0 0.0
      %1171 = vmatmul.mubr.f32.gmra.mrb[0].mxu0 %v962
      %v1172 = vpop.f32.mrb[0].mxu0
      %v1173 = vadd.f32 %v849, %v1172
      %v1174 = vpop.f32.mrb[0].mxu0
      %1175 = vmatprep.mubr.f32.mxu0 0.0
      %1176 = vmatmul.mubr.f32.gmra.mrb[0].mxu0 %v965
      %v1177 = vpop.f32.mrb[0].mxu0
      %v1178 = vadd.f32 %v854, %v1177
      %v1179 = vpop.f32.mrb[0].mxu0
      %1180 = vmatprep.mubr.f32.mxu0 0.0
      %1181 = vmatmul.mubr.f32.gmra.mrb[0].mxu0 %v968
      %v1182 = vpop.f32.mrb[0].mxu0
      %v1183 = vadd.f32 %v859, %v1182
      %v1184 = vpop.f32.mrb[0].mxu0
      %1185 = vmatprep.mubr.f32.mxu0 0.0
      %1186 = vmatmul.mubr.f32.gmra.mrb[0].mxu0 %v971
      %v1187 = vpop.f32.mrb[0].mxu0
      %v1188 = vadd.f32 %v864, %v1187
      %v1189 = vpop.f32.mrb[0].mxu0
      %1190 = vmatprep.mubr.f32.mxu0 0.0
      %1191 = vmatmul.mubr.f32.gmra.mrb[0].mxu0 %v974
      %v1192 = vpop.f32.mrb[0].mxu0
      %v1193 = vadd.f32 %v869, %v1192
      %v1194 = vpop.f32.mrb[0].mxu0
      %1195 = vmatprep.mubr.f32.mxu0 0.0
      %1196 = vmatmul.mubr.f32.gmra.mrb[0].mxu0 %v977
      %v1197 = vpop.f32.mrb[0].mxu0
      %v1198 = vadd.f32 %v874, %v1197
      %v1199 = vpop.f32.mrb[0].mxu0
      %1200 = vmatprep.mubr.f32.mxu0 0.0
      %1201 = vmatmul.mubr.f32.gmra.mrb[0].mxu0 %v980
      %v1202 = vpop.f32.mrb[0].mxu0
      %v1203 = vadd.f32 %v879, %v1202
      %v1204 = vpop.f32.mrb[0].mxu0
      %1205 = vmatprep.mubr.f32.mxu0 0.0
      %1206 = vmatmul.mubr.f32.gmra.mrb[0].mxu0 %v983
      %v1207 = vpop.f32.mrb[0].mxu0
      %v1208 = vadd.f32 %v884, %v1207
      %v1209 = vpop.f32.mrb[0].mxu0
      %1210 = vmatprep.mubr.f32.mxu0 0.0
      %1211 = vmatmul.mubr.f32.gmra.mrb[0].mxu0 %v986
      %v1212 = vpop.f32.mrb[0].mxu0
      %v1213 = vadd.f32 %v889, %v1212
      %v1214 = vpop.f32.mrb[0].mxu0
      %1215 = vdwg.mxu0
      %v1216 = vld [vmem:[%s499 + $0x2] sm:$0xff]
      %v1217 = vld [vmem:[%s499 + $0xa] sm:$0xff]
      %v1218 = vld [vmem:[%s499 + $0x1a] sm:$0xff]
      %v1219 = vld [vmem:[%s499 + $0x22] sm:$0xff]
      %v1220 = vld [vmem:[%s499 + $0x32] sm:$0xff]
      %v1221 = vld [vmem:[%s499 + $0x3a] sm:$0xff]
      %v1222 = vld [vmem:[%s499 + $0x4a] sm:$0xff]
      %v1223 = vld [vmem:[%s499 + $0x52] sm:$0xff]
      %v1224 = vld [vmem:[%s499 + $0x62] sm:$0xff]
      %v1225 = vld [vmem:[%s499 + $0x6a] sm:$0xff]
      %v1226 = vld [vmem:[%s499 + $0x7a] sm:$0xff]
      %v1227 = vld [vmem:[%s499 + $0x82] sm:$0xff]
      %v1228 = vld [vmem:[%s499 + $0x92] sm:$0xff]
      %v1229 = vld [vmem:[%s499 + $0x9a] sm:$0xff]
      %v1230 = vld [vmem:[%s499 + $0xaa] sm:$0xff]
      %v1231 = vld [vmem:[%s499 + $0xb2] sm:$0xff]
      %v1232 = vld [vmem:[%s499 + $0xc2] sm:$0xff]
      %v1233 = vld [vmem:[%s499 + $0xca] sm:$0xff]
      %v1234 = vld [vmem:[%s499 + $0xda] sm:$0xff]
      %v1235 = vld [vmem:[%s499 + $0xe2] sm:$0xff]
      %v1236 = vld [vmem:[%s499 + $0xf2] sm:$0xff]
      %v1237 = vld [vmem:[%s499 + $0xfa] sm:$0xff]
      %v1238 = vld [vmem:[%s499 + $0x10a] sm:$0xff]
      %v1239 = vld [vmem:[%s499 + $0x112] sm:$0xff]
      %v1240 = vld [vmem:[%s499 + $0x122] sm:$0xff]
      %v1241 = vld [vmem:[%s499 + $0x12a] sm:$0xff]
      %v1242 = vld [vmem:[%s499 + $0x13a] sm:$0xff]
      %v1243 = vld [vmem:[%s499 + $0x142] sm:$0xff]
      %v1244 = vld [vmem:[%s499 + $0x152] sm:$0xff]
      %v1245 = vld [vmem:[%s499 + $0x15a] sm:$0xff]
      %v1246 = vld [vmem:[%s499 + $0x16a] sm:$0xff]
      %v1247 = vld [vmem:[%s499 + $0x172] sm:$0xff]
      %v1248 = vld [vmem:[%s1 + $0x8] sm:$0xf]
      %v1250 = vsel %vm566, %v1216, 0
      %v1253 = vsel %vm566, %v1217, 0
      %v1256 = vsel %vm566, %v1218, 0
      %v1259 = vsel %vm566, %v1219, 0
      %v1262 = vsel %vm566, %v1220, 0
      %v1265 = vsel %vm566, %v1221, 0
      %v1268 = vsel %vm566, %v1222, 0
      %v1271 = vsel %vm566, %v1223, 0
      %v1274 = vsel %vm566, %v1224, 0
      %v1277 = vsel %vm566, %v1225, 0
      %v1280 = vsel %vm566, %v1226, 0
      %v1283 = vsel %vm566, %v1227, 0
      %v1286 = vsel %vm566, %v1228, 0
      %v1289 = vsel %vm566, %v1229, 0
      %v1292 = vsel %vm566, %v1230, 0
      %v1295 = vsel %vm566, %v1231, 0
      %v1298 = vsel %vm566, %v1232, 0
      %v1301 = vsel %vm566, %v1233, 0
      %v1304 = vsel %vm566, %v1234, 0
      %v1307 = vsel %vm566, %v1235, 0
      %v1310 = vsel %vm566, %v1236, 0
      %v1313 = vsel %vm566, %v1237, 0
      %v1316 = vsel %vm566, %v1238, 0
      %v1319 = vsel %vm566, %v1239, 0
      %v1322 = vsel %vm566, %v1240, 0
      %v1325 = vsel %vm566, %v1241, 0
      %v1328 = vsel %vm566, %v1242, 0
      %v1331 = vsel %vm566, %v1243, 0
      %v1334 = vsel %vm566, %v1244, 0
      %v1337 = vsel %vm566, %v1245, 0
      %v1340 = vsel %vm566, %v1246, 0
      %v1343 = vsel %vm566, %v1247, 0
      %v1346 = vsel %vm663, %v1248, 0
      %1348 = vmatprep.subr.mxu0 0.0
      %1349 = vmatpush1.msra.mxu0 %v1346
      %1350 = vmatprep.subr.mxu0 0.0
      %1351 = vmatpush1.msra.mxu0 0.0
      %1352 = vmatprep.subr.mxu0 0.0
      %1353 = vmatpush1.msra.mxu0 0.0
      %1354 = vmatprep.subr.mxu0 0.0
      %1355 = vmatpush1.msra.mxu0 0.0
      %1356 = vmatprep.subr.mxu0 0.0
      %1357 = vmatpush1.msra.mxu0 0.0
      %1358 = vmatprep.subr.mxu0 0.0
      %1359 = vmatpush1.msra.mxu0 0.0
      %1360 = vmatprep.subr.mxu0 0.0
      %1361 = vmatpush1.msra.mxu0 0.0
      %1362 = vmatprep.subr.mxu0 0.0
      %1363 = vmatpush1.msra.mxu0 0.0
      %1364 = vmatprep.subr.mxu0 0.0
      %1365 = vmatpush1.msra.mxu0 0.0
      %1366 = vmatprep.subr.mxu0 0.0
      %1367 = vmatpush1.msra.mxu0 0.0
      %1368 = vmatprep.subr.mxu0 0.0
      %1369 = vmatpush1.msra.mxu0 0.0
      %1370 = vmatprep.subr.mxu0 0.0
      %1371 = vmatpush1.msra.mxu0 0.0
      %1372 = vmatprep.subr.mxu0 0.0
      %1373 = vmatpush1.msra.mxu0 0.0
      %1374 = vmatprep.subr.mxu0 0.0
      %1375 = vmatpush1.msra.mxu0 0.0
      %1376 = vmatprep.subr.mxu0 0.0
      %1377 = vmatpush1.msra.mxu0 0.0
      %1378 = vmatprep.subr.mxu0 0.0
      %1379 = vmatpush1.msra.mxu0 0.0
      %1380 = vmatprep.subr.mxu0 0.0
      %1381 = vmatpush1.msra.mxu0 0.0
      %1382 = vmatprep.subr.mxu0 0.0
      %1383 = vmatpush1.msra.mxu0 0.0
      %1384 = vmatprep.subr.mxu0 0.0
      %1385 = vmatpush1.msra.mxu0 0.0
      %1386 = vmatprep.subr.mxu0 0.0
      %1387 = vmatpush1.msra.mxu0 0.0
      %1388 = vmatprep.subr.mxu0 0.0
      %1389 = vmatpush1.msra.mxu0 0.0
      %1390 = vmatprep.subr.mxu0 0.0
      %1391 = vmatpush1.msra.mxu0 0.0
      %1392 = vmatprep.subr.mxu0 0.0
      %1393 = vmatpush1.msra.mxu0 0.0
      %1394 = vmatprep.subr.mxu0 0.0
      %1395 = vmatpush1.msra.mxu0 0.0
      %1396 = vmatprep.subr.mxu0 0.0
      %1397 = vmatpush1.msra.mxu0 0.0
      %1398 = vmatprep.subr.mxu0 0.0
      %1399 = vmatpush1.msra.mxu0 0.0
      %1400 = vmatprep.subr.mxu0 0.0
      %1401 = vmatpush1.msra.mxu0 0.0
      %1402 = vmatprep.subr.mxu0 0.0
      %1403 = vmatpush1.msra.mxu0 0.0
      %1404 = vmatprep.subr.mxu0 0.0
      %1405 = vmatpush1.msra.mxu0 0.0
      %1406 = vmatprep.subr.mxu0 0.0
      %1407 = vmatpush1.msra.mxu0 0.0
      %1408 = vmatprep.subr.mxu0 0.0
      %1409 = vmatpush1.msra.mxu0 0.0
      %1410 = vmatprep.subr.mxu0 0.0
      %1411 = vmatpush1.msra.mxu0 0.0
      %1412 = vmatprep.mubr.f32.mxu0 0.0
      %1413 = vmatmul.mubr.f32.gmra.mrb[0].mxu0 %v1250
      %v1414 = vpop.f32.mrb[0].mxu0
      %v1415 = vadd.f32 0.0, %v1414
      %v1416 = vpop.f32.mrb[0].mxu0
      %1417 = vmatprep.mubr.f32.mxu0 0.0
      %1418 = vmatmul.mubr.f32.gmra.mrb[0].mxu0 %v1253
      %v1419 = vpop.f32.mrb[0].mxu0
      %v1420 = vadd.f32 0.0, %v1419
      %v1421 = vpop.f32.mrb[0].mxu0
      %1422 = vmatprep.mubr.f32.mxu0 0.0
      %1423 = vmatmul.mubr.f32.gmra.mrb[0].mxu0 %v1256
      %v1424 = vpop.f32.mrb[0].mxu0
      %v1425 = vadd.f32 0.0, %v1424
      %v1426 = vpop.f32.mrb[0].mxu0
      %1427 = vmatprep.mubr.f32.mxu0 0.0
      %1428 = vmatmul.mubr.f32.gmra.mrb[0].mxu0 %v1259
      %v1429 = vpop.f32.mrb[0].mxu0
      %v1430 = vadd.f32 0.0, %v1429
      %v1431 = vpop.f32.mrb[0].mxu0
      %1432 = vmatprep.mubr.f32.mxu0 0.0
      %1433 = vmatmul.mubr.f32.gmra.mrb[0].mxu0 %v1262
      %v1434 = vpop.f32.mrb[0].mxu0
      %v1435 = vadd.f32 0.0, %v1434
      %v1436 = vpop.f32.mrb[0].mxu0
      %1437 = vmatprep.mubr.f32.mxu0 0.0
      %1438 = vmatmul.mubr.f32.gmra.mrb[0].mxu0 %v1265
      %v1439 = vpop.f32.mrb[0].mxu0
      %v1440 = vadd.f32 0.0, %v1439
      %v1441 = vpop.f32.mrb[0].mxu0
      %1442 = vmatprep.mubr.f32.mxu0 0.0
      %1443 = vmatmul.mubr.f32.gmra.mrb[0].mxu0 %v1268
      %v1444 = vpop.f32.mrb[0].mxu0
      %v1445 = vadd.f32 0.0, %v1444
      %v1446 = vpop.f32.mrb[0].mxu0
      %1447 = vmatprep.mubr.f32.mxu0 0.0
      %1448 = vmatmul.mubr.f32.gmra.mrb[0].mxu0 %v1271
      %v1449 = vpop.f32.mrb[0].mxu0
      %v1450 = vadd.f32 0.0, %v1449
      %v1451 = vpop.f32.mrb[0].mxu0
      %1452 = vmatprep.mubr.f32.mxu0 0.0
      %1453 = vmatmul.mubr.f32.gmra.mrb[0].mxu0 %v1274
      %v1454 = vpop.f32.mrb[0].mxu0
      %v1455 = vadd.f32 0.0, %v1454
      %v1456 = vpop.f32.mrb[0].mxu0
      %1457 = vmatprep.mubr.f32.mxu0 0.0
      %1458 = vmatmul.mubr.f32.gmra.mrb[0].mxu0 %v1277
      %v1459 = vpop.f32.mrb[0].mxu0
      %v1460 = vadd.f32 0.0, %v1459
      %v1461 = vpop.f32.mrb[0].mxu0
      %1462 = vmatprep.mubr.f32.mxu0 0.0
      %1463 = vmatmul.mubr.f32.gmra.mrb[0].mxu0 %v1280
      %v1464 = vpop.f32.mrb[0].mxu0
      %v1465 = vadd.f32 0.0, %v1464
      %v1466 = vpop.f32.mrb[0].mxu0
      %1467 = vmatprep.mubr.f32.mxu0 0.0
      %1468 = vmatmul.mubr.f32.gmra.mrb[0].mxu0 %v1283
      %v1469 = vpop.f32.mrb[0].mxu0
      %v1470 = vadd.f32 0.0, %v1469
      %v1471 = vpop.f32.mrb[0].mxu0
      %1472 = vmatprep.mubr.f32.mxu0 0.0
      %1473 = vmatmul.mubr.f32.gmra.mrb[0].mxu0 %v1286
      %v1474 = vpop.f32.mrb[0].mxu0
      %v1475 = vadd.f32 0.0, %v1474
      %v1476 = vpop.f32.mrb[0].mxu0
      %1477 = vmatprep.mubr.f32.mxu0 0.0
      %1478 = vmatmul.mubr.f32.gmra.mrb[0].mxu0 %v1289
      %v1479 = vpop.f32.mrb[0].mxu0
      %v1480 = vadd.f32 0.0, %v1479
      %v1481 = vpop.f32.mrb[0].mxu0
      %1482 = vmatprep.mubr.f32.mxu0 0.0
      %1483 = vmatmul.mubr.f32.gmra.mrb[0].mxu0 %v1292
      %v1484 = vpop.f32.mrb[0].mxu0
      %v1485 = vadd.f32 0.0, %v1484
      %v1486 = vpop.f32.mrb[0].mxu0
      %1487 = vmatprep.mubr.f32.mxu0 0.0
      %1488 = vmatmul.mubr.f32.gmra.mrb[0].mxu0 %v1295
      %v1489 = vpop.f32.mrb[0].mxu0
      %v1490 = vadd.f32 0.0, %v1489
      %v1491 = vpop.f32.mrb[0].mxu0
      %1492 = vmatprep.mubr.f32.mxu0 0.0
      %1493 = vmatmul.mubr.f32.gmra.mrb[0].mxu0 %v1298
      %v1494 = vpop.f32.mrb[0].mxu0
      %v1495 = vadd.f32 0.0, %v1494
      %v1496 = vpop.f32.mrb[0].mxu0
      %1497 = vmatprep.mubr.f32.mxu0 0.0
      %1498 = vmatmul.mubr.f32.gmra.mrb[0].mxu0 %v1301
      %v1499 = vpop.f32.mrb[0].mxu0
      %v1500 = vadd.f32 0.0, %v1499
      %v1501 = vpop.f32.mrb[0].mxu0
      %1502 = vmatprep.mubr.f32.mxu0 0.0
      %1503 = vmatmul.mubr.f32.gmra.mrb[0].mxu0 %v1304
      %v1504 = vpop.f32.mrb[0].mxu0
      %v1505 = vadd.f32 0.0, %v1504
      %v1506 = vpop.f32.mrb[0].mxu0
      %1507 = vmatprep.mubr.f32.mxu0 0.0
      %1508 = vmatmul.mubr.f32.gmra.mrb[0].mxu0 %v1307
      %v1509 = vpop.f32.mrb[0].mxu0
      %v1510 = vadd.f32 0.0, %v1509
      %v1511 = vpop.f32.mrb[0].mxu0
      %1512 = vmatprep.mubr.f32.mxu0 0.0
      %1513 = vmatmul.mubr.f32.gmra.mrb[0].mxu0 %v1310
      %v1514 = vpop.f32.mrb[0].mxu0
      %v1515 = vadd.f32 0.0, %v1514
      %v1516 = vpop.f32.mrb[0].mxu0
      %1517 = vmatprep.mubr.f32.mxu0 0.0
      %1518 = vmatmul.mubr.f32.gmra.mrb[0].mxu0 %v1313
      %v1519 = vpop.f32.mrb[0].mxu0
      %v1520 = vadd.f32 0.0, %v1519
      %v1521 = vpop.f32.mrb[0].mxu0
      %1522 = vmatprep.mubr.f32.mxu0 0.0
      %1523 = vmatmul.mubr.f32.gmra.mrb[0].mxu0 %v1316
      %v1524 = vpop.f32.mrb[0].mxu0
      %v1525 = vadd.f32 0.0, %v1524
      %v1526 = vpop.f32.mrb[0].mxu0
      %1527 = vmatprep.mubr.f32.mxu0 0.0
      %1528 = vmatmul.mubr.f32.gmra.mrb[0].mxu0 %v1319
      %v1529 = vpop.f32.mrb[0].mxu0
      %v1530 = vadd.f32 0.0, %v1529
      %v1531 = vpop.f32.mrb[0].mxu0
      %1532 = vmatprep.mubr.f32.mxu0 0.0
      %1533 = vmatmul.mubr.f32.gmra.mrb[0].mxu0 %v1322
      %v1534 = vpop.f32.mrb[0].mxu0
      %v1535 = vadd.f32 0.0, %v1534
      %v1536 = vpop.f32.mrb[0].mxu0
      %1537 = vmatprep.mubr.f32.mxu0 0.0
      %1538 = vmatmul.mubr.f32.gmra.mrb[0].mxu0 %v1325
      %v1539 = vpop.f32.mrb[0].mxu0
      %v1540 = vadd.f32 0.0, %v1539
      %v1541 = vpop.f32.mrb[0].mxu0
      %1542 = vmatprep.mubr.f32.mxu0 0.0
      %1543 = vmatmul.mubr.f32.gmra.mrb[0].mxu0 %v1328
      %v1544 = vpop.f32.mrb[0].mxu0
      %v1545 = vadd.f32 0.0, %v1544
      %v1546 = vpop.f32.mrb[0].mxu0
      %1547 = vmatprep.mubr.f32.mxu0 0.0
      %1548 = vmatmul.mubr.f32.gmra.mrb[0].mxu0 %v1331
      %v1549 = vpop.f32.mrb[0].mxu0
      %v1550 = vadd.f32 0.0, %v1549
      %v1551 = vpop.f32.mrb[0].mxu0
      %1552 = vmatprep.mubr.f32.mxu0 0.0
      %1553 = vmatmul.mubr.f32.gmra.mrb[0].mxu0 %v1334
      %v1554 = vpop.f32.mrb[0].mxu0
      %v1555 = vadd.f32 0.0, %v1554
      %v1556 = vpop.f32.mrb[0].mxu0
      %1557 = vmatprep.mubr.f32.mxu0 0.0
      %1558 = vmatmul.mubr.f32.gmra.mrb[0].mxu0 %v1337
      %v1559 = vpop.f32.mrb[0].mxu0
      %v1560 = vadd.f32 0.0, %v1559
      %v1561 = vpop.f32.mrb[0].mxu0
      %1562 = vmatprep.mubr.f32.mxu0 0.0
      %1563 = vmatmul.mubr.f32.gmra.mrb[0].mxu0 %v1340
      %v1564 = vpop.f32.mrb[0].mxu0
      %v1565 = vadd.f32 0.0, %v1564
      %v1566 = vpop.f32.mrb[0].mxu0
      %1567 = vmatprep.mubr.f32.mxu0 0.0
      %1568 = vmatmul.mubr.f32.gmra.mrb[0].mxu0 %v1343
      %v1569 = vpop.f32.mrb[0].mxu0
      %v1570 = vadd.f32 0.0, %v1569
      %v1571 = vpop.f32.mrb[0].mxu0
      %1572 = vdwg.mxu0
      %v1573 = vadd.f32 %v1058, %v1415
      %v1574 = vadd.f32 %v1063, %v1420
      %v1575 = vadd.f32 %v1068, %v1425
      %v1576 = vadd.f32 %v1073, %v1430
      %v1577 = vadd.f32 %v1078, %v1435
      %v1578 = vadd.f32 %v1083, %v1440
      %v1579 = vadd.f32 %v1088, %v1445
      %v1580 = vadd.f32 %v1093, %v1450
      %v1581 = vadd.f32 %v1098, %v1455
      %v1582 = vadd.f32 %v1103, %v1460
      %v1583 = vadd.f32 %v1108, %v1465
      %v1584 = vadd.f32 %v1113, %v1470
      %v1585 = vadd.f32 %v1118, %v1475
      %v1586 = vadd.f32 %v1123, %v1480
      %v1587 = vadd.f32 %v1128, %v1485
      %v1588 = vadd.f32 %v1133, %v1490
      %v1589 = vadd.f32 %v1138, %v1495
      %v1590 = vadd.f32 %v1143, %v1500
      %v1591 = vadd.f32 %v1148, %v1505
      %v1592 = vadd.f32 %v1153, %v1510
      %v1593 = vadd.f32 %v1158, %v1515
      %v1594 = vadd.f32 %v1163, %v1520
      %v1595 = vadd.f32 %v1168, %v1525
      %v1596 = vadd.f32 %v1173, %v1530
      %v1597 = vadd.f32 %v1178, %v1535
      %v1598 = vadd.f32 %v1183, %v1540
      %v1599 = vadd.f32 %v1188, %v1545
      %v1600 = vadd.f32 %v1193, %v1550
      %v1601 = vadd.f32 %v1198, %v1555
      %v1602 = vadd.f32 %v1203, %v1560
      %v1603 = vadd.f32 %v1208, %v1565
      %v1604 = vadd.f32 %v1213, %v1570
      %s1605 = sadd.s32 %s497, 1
      %s1606 = smul.u32 %s1605, 24
      %s1607 = scalar_lea.vmem [#allocation2], %s1606
      %v1608 = vld [vmem:[%s1607] sm:$0xff]
      %v1609 = vld [vmem:[%s1607 + $0x8] sm:$0xff]
      %v1610 = vld [vmem:[%s1607 + $0x18] sm:$0xff]
      %v1611 = vld [vmem:[%s1607 + $0x20] sm:$0xff]
      %v1612 = vld [vmem:[%s1607 + $0x30] sm:$0xff]
      %v1613 = vld [vmem:[%s1607 + $0x38] sm:$0xff]
      %v1614 = vld [vmem:[%s1607 + $0x48] sm:$0xff]
      %v1615 = vld [vmem:[%s1607 + $0x50] sm:$0xff]
      %v1616 = vld [vmem:[%s1607 + $0x60] sm:$0xff]
      %v1617 = vld [vmem:[%s1607 + $0x68] sm:$0xff]
      %v1618 = vld [vmem:[%s1607 + $0x78] sm:$0xff]
      %v1619 = vld [vmem:[%s1607 + $0x80] sm:$0xff]
      %v1620 = vld [vmem:[%s1607 + $0x90] sm:$0xff]
      %v1621 = vld [vmem:[%s1607 + $0x98] sm:$0xff]
      %v1622 = vld [vmem:[%s1607 + $0xa8] sm:$0xff]
      %v1623 = vld [vmem:[%s1607 + $0xb0] sm:$0xff]
      %v1624 = vld [vmem:[%s1607 + $0xc0] sm:$0xff]
      %v1625 = vld [vmem:[%s1607 + $0xc8] sm:$0xff]
      %v1626 = vld [vmem:[%s1607 + $0xd8] sm:$0xff]
      %v1627 = vld [vmem:[%s1607 + $0xe0] sm:$0xff]
      %v1628 = vld [vmem:[%s1607 + $0xf0] sm:$0xff]
      %v1629 = vld [vmem:[%s1607 + $0xf8] sm:$0xff]
      %v1630 = vld [vmem:[%s1607 + $0x108] sm:$0xff]
      %v1631 = vld [vmem:[%s1607 + $0x110] sm:$0xff]
      %v1632 = vld [vmem:[%s1607 + $0x120] sm:$0xff]
      %v1633 = vld [vmem:[%s1607 + $0x128] sm:$0xff]
      %v1634 = vld [vmem:[%s1607 + $0x138] sm:$0xff]
      %v1635 = vld [vmem:[%s1607 + $0x140] sm:$0xff]
      %v1636 = vld [vmem:[%s1607 + $0x150] sm:$0xff]
      %v1637 = vld [vmem:[%s1607 + $0x158] sm:$0xff]
      %v1638 = vld [vmem:[%s1607 + $0x168] sm:$0xff]
      %v1639 = vld [vmem:[%s1607 + $0x170] sm:$0xff]
      %v1640 = vld [vmem:[%s1 + $0xc] sm:$0xf]
      %v1642 = vsel %vm566, %v1608, 0
      %v1645 = vsel %vm566, %v1609, 0
      %v1648 = vsel %vm566, %v1610, 0
      %v1651 = vsel %vm566, %v1611, 0
      %v1654 = vsel %vm566, %v1612, 0
      %v1657 = vsel %vm566, %v1613, 0
      %v1660 = vsel %vm566, %v1614, 0
      %v1663 = vsel %vm566, %v1615, 0
      %v1666 = vsel %vm566, %v1616, 0
      %v1669 = vsel %vm566, %v1617, 0
      %v1672 = vsel %vm566, %v1618, 0
      %v1675 = vsel %vm566, %v1619, 0
      %v1678 = vsel %vm566, %v1620, 0
      %v1681 = vsel %vm566, %v1621, 0
      %v1684 = vsel %vm566, %v1622, 0
      %v1687 = vsel %vm566, %v1623, 0
      %v1690 = vsel %vm566, %v1624, 0
      %v1693 = vsel %vm566, %v1625, 0
      %v1696 = vsel %vm566, %v1626, 0
      %v1699 = vsel %vm566, %v1627, 0
      %v1702 = vsel %vm566, %v1628, 0
      %v1705 = vsel %vm566, %v1629, 0
      %v1708 = vsel %vm566, %v1630, 0
      %v1711 = vsel %vm566, %v1631, 0
      %v1714 = vsel %vm566, %v1632, 0
      %v1717 = vsel %vm566, %v1633, 0
      %v1720 = vsel %vm566, %v1634, 0
      %v1723 = vsel %vm566, %v1635, 0
      %v1726 = vsel %vm566, %v1636, 0
      %v1729 = vsel %vm566, %v1637, 0
      %v1732 = vsel %vm566, %v1638, 0
      %v1735 = vsel %vm566, %v1639, 0
      %v1738 = vsel %vm663, %v1640, 0
      %1740 = vmatprep.subr.mxu0 0.0
      %1741 = vmatpush1.msra.mxu0 %v1738
      %1742 = vmatprep.subr.mxu0 0.0
      %1743 = vmatpush1.msra.mxu0 0.0
      %1744 = vmatprep.subr.mxu0 0.0
      %1745 = vmatpush1.msra.mxu0 0.0
      %1746 = vmatprep.subr.mxu0 0.0
      %1747 = vmatpush1.msra.mxu0 0.0
      %1748 = vmatprep.subr.mxu0 0.0
      %1749 = vmatpush1.msra.mxu0 0.0
      %1750 = vmatprep.subr.mxu0 0.0
      %1751 = vmatpush1.msra.mxu0 0.0
      %1752 = vmatprep.subr.mxu0 0.0
      %1753 = vmatpush1.msra.mxu0 0.0
      %1754 = vmatprep.subr.mxu0 0.0
      %1755 = vmatpush1.msra.mxu0 0.0
      %1756 = vmatprep.subr.mxu0 0.0
      %1757 = vmatpush1.msra.mxu0 0.0
      %1758 = vmatprep.subr.mxu0 0.0
      %1759 = vmatpush1.msra.mxu0 0.0
      %1760 = vmatprep.subr.mxu0 0.0
      %1761 = vmatpush1.msra.mxu0 0.0
      %1762 = vmatprep.subr.mxu0 0.0
      %1763 = vmatpush1.msra.mxu0 0.0
      %1764 = vmatprep.subr.mxu0 0.0
      %1765 = vmatpush1.msra.mxu0 0.0
      %1766 = vmatprep.subr.mxu0 0.0
      %1767 = vmatpush1.msra.mxu0 0.0
      %1768 = vmatprep.subr.mxu0 0.0
      %1769 = vmatpush1.msra.mxu0 0.0
      %1770 = vmatprep.subr.mxu0 0.0
      %1771 = vmatpush1.msra.mxu0 0.0
      %1772 = vmatprep.subr.mxu0 0.0
      %1773 = vmatpush1.msra.mxu0 0.0
      %1774 = vmatprep.subr.mxu0 0.0
      %1775 = vmatpush1.msra.mxu0 0.0
      %1776 = vmatprep.subr.mxu0 0.0
      %1777 = vmatpush1.msra.mxu0 0.0
      %1778 = vmatprep.subr.mxu0 0.0
      %1779 = vmatpush1.msra.mxu0 0.0
      %1780 = vmatprep.subr.mxu0 0.0
      %1781 = vmatpush1.msra.mxu0 0.0
      %1782 = vmatprep.subr.mxu0 0.0
      %1783 = vmatpush1.msra.mxu0 0.0
      %1784 = vmatprep.subr.mxu0 0.0
      %1785 = vmatpush1.msra.mxu0 0.0
      %1786 = vmatprep.subr.mxu0 0.0
      %1787 = vmatpush1.msra.mxu0 0.0
      %1788 = vmatprep.subr.mxu0 0.0
      %1789 = vmatpush1.msra.mxu0 0.0
      %1790 = vmatprep.subr.mxu0 0.0
      %1791 = vmatpush1.msra.mxu0 0.0
      %1792 = vmatprep.subr.mxu0 0.0
      %1793 = vmatpush1.msra.mxu0 0.0
      %1794 = vmatprep.subr.mxu0 0.0
      %1795 = vmatpush1.msra.mxu0 0.0
      %1796 = vmatprep.subr.mxu0 0.0
      %1797 = vmatpush1.msra.mxu0 0.0
      %1798 = vmatprep.subr.mxu0 0.0
      %1799 = vmatpush1.msra.mxu0 0.0
      %1800 = vmatprep.subr.mxu0 0.0
      %1801 = vmatpush1.msra.mxu0 0.0
      %1802 = vmatprep.subr.mxu0 0.0
      %1803 = vmatpush1.msra.mxu0 0.0
      %1804 = vmatprep.mubr.f32.mxu0 0.0
      %1805 = vmatmul.mubr.f32.gmra.mrb[0].mxu0 %v1642
      %v1806 = vpop.f32.mrb[0].mxu0
      %v1807 = vadd.f32 0.0, %v1806
      %v1808 = vpop.f32.mrb[0].mxu0
      %1809 = vmatprep.mubr.f32.mxu0 0.0
      %1810 = vmatmul.mubr.f32.gmra.mrb[0].mxu0 %v1645
      %v1811 = vpop.f32.mrb[0].mxu0
      %v1812 = vadd.f32 0.0, %v1811
      %v1813 = vpop.f32.mrb[0].mxu0
      %1814 = vmatprep.mubr.f32.mxu0 0.0
      %1815 = vmatmul.mubr.f32.gmra.mrb[0].mxu0 %v1648
      %v1816 = vpop.f32.mrb[0].mxu0
      %v1817 = vadd.f32 0.0, %v1816
      %v1818 = vpop.f32.mrb[0].mxu0
      %1819 = vmatprep.mubr.f32.mxu0 0.0
      %1820 = vmatmul.mubr.f32.gmra.mrb[0].mxu0 %v1651
      %v1821 = vpop.f32.mrb[0].mxu0
      %v1822 = vadd.f32 0.0, %v1821
      %v1823 = vpop.f32.mrb[0].mxu0
      %1824 = vmatprep.mubr.f32.mxu0 0.0
      %1825 = vmatmul.mubr.f32.gmra.mrb[0].mxu0 %v1654
      %v1826 = vpop.f32.mrb[0].mxu0
      %v1827 = vadd.f32 0.0, %v1826
      %v1828 = vpop.f32.mrb[0].mxu0
      %1829 = vmatprep.mubr.f32.mxu0 0.0
      %1830 = vmatmul.mubr.f32.gmra.mrb[0].mxu0 %v1657
      %v1831 = vpop.f32.mrb[0].mxu0
      %v1832 = vadd.f32 0.0, %v1831
      %v1833 = vpop.f32.mrb[0].mxu0
      %1834 = vmatprep.mubr.f32.mxu0 0.0
      %1835 = vmatmul.mubr.f32.gmra.mrb[0].mxu0 %v1660
      %v1836 = vpop.f32.mrb[0].mxu0
      %v1837 = vadd.f32 0.0, %v1836
      %v1838 = vpop.f32.mrb[0].mxu0
      %1839 = vmatprep.mubr.f32.mxu0 0.0
      %1840 = vmatmul.mubr.f32.gmra.mrb[0].mxu0 %v1663
      %v1841 = vpop.f32.mrb[0].mxu0
      %v1842 = vadd.f32 0.0, %v1841
      %v1843 = vpop.f32.mrb[0].mxu0
      %1844 = vmatprep.mubr.f32.mxu0 0.0
      %1845 = vmatmul.mubr.f32.gmra.mrb[0].mxu0 %v1666
      %v1846 = vpop.f32.mrb[0].mxu0
      %v1847 = vadd.f32 0.0, %v1846
      %v1848 = vpop.f32.mrb[0].mxu0
      %1849 = vmatprep.mubr.f32.mxu0 0.0
      %1850 = vmatmul.mubr.f32.gmra.mrb[0].mxu0 %v1669
      %v1851 = vpop.f32.mrb[0].mxu0
      %v1852 = vadd.f32 0.0, %v1851
      %v1853 = vpop.f32.mrb[0].mxu0
      %1854 = vmatprep.mubr.f32.mxu0 0.0
      %1855 = vmatmul.mubr.f32.gmra.mrb[0].mxu0 %v1672
      %v1856 = vpop.f32.mrb[0].mxu0
      %v1857 = vadd.f32 0.0, %v1856
      %v1858 = vpop.f32.mrb[0].mxu0
      %1859 = vmatprep.mubr.f32.mxu0 0.0
      %1860 = vmatmul.mubr.f32.gmra.mrb[0].mxu0 %v1675
      %v1861 = vpop.f32.mrb[0].mxu0
      %v1862 = vadd.f32 0.0, %v1861
      %v1863 = vpop.f32.mrb[0].mxu0
      %1864 = vmatprep.mubr.f32.mxu0 0.0
      %1865 = vmatmul.mubr.f32.gmra.mrb[0].mxu0 %v1678
      %v1866 = vpop.f32.mrb[0].mxu0
      %v1867 = vadd.f32 0.0, %v1866
      %v1868 = vpop.f32.mrb[0].mxu0
      %1869 = vmatprep.mubr.f32.mxu0 0.0
      %1870 = vmatmul.mubr.f32.gmra.mrb[0].mxu0 %v1681
      %v1871 = vpop.f32.mrb[0].mxu0
      %v1872 = vadd.f32 0.0, %v1871
      %v1873 = vpop.f32.mrb[0].mxu0
      %1874 = vmatprep.mubr.f32.mxu0 0.0
      %1875 = vmatmul.mubr.f32.gmra.mrb[0].mxu0 %v1684
      %v1876 = vpop.f32.mrb[0].mxu0
      %v1877 = vadd.f32 0.0, %v1876
      %v1878 = vpop.f32.mrb[0].mxu0
      %1879 = vmatprep.mubr.f32.mxu0 0.0
      %1880 = vmatmul.mubr.f32.gmra.mrb[0].mxu0 %v1687
      %v1881 = vpop.f32.mrb[0].mxu0
      %v1882 = vadd.f32 0.0, %v1881
      %v1883 = vpop.f32.mrb[0].mxu0
      %1884 = vmatprep.mubr.f32.mxu0 0.0
      %1885 = vmatmul.mubr.f32.gmra.mrb[0].mxu0 %v1690
      %v1886 = vpop.f32.mrb[0].mxu0
      %v1887 = vadd.f32 0.0, %v1886
      %v1888 = vpop.f32.mrb[0].mxu0
      %1889 = vmatprep.mubr.f32.mxu0 0.0
      %1890 = vmatmul.mubr.f32.gmra.mrb[0].mxu0 %v1693
      %v1891 = vpop.f32.mrb[0].mxu0
      %v1892 = vadd.f32 0.0, %v1891
      %v1893 = vpop.f32.mrb[0].mxu0
      %1894 = vmatprep.mubr.f32.mxu0 0.0
      %1895 = vmatmul.mubr.f32.gmra.mrb[0].mxu0 %v1696
      %v1896 = vpop.f32.mrb[0].mxu0
      %v1897 = vadd.f32 0.0, %v1896
      %v1898 = vpop.f32.mrb[0].mxu0
      %1899 = vmatprep.mubr.f32.mxu0 0.0
      %1900 = vmatmul.mubr.f32.gmra.mrb[0].mxu0 %v1699
      %v1901 = vpop.f32.mrb[0].mxu0
      %v1902 = vadd.f32 0.0, %v1901
      %v1903 = vpop.f32.mrb[0].mxu0
      %1904 = vmatprep.mubr.f32.mxu0 0.0
      %1905 = vmatmul.mubr.f32.gmra.mrb[0].mxu0 %v1702
      %v1906 = vpop.f32.mrb[0].mxu0
      %v1907 = vadd.f32 0.0, %v1906
      %v1908 = vpop.f32.mrb[0].mxu0
      %1909 = vmatprep.mubr.f32.mxu0 0.0
      %1910 = vmatmul.mubr.f32.gmra.mrb[0].mxu0 %v1705
      %v1911 = vpop.f32.mrb[0].mxu0
      %v1912 = vadd.f32 0.0, %v1911
      %v1913 = vpop.f32.mrb[0].mxu0
      %1914 = vmatprep.mubr.f32.mxu0 0.0
      %1915 = vmatmul.mubr.f32.gmra.mrb[0].mxu0 %v1708
      %v1916 = vpop.f32.mrb[0].mxu0
      %v1917 = vadd.f32 0.0, %v1916
      %v1918 = vpop.f32.mrb[0].mxu0
      %1919 = vmatprep.mubr.f32.mxu0 0.0
      %1920 = vmatmul.mubr.f32.gmra.mrb[0].mxu0 %v1711
      %v1921 = vpop.f32.mrb[0].mxu0
      %v1922 = vadd.f32 0.0, %v1921
      %v1923 = vpop.f32.mrb[0].mxu0
      %1924 = vmatprep.mubr.f32.mxu0 0.0
      %1925 = vmatmul.mubr.f32.gmra.mrb[0].mxu0 %v1714
      %v1926 = vpop.f32.mrb[0].mxu0
      %v1927 = vadd.f32 0.0, %v1926
      %v1928 = vpop.f32.mrb[0].mxu0
      %1929 = vmatprep.mubr.f32.mxu0 0.0
      %1930 = vmatmul.mubr.f32.gmra.mrb[0].mxu0 %v1717
      %v1931 = vpop.f32.mrb[0].mxu0
      %v1932 = vadd.f32 0.0, %v1931
      %v1933 = vpop.f32.mrb[0].mxu0
      %1934 = vmatprep.mubr.f32.mxu0 0.0
      %1935 = vmatmul.mubr.f32.gmra.mrb[0].mxu0 %v1720
      %v1936 = vpop.f32.mrb[0].mxu0
      %v1937 = vadd.f32 0.0, %v1936
      %v1938 = vpop.f32.mrb[0].mxu0
      %1939 = vmatprep.mubr.f32.mxu0 0.0
      %1940 = vmatmul.mubr.f32.gmra.mrb[0].mxu0 %v1723
      %v1941 = vpop.f32.mrb[0].mxu0
      %v1942 = vadd.f32 0.0, %v1941
      %v1943 = vpop.f32.mrb[0].mxu0
      %1944 = vmatprep.mubr.f32.mxu0 0.0
      %1945 = vmatmul.mubr.f32.gmra.mrb[0].mxu0 %v1726
      %v1946 = vpop.f32.mrb[0].mxu0
      %v1947 = vadd.f32 0.0, %v1946
      %v1948 = vpop.f32.mrb[0].mxu0
      %1949 = vmatprep.mubr.f32.mxu0 0.0
      %1950 = vmatmul.mubr.f32.gmra.mrb[0].mxu0 %v1729
      %v1951 = vpop.f32.mrb[0].mxu0
      %v1952 = vadd.f32 0.0, %v1951
      %v1953 = vpop.f32.mrb[0].mxu0
      %1954 = vmatprep.mubr.f32.mxu0 0.0
      %1955 = vmatmul.mubr.f32.gmra.mrb[0].mxu0 %v1732
      %v1956 = vpop.f32.mrb[0].mxu0
      %v1957 = vadd.f32 0.0, %v1956
      %v1958 = vpop.f32.mrb[0].mxu0
      %1959 = vmatprep.mubr.f32.mxu0 0.0
      %1960 = vmatmul.mubr.f32.gmra.mrb[0].mxu0 %v1735
      %v1961 = vpop.f32.mrb[0].mxu0
      %v1962 = vadd.f32 0.0, %v1961
      %v1963 = vpop.f32.mrb[0].mxu0
      %1964 = vdwg.mxu0
      %v1965 = vadd.f32 %v1573, %v1807
      %v1966 = vadd.f32 %v1574, %v1812
      %v1967 = vadd.f32 %v1575, %v1817
      %v1968 = vadd.f32 %v1576, %v1822
      %v1969 = vadd.f32 %v1577, %v1827
      %v1970 = vadd.f32 %v1578, %v1832
      %v1971 = vadd.f32 %v1579, %v1837
      %v1972 = vadd.f32 %v1580, %v1842
      %v1973 = vadd.f32 %v1581, %v1847
      %v1974 = vadd.f32 %v1582, %v1852
      %v1975 = vadd.f32 %v1583, %v1857
      %v1976 = vadd.f32 %v1584, %v1862
      %v1977 = vadd.f32 %v1585, %v1867
      %v1978 = vadd.f32 %v1586, %v1872
      %v1979 = vadd.f32 %v1587, %v1877
      %v1980 = vadd.f32 %v1588, %v1882
      %v1981 = vadd.f32 %v1589, %v1887
      %v1982 = vadd.f32 %v1590, %v1892
      %v1983 = vadd.f32 %v1591, %v1897
      %v1984 = vadd.f32 %v1592, %v1902
      %v1985 = vadd.f32 %v1593, %v1907
      %v1986 = vadd.f32 %v1594, %v1912
      %v1987 = vadd.f32 %v1595, %v1917
      %v1988 = vadd.f32 %v1596, %v1922
      %v1989 = vadd.f32 %v1597, %v1927
      %v1990 = vadd.f32 %v1598, %v1932
      %v1991 = vadd.f32 %v1599, %v1937
      %v1992 = vadd.f32 %v1600, %v1942
      %v1993 = vadd.f32 %v1601, %v1947
      %v1994 = vadd.f32 %v1602, %v1952
      %v1995 = vadd.f32 %v1603, %v1957
      %v1996 = vadd.f32 %v1604, %v1962
      %v1997 = vld [vmem:[%s1607 + $0x1] sm:$0xff]
      %v1998 = vld [vmem:[%s1607 + $0x9] sm:$0xff]
      %v1999 = vld [vmem:[%s1607 + $0x19] sm:$0xff]
      %v2000 = vld [vmem:[%s1607 + $0x21] sm:$0xff]
      %v2001 = vld [vmem:[%s1607 + $0x31] sm:$0xff]
      %v2002 = vld [vmem:[%s1607 + $0x39] sm:$0xff]
      %v2003 = vld [vmem:[%s1607 + $0x49] sm:$0xff]
      %v2004 = vld [vmem:[%s1607 + $0x51] sm:$0xff]
      %v2005 = vld [vmem:[%s1607 + $0x61] sm:$0xff]
      %v2006 = vld [vmem:[%s1607 + $0x69] sm:$0xff]
      %v2007 = vld [vmem:[%s1607 + $0x79] sm:$0xff]
      %v2008 = vld [vmem:[%s1607 + $0x81] sm:$0xff]
      %v2009 = vld [vmem:[%s1607 + $0x91] sm:$0xff]
      %v2010 = vld [vmem:[%s1607 + $0x99] sm:$0xff]
      %v2011 = vld [vmem:[%s1607 + $0xa9] sm:$0xff]
      %v2012 = vld [vmem:[%s1607 + $0xb1] sm:$0xff]
      %v2013 = vld [vmem:[%s1607 + $0xc1] sm:$0xff]
      %v2014 = vld [vmem:[%s1607 + $0xc9] sm:$0xff]
      %v2015 = vld [vmem:[%s1607 + $0xd9] sm:$0xff]
      %v2016 = vld [vmem:[%s1607 + $0xe1] sm:$0xff]
      %v2017 = vld [vmem:[%s1607 + $0xf1] sm:$0xff]
      %v2018 = vld [vmem:[%s1607 + $0xf9] sm:$0xff]
      %v2019 = vld [vmem:[%s1607 + $0x109] sm:$0xff]
      %v2020 = vld [vmem:[%s1607 + $0x111] sm:$0xff]
      %v2021 = vld [vmem:[%s1607 + $0x121] sm:$0xff]
      %v2022 = vld [vmem:[%s1607 + $0x129] sm:$0xff]
      %v2023 = vld [vmem:[%s1607 + $0x139] sm:$0xff]
      %v2024 = vld [vmem:[%s1607 + $0x141] sm:$0xff]
      %v2025 = vld [vmem:[%s1607 + $0x151] sm:$0xff]
      %v2026 = vld [vmem:[%s1607 + $0x159] sm:$0xff]
      %v2027 = vld [vmem:[%s1607 + $0x169] sm:$0xff]
      %v2028 = vld [vmem:[%s1607 + $0x171] sm:$0xff]
      %v2029 = vld [vmem:[%s1 + $0x10] sm:$0xf]
      %v2031 = vsel %vm566, %v1997, 0
      %v2034 = vsel %vm566, %v1998, 0
      %v2037 = vsel %vm566, %v1999, 0
      %v2040 = vsel %vm566, %v2000, 0
      %v2043 = vsel %vm566, %v2001, 0
      %v2046 = vsel %vm566, %v2002, 0
      %v2049 = vsel %vm566, %v2003, 0
      %v2052 = vsel %vm566, %v2004, 0
      %v2055 = vsel %vm566, %v2005, 0
      %v2058 = vsel %vm566, %v2006, 0
      %v2061 = vsel %vm566, %v2007, 0
      %v2064 = vsel %vm566, %v2008, 0
      %v2067 = vsel %vm566, %v2009, 0
      %v2070 = vsel %vm566, %v2010, 0
      %v2073 = vsel %vm566, %v2011, 0
      %v2076 = vsel %vm566, %v2012, 0
      %v2079 = vsel %vm566, %v2013, 0
      %v2082 = vsel %vm566, %v2014, 0
      %v2085 = vsel %vm566, %v2015, 0
      %v2088 = vsel %vm566, %v2016, 0
      %v2091 = vsel %vm566, %v2017, 0
      %v2094 = vsel %vm566, %v2018, 0
      %v2097 = vsel %vm566, %v2019, 0
      %v2100 = vsel %vm566, %v2020, 0
      %v2103 = vsel %vm566, %v2021, 0
      %v2106 = vsel %vm566, %v2022, 0
      %v2109 = vsel %vm566, %v2023, 0
      %v2112 = vsel %vm566, %v2024, 0
      %v2115 = vsel %vm566, %v2025, 0
      %v2118 = vsel %vm566, %v2026, 0
      %v2121 = vsel %vm566, %v2027, 0
      %v2124 = vsel %vm566, %v2028, 0
      %v2127 = vsel %vm663, %v2029, 0
      %2129 = vmatprep.subr.mxu0 0.0
      %2130 = vmatpush1.msra.mxu0 %v2127
      %2131 = vmatprep.subr.mxu0 0.0
      %2132 = vmatpush1.msra.mxu0 0.0
      %2133 = vmatprep.subr.mxu0 0.0
      %2134 = vmatpush1.msra.mxu0 0.0
      %2135 = vmatprep.subr.mxu0 0.0
      %2136 = vmatpush1.msra.mxu0 0.0
      %2137 = vmatprep.subr.mxu0 0.0
      %2138 = vmatpush1.msra.mxu0 0.0
      %2139 = vmatprep.subr.mxu0 0.0
      %2140 = vmatpush1.msra.mxu0 0.0
      %2141 = vmatprep.subr.mxu0 0.0
      %2142 = vmatpush1.msra.mxu0 0.0
      %2143 = vmatprep.subr.mxu0 0.0
      %2144 = vmatpush1.msra.mxu0 0.0
      %2145 = vmatprep.subr.mxu0 0.0
      %2146 = vmatpush1.msra.mxu0 0.0
      %2147 = vmatprep.subr.mxu0 0.0
      %2148 = vmatpush1.msra.mxu0 0.0
      %2149 = vmatprep.subr.mxu0 0.0
      %2150 = vmatpush1.msra.mxu0 0.0
      %2151 = vmatprep.subr.mxu0 0.0
      %2152 = vmatpush1.msra.mxu0 0.0
      %2153 = vmatprep.subr.mxu0 0.0
      %2154 = vmatpush1.msra.mxu0 0.0
      %2155 = vmatprep.subr.mxu0 0.0
      %2156 = vmatpush1.msra.mxu0 0.0
      %2157 = vmatprep.subr.mxu0 0.0
      %2158 = vmatpush1.msra.mxu0 0.0
      %2159 = vmatprep.subr.mxu0 0.0
      %2160 = vmatpush1.msra.mxu0 0.0
      %2161 = vmatprep.subr.mxu0 0.0
      %2162 = vmatpush1.msra.mxu0 0.0
      %2163 = vmatprep.subr.mxu0 0.0
      %2164 = vmatpush1.msra.mxu0 0.0
      %2165 = vmatprep.subr.mxu0 0.0
      %2166 = vmatpush1.msra.mxu0 0.0
      %2167 = vmatprep.subr.mxu0 0.0
      %2168 = vmatpush1.msra.mxu0 0.0
      %2169 = vmatprep.subr.mxu0 0.0
      %2170 = vmatpush1.msra.mxu0 0.0
      %2171 = vmatprep.subr.mxu0 0.0
      %2172 = vmatpush1.msra.mxu0 0.0
      %2173 = vmatprep.subr.mxu0 0.0
      %2174 = vmatpush1.msra.mxu0 0.0
      %2175 = vmatprep.subr.mxu0 0.0
      %2176 = vmatpush1.msra.mxu0 0.0
      %2177 = vmatprep.subr.mxu0 0.0
      %2178 = vmatpush1.msra.mxu0 0.0
      %2179 = vmatprep.subr.mxu0 0.0
      %2180 = vmatpush1.msra.mxu0 0.0
      %2181 = vmatprep.subr.mxu0 0.0
      %2182 = vmatpush1.msra.mxu0 0.0
      %2183 = vmatprep.subr.mxu0 0.0
      %2184 = vmatpush1.msra.mxu0 0.0
      %2185 = vmatprep.subr.mxu0 0.0
      %2186 = vmatpush1.msra.mxu0 0.0
      %2187 = vmatprep.subr.mxu0 0.0
      %2188 = vmatpush1.msra.mxu0 0.0
      %2189 = vmatprep.subr.mxu0 0.0
      %2190 = vmatpush1.msra.mxu0 0.0
      %2191 = vmatprep.subr.mxu0 0.0
      %2192 = vmatpush1.msra.mxu0 0.0
      %2193 = vmatprep.mubr.f32.mxu0 0.0
      %2194 = vmatmul.mubr.f32.gmra.mrb[0].mxu0 %v2031
      %v2195 = vpop.f32.mrb[0].mxu0
      %v2196 = vadd.f32 0.0, %v2195
      %v2197 = vpop.f32.mrb[0].mxu0
      %2198 = vmatprep.mubr.f32.mxu0 0.0
      %2199 = vmatmul.mubr.f32.gmra.mrb[0].mxu0 %v2034
      %v2200 = vpop.f32.mrb[0].mxu0
      %v2201 = vadd.f32 0.0, %v2200
      %v2202 = vpop.f32.mrb[0].mxu0
      %2203 = vmatprep.mubr.f32.mxu0 0.0
      %2204 = vmatmul.mubr.f32.gmra.mrb[0].mxu0 %v2037
      %v2205 = vpop.f32.mrb[0].mxu0
      %v2206 = vadd.f32 0.0, %v2205
      %v2207 = vpop.f32.mrb[0].mxu0
      %2208 = vmatprep.mubr.f32.mxu0 0.0
      %2209 = vmatmul.mubr.f32.gmra.mrb[0].mxu0 %v2040
      %v2210 = vpop.f32.mrb[0].mxu0
      %v2211 = vadd.f32 0.0, %v2210
      %v2212 = vpop.f32.mrb[0].mxu0
      %2213 = vmatprep.mubr.f32.mxu0 0.0
      %2214 = vmatmul.mubr.f32.gmra.mrb[0].mxu0 %v2043
      %v2215 = vpop.f32.mrb[0].mxu0
      %v2216 = vadd.f32 0.0, %v2215
      %v2217 = vpop.f32.mrb[0].mxu0
      %2218 = vmatprep.mubr.f32.mxu0 0.0
      %2219 = vmatmul.mubr.f32.gmra.mrb[0].mxu0 %v2046
      %v2220 = vpop.f32.mrb[0].mxu0
      %v2221 = vadd.f32 0.0, %v2220
      %v2222 = vpop.f32.mrb[0].mxu0
      %2223 = vmatprep.mubr.f32.mxu0 0.0
      %2224 = vmatmul.mubr.f32.gmra.mrb[0].mxu0 %v2049
      %v2225 = vpop.f32.mrb[0].mxu0
      %v2226 = vadd.f32 0.0, %v2225
      %v2227 = vpop.f32.mrb[0].mxu0
      %2228 = vmatprep.mubr.f32.mxu0 0.0
      %2229 = vmatmul.mubr.f32.gmra.mrb[0].mxu0 %v2052
      %v2230 = vpop.f32.mrb[0].mxu0
      %v2231 = vadd.f32 0.0, %v2230
      %v2232 = vpop.f32.mrb[0].mxu0
      %2233 = vmatprep.mubr.f32.mxu0 0.0
      %2234 = vmatmul.mubr.f32.gmra.mrb[0].mxu0 %v2055
      %v2235 = vpop.f32.mrb[0].mxu0
      %v2236 = vadd.f32 0.0, %v2235
      %v2237 = vpop.f32.mrb[0].mxu0
      %2238 = vmatprep.mubr.f32.mxu0 0.0
      %2239 = vmatmul.mubr.f32.gmra.mrb[0].mxu0 %v2058
      %v2240 = vpop.f32.mrb[0].mxu0
      %v2241 = vadd.f32 0.0, %v2240
      %v2242 = vpop.f32.mrb[0].mxu0
      %2243 = vmatprep.mubr.f32.mxu0 0.0
      %2244 = vmatmul.mubr.f32.gmra.mrb[0].mxu0 %v2061
      %v2245 = vpop.f32.mrb[0].mxu0
      %v2246 = vadd.f32 0.0, %v2245
      %v2247 = vpop.f32.mrb[0].mxu0
      %2248 = vmatprep.mubr.f32.mxu0 0.0
      %2249 = vmatmul.mubr.f32.gmra.mrb[0].mxu0 %v2064
      %v2250 = vpop.f32.mrb[0].mxu0
      %v2251 = vadd.f32 0.0, %v2250
      %v2252 = vpop.f32.mrb[0].mxu0
      %2253 = vmatprep.mubr.f32.mxu0 0.0
      %2254 = vmatmul.mubr.f32.gmra.mrb[0].mxu0 %v2067
      %v2255 = vpop.f32.mrb[0].mxu0
      %v2256 = vadd.f32 0.0, %v2255
      %v2257 = vpop.f32.mrb[0].mxu0
      %2258 = vmatprep.mubr.f32.mxu0 0.0
      %2259 = vmatmul.mubr.f32.gmra.mrb[0].mxu0 %v2070
      %v2260 = vpop.f32.mrb[0].mxu0
      %v2261 = vadd.f32 0.0, %v2260
      %v2262 = vpop.f32.mrb[0].mxu0
      %2263 = vmatprep.mubr.f32.mxu0 0.0
      %2264 = vmatmul.mubr.f32.gmra.mrb[0].mxu0 %v2073
      %v2265 = vpop.f32.mrb[0].mxu0
      %v2266 = vadd.f32 0.0, %v2265
      %v2267 = vpop.f32.mrb[0].mxu0
      %2268 = vmatprep.mubr.f32.mxu0 0.0
      %2269 = vmatmul.mubr.f32.gmra.mrb[0].mxu0 %v2076
      %v2270 = vpop.f32.mrb[0].mxu0
      %v2271 = vadd.f32 0.0, %v2270
      %v2272 = vpop.f32.mrb[0].mxu0
      %2273 = vmatprep.mubr.f32.mxu0 0.0
      %2274 = vmatmul.mubr.f32.gmra.mrb[0].mxu0 %v2079
      %v2275 = vpop.f32.mrb[0].mxu0
      %v2276 = vadd.f32 0.0, %v2275
      %v2277 = vpop.f32.mrb[0].mxu0
      %2278 = vmatprep.mubr.f32.mxu0 0.0
      %2279 = vmatmul.mubr.f32.gmra.mrb[0].mxu0 %v2082
      %v2280 = vpop.f32.mrb[0].mxu0
      %v2281 = vadd.f32 0.0, %v2280
      %v2282 = vpop.f32.mrb[0].mxu0
      %2283 = vmatprep.mubr.f32.mxu0 0.0
      %2284 = vmatmul.mubr.f32.gmra.mrb[0].mxu0 %v2085
      %v2285 = vpop.f32.mrb[0].mxu0
      %v2286 = vadd.f32 0.0, %v2285
      %v2287 = vpop.f32.mrb[0].mxu0
      %2288 = vmatprep.mubr.f32.mxu0 0.0
      %2289 = vmatmul.mubr.f32.gmra.mrb[0].mxu0 %v2088
      %v2290 = vpop.f32.mrb[0].mxu0
      %v2291 = vadd.f32 0.0, %v2290
      %v2292 = vpop.f32.mrb[0].mxu0
      %2293 = vmatprep.mubr.f32.mxu0 0.0
      %2294 = vmatmul.mubr.f32.gmra.mrb[0].mxu0 %v2091
      %v2295 = vpop.f32.mrb[0].mxu0
      %v2296 = vadd.f32 0.0, %v2295
      %v2297 = vpop.f32.mrb[0].mxu0
      %2298 = vmatprep.mubr.f32.mxu0 0.0
      %2299 = vmatmul.mubr.f32.gmra.mrb[0].mxu0 %v2094
      %v2300 = vpop.f32.mrb[0].mxu0
      %v2301 = vadd.f32 0.0, %v2300
      %v2302 = vpop.f32.mrb[0].mxu0
      %2303 = vmatprep.mubr.f32.mxu0 0.0
      %2304 = vmatmul.mubr.f32.gmra.mrb[0].mxu0 %v2097
      %v2305 = vpop.f32.mrb[0].mxu0
      %v2306 = vadd.f32 0.0, %v2305
      %v2307 = vpop.f32.mrb[0].mxu0
      %2308 = vmatprep.mubr.f32.mxu0 0.0
      %2309 = vmatmul.mubr.f32.gmra.mrb[0].mxu0 %v2100
      %v2310 = vpop.f32.mrb[0].mxu0
      %v2311 = vadd.f32 0.0, %v2310
      %v2312 = vpop.f32.mrb[0].mxu0
      %2313 = vmatprep.mubr.f32.mxu0 0.0
      %2314 = vmatmul.mubr.f32.gmra.mrb[0].mxu0 %v2103
      %v2315 = vpop.f32.mrb[0].mxu0
      %v2316 = vadd.f32 0.0, %v2315
      %v2317 = vpop.f32.mrb[0].mxu0
      %2318 = vmatprep.mubr.f32.mxu0 0.0
      %2319 = vmatmul.mubr.f32.gmra.mrb[0].mxu0 %v2106
      %v2320 = vpop.f32.mrb[0].mxu0
      %v2321 = vadd.f32 0.0, %v2320
      %v2322 = vpop.f32.mrb[0].mxu0
      %2323 = vmatprep.mubr.f32.mxu0 0.0
      %2324 = vmatmul.mubr.f32.gmra.mrb[0].mxu0 %v2109
      %v2325 = vpop.f32.mrb[0].mxu0
      %v2326 = vadd.f32 0.0, %v2325
      %v2327 = vpop.f32.mrb[0].mxu0
      %2328 = vmatprep.mubr.f32.mxu0 0.0
      %2329 = vmatmul.mubr.f32.gmra.mrb[0].mxu0 %v2112
      %v2330 = vpop.f32.mrb[0].mxu0
      %v2331 = vadd.f32 0.0, %v2330
      %v2332 = vpop.f32.mrb[0].mxu0
      %2333 = vmatprep.mubr.f32.mxu0 0.0
      %2334 = vmatmul.mubr.f32.gmra.mrb[0].mxu0 %v2115
      %v2335 = vpop.f32.mrb[0].mxu0
      %v2336 = vadd.f32 0.0, %v2335
      %v2337 = vpop.f32.mrb[0].mxu0
      %2338 = vmatprep.mubr.f32.mxu0 0.0
      %2339 = vmatmul.mubr.f32.gmra.mrb[0].mxu0 %v2118
      %v2340 = vpop.f32.mrb[0].mxu0
      %v2341 = vadd.f32 0.0, %v2340
      %v2342 = vpop.f32.mrb[0].mxu0
      %2343 = vmatprep.mubr.f32.mxu0 0.0
      %2344 = vmatmul.mubr.f32.gmra.mrb[0].mxu0 %v2121
      %v2345 = vpop.f32.mrb[0].mxu0
      %v2346 = vadd.f32 0.0, %v2345
      %v2347 = vpop.f32.mrb[0].mxu0
      %2348 = vmatprep.mubr.f32.mxu0 0.0
      %2349 = vmatmul.mubr.f32.gmra.mrb[0].mxu0 %v2124
      %v2350 = vpop.f32.mrb[0].mxu0
      %v2351 = vadd.f32 0.0, %v2350
      %v2352 = vpop.f32.mrb[0].mxu0
      %2353 = vdwg.mxu0
      %v2354 = vadd.f32 %v1965, %v2196
      %v2355 = vadd.f32 %v1966, %v2201
      %v2356 = vadd.f32 %v1967, %v2206
      %v2357 = vadd.f32 %v1968, %v2211
      %v2358 = vadd.f32 %v1969, %v2216
      %v2359 = vadd.f32 %v1970, %v2221
      %v2360 = vadd.f32 %v1971, %v2226
      %v2361 = vadd.f32 %v1972, %v2231
      %v2362 = vadd.f32 %v1973, %v2236
      %v2363 = vadd.f32 %v1974, %v2241
      %v2364 = vadd.f32 %v1975, %v2246
      %v2365 = vadd.f32 %v1976, %v2251
      %v2366 = vadd.f32 %v1977, %v2256
      %v2367 = vadd.f32 %v1978, %v2261
      %v2368 = vadd.f32 %v1979, %v2266
      %v2369 = vadd.f32 %v1980, %v2271
      %v2370 = vadd.f32 %v1981, %v2276
      %v2371 = vadd.f32 %v1982, %v2281
      %v2372 = vadd.f32 %v1983, %v2286
      %v2373 = vadd.f32 %v1984, %v2291
      %v2374 = vadd.f32 %v1985, %v2296
      %v2375 = vadd.f32 %v1986, %v2301
      %v2376 = vadd.f32 %v1987, %v2306
      %v2377 = vadd.f32 %v1988, %v2311
      %v2378 = vadd.f32 %v1989, %v2316
      %v2379 = vadd.f32 %v1990, %v2321
      %v2380 = vadd.f32 %v1991, %v2326
      %v2381 = vadd.f32 %v1992, %v2331
      %v2382 = vadd.f32 %v1993, %v2336
      %v2383 = vadd.f32 %v1994, %v2341
      %v2384 = vadd.f32 %v1995, %v2346
      %v2385 = vadd.f32 %v1996, %v2351
      %v2386 = vld [vmem:[%s1607 + $0x2] sm:$0xff]
      %v2387 = vld [vmem:[%s1607 + $0xa] sm:$0xff]
      %v2388 = vld [vmem:[%s1607 + $0x1a] sm:$0xff]
      %v2389 = vld [vmem:[%s1607 + $0x22] sm:$0xff]
      %v2390 = vld [vmem:[%s1607 + $0x32] sm:$0xff]
      %v2391 = vld [vmem:[%s1607 + $0x3a] sm:$0xff]
      %v2392 = vld [vmem:[%s1607 + $0x4a] sm:$0xff]
      %v2393 = vld [vmem:[%s1607 + $0x52] sm:$0xff]
      %v2394 = vld [vmem:[%s1607 + $0x62] sm:$0xff]
      %v2395 = vld [vmem:[%s1607 + $0x6a] sm:$0xff]
      %v2396 = vld [vmem:[%s1607 + $0x7a] sm:$0xff]
      %v2397 = vld [vmem:[%s1607 + $0x82] sm:$0xff]
      %v2398 = vld [vmem:[%s1607 + $0x92] sm:$0xff]
      %v2399 = vld [vmem:[%s1607 + $0x9a] sm:$0xff]
      %v2400 = vld [vmem:[%s1607 + $0xaa] sm:$0xff]
      %v2401 = vld [vmem:[%s1607 + $0xb2] sm:$0xff]
      %v2402 = vld [vmem:[%s1607 + $0xc2] sm:$0xff]
      %v2403 = vld [vmem:[%s1607 + $0xca] sm:$0xff]
      %v2404 = vld [vmem:[%s1607 + $0xda] sm:$0xff]
      %v2405 = vld [vmem:[%s1607 + $0xe2] sm:$0xff]
      %v2406 = vld [vmem:[%s1607 + $0xf2] sm:$0xff]
      %v2407 = vld [vmem:[%s1607 + $0xfa] sm:$0xff]
      %v2408 = vld [vmem:[%s1607 + $0x10a] sm:$0xff]
      %v2409 = vld [vmem:[%s1607 + $0x112] sm:$0xff]
      %v2410 = vld [vmem:[%s1607 + $0x122] sm:$0xff]
      %v2411 = vld [vmem:[%s1607 + $0x12a] sm:$0xff]
      %v2412 = vld [vmem:[%s1607 + $0x13a] sm:$0xff]
      %v2413 = vld [vmem:[%s1607 + $0x142] sm:$0xff]
      %v2414 = vld [vmem:[%s1607 + $0x152] sm:$0xff]
      %v2415 = vld [vmem:[%s1607 + $0x15a] sm:$0xff]
      %v2416 = vld [vmem:[%s1607 + $0x16a] sm:$0xff]
      %v2417 = vld [vmem:[%s1607 + $0x172] sm:$0xff]
      %v2418 = vld [vmem:[%s1 + $0x14] sm:$0xf]
      %v2420 = vsel %vm566, %v2386, 0
      %v2423 = vsel %vm566, %v2387, 0
      %v2426 = vsel %vm566, %v2388, 0
      %v2429 = vsel %vm566, %v2389, 0
      %v2432 = vsel %vm566, %v2390, 0
      %v2435 = vsel %vm566, %v2391, 0
      %v2438 = vsel %vm566, %v2392, 0
      %v2441 = vsel %vm566, %v2393, 0
      %v2444 = vsel %vm566, %v2394, 0
      %v2447 = vsel %vm566, %v2395, 0
      %v2450 = vsel %vm566, %v2396, 0
      %v2453 = vsel %vm566, %v2397, 0
      %v2456 = vsel %vm566, %v2398, 0
      %v2459 = vsel %vm566, %v2399, 0
      %v2462 = vsel %vm566, %v2400, 0
      %v2465 = vsel %vm566, %v2401, 0
      %v2468 = vsel %vm566, %v2402, 0
      %v2471 = vsel %vm566, %v2403, 0
      %v2474 = vsel %vm566, %v2404, 0
      %v2477 = vsel %vm566, %v2405, 0
      %v2480 = vsel %vm566, %v2406, 0
      %v2483 = vsel %vm566, %v2407, 0
      %v2486 = vsel %vm566, %v2408, 0
      %v2489 = vsel %vm566, %v2409, 0
      %v2492 = vsel %vm566, %v2410, 0
      %v2495 = vsel %vm566, %v2411, 0
      %v2498 = vsel %vm566, %v2412, 0
      %v2501 = vsel %vm566, %v2413, 0
      %v2504 = vsel %vm566, %v2414, 0
      %v2507 = vsel %vm566, %v2415, 0
      %v2510 = vsel %vm566, %v2416, 0
      %v2513 = vsel %vm566, %v2417, 0
      %v2516 = vsel %vm663, %v2418, 0
      %2518 = vmatprep.subr.mxu0 0.0
      %2519 = vmatpush1.msra.mxu0 %v2516
      %2520 = vmatprep.subr.mxu0 0.0
      %2521 = vmatpush1.msra.mxu0 0.0
      %2522 = vmatprep.subr.mxu0 0.0
      %2523 = vmatpush1.msra.mxu0 0.0
      %2524 = vmatprep.subr.mxu0 0.0
      %2525 = vmatpush1.msra.mxu0 0.0
      %2526 = vmatprep.subr.mxu0 0.0
      %2527 = vmatpush1.msra.mxu0 0.0
      %2528 = vmatprep.subr.mxu0 0.0
      %2529 = vmatpush1.msra.mxu0 0.0
      %2530 = vmatprep.subr.mxu0 0.0
      %2531 = vmatpush1.msra.mxu0 0.0
      %2532 = vmatprep.subr.mxu0 0.0
      %2533 = vmatpush1.msra.mxu0 0.0
      %2534 = vmatprep.subr.mxu0 0.0
      %2535 = vmatpush1.msra.mxu0 0.0
      %2536 = vmatprep.subr.mxu0 0.0
      %2537 = vmatpush1.msra.mxu0 0.0
      %2538 = vmatprep.subr.mxu0 0.0
      %2539 = vmatpush1.msra.mxu0 0.0
      %2540 = vmatprep.subr.mxu0 0.0
      %2541 = vmatpush1.msra.mxu0 0.0
      %2542 = vmatprep.subr.mxu0 0.0
      %2543 = vmatpush1.msra.mxu0 0.0
      %2544 = vmatprep.subr.mxu0 0.0
      %2545 = vmatpush1.msra.mxu0 0.0
      %2546 = vmatprep.subr.mxu0 0.0
      %2547 = vmatpush1.msra.mxu0 0.0
      %2548 = vmatprep.subr.mxu0 0.0
      %2549 = vmatpush1.msra.mxu0 0.0
      %2550 = vmatprep.subr.mxu0 0.0
      %2551 = vmatpush1.msra.mxu0 0.0
      %2552 = vmatprep.subr.mxu0 0.0
      %2553 = vmatpush1.msra.mxu0 0.0
      %2554 = vmatprep.subr.mxu0 0.0
      %2555 = vmatpush1.msra.mxu0 0.0
      %2556 = vmatprep.subr.mxu0 0.0
      %2557 = vmatpush1.msra.mxu0 0.0
      %2558 = vmatprep.subr.mxu0 0.0
      %2559 = vmatpush1.msra.mxu0 0.0
      %2560 = vmatprep.subr.mxu0 0.0
      %2561 = vmatpush1.msra.mxu0 0.0
      %2562 = vmatprep.subr.mxu0 0.0
      %2563 = vmatpush1.msra.mxu0 0.0
      %2564 = vmatprep.subr.mxu0 0.0
      %2565 = vmatpush1.msra.mxu0 0.0
      %2566 = vmatprep.subr.mxu0 0.0
      %2567 = vmatpush1.msra.mxu0 0.0
      %2568 = vmatprep.subr.mxu0 0.0
      %2569 = vmatpush1.msra.mxu0 0.0
      %2570 = vmatprep.subr.mxu0 0.0
      %2571 = vmatpush1.msra.mxu0 0.0
      %2572 = vmatprep.subr.mxu0 0.0
      %2573 = vmatpush1.msra.mxu0 0.0
      %2574 = vmatprep.subr.mxu0 0.0
      %2575 = vmatpush1.msra.mxu0 0.0
      %2576 = vmatprep.subr.mxu0 0.0
      %2577 = vmatpush1.msra.mxu0 0.0
      %2578 = vmatprep.subr.mxu0 0.0
      %2579 = vmatpush1.msra.mxu0 0.0
      %2580 = vmatprep.subr.mxu0 0.0
      %2581 = vmatpush1.msra.mxu0 0.0
      %2582 = vmatprep.mubr.f32.mxu0 0.0
      %2583 = vmatmul.mubr.f32.gmra.mrb[0].mxu0 %v2420
      %v2584 = vpop.f32.mrb[0].mxu0
      %v2585 = vadd.f32 0.0, %v2584
      %v2586 = vpop.f32.mrb[0].mxu0
      %2587 = vmatprep.mubr.f32.mxu0 0.0
      %2588 = vmatmul.mubr.f32.gmra.mrb[0].mxu0 %v2423
      %v2589 = vpop.f32.mrb[0].mxu0
      %v2590 = vadd.f32 0.0, %v2589
      %v2591 = vpop.f32.mrb[0].mxu0
      %2592 = vmatprep.mubr.f32.mxu0 0.0
      %2593 = vmatmul.mubr.f32.gmra.mrb[0].mxu0 %v2426
      %v2594 = vpop.f32.mrb[0].mxu0
      %v2595 = vadd.f32 0.0, %v2594
      %v2596 = vpop.f32.mrb[0].mxu0
      %2597 = vmatprep.mubr.f32.mxu0 0.0
      %2598 = vmatmul.mubr.f32.gmra.mrb[0].mxu0 %v2429
      %v2599 = vpop.f32.mrb[0].mxu0
      %v2600 = vadd.f32 0.0, %v2599
      %v2601 = vpop.f32.mrb[0].mxu0
      %2602 = vmatprep.mubr.f32.mxu0 0.0
      %2603 = vmatmul.mubr.f32.gmra.mrb[0].mxu0 %v2432
      %v2604 = vpop.f32.mrb[0].mxu0
      %v2605 = vadd.f32 0.0, %v2604
      %v2606 = vpop.f32.mrb[0].mxu0
      %2607 = vmatprep.mubr.f32.mxu0 0.0
      %2608 = vmatmul.mubr.f32.gmra.mrb[0].mxu0 %v2435
      %v2609 = vpop.f32.mrb[0].mxu0
      %v2610 = vadd.f32 0.0, %v2609
      %v2611 = vpop.f32.mrb[0].mxu0
      %2612 = vmatprep.mubr.f32.mxu0 0.0
      %2613 = vmatmul.mubr.f32.gmra.mrb[0].mxu0 %v2438
      %v2614 = vpop.f32.mrb[0].mxu0
      %v2615 = vadd.f32 0.0, %v2614
      %v2616 = vpop.f32.mrb[0].mxu0
      %2617 = vmatprep.mubr.f32.mxu0 0.0
      %2618 = vmatmul.mubr.f32.gmra.mrb[0].mxu0 %v2441
      %v2619 = vpop.f32.mrb[0].mxu0
      %v2620 = vadd.f32 0.0, %v2619
      %v2621 = vpop.f32.mrb[0].mxu0
      %2622 = vmatprep.mubr.f32.mxu0 0.0
      %2623 = vmatmul.mubr.f32.gmra.mrb[0].mxu0 %v2444
      %v2624 = vpop.f32.mrb[0].mxu0
      %v2625 = vadd.f32 0.0, %v2624
      %v2626 = vpop.f32.mrb[0].mxu0
      %2627 = vmatprep.mubr.f32.mxu0 0.0
      %2628 = vmatmul.mubr.f32.gmra.mrb[0].mxu0 %v2447
      %v2629 = vpop.f32.mrb[0].mxu0
      %v2630 = vadd.f32 0.0, %v2629
      %v2631 = vpop.f32.mrb[0].mxu0
      %2632 = vmatprep.mubr.f32.mxu0 0.0
      %2633 = vmatmul.mubr.f32.gmra.mrb[0].mxu0 %v2450
      %v2634 = vpop.f32.mrb[0].mxu0
      %v2635 = vadd.f32 0.0, %v2634
      %v2636 = vpop.f32.mrb[0].mxu0
      %2637 = vmatprep.mubr.f32.mxu0 0.0
      %2638 = vmatmul.mubr.f32.gmra.mrb[0].mxu0 %v2453
      %v2639 = vpop.f32.mrb[0].mxu0
      %v2640 = vadd.f32 0.0, %v2639
      %v2641 = vpop.f32.mrb[0].mxu0
      %2642 = vmatprep.mubr.f32.mxu0 0.0
      %2643 = vmatmul.mubr.f32.gmra.mrb[0].mxu0 %v2456
      %v2644 = vpop.f32.mrb[0].mxu0
      %v2645 = vadd.f32 0.0, %v2644
      %v2646 = vpop.f32.mrb[0].mxu0
      %2647 = vmatprep.mubr.f32.mxu0 0.0
      %2648 = vmatmul.mubr.f32.gmra.mrb[0].mxu0 %v2459
      %v2649 = vpop.f32.mrb[0].mxu0
      %v2650 = vadd.f32 0.0, %v2649
      %v2651 = vpop.f32.mrb[0].mxu0
      %2652 = vmatprep.mubr.f32.mxu0 0.0
      %2653 = vmatmul.mubr.f32.gmra.mrb[0].mxu0 %v2462
      %v2654 = vpop.f32.mrb[0].mxu0
      %v2655 = vadd.f32 0.0, %v2654
      %v2656 = vpop.f32.mrb[0].mxu0
      %2657 = vmatprep.mubr.f32.mxu0 0.0
      %2658 = vmatmul.mubr.f32.gmra.mrb[0].mxu0 %v2465
      %v2659 = vpop.f32.mrb[0].mxu0
      %v2660 = vadd.f32 0.0, %v2659
      %v2661 = vpop.f32.mrb[0].mxu0
      %2662 = vmatprep.mubr.f32.mxu0 0.0
      %2663 = vmatmul.mubr.f32.gmra.mrb[0].mxu0 %v2468
      %v2664 = vpop.f32.mrb[0].mxu0
      %v2665 = vadd.f32 0.0, %v2664
      %v2666 = vpop.f32.mrb[0].mxu0
      %2667 = vmatprep.mubr.f32.mxu0 0.0
      %2668 = vmatmul.mubr.f32.gmra.mrb[0].mxu0 %v2471
      %v2669 = vpop.f32.mrb[0].mxu0
      %v2670 = vadd.f32 0.0, %v2669
      %v2671 = vpop.f32.mrb[0].mxu0
      %2672 = vmatprep.mubr.f32.mxu0 0.0
      %2673 = vmatmul.mubr.f32.gmra.mrb[0].mxu0 %v2474
      %v2674 = vpop.f32.mrb[0].mxu0
      %v2675 = vadd.f32 0.0, %v2674
      %v2676 = vpop.f32.mrb[0].mxu0
      %2677 = vmatprep.mubr.f32.mxu0 0.0
      %2678 = vmatmul.mubr.f32.gmra.mrb[0].mxu0 %v2477
      %v2679 = vpop.f32.mrb[0].mxu0
      %v2680 = vadd.f32 0.0, %v2679
      %v2681 = vpop.f32.mrb[0].mxu0
      %2682 = vmatprep.mubr.f32.mxu0 0.0
      %2683 = vmatmul.mubr.f32.gmra.mrb[0].mxu0 %v2480
      %v2684 = vpop.f32.mrb[0].mxu0
      %v2685 = vadd.f32 0.0, %v2684
      %v2686 = vpop.f32.mrb[0].mxu0
      %2687 = vmatprep.mubr.f32.mxu0 0.0
      %2688 = vmatmul.mubr.f32.gmra.mrb[0].mxu0 %v2483
      %v2689 = vpop.f32.mrb[0].mxu0
      %v2690 = vadd.f32 0.0, %v2689
      %v2691 = vpop.f32.mrb[0].mxu0
      %2692 = vmatprep.mubr.f32.mxu0 0.0
      %2693 = vmatmul.mubr.f32.gmra.mrb[0].mxu0 %v2486
      %v2694 = vpop.f32.mrb[0].mxu0
      %v2695 = vadd.f32 0.0, %v2694
      %v2696 = vpop.f32.mrb[0].mxu0
      %2697 = vmatprep.mubr.f32.mxu0 0.0
      %2698 = vmatmul.mubr.f32.gmra.mrb[0].mxu0 %v2489
      %v2699 = vpop.f32.mrb[0].mxu0
      %v2700 = vadd.f32 0.0, %v2699
      %v2701 = vpop.f32.mrb[0].mxu0
      %2702 = vmatprep.mubr.f32.mxu0 0.0
      %2703 = vmatmul.mubr.f32.gmra.mrb[0].mxu0 %v2492
      %v2704 = vpop.f32.mrb[0].mxu0
      %v2705 = vadd.f32 0.0, %v2704
      %v2706 = vpop.f32.mrb[0].mxu0
      %2707 = vmatprep.mubr.f32.mxu0 0.0
      %2708 = vmatmul.mubr.f32.gmra.mrb[0].mxu0 %v2495
      %v2709 = vpop.f32.mrb[0].mxu0
      %v2710 = vadd.f32 0.0, %v2709
      %v2711 = vpop.f32.mrb[0].mxu0
      %2712 = vmatprep.mubr.f32.mxu0 0.0
      %2713 = vmatmul.mubr.f32.gmra.mrb[0].mxu0 %v2498
      %v2714 = vpop.f32.mrb[0].mxu0
      %v2715 = vadd.f32 0.0, %v2714
      %v2716 = vpop.f32.mrb[0].mxu0
      %2717 = vmatprep.mubr.f32.mxu0 0.0
      %2718 = vmatmul.mubr.f32.gmra.mrb[0].mxu0 %v2501
      %v2719 = vpop.f32.mrb[0].mxu0
      %v2720 = vadd.f32 0.0, %v2719
      %v2721 = vpop.f32.mrb[0].mxu0
      %2722 = vmatprep.mubr.f32.mxu0 0.0
      %2723 = vmatmul.mubr.f32.gmra.mrb[0].mxu0 %v2504
      %v2724 = vpop.f32.mrb[0].mxu0
      %v2725 = vadd.f32 0.0, %v2724
      %v2726 = vpop.f32.mrb[0].mxu0
      %2727 = vmatprep.mubr.f32.mxu0 0.0
      %2728 = vmatmul.mubr.f32.gmra.mrb[0].mxu0 %v2507
      %v2729 = vpop.f32.mrb[0].mxu0
      %v2730 = vadd.f32 0.0, %v2729
      %v2731 = vpop.f32.mrb[0].mxu0
      %2732 = vmatprep.mubr.f32.mxu0 0.0
      %2733 = vmatmul.mubr.f32.gmra.mrb[0].mxu0 %v2510
      %v2734 = vpop.f32.mrb[0].mxu0
      %v2735 = vadd.f32 0.0, %v2734
      %v2736 = vpop.f32.mrb[0].mxu0
      %2737 = vmatprep.mubr.f32.mxu0 0.0
      %2738 = vmatmul.mubr.f32.gmra.mrb[0].mxu0 %v2513
      %v2739 = vpop.f32.mrb[0].mxu0
      %v2740 = vadd.f32 0.0, %v2739
      %v2741 = vpop.f32.mrb[0].mxu0
      %2742 = vdwg.mxu0
      %v2743 = vadd.f32 %v2354, %v2585
      %v2744 = vadd.f32 %v2355, %v2590
      %v2745 = vadd.f32 %v2356, %v2595
      %v2746 = vadd.f32 %v2357, %v2600
      %v2747 = vadd.f32 %v2358, %v2605
      %v2748 = vadd.f32 %v2359, %v2610
      %v2749 = vadd.f32 %v2360, %v2615
      %v2750 = vadd.f32 %v2361, %v2620
      %v2751 = vadd.f32 %v2362, %v2625
      %v2752 = vadd.f32 %v2363, %v2630
      %v2753 = vadd.f32 %v2364, %v2635
      %v2754 = vadd.f32 %v2365, %v2640
      %v2755 = vadd.f32 %v2366, %v2645
      %v2756 = vadd.f32 %v2367, %v2650
      %v2757 = vadd.f32 %v2368, %v2655
      %v2758 = vadd.f32 %v2369, %v2660
      %v2759 = vadd.f32 %v2370, %v2665
      %v2760 = vadd.f32 %v2371, %v2670
      %v2761 = vadd.f32 %v2372, %v2675
      %v2762 = vadd.f32 %v2373, %v2680
      %v2763 = vadd.f32 %v2374, %v2685
      %v2764 = vadd.f32 %v2375, %v2690
      %v2765 = vadd.f32 %v2376, %v2695
      %v2766 = vadd.f32 %v2377, %v2700
      %v2767 = vadd.f32 %v2378, %v2705
      %v2768 = vadd.f32 %v2379, %v2710
      %v2769 = vadd.f32 %v2380, %v2715
      %v2770 = vadd.f32 %v2381, %v2720
      %v2771 = vadd.f32 %v2382, %v2725
      %v2772 = vadd.f32 %v2383, %v2730
      %v2773 = vadd.f32 %v2384, %v2735
      %v2774 = vadd.f32 %v2385, %v2740
      %s2775 = sadd.s32 %s497, 2
      %s2776 = smul.u32 %s2775, 24
      %s2777 = scalar_lea.vmem [#allocation2], %s2776
      %v2778 = vld [vmem:[%s2777] sm:$0xff]
      %v2779 = vld [vmem:[%s2777 + $0x8] sm:$0xff]
      %v2780 = vld [vmem:[%s2777 + $0x18] sm:$0xff]
      %v2781 = vld [vmem:[%s2777 + $0x20] sm:$0xff]
      %v2782 = vld [vmem:[%s2777 + $0x30] sm:$0xff]
      %v2783 = vld [vmem:[%s2777 + $0x38] sm:$0xff]
      %v2784 = vld [vmem:[%s2777 + $0x48] sm:$0xff]
      %v2785 = vld [vmem:[%s2777 + $0x50] sm:$0xff]
      %v2786 = vld [vmem:[%s2777 + $0x60] sm:$0xff]
      %v2787 = vld [vmem:[%s2777 + $0x68] sm:$0xff]
      %v2788 = vld [vmem:[%s2777 + $0x78] sm:$0xff]
      %v2789 = vld [vmem:[%s2777 + $0x80] sm:$0xff]
      %v2790 = vld [vmem:[%s2777 + $0x90] sm:$0xff]
      %v2791 = vld [vmem:[%s2777 + $0x98] sm:$0xff]
      %v2792 = vld [vmem:[%s2777 + $0xa8] sm:$0xff]
      %v2793 = vld [vmem:[%s2777 + $0xb0] sm:$0xff]
      %v2794 = vld [vmem:[%s2777 + $0xc0] sm:$0xff]
      %v2795 = vld [vmem:[%s2777 + $0xc8] sm:$0xff]
      %v2796 = vld [vmem:[%s2777 + $0xd8] sm:$0xff]
      %v2797 = vld [vmem:[%s2777 + $0xe0] sm:$0xff]
      %v2798 = vld [vmem:[%s2777 + $0xf0] sm:$0xff]
      %v2799 = vld [vmem:[%s2777 + $0xf8] sm:$0xff]
      %v2800 = vld [vmem:[%s2777 + $0x108] sm:$0xff]
      %v2801 = vld [vmem:[%s2777 + $0x110] sm:$0xff]
      %v2802 = vld [vmem:[%s2777 + $0x120] sm:$0xff]
      %v2803 = vld [vmem:[%s2777 + $0x128] sm:$0xff]
      %v2804 = vld [vmem:[%s2777 + $0x138] sm:$0xff]
      %v2805 = vld [vmem:[%s2777 + $0x140] sm:$0xff]
      %v2806 = vld [vmem:[%s2777 + $0x150] sm:$0xff]
      %v2807 = vld [vmem:[%s2777 + $0x158] sm:$0xff]
      %v2808 = vld [vmem:[%s2777 + $0x168] sm:$0xff]
      %v2809 = vld [vmem:[%s2777 + $0x170] sm:$0xff]
      %v2810 = vld [vmem:[%s1 + $0x18] sm:$0xf]
      %v2812 = vsel %vm566, %v2778, 0
      %v2815 = vsel %vm566, %v2779, 0
      %v2818 = vsel %vm566, %v2780, 0
      %v2821 = vsel %vm566, %v2781, 0
      %v2824 = vsel %vm566, %v2782, 0
      %v2827 = vsel %vm566, %v2783, 0
      %v2830 = vsel %vm566, %v2784, 0
      %v2833 = vsel %vm566, %v2785, 0
      %v2836 = vsel %vm566, %v2786, 0
      %v2839 = vsel %vm566, %v2787, 0
      %v2842 = vsel %vm566, %v2788, 0
      %v2845 = vsel %vm566, %v2789, 0
      %v2848 = vsel %vm566, %v2790, 0
      %v2851 = vsel %vm566, %v2791, 0
      %v2854 = vsel %vm566, %v2792, 0
      %v2857 = vsel %vm566, %v2793, 0
      %v2860 = vsel %vm566, %v2794, 0
      %v2863 = vsel %vm566, %v2795, 0
      %v2866 = vsel %vm566, %v2796, 0
      %v2869 = vsel %vm566, %v2797, 0
      %v2872 = vsel %vm566, %v2798, 0
      %v2875 = vsel %vm566, %v2799, 0
      %v2878 = vsel %vm566, %v2800, 0
      %v2881 = vsel %vm566, %v2801, 0
      %v2884 = vsel %vm566, %v2802, 0
      %v2887 = vsel %vm566, %v2803, 0
      %v2890 = vsel %vm566, %v2804, 0
      %v2893 = vsel %vm566, %v2805, 0
      %v2896 = vsel %vm566, %v2806, 0
      %v2899 = vsel %vm566, %v2807, 0
      %v2902 = vsel %vm566, %v2808, 0
      %v2905 = vsel %vm566, %v2809, 0
      %v2908 = vsel %vm663, %v2810, 0
      %2910 = vmatprep.subr.mxu0 0.0
      %2911 = vmatpush1.msra.mxu0 %v2908
      %2912 = vmatprep.subr.mxu0 0.0
      %2913 = vmatpush1.msra.mxu0 0.0
      %2914 = vmatprep.subr.mxu0 0.0
      %2915 = vmatpush1.msra.mxu0 0.0
      %2916 = vmatprep.subr.mxu0 0.0
      %2917 = vmatpush1.msra.mxu0 0.0
      %2918 = vmatprep.subr.mxu0 0.0
      %2919 = vmatpush1.msra.mxu0 0.0
      %2920 = vmatprep.subr.mxu0 0.0
      %2921 = vmatpush1.msra.mxu0 0.0
      %2922 = vmatprep.subr.mxu0 0.0
      %2923 = vmatpush1.msra.mxu0 0.0
      %2924 = vmatprep.subr.mxu0 0.0
      %2925 = vmatpush1.msra.mxu0 0.0
      %2926 = vmatprep.subr.mxu0 0.0
      %2927 = vmatpush1.msra.mxu0 0.0
      %2928 = vmatprep.subr.mxu0 0.0
      %2929 = vmatpush1.msra.mxu0 0.0
      %2930 = vmatprep.subr.mxu0 0.0
      %2931 = vmatpush1.msra.mxu0 0.0
      %2932 = vmatprep.subr.mxu0 0.0
      %2933 = vmatpush1.msra.mxu0 0.0
      %2934 = vmatprep.subr.mxu0 0.0
      %2935 = vmatpush1.msra.mxu0 0.0
      %2936 = vmatprep.subr.mxu0 0.0
      %2937 = vmatpush1.msra.mxu0 0.0
      %2938 = vmatprep.subr.mxu0 0.0
      %2939 = vmatpush1.msra.mxu0 0.0
      %2940 = vmatprep.subr.mxu0 0.0
      %2941 = vmatpush1.msra.mxu0 0.0
      %2942 = vmatprep.subr.mxu0 0.0
      %2943 = vmatpush1.msra.mxu0 0.0
      %2944 = vmatprep.subr.mxu0 0.0
      %2945 = vmatpush1.msra.mxu0 0.0
      %2946 = vmatprep.subr.mxu0 0.0
      %2947 = vmatpush1.msra.mxu0 0.0
      %2948 = vmatprep.subr.mxu0 0.0
      %2949 = vmatpush1.msra.mxu0 0.0
      %2950 = vmatprep.subr.mxu0 0.0
      %2951 = vmatpush1.msra.mxu0 0.0
      %2952 = vmatprep.subr.mxu0 0.0
      %2953 = vmatpush1.msra.mxu0 0.0
      %2954 = vmatprep.subr.mxu0 0.0
      %2955 = vmatpush1.msra.mxu0 0.0
      %2956 = vmatprep.subr.mxu0 0.0
      %2957 = vmatpush1.msra.mxu0 0.0
      %2958 = vmatprep.subr.mxu0 0.0
      %2959 = vmatpush1.msra.mxu0 0.0
      %2960 = vmatprep.subr.mxu0 0.0
      %2961 = vmatpush1.msra.mxu0 0.0
      %2962 = vmatprep.subr.mxu0 0.0
      %2963 = vmatpush1.msra.mxu0 0.0
      %2964 = vmatprep.subr.mxu0 0.0
      %2965 = vmatpush1.msra.mxu0 0.0
      %2966 = vmatprep.subr.mxu0 0.0
      %2967 = vmatpush1.msra.mxu0 0.0
      %2968 = vmatprep.subr.mxu0 0.0
      %2969 = vmatpush1.msra.mxu0 0.0
      %2970 = vmatprep.subr.mxu0 0.0
      %2971 = vmatpush1.msra.mxu0 0.0
      %2972 = vmatprep.subr.mxu0 0.0
      %2973 = vmatpush1.msra.mxu0 0.0
      %2974 = vmatprep.mubr.f32.mxu0 0.0
      %2975 = vmatmul.mubr.f32.gmra.mrb[0].mxu0 %v2812
      %v2976 = vpop.f32.mrb[0].mxu0
      %v2977 = vadd.f32 0.0, %v2976
      %v2978 = vpop.f32.mrb[0].mxu0
      %2979 = vmatprep.mubr.f32.mxu0 0.0
      %2980 = vmatmul.mubr.f32.gmra.mrb[0].mxu0 %v2815
      %v2981 = vpop.f32.mrb[0].mxu0
      %v2982 = vadd.f32 0.0, %v2981
      %v2983 = vpop.f32.mrb[0].mxu0
      %2984 = vmatprep.mubr.f32.mxu0 0.0
      %2985 = vmatmul.mubr.f32.gmra.mrb[0].mxu0 %v2818
      %v2986 = vpop.f32.mrb[0].mxu0
      %v2987 = vadd.f32 0.0, %v2986
      %v2988 = vpop.f32.mrb[0].mxu0
      %2989 = vmatprep.mubr.f32.mxu0 0.0
      %2990 = vmatmul.mubr.f32.gmra.mrb[0].mxu0 %v2821
      %v2991 = vpop.f32.mrb[0].mxu0
      %v2992 = vadd.f32 0.0, %v2991
      %v2993 = vpop.f32.mrb[0].mxu0
      %2994 = vmatprep.mubr.f32.mxu0 0.0
      %2995 = vmatmul.mubr.f32.gmra.mrb[0].mxu0 %v2824
      %v2996 = vpop.f32.mrb[0].mxu0
      %v2997 = vadd.f32 0.0, %v2996
      %v2998 = vpop.f32.mrb[0].mxu0
      %2999 = vmatprep.mubr.f32.mxu0 0.0
      %3000 = vmatmul.mubr.f32.gmra.mrb[0].mxu0 %v2827
      %v3001 = vpop.f32.mrb[0].mxu0
      %v3002 = vadd.f32 0.0, %v3001
      %v3003 = vpop.f32.mrb[0].mxu0
      %3004 = vmatprep.mubr.f32.mxu0 0.0
      %3005 = vmatmul.mubr.f32.gmra.mrb[0].mxu0 %v2830
      %v3006 = vpop.f32.mrb[0].mxu0
      %v3007 = vadd.f32 0.0, %v3006
      %v3008 = vpop.f32.mrb[0].mxu0
      %3009 = vmatprep.mubr.f32.mxu0 0.0
      %3010 = vmatmul.mubr.f32.gmra.mrb[0].mxu0 %v2833
      %v3011 = vpop.f32.mrb[0].mxu0
      %v3012 = vadd.f32 0.0, %v3011
      %v3013 = vpop.f32.mrb[0].mxu0
      %3014 = vmatprep.mubr.f32.mxu0 0.0
      %3015 = vmatmul.mubr.f32.gmra.mrb[0].mxu0 %v2836
      %v3016 = vpop.f32.mrb[0].mxu0
      %v3017 = vadd.f32 0.0, %v3016
      %v3018 = vpop.f32.mrb[0].mxu0
      %3019 = vmatprep.mubr.f32.mxu0 0.0
      %3020 = vmatmul.mubr.f32.gmra.mrb[0].mxu0 %v2839
      %v3021 = vpop.f32.mrb[0].mxu0
      %v3022 = vadd.f32 0.0, %v3021
      %v3023 = vpop.f32.mrb[0].mxu0
      %3024 = vmatprep.mubr.f32.mxu0 0.0
      %3025 = vmatmul.mubr.f32.gmra.mrb[0].mxu0 %v2842
      %v3026 = vpop.f32.mrb[0].mxu0
      %v3027 = vadd.f32 0.0, %v3026
      %v3028 = vpop.f32.mrb[0].mxu0
      %3029 = vmatprep.mubr.f32.mxu0 0.0
      %3030 = vmatmul.mubr.f32.gmra.mrb[0].mxu0 %v2845
      %v3031 = vpop.f32.mrb[0].mxu0
      %v3032 = vadd.f32 0.0, %v3031
      %v3033 = vpop.f32.mrb[0].mxu0
      %3034 = vmatprep.mubr.f32.mxu0 0.0
      %3035 = vmatmul.mubr.f32.gmra.mrb[0].mxu0 %v2848
      %v3036 = vpop.f32.mrb[0].mxu0
      %v3037 = vadd.f32 0.0, %v3036
      %v3038 = vpop.f32.mrb[0].mxu0
      %3039 = vmatprep.mubr.f32.mxu0 0.0
      %3040 = vmatmul.mubr.f32.gmra.mrb[0].mxu0 %v2851
      %v3041 = vpop.f32.mrb[0].mxu0
      %v3042 = vadd.f32 0.0, %v3041
      %v3043 = vpop.f32.mrb[0].mxu0
      %3044 = vmatprep.mubr.f32.mxu0 0.0
      %3045 = vmatmul.mubr.f32.gmra.mrb[0].mxu0 %v2854
      %v3046 = vpop.f32.mrb[0].mxu0
      %v3047 = vadd.f32 0.0, %v3046
      %v3048 = vpop.f32.mrb[0].mxu0
      %3049 = vmatprep.mubr.f32.mxu0 0.0
      %3050 = vmatmul.mubr.f32.gmra.mrb[0].mxu0 %v2857
      %v3051 = vpop.f32.mrb[0].mxu0
      %v3052 = vadd.f32 0.0, %v3051
      %v3053 = vpop.f32.mrb[0].mxu0
      %3054 = vmatprep.mubr.f32.mxu0 0.0
      %3055 = vmatmul.mubr.f32.gmra.mrb[0].mxu0 %v2860
      %v3056 = vpop.f32.mrb[0].mxu0
      %v3057 = vadd.f32 0.0, %v3056
      %v3058 = vpop.f32.mrb[0].mxu0
      %3059 = vmatprep.mubr.f32.mxu0 0.0
      %3060 = vmatmul.mubr.f32.gmra.mrb[0].mxu0 %v2863
      %v3061 = vpop.f32.mrb[0].mxu0
      %v3062 = vadd.f32 0.0, %v3061
      %v3063 = vpop.f32.mrb[0].mxu0
      %3064 = vmatprep.mubr.f32.mxu0 0.0
      %3065 = vmatmul.mubr.f32.gmra.mrb[0].mxu0 %v2866
      %v3066 = vpop.f32.mrb[0].mxu0
      %v3067 = vadd.f32 0.0, %v3066
      %v3068 = vpop.f32.mrb[0].mxu0
      %3069 = vmatprep.mubr.f32.mxu0 0.0
      %3070 = vmatmul.mubr.f32.gmra.mrb[0].mxu0 %v2869
      %v3071 = vpop.f32.mrb[0].mxu0
      %v3072 = vadd.f32 0.0, %v3071
      %v3073 = vpop.f32.mrb[0].mxu0
      %3074 = vmatprep.mubr.f32.mxu0 0.0
      %3075 = vmatmul.mubr.f32.gmra.mrb[0].mxu0 %v2872
      %v3076 = vpop.f32.mrb[0].mxu0
      %v3077 = vadd.f32 0.0, %v3076
      %v3078 = vpop.f32.mrb[0].mxu0
      %3079 = vmatprep.mubr.f32.mxu0 0.0
      %3080 = vmatmul.mubr.f32.gmra.mrb[0].mxu0 %v2875
      %v3081 = vpop.f32.mrb[0].mxu0
      %v3082 = vadd.f32 0.0, %v3081
      %v3083 = vpop.f32.mrb[0].mxu0
      %3084 = vmatprep.mubr.f32.mxu0 0.0
      %3085 = vmatmul.mubr.f32.gmra.mrb[0].mxu0 %v2878
      %v3086 = vpop.f32.mrb[0].mxu0
      %v3087 = vadd.f32 0.0, %v3086
      %v3088 = vpop.f32.mrb[0].mxu0
      %3089 = vmatprep.mubr.f32.mxu0 0.0
      %3090 = vmatmul.mubr.f32.gmra.mrb[0].mxu0 %v2881
      %v3091 = vpop.f32.mrb[0].mxu0
      %v3092 = vadd.f32 0.0, %v3091
      %v3093 = vpop.f32.mrb[0].mxu0
      %3094 = vmatprep.mubr.f32.mxu0 0.0
      %3095 = vmatmul.mubr.f32.gmra.mrb[0].mxu0 %v2884
      %v3096 = vpop.f32.mrb[0].mxu0
      %v3097 = vadd.f32 0.0, %v3096
      %v3098 = vpop.f32.mrb[0].mxu0
      %3099 = vmatprep.mubr.f32.mxu0 0.0
      %3100 = vmatmul.mubr.f32.gmra.mrb[0].mxu0 %v2887
      %v3101 = vpop.f32.mrb[0].mxu0
      %v3102 = vadd.f32 0.0, %v3101
      %v3103 = vpop.f32.mrb[0].mxu0
      %3104 = vmatprep.mubr.f32.mxu0 0.0
      %3105 = vmatmul.mubr.f32.gmra.mrb[0].mxu0 %v2890
      %v3106 = vpop.f32.mrb[0].mxu0
      %v3107 = vadd.f32 0.0, %v3106
      %v3108 = vpop.f32.mrb[0].mxu0
      %3109 = vmatprep.mubr.f32.mxu0 0.0
      %3110 = vmatmul.mubr.f32.gmra.mrb[0].mxu0 %v2893
      %v3111 = vpop.f32.mrb[0].mxu0
      %v3112 = vadd.f32 0.0, %v3111
      %v3113 = vpop.f32.mrb[0].mxu0
      %3114 = vmatprep.mubr.f32.mxu0 0.0
      %3115 = vmatmul.mubr.f32.gmra.mrb[0].mxu0 %v2896
      %v3116 = vpop.f32.mrb[0].mxu0
      %v3117 = vadd.f32 0.0, %v3116
      %v3118 = vpop.f32.mrb[0].mxu0
      %3119 = vmatprep.mubr.f32.mxu0 0.0
      %3120 = vmatmul.mubr.f32.gmra.mrb[0].mxu0 %v2899
      %v3121 = vpop.f32.mrb[0].mxu0
      %v3122 = vadd.f32 0.0, %v3121
      %v3123 = vpop.f32.mrb[0].mxu0
      %3124 = vmatprep.mubr.f32.mxu0 0.0
      %3125 = vmatmul.mubr.f32.gmra.mrb[0].mxu0 %v2902
      %v3126 = vpop.f32.mrb[0].mxu0
      %v3127 = vadd.f32 0.0, %v3126
      %v3128 = vpop.f32.mrb[0].mxu0
      %3129 = vmatprep.mubr.f32.mxu0 0.0
      %3130 = vmatmul.mubr.f32.gmra.mrb[0].mxu0 %v2905
      %v3131 = vpop.f32.mrb[0].mxu0
      %v3132 = vadd.f32 0.0, %v3131
      %v3133 = vpop.f32.mrb[0].mxu0
      %3134 = vdwg.mxu0
      %v3135 = vadd.f32 %v2743, %v2977
      %v3136 = vadd.f32 %v2744, %v2982
      %v3137 = vadd.f32 %v2745, %v2987
      %v3138 = vadd.f32 %v2746, %v2992
      %v3139 = vadd.f32 %v2747, %v2997
      %v3140 = vadd.f32 %v2748, %v3002
      %v3141 = vadd.f32 %v2749, %v3007
      %v3142 = vadd.f32 %v2750, %v3012
      %v3143 = vadd.f32 %v2751, %v3017
      %v3144 = vadd.f32 %v2752, %v3022
      %v3145 = vadd.f32 %v2753, %v3027
      %v3146 = vadd.f32 %v2754, %v3032
      %v3147 = vadd.f32 %v2755, %v3037
      %v3148 = vadd.f32 %v2756, %v3042
      %v3149 = vadd.f32 %v2757, %v3047
      %v3150 = vadd.f32 %v2758, %v3052
      %v3151 = vadd.f32 %v2759, %v3057
      %v3152 = vadd.f32 %v2760, %v3062
      %v3153 = vadd.f32 %v2761, %v3067
      %v3154 = vadd.f32 %v2762, %v3072
      %v3155 = vadd.f32 %v2763, %v3077
      %v3156 = vadd.f32 %v2764, %v3082
      %v3157 = vadd.f32 %v2765, %v3087
      %v3158 = vadd.f32 %v2766, %v3092
      %v3159 = vadd.f32 %v2767, %v3097
      %v3160 = vadd.f32 %v2768, %v3102
      %v3161 = vadd.f32 %v2769, %v3107
      %v3162 = vadd.f32 %v2770, %v3112
      %v3163 = vadd.f32 %v2771, %v3117
      %v3164 = vadd.f32 %v2772, %v3122
      %v3165 = vadd.f32 %v2773, %v3127
      %v3166 = vadd.f32 %v2774, %v3132
      %v3167 = vld [vmem:[%s2777 + $0x1] sm:$0xff]
      %v3168 = vld [vmem:[%s2777 + $0x9] sm:$0xff]
      %v3169 = vld [vmem:[%s2777 + $0x19] sm:$0xff]
      %v3170 = vld [vmem:[%s2777 + $0x21] sm:$0xff]
      %v3171 = vld [vmem:[%s2777 + $0x31] sm:$0xff]
      %v3172 = vld [vmem:[%s2777 + $0x39] sm:$0xff]
      %v3173 = vld [vmem:[%s2777 + $0x49] sm:$0xff]
      %v3174 = vld [vmem:[%s2777 + $0x51] sm:$0xff]
      %v3175 = vld [vmem:[%s2777 + $0x61] sm:$0xff]
      %v3176 = vld [vmem:[%s2777 + $0x69] sm:$0xff]
      %v3177 = vld [vmem:[%s2777 + $0x79] sm:$0xff]
      %v3178 = vld [vmem:[%s2777 + $0x81] sm:$0xff]
      %v3179 = vld [vmem:[%s2777 + $0x91] sm:$0xff]
      %v3180 = vld [vmem:[%s2777 + $0x99] sm:$0xff]
      %v3181 = vld [vmem:[%s2777 + $0xa9] sm:$0xff]
      %v3182 = vld [vmem:[%s2777 + $0xb1] sm:$0xff]
      %v3183 = vld [vmem:[%s2777 + $0xc1] sm:$0xff]
      %v3184 = vld [vmem:[%s2777 + $0xc9] sm:$0xff]
      %v3185 = vld [vmem:[%s2777 + $0xd9] sm:$0xff]
      %v3186 = vld [vmem:[%s2777 + $0xe1] sm:$0xff]
      %v3187 = vld [vmem:[%s2777 + $0xf1] sm:$0xff]
      %v3188 = vld [vmem:[%s2777 + $0xf9] sm:$0xff]
      %v3189 = vld [vmem:[%s2777 + $0x109] sm:$0xff]
      %v3190 = vld [vmem:[%s2777 + $0x111] sm:$0xff]
      %v3191 = vld [vmem:[%s2777 + $0x121] sm:$0xff]
      %v3192 = vld [vmem:[%s2777 + $0x129] sm:$0xff]
      %v3193 = vld [vmem:[%s2777 + $0x139] sm:$0xff]
      %v3194 = vld [vmem:[%s2777 + $0x141] sm:$0xff]
      %v3195 = vld [vmem:[%s2777 + $0x151] sm:$0xff]
      %v3196 = vld [vmem:[%s2777 + $0x159] sm:$0xff]
      %v3197 = vld [vmem:[%s2777 + $0x169] sm:$0xff]
      %v3198 = vld [vmem:[%s2777 + $0x171] sm:$0xff]
      %v3199 = vld [vmem:[%s1 + $0x1c] sm:$0xf]
      %v3201 = vsel %vm566, %v3167, 0
      %v3204 = vsel %vm566, %v3168, 0
      %v3207 = vsel %vm566, %v3169, 0
      %v3210 = vsel %vm566, %v3170, 0
      %v3213 = vsel %vm566, %v3171, 0
      %v3216 = vsel %vm566, %v3172, 0
      %v3219 = vsel %vm566, %v3173, 0
      %v3222 = vsel %vm566, %v3174, 0
      %v3225 = vsel %vm566, %v3175, 0
      %v3228 = vsel %vm566, %v3176, 0
      %v3231 = vsel %vm566, %v3177, 0
      %v3234 = vsel %vm566, %v3178, 0
      %v3237 = vsel %vm566, %v3179, 0
      %v3240 = vsel %vm566, %v3180, 0
      %v3243 = vsel %vm566, %v3181, 0
      %v3246 = vsel %vm566, %v3182, 0
      %v3249 = vsel %vm566, %v3183, 0
      %v3252 = vsel %vm566, %v3184, 0
      %v3255 = vsel %vm566, %v3185, 0
      %v3258 = vsel %vm566, %v3186, 0
      %v3261 = vsel %vm566, %v3187, 0
      %v3264 = vsel %vm566, %v3188, 0
      %v3267 = vsel %vm566, %v3189, 0
      %v3270 = vsel %vm566, %v3190, 0
      %v3273 = vsel %vm566, %v3191, 0
      %v3276 = vsel %vm566, %v3192, 0
      %v3279 = vsel %vm566, %v3193, 0
      %v3282 = vsel %vm566, %v3194, 0
      %v3285 = vsel %vm566, %v3195, 0
      %v3288 = vsel %vm566, %v3196, 0
      %v3291 = vsel %vm566, %v3197, 0
      %v3294 = vsel %vm566, %v3198, 0
      %v3297 = vsel %vm663, %v3199, 0
      %3299 = vmatprep.subr.mxu0 0.0
      %3300 = vmatpush1.msra.mxu0 %v3297
      %3301 = vmatprep.subr.mxu0 0.0
      %3302 = vmatpush1.msra.mxu0 0.0
      %3303 = vmatprep.subr.mxu0 0.0
      %3304 = vmatpush1.msra.mxu0 0.0
      %3305 = vmatprep.subr.mxu0 0.0
      %3306 = vmatpush1.msra.mxu0 0.0
      %3307 = vmatprep.subr.mxu0 0.0
      %3308 = vmatpush1.msra.mxu0 0.0
      %3309 = vmatprep.subr.mxu0 0.0
      %3310 = vmatpush1.msra.mxu0 0.0
      %3311 = vmatprep.subr.mxu0 0.0
      %3312 = vmatpush1.msra.mxu0 0.0
      %3313 = vmatprep.subr.mxu0 0.0
      %3314 = vmatpush1.msra.mxu0 0.0
      %3315 = vmatprep.subr.mxu0 0.0
      %3316 = vmatpush1.msra.mxu0 0.0
      %3317 = vmatprep.subr.mxu0 0.0
      %3318 = vmatpush1.msra.mxu0 0.0
      %3319 = vmatprep.subr.mxu0 0.0
      %3320 = vmatpush1.msra.mxu0 0.0
      %3321 = vmatprep.subr.mxu0 0.0
      %3322 = vmatpush1.msra.mxu0 0.0
      %3323 = vmatprep.subr.mxu0 0.0
      %3324 = vmatpush1.msra.mxu0 0.0
      %3325 = vmatprep.subr.mxu0 0.0
      %3326 = vmatpush1.msra.mxu0 0.0
      %3327 = vmatprep.subr.mxu0 0.0
      %3328 = vmatpush1.msra.mxu0 0.0
      %3329 = vmatprep.subr.mxu0 0.0
      %3330 = vmatpush1.msra.mxu0 0.0
      %3331 = vmatprep.subr.mxu0 0.0
      %3332 = vmatpush1.msra.mxu0 0.0
      %3333 = vmatprep.subr.mxu0 0.0
      %3334 = vmatpush1.msra.mxu0 0.0
      %3335 = vmatprep.subr.mxu0 0.0
      %3336 = vmatpush1.msra.mxu0 0.0
      %3337 = vmatprep.subr.mxu0 0.0
      %3338 = vmatpush1.msra.mxu0 0.0
      %3339 = vmatprep.subr.mxu0 0.0
      %3340 = vmatpush1.msra.mxu0 0.0
      %3341 = vmatprep.subr.mxu0 0.0
      %3342 = vmatpush1.msra.mxu0 0.0
      %3343 = vmatprep.subr.mxu0 0.0
      %3344 = vmatpush1.msra.mxu0 0.0
      %3345 = vmatprep.subr.mxu0 0.0
      %3346 = vmatpush1.msra.mxu0 0.0
      %3347 = vmatprep.subr.mxu0 0.0
      %3348 = vmatpush1.msra.mxu0 0.0
      %3349 = vmatprep.subr.mxu0 0.0
      %3350 = vmatpush1.msra.mxu0 0.0
      %3351 = vmatprep.subr.mxu0 0.0
      %3352 = vmatpush1.msra.mxu0 0.0
      %3353 = vmatprep.subr.mxu0 0.0
      %3354 = vmatpush1.msra.mxu0 0.0
      %3355 = vmatprep.subr.mxu0 0.0
      %3356 = vmatpush1.msra.mxu0 0.0
      %3357 = vmatprep.subr.mxu0 0.0
      %3358 = vmatpush1.msra.mxu0 0.0
      %3359 = vmatprep.subr.mxu0 0.0
      %3360 = vmatpush1.msra.mxu0 0.0
      %3361 = vmatprep.subr.mxu0 0.0
      %3362 = vmatpush1.msra.mxu0 0.0
      %3363 = vmatprep.mubr.f32.mxu0 0.0
      %3364 = vmatmul.mubr.f32.gmra.mrb[0].mxu0 %v3201
      %v3365 = vpop.f32.mrb[0].mxu0
      %v3366 = vadd.f32 0.0, %v3365
      %v3367 = vpop.f32.mrb[0].mxu0
      %3368 = vmatprep.mubr.f32.mxu0 0.0
      %3369 = vmatmul.mubr.f32.gmra.mrb[0].mxu0 %v3204
      %v3370 = vpop.f32.mrb[0].mxu0
      %v3371 = vadd.f32 0.0, %v3370
      %v3372 = vpop.f32.mrb[0].mxu0
      %3373 = vmatprep.mubr.f32.mxu0 0.0
      %3374 = vmatmul.mubr.f32.gmra.mrb[0].mxu0 %v3207
      %v3375 = vpop.f32.mrb[0].mxu0
      %v3376 = vadd.f32 0.0, %v3375
      %v3377 = vpop.f32.mrb[0].mxu0
      %3378 = vmatprep.mubr.f32.mxu0 0.0
      %3379 = vmatmul.mubr.f32.gmra.mrb[0].mxu0 %v3210
      %v3380 = vpop.f32.mrb[0].mxu0
      %v3381 = vadd.f32 0.0, %v3380
      %v3382 = vpop.f32.mrb[0].mxu0
      %3383 = vmatprep.mubr.f32.mxu0 0.0
      %3384 = vmatmul.mubr.f32.gmra.mrb[0].mxu0 %v3213
      %v3385 = vpop.f32.mrb[0].mxu0
      %v3386 = vadd.f32 0.0, %v3385
      %v3387 = vpop.f32.mrb[0].mxu0
      %3388 = vmatprep.mubr.f32.mxu0 0.0
      %3389 = vmatmul.mubr.f32.gmra.mrb[0].mxu0 %v3216
      %v3390 = vpop.f32.mrb[0].mxu0
      %v3391 = vadd.f32 0.0, %v3390
      %v3392 = vpop.f32.mrb[0].mxu0
      %3393 = vmatprep.mubr.f32.mxu0 0.0
      %3394 = vmatmul.mubr.f32.gmra.mrb[0].mxu0 %v3219
      %v3395 = vpop.f32.mrb[0].mxu0
      %v3396 = vadd.f32 0.0, %v3395
      %v3397 = vpop.f32.mrb[0].mxu0
      %3398 = vmatprep.mubr.f32.mxu0 0.0
      %3399 = vmatmul.mubr.f32.gmra.mrb[0].mxu0 %v3222
      %v3400 = vpop.f32.mrb[0].mxu0
      %v3401 = vadd.f32 0.0, %v3400
      %v3402 = vpop.f32.mrb[0].mxu0
      %3403 = vmatprep.mubr.f32.mxu0 0.0
      %3404 = vmatmul.mubr.f32.gmra.mrb[0].mxu0 %v3225
      %v3405 = vpop.f32.mrb[0].mxu0
      %v3406 = vadd.f32 0.0, %v3405
      %v3407 = vpop.f32.mrb[0].mxu0
      %3408 = vmatprep.mubr.f32.mxu0 0.0
      %3409 = vmatmul.mubr.f32.gmra.mrb[0].mxu0 %v3228
      %v3410 = vpop.f32.mrb[0].mxu0
      %v3411 = vadd.f32 0.0, %v3410
      %v3412 = vpop.f32.mrb[0].mxu0
      %3413 = vmatprep.mubr.f32.mxu0 0.0
      %3414 = vmatmul.mubr.f32.gmra.mrb[0].mxu0 %v3231
      %v3415 = vpop.f32.mrb[0].mxu0
      %v3416 = vadd.f32 0.0, %v3415
      %v3417 = vpop.f32.mrb[0].mxu0
      %3418 = vmatprep.mubr.f32.mxu0 0.0
      %3419 = vmatmul.mubr.f32.gmra.mrb[0].mxu0 %v3234
      %v3420 = vpop.f32.mrb[0].mxu0
      %v3421 = vadd.f32 0.0, %v3420
      %v3422 = vpop.f32.mrb[0].mxu0
      %3423 = vmatprep.mubr.f32.mxu0 0.0
      %3424 = vmatmul.mubr.f32.gmra.mrb[0].mxu0 %v3237
      %v3425 = vpop.f32.mrb[0].mxu0
      %v3426 = vadd.f32 0.0, %v3425
      %v3427 = vpop.f32.mrb[0].mxu0
      %3428 = vmatprep.mubr.f32.mxu0 0.0
      %3429 = vmatmul.mubr.f32.gmra.mrb[0].mxu0 %v3240
      %v3430 = vpop.f32.mrb[0].mxu0
      %v3431 = vadd.f32 0.0, %v3430
      %v3432 = vpop.f32.mrb[0].mxu0
      %3433 = vmatprep.mubr.f32.mxu0 0.0
      %3434 = vmatmul.mubr.f32.gmra.mrb[0].mxu0 %v3243
      %v3435 = vpop.f32.mrb[0].mxu0
      %v3436 = vadd.f32 0.0, %v3435
      %v3437 = vpop.f32.mrb[0].mxu0
      %3438 = vmatprep.mubr.f32.mxu0 0.0
      %3439 = vmatmul.mubr.f32.gmra.mrb[0].mxu0 %v3246
      %v3440 = vpop.f32.mrb[0].mxu0
      %v3441 = vadd.f32 0.0, %v3440
      %v3442 = vpop.f32.mrb[0].mxu0
      %3443 = vmatprep.mubr.f32.mxu0 0.0
      %3444 = vmatmul.mubr.f32.gmra.mrb[0].mxu0 %v3249
      %v3445 = vpop.f32.mrb[0].mxu0
      %v3446 = vadd.f32 0.0, %v3445
      %v3447 = vpop.f32.mrb[0].mxu0
      %3448 = vmatprep.mubr.f32.mxu0 0.0
      %3449 = vmatmul.mubr.f32.gmra.mrb[0].mxu0 %v3252
      %v3450 = vpop.f32.mrb[0].mxu0
      %v3451 = vadd.f32 0.0, %v3450
      %v3452 = vpop.f32.mrb[0].mxu0
      %3453 = vmatprep.mubr.f32.mxu0 0.0
      %3454 = vmatmul.mubr.f32.gmra.mrb[0].mxu0 %v3255
      %v3455 = vpop.f32.mrb[0].mxu0
      %v3456 = vadd.f32 0.0, %v3455
      %v3457 = vpop.f32.mrb[0].mxu0
      %3458 = vmatprep.mubr.f32.mxu0 0.0
      %3459 = vmatmul.mubr.f32.gmra.mrb[0].mxu0 %v3258
      %v3460 = vpop.f32.mrb[0].mxu0
      %v3461 = vadd.f32 0.0, %v3460
      %v3462 = vpop.f32.mrb[0].mxu0
      %3463 = vmatprep.mubr.f32.mxu0 0.0
      %3464 = vmatmul.mubr.f32.gmra.mrb[0].mxu0 %v3261
      %v3465 = vpop.f32.mrb[0].mxu0
      %v3466 = vadd.f32 0.0, %v3465
      %v3467 = vpop.f32.mrb[0].mxu0
      %3468 = vmatprep.mubr.f32.mxu0 0.0
      %3469 = vmatmul.mubr.f32.gmra.mrb[0].mxu0 %v3264
      %v3470 = vpop.f32.mrb[0].mxu0
      %v3471 = vadd.f32 0.0, %v3470
      %v3472 = vpop.f32.mrb[0].mxu0
      %3473 = vmatprep.mubr.f32.mxu0 0.0
      %3474 = vmatmul.mubr.f32.gmra.mrb[0].mxu0 %v3267
      %v3475 = vpop.f32.mrb[0].mxu0
      %v3476 = vadd.f32 0.0, %v3475
      %v3477 = vpop.f32.mrb[0].mxu0
      %3478 = vmatprep.mubr.f32.mxu0 0.0
      %3479 = vmatmul.mubr.f32.gmra.mrb[0].mxu0 %v3270
      %v3480 = vpop.f32.mrb[0].mxu0
      %v3481 = vadd.f32 0.0, %v3480
      %v3482 = vpop.f32.mrb[0].mxu0
      %3483 = vmatprep.mubr.f32.mxu0 0.0
      %3484 = vmatmul.mubr.f32.gmra.mrb[0].mxu0 %v3273
      %v3485 = vpop.f32.mrb[0].mxu0
      %v3486 = vadd.f32 0.0, %v3485
      %v3487 = vpop.f32.mrb[0].mxu0
      %3488 = vmatprep.mubr.f32.mxu0 0.0
      %3489 = vmatmul.mubr.f32.gmra.mrb[0].mxu0 %v3276
      %v3490 = vpop.f32.mrb[0].mxu0
      %v3491 = vadd.f32 0.0, %v3490
      %v3492 = vpop.f32.mrb[0].mxu0
      %3493 = vmatprep.mubr.f32.mxu0 0.0
      %3494 = vmatmul.mubr.f32.gmra.mrb[0].mxu0 %v3279
      %v3495 = vpop.f32.mrb[0].mxu0
      %v3496 = vadd.f32 0.0, %v3495
      %v3497 = vpop.f32.mrb[0].mxu0
      %3498 = vmatprep.mubr.f32.mxu0 0.0
      %3499 = vmatmul.mubr.f32.gmra.mrb[0].mxu0 %v3282
      %v3500 = vpop.f32.mrb[0].mxu0
      %v3501 = vadd.f32 0.0, %v3500
      %v3502 = vpop.f32.mrb[0].mxu0
      %3503 = vmatprep.mubr.f32.mxu0 0.0
      %3504 = vmatmul.mubr.f32.gmra.mrb[0].mxu0 %v3285
      %v3505 = vpop.f32.mrb[0].mxu0
      %v3506 = vadd.f32 0.0, %v3505
      %v3507 = vpop.f32.mrb[0].mxu0
      %3508 = vmatprep.mubr.f32.mxu0 0.0
      %3509 = vmatmul.mubr.f32.gmra.mrb[0].mxu0 %v3288
      %v3510 = vpop.f32.mrb[0].mxu0
      %v3511 = vadd.f32 0.0, %v3510
      %v3512 = vpop.f32.mrb[0].mxu0
      %3513 = vmatprep.mubr.f32.mxu0 0.0
      %3514 = vmatmul.mubr.f32.gmra.mrb[0].mxu0 %v3291
      %v3515 = vpop.f32.mrb[0].mxu0
      %v3516 = vadd.f32 0.0, %v3515
      %v3517 = vpop.f32.mrb[0].mxu0
      %3518 = vmatprep.mubr.f32.mxu0 0.0
      %3519 = vmatmul.mubr.f32.gmra.mrb[0].mxu0 %v3294
      %v3520 = vpop.f32.mrb[0].mxu0
      %v3521 = vadd.f32 0.0, %v3520
      %v3522 = vpop.f32.mrb[0].mxu0
      %3523 = vdwg.mxu0
      %v3524 = vadd.f32 %v3135, %v3366
      %v3525 = vadd.f32 %v3136, %v3371
      %v3526 = vadd.f32 %v3137, %v3376
      %v3527 = vadd.f32 %v3138, %v3381
      %v3528 = vadd.f32 %v3139, %v3386
      %v3529 = vadd.f32 %v3140, %v3391
      %v3530 = vadd.f32 %v3141, %v3396
      %v3531 = vadd.f32 %v3142, %v3401
      %v3532 = vadd.f32 %v3143, %v3406
      %v3533 = vadd.f32 %v3144, %v3411
      %v3534 = vadd.f32 %v3145, %v3416
      %v3535 = vadd.f32 %v3146, %v3421
      %v3536 = vadd.f32 %v3147, %v3426
      %v3537 = vadd.f32 %v3148, %v3431
      %v3538 = vadd.f32 %v3149, %v3436
      %v3539 = vadd.f32 %v3150, %v3441
      %v3540 = vadd.f32 %v3151, %v3446
      %v3541 = vadd.f32 %v3152, %v3451
      %v3542 = vadd.f32 %v3153, %v3456
      %v3543 = vadd.f32 %v3154, %v3461
      %v3544 = vadd.f32 %v3155, %v3466
      %v3545 = vadd.f32 %v3156, %v3471
      %v3546 = vadd.f32 %v3157, %v3476
      %v3547 = vadd.f32 %v3158, %v3481
      %v3548 = vadd.f32 %v3159, %v3486
      %v3549 = vadd.f32 %v3160, %v3491
      %v3550 = vadd.f32 %v3161, %v3496
      %v3551 = vadd.f32 %v3162, %v3501
      %v3552 = vadd.f32 %v3163, %v3506
      %v3553 = vadd.f32 %v3164, %v3511
      %v3554 = vadd.f32 %v3165, %v3516
      %v3555 = vadd.f32 %v3166, %v3521
      %v3556 = vld [vmem:[%s2777 + $0x2] sm:$0xff]
      %v3557 = vld [vmem:[%s2777 + $0xa] sm:$0xff]
      %v3558 = vld [vmem:[%s2777 + $0x1a] sm:$0xff]
      %v3559 = vld [vmem:[%s2777 + $0x22] sm:$0xff]
      %v3560 = vld [vmem:[%s2777 + $0x32] sm:$0xff]
      %v3561 = vld [vmem:[%s2777 + $0x3a] sm:$0xff]
      %v3562 = vld [vmem:[%s2777 + $0x4a] sm:$0xff]
      %v3563 = vld [vmem:[%s2777 + $0x52] sm:$0xff]
      %v3564 = vld [vmem:[%s2777 + $0x62] sm:$0xff]
      %v3565 = vld [vmem:[%s2777 + $0x6a] sm:$0xff]
      %v3566 = vld [vmem:[%s2777 + $0x7a] sm:$0xff]
      %v3567 = vld [vmem:[%s2777 + $0x82] sm:$0xff]
      %v3568 = vld [vmem:[%s2777 + $0x92] sm:$0xff]
      %v3569 = vld [vmem:[%s2777 + $0x9a] sm:$0xff]
      %v3570 = vld [vmem:[%s2777 + $0xaa] sm:$0xff]
      %v3571 = vld [vmem:[%s2777 + $0xb2] sm:$0xff]
      %v3572 = vld [vmem:[%s2777 + $0xc2] sm:$0xff]
      %v3573 = vld [vmem:[%s2777 + $0xca] sm:$0xff]
      %v3574 = vld [vmem:[%s2777 + $0xda] sm:$0xff]
      %v3575 = vld [vmem:[%s2777 + $0xe2] sm:$0xff]
      %v3576 = vld [vmem:[%s2777 + $0xf2] sm:$0xff]
      %v3577 = vld [vmem:[%s2777 + $0xfa] sm:$0xff]
      %v3578 = vld [vmem:[%s2777 + $0x10a] sm:$0xff]
      %v3579 = vld [vmem:[%s2777 + $0x112] sm:$0xff]
      %v3580 = vld [vmem:[%s2777 + $0x122] sm:$0xff]
      %v3581 = vld [vmem:[%s2777 + $0x12a] sm:$0xff]
      %v3582 = vld [vmem:[%s2777 + $0x13a] sm:$0xff]
      %v3583 = vld [vmem:[%s2777 + $0x142] sm:$0xff]
      %v3584 = vld [vmem:[%s2777 + $0x152] sm:$0xff]
      %v3585 = vld [vmem:[%s2777 + $0x15a] sm:$0xff]
      %v3586 = vld [vmem:[%s2777 + $0x16a] sm:$0xff]
      %v3587 = vld [vmem:[%s2777 + $0x172] sm:$0xff]
      %v3588 = vld [vmem:[%s1 + $0x20] sm:$0xf]
      %v3590 = vsel %vm566, %v3556, 0
      %v3593 = vsel %vm566, %v3557, 0
      %v3596 = vsel %vm566, %v3558, 0
      %v3599 = vsel %vm566, %v3559, 0
      %v3602 = vsel %vm566, %v3560, 0
      %v3605 = vsel %vm566, %v3561, 0
      %v3608 = vsel %vm566, %v3562, 0
      %v3611 = vsel %vm566, %v3563, 0
      %v3614 = vsel %vm566, %v3564, 0
      %v3617 = vsel %vm566, %v3565, 0
      %v3620 = vsel %vm566, %v3566, 0
      %v3623 = vsel %vm566, %v3567, 0
      %v3626 = vsel %vm566, %v3568, 0
      %v3629 = vsel %vm566, %v3569, 0
      %v3632 = vsel %vm566, %v3570, 0
      %v3635 = vsel %vm566, %v3571, 0
      %v3638 = vsel %vm566, %v3572, 0
      %v3641 = vsel %vm566, %v3573, 0
      %v3644 = vsel %vm566, %v3574, 0
      %v3647 = vsel %vm566, %v3575, 0
      %v3650 = vsel %vm566, %v3576, 0
      %v3653 = vsel %vm566, %v3577, 0
      %v3656 = vsel %vm566, %v3578, 0
      %v3659 = vsel %vm566, %v3579, 0
      %v3662 = vsel %vm566, %v3580, 0
      %v3665 = vsel %vm566, %v3581, 0
      %v3668 = vsel %vm566, %v3582, 0
      %v3671 = vsel %vm566, %v3583, 0
      %v3674 = vsel %vm566, %v3584, 0
      %v3677 = vsel %vm566, %v3585, 0
      %v3680 = vsel %vm566, %v3586, 0
      %v3683 = vsel %vm566, %v3587, 0
      %v3686 = vsel %vm663, %v3588, 0
      %3688 = vmatprep.subr.mxu0 0.0
      %3689 = vmatpush1.msra.mxu0 %v3686
      %3690 = vmatprep.subr.mxu0 0.0
      %3691 = vmatpush1.msra.mxu0 0.0
      %3692 = vmatprep.subr.mxu0 0.0
      %3693 = vmatpush1.msra.mxu0 0.0
      %3694 = vmatprep.subr.mxu0 0.0
      %3695 = vmatpush1.msra.mxu0 0.0
      %3696 = vmatprep.subr.mxu0 0.0
      %3697 = vmatpush1.msra.mxu0 0.0
      %3698 = vmatprep.subr.mxu0 0.0
      %3699 = vmatpush1.msra.mxu0 0.0
      %3700 = vmatprep.subr.mxu0 0.0
      %3701 = vmatpush1.msra.mxu0 0.0
      %3702 = vmatprep.subr.mxu0 0.0
      %3703 = vmatpush1.msra.mxu0 0.0
      %3704 = vmatprep.subr.mxu0 0.0
      %3705 = vmatpush1.msra.mxu0 0.0
      %3706 = vmatprep.subr.mxu0 0.0
      %3707 = vmatpush1.msra.mxu0 0.0
      %3708 = vmatprep.subr.mxu0 0.0
      %3709 = vmatpush1.msra.mxu0 0.0
      %3710 = vmatprep.subr.mxu0 0.0
      %3711 = vmatpush1.msra.mxu0 0.0
      %3712 = vmatprep.subr.mxu0 0.0
      %3713 = vmatpush1.msra.mxu0 0.0
      %3714 = vmatprep.subr.mxu0 0.0
      %3715 = vmatpush1.msra.mxu0 0.0
      %3716 = vmatprep.subr.mxu0 0.0
      %3717 = vmatpush1.msra.mxu0 0.0
      %3718 = vmatprep.subr.mxu0 0.0
      %3719 = vmatpush1.msra.mxu0 0.0
      %3720 = vmatprep.subr.mxu0 0.0
      %3721 = vmatpush1.msra.mxu0 0.0
      %3722 = vmatprep.subr.mxu0 0.0
      %3723 = vmatpush1.msra.mxu0 0.0
      %3724 = vmatprep.subr.mxu0 0.0
      %3725 = vmatpush1.msra.mxu0 0.0
      %3726 = vmatprep.subr.mxu0 0.0
      %3727 = vmatpush1.msra.mxu0 0.0
      %3728 = vmatprep.subr.mxu0 0.0
      %3729 = vmatpush1.msra.mxu0 0.0
      %3730 = vmatprep.subr.mxu0 0.0
      %3731 = vmatpush1.msra.mxu0 0.0
      %3732 = vmatprep.subr.mxu0 0.0
      %3733 = vmatpush1.msra.mxu0 0.0
      %3734 = vmatprep.subr.mxu0 0.0
      %3735 = vmatpush1.msra.mxu0 0.0
      %3736 = vmatprep.subr.mxu0 0.0
      %3737 = vmatpush1.msra.mxu0 0.0
      %3738 = vmatprep.subr.mxu0 0.0
      %3739 = vmatpush1.msra.mxu0 0.0
      %3740 = vmatprep.subr.mxu0 0.0
      %3741 = vmatpush1.msra.mxu0 0.0
      %3742 = vmatprep.subr.mxu0 0.0
      %3743 = vmatpush1.msra.mxu0 0.0
      %3744 = vmatprep.subr.mxu0 0.0
      %3745 = vmatpush1.msra.mxu0 0.0
      %3746 = vmatprep.subr.mxu0 0.0
      %3747 = vmatpush1.msra.mxu0 0.0
      %3748 = vmatprep.subr.mxu0 0.0
      %3749 = vmatpush1.msra.mxu0 0.0
      %3750 = vmatprep.subr.mxu0 0.0
      %3751 = vmatpush1.msra.mxu0 0.0
      %3752 = vmatprep.mubr.f32.mxu0 0.0
      %3753 = vmatmul.mubr.f32.gmra.mrb[0].mxu0 %v3590
      %v3754 = vpop.f32.mrb[0].mxu0
      %v3755 = vadd.f32 0.0, %v3754
      %v3756 = vpop.f32.mrb[0].mxu0
      %3757 = vmatprep.mubr.f32.mxu0 0.0
      %3758 = vmatmul.mubr.f32.gmra.mrb[0].mxu0 %v3593
      %v3759 = vpop.f32.mrb[0].mxu0
      %v3760 = vadd.f32 0.0, %v3759
      %v3761 = vpop.f32.mrb[0].mxu0
      %3762 = vmatprep.mubr.f32.mxu0 0.0
      %3763 = vmatmul.mubr.f32.gmra.mrb[0].mxu0 %v3596
      %v3764 = vpop.f32.mrb[0].mxu0
      %v3765 = vadd.f32 0.0, %v3764
      %v3766 = vpop.f32.mrb[0].mxu0
      %3767 = vmatprep.mubr.f32.mxu0 0.0
      %3768 = vmatmul.mubr.f32.gmra.mrb[0].mxu0 %v3599
      %v3769 = vpop.f32.mrb[0].mxu0
      %v3770 = vadd.f32 0.0, %v3769
      %v3771 = vpop.f32.mrb[0].mxu0
      %3772 = vmatprep.mubr.f32.mxu0 0.0
      %3773 = vmatmul.mubr.f32.gmra.mrb[0].mxu0 %v3602
      %v3774 = vpop.f32.mrb[0].mxu0
      %v3775 = vadd.f32 0.0, %v3774
      %v3776 = vpop.f32.mrb[0].mxu0
      %3777 = vmatprep.mubr.f32.mxu0 0.0
      %3778 = vmatmul.mubr.f32.gmra.mrb[0].mxu0 %v3605
      %v3779 = vpop.f32.mrb[0].mxu0
      %v3780 = vadd.f32 0.0, %v3779
      %v3781 = vpop.f32.mrb[0].mxu0
      %3782 = vmatprep.mubr.f32.mxu0 0.0
      %3783 = vmatmul.mubr.f32.gmra.mrb[0].mxu0 %v3608
      %v3784 = vpop.f32.mrb[0].mxu0
      %v3785 = vadd.f32 0.0, %v3784
      %v3786 = vpop.f32.mrb[0].mxu0
      %3787 = vmatprep.mubr.f32.mxu0 0.0
      %3788 = vmatmul.mubr.f32.gmra.mrb[0].mxu0 %v3611
      %v3789 = vpop.f32.mrb[0].mxu0
      %v3790 = vadd.f32 0.0, %v3789
      %v3791 = vpop.f32.mrb[0].mxu0
      %3792 = vmatprep.mubr.f32.mxu0 0.0
      %3793 = vmatmul.mubr.f32.gmra.mrb[0].mxu0 %v3614
      %v3794 = vpop.f32.mrb[0].mxu0
      %v3795 = vadd.f32 0.0, %v3794
      %v3796 = vpop.f32.mrb[0].mxu0
      %3797 = vmatprep.mubr.f32.mxu0 0.0
      %3798 = vmatmul.mubr.f32.gmra.mrb[0].mxu0 %v3617
      %v3799 = vpop.f32.mrb[0].mxu0
      %v3800 = vadd.f32 0.0, %v3799
      %v3801 = vpop.f32.mrb[0].mxu0
      %3802 = vmatprep.mubr.f32.mxu0 0.0
      %3803 = vmatmul.mubr.f32.gmra.mrb[0].mxu0 %v3620
      %v3804 = vpop.f32.mrb[0].mxu0
      %v3805 = vadd.f32 0.0, %v3804
      %v3806 = vpop.f32.mrb[0].mxu0
      %3807 = vmatprep.mubr.f32.mxu0 0.0
      %3808 = vmatmul.mubr.f32.gmra.mrb[0].mxu0 %v3623
      %v3809 = vpop.f32.mrb[0].mxu0
      %v3810 = vadd.f32 0.0, %v3809
      %v3811 = vpop.f32.mrb[0].mxu0
      %3812 = vmatprep.mubr.f32.mxu0 0.0
      %3813 = vmatmul.mubr.f32.gmra.mrb[0].mxu0 %v3626
      %v3814 = vpop.f32.mrb[0].mxu0
      %v3815 = vadd.f32 0.0, %v3814
      %v3816 = vpop.f32.mrb[0].mxu0
      %3817 = vmatprep.mubr.f32.mxu0 0.0
      %3818 = vmatmul.mubr.f32.gmra.mrb[0].mxu0 %v3629
      %v3819 = vpop.f32.mrb[0].mxu0
      %v3820 = vadd.f32 0.0, %v3819
      %v3821 = vpop.f32.mrb[0].mxu0
      %3822 = vmatprep.mubr.f32.mxu0 0.0
      %3823 = vmatmul.mubr.f32.gmra.mrb[0].mxu0 %v3632
      %v3824 = vpop.f32.mrb[0].mxu0
      %v3825 = vadd.f32 0.0, %v3824
      %v3826 = vpop.f32.mrb[0].mxu0
      %3827 = vmatprep.mubr.f32.mxu0 0.0
      %3828 = vmatmul.mubr.f32.gmra.mrb[0].mxu0 %v3635
      %v3829 = vpop.f32.mrb[0].mxu0
      %v3830 = vadd.f32 0.0, %v3829
      %v3831 = vpop.f32.mrb[0].mxu0
      %3832 = vmatprep.mubr.f32.mxu0 0.0
      %3833 = vmatmul.mubr.f32.gmra.mrb[0].mxu0 %v3638
      %v3834 = vpop.f32.mrb[0].mxu0
      %v3835 = vadd.f32 0.0, %v3834
      %v3836 = vpop.f32.mrb[0].mxu0
      %3837 = vmatprep.mubr.f32.mxu0 0.0
      %3838 = vmatmul.mubr.f32.gmra.mrb[0].mxu0 %v3641
      %v3839 = vpop.f32.mrb[0].mxu0
      %v3840 = vadd.f32 0.0, %v3839
      %v3841 = vpop.f32.mrb[0].mxu0
      %3842 = vmatprep.mubr.f32.mxu0 0.0
      %3843 = vmatmul.mubr.f32.gmra.mrb[0].mxu0 %v3644
      %v3844 = vpop.f32.mrb[0].mxu0
      %v3845 = vadd.f32 0.0, %v3844
      %v3846 = vpop.f32.mrb[0].mxu0
      %3847 = vmatprep.mubr.f32.mxu0 0.0
      %3848 = vmatmul.mubr.f32.gmra.mrb[0].mxu0 %v3647
      %v3849 = vpop.f32.mrb[0].mxu0
      %v3850 = vadd.f32 0.0, %v3849
      %v3851 = vpop.f32.mrb[0].mxu0
      %3852 = vmatprep.mubr.f32.mxu0 0.0
      %3853 = vmatmul.mubr.f32.gmra.mrb[0].mxu0 %v3650
      %v3854 = vpop.f32.mrb[0].mxu0
      %v3855 = vadd.f32 0.0, %v3854
      %v3856 = vpop.f32.mrb[0].mxu0
      %3857 = vmatprep.mubr.f32.mxu0 0.0
      %3858 = vmatmul.mubr.f32.gmra.mrb[0].mxu0 %v3653
      %v3859 = vpop.f32.mrb[0].mxu0
      %v3860 = vadd.f32 0.0, %v3859
      %v3861 = vpop.f32.mrb[0].mxu0
      %3862 = vmatprep.mubr.f32.mxu0 0.0
      %3863 = vmatmul.mubr.f32.gmra.mrb[0].mxu0 %v3656
      %v3864 = vpop.f32.mrb[0].mxu0
      %v3865 = vadd.f32 0.0, %v3864
      %v3866 = vpop.f32.mrb[0].mxu0
      %3867 = vmatprep.mubr.f32.mxu0 0.0
      %3868 = vmatmul.mubr.f32.gmra.mrb[0].mxu0 %v3659
      %v3869 = vpop.f32.mrb[0].mxu0
      %v3870 = vadd.f32 0.0, %v3869
      %v3871 = vpop.f32.mrb[0].mxu0
      %3872 = vmatprep.mubr.f32.mxu0 0.0
      %3873 = vmatmul.mubr.f32.gmra.mrb[0].mxu0 %v3662
      %v3874 = vpop.f32.mrb[0].mxu0
      %v3875 = vadd.f32 0.0, %v3874
      %v3876 = vpop.f32.mrb[0].mxu0
      %3877 = vmatprep.mubr.f32.mxu0 0.0
      %3878 = vmatmul.mubr.f32.gmra.mrb[0].mxu0 %v3665
      %v3879 = vpop.f32.mrb[0].mxu0
      %v3880 = vadd.f32 0.0, %v3879
      %v3881 = vpop.f32.mrb[0].mxu0
      %3882 = vmatprep.mubr.f32.mxu0 0.0
      %3883 = vmatmul.mubr.f32.gmra.mrb[0].mxu0 %v3668
      %v3884 = vpop.f32.mrb[0].mxu0
      %v3885 = vadd.f32 0.0, %v3884
      %v3886 = vpop.f32.mrb[0].mxu0
      %3887 = vmatprep.mubr.f32.mxu0 0.0
      %3888 = vmatmul.mubr.f32.gmra.mrb[0].mxu0 %v3671
      %v3889 = vpop.f32.mrb[0].mxu0
      %v3890 = vadd.f32 0.0, %v3889
      %v3891 = vpop.f32.mrb[0].mxu0
      %3892 = vmatprep.mubr.f32.mxu0 0.0
      %3893 = vmatmul.mubr.f32.gmra.mrb[0].mxu0 %v3674
      %v3894 = vpop.f32.mrb[0].mxu0
      %v3895 = vadd.f32 0.0, %v3894
      %v3896 = vpop.f32.mrb[0].mxu0
      %3897 = vmatprep.mubr.f32.mxu0 0.0
      %3898 = vmatmul.mubr.f32.gmra.mrb[0].mxu0 %v3677
      %v3899 = vpop.f32.mrb[0].mxu0
      %v3900 = vadd.f32 0.0, %v3899
      %v3901 = vpop.f32.mrb[0].mxu0
      %3902 = vmatprep.mubr.f32.mxu0 0.0
      %3903 = vmatmul.mubr.f32.gmra.mrb[0].mxu0 %v3680
      %v3904 = vpop.f32.mrb[0].mxu0
      %v3905 = vadd.f32 0.0, %v3904
      %v3906 = vpop.f32.mrb[0].mxu0
      %3907 = vmatprep.mubr.f32.mxu0 0.0
      %3908 = vmatmul.mubr.f32.gmra.mrb[0].mxu0 %v3683
      %v3909 = vpop.f32.mrb[0].mxu0
      %v3910 = vadd.f32 0.0, %v3909
      %v3911 = vpop.f32.mrb[0].mxu0
      %3912 = vdwg.mxu0
      %v3913 = vadd.f32 %v3524, %v3755
      %v3914 = vadd.f32 %v3525, %v3760
      %v3915 = vadd.f32 %v3526, %v3765
      %v3916 = vadd.f32 %v3527, %v3770
      %v3917 = vadd.f32 %v3528, %v3775
      %v3918 = vadd.f32 %v3529, %v3780
      %v3919 = vadd.f32 %v3530, %v3785
      %v3920 = vadd.f32 %v3531, %v3790
      %v3921 = vadd.f32 %v3532, %v3795
      %v3922 = vadd.f32 %v3533, %v3800
      %v3923 = vadd.f32 %v3534, %v3805
      %v3924 = vadd.f32 %v3535, %v3810
      %v3925 = vadd.f32 %v3536, %v3815
      %v3926 = vadd.f32 %v3537, %v3820
      %v3927 = vadd.f32 %v3538, %v3825
      %v3928 = vadd.f32 %v3539, %v3830
      %v3929 = vadd.f32 %v3540, %v3835
      %v3930 = vadd.f32 %v3541, %v3840
      %v3931 = vadd.f32 %v3542, %v3845
      %v3932 = vadd.f32 %v3543, %v3850
      %v3933 = vadd.f32 %v3544, %v3855
      %v3934 = vadd.f32 %v3545, %v3860
      %v3935 = vadd.f32 %v3546, %v3865
      %v3936 = vadd.f32 %v3547, %v3870
      %v3937 = vadd.f32 %v3548, %v3875
      %v3938 = vadd.f32 %v3549, %v3880
      %v3939 = vadd.f32 %v3550, %v3885
      %v3940 = vadd.f32 %v3551, %v3890
      %v3941 = vadd.f32 %v3552, %v3895
      %v3942 = vadd.f32 %v3553, %v3900
      %v3943 = vadd.f32 %v3554, %v3905
      %v3944 = vadd.f32 %v3555, %v3910
      %v3945 = vsel %vm566, %v3913, 0.0
      %v3946 = vsel %vm566, %v3914, 0.0
      %v3947 = vadd.f32 %v3945, %v3946
      %v3948 = vsel %vm566, %v3915, 0.0
      %v3949 = vadd.f32 %v3947, %v3948
      %v3950 = vsel %vm566, %v3916, 0.0
      %v3951 = vadd.f32 %v3949, %v3950
      %v3952 = vsel %vm566, %v3917, 0.0
      %v3953 = vadd.f32 %v3951, %v3952
      %v3954 = vsel %vm566, %v3918, 0.0
      %v3955 = vadd.f32 %v3953, %v3954
      %v3956 = vsel %vm566, %v3919, 0.0
      %v3957 = vadd.f32 %v3955, %v3956
      %v3958 = vsel %vm566, %v3920, 0.0
      %v3959 = vadd.f32 %v3957, %v3958
      %v3960 = vsel %vm566, %v3921, 0.0
      %v3961 = vadd.f32 %v3959, %v3960
      %v3962 = vsel %vm566, %v3922, 0.0
      %v3963 = vadd.f32 %v3961, %v3962
      %v3964 = vsel %vm566, %v3923, 0.0
      %v3965 = vadd.f32 %v3963, %v3964
      %v3966 = vsel %vm566, %v3924, 0.0
      %v3967 = vadd.f32 %v3965, %v3966
      %v3968 = vsel %vm566, %v3925, 0.0
      %v3969 = vadd.f32 %v3967, %v3968
      %v3970 = vsel %vm566, %v3926, 0.0
      %v3971 = vadd.f32 %v3969, %v3970
      %v3972 = vsel %vm566, %v3927, 0.0
      %v3973 = vadd.f32 %v3971, %v3972
      %v3974 = vsel %vm566, %v3928, 0.0
      %v3975 = vadd.f32 %v3973, %v3974
      %v3976 = vsel %vm566, %v3929, 0.0
      %v3977 = vadd.f32 %v3975, %v3976
      %v3978 = vsel %vm566, %v3930, 0.0
      %v3979 = vadd.f32 %v3977, %v3978
      %v3980 = vsel %vm566, %v3931, 0.0
      %v3981 = vadd.f32 %v3979, %v3980
      %v3982 = vsel %vm566, %v3932, 0.0
      %v3983 = vadd.f32 %v3981, %v3982
      %v3984 = vsel %vm566, %v3933, 0.0
      %v3985 = vadd.f32 %v3983, %v3984
      %v3986 = vsel %vm566, %v3934, 0.0
      %v3987 = vadd.f32 %v3985, %v3986
      %v3988 = vsel %vm566, %v3935, 0.0
      %v3989 = vadd.f32 %v3987, %v3988
      %v3990 = vsel %vm566, %v3936, 0.0
      %v3991 = vadd.f32 %v3989, %v3990
      %v3992 = vsel %vm566, %v3937, 0.0
      %v3993 = vadd.f32 %v3991, %v3992
      %v3994 = vsel %vm566, %v3938, 0.0
      %v3995 = vadd.f32 %v3993, %v3994
      %v3996 = vsel %vm566, %v3939, 0.0
      %v3997 = vadd.f32 %v3995, %v3996
      %v3998 = vsel %vm566, %v3940, 0.0
      %v3999 = vadd.f32 %v3997, %v3998
      %v4000 = vsel %vm566, %v3941, 0.0
      %v4001 = vadd.f32 %v3999, %v4000
      %v4002 = vsel %vm566, %v3942, 0.0
      %v4003 = vadd.f32 %v4001, %v4002
      %v4004 = vsel %vm566, %v3943, 0.0
      %v4005 = vadd.f32 %v4003, %v4004
      %v4006 = vsel %vm566, %v3944, 0.0
      %v4007 = vadd.f32 %v4005, %v4006
      %v4008 = vrot.slane %v4007, 4
      %v4009 = vadd.f32 %v4007, %v4008
      %v4010 = vrot.slane %v4009, 2
      %v4011 = vadd.f32 %v4009, %v4010
      %v4012 = vrot.slane %v4011, 1
      %v4013 = vadd.f32 %v4011, %v4012
      %v4014 = vmul.f32 %v3913, %v3913
      %v4015 = vmul.f32 %v3914, %v3914
      %v4016 = vmul.f32 %v3915, %v3915
      %v4017 = vmul.f32 %v3916, %v3916
      %v4018 = vmul.f32 %v3917, %v3917
      %v4019 = vmul.f32 %v3918, %v3918
      %v4020 = vmul.f32 %v3919, %v3919
      %v4021 = vmul.f32 %v3920, %v3920
      %v4022 = vmul.f32 %v3921, %v3921
      %v4023 = vmul.f32 %v3922, %v3922
      %v4024 = vmul.f32 %v3923, %v3923
      %v4025 = vmul.f32 %v3924, %v3924
      %v4026 = vmul.f32 %v3925, %v3925
      %v4027 = vmul.f32 %v3926, %v3926
      %v4028 = vmul.f32 %v3927, %v3927
      %v4029 = vmul.f32 %v3928, %v3928
      %v4030 = vmul.f32 %v3929, %v3929
      %v4031 = vmul.f32 %v3930, %v3930
      %v4032 = vmul.f32 %v3931, %v3931
      %v4033 = vmul.f32 %v3932, %v3932
      %v4034 = vmul.f32 %v3933, %v3933
      %v4035 = vmul.f32 %v3934, %v3934
      %v4036 = vmul.f32 %v3935, %v3935
      %v4037 = vmul.f32 %v3936, %v3936
      %v4038 = vmul.f32 %v3937, %v3937
      %v4039 = vmul.f32 %v3938, %v3938
      %v4040 = vmul.f32 %v3939, %v3939
      %v4041 = vmul.f32 %v3940, %v3940
      %v4042 = vmul.f32 %v3941, %v3941
      %v4043 = vmul.f32 %v3942, %v3942
      %v4044 = vmul.f32 %v3943, %v3943
      %v4045 = vmul.f32 %v3944, %v3944
      %v4046 = vsel %vm566, %v4014, 0.0
      %v4047 = vsel %vm566, %v4015, 0.0
      %v4048 = vadd.f32 %v4046, %v4047
      %v4049 = vsel %vm566, %v4016, 0.0
      %v4050 = vadd.f32 %v4048, %v4049
      %v4051 = vsel %vm566, %v4017, 0.0
      %v4052 = vadd.f32 %v4050, %v4051
      %v4053 = vsel %vm566, %v4018, 0.0
      %v4054 = vadd.f32 %v4052, %v4053
      %v4055 = vsel %vm566, %v4019, 0.0
      %v4056 = vadd.f32 %v4054, %v4055
      %v4057 = vsel %vm566, %v4020, 0.0
      %v4058 = vadd.f32 %v4056, %v4057
      %v4059 = vsel %vm566, %v4021, 0.0
      %v4060 = vadd.f32 %v4058, %v4059
      %v4061 = vsel %vm566, %v4022, 0.0
      %v4062 = vadd.f32 %v4060, %v4061
      %v4063 = vsel %vm566, %v4023, 0.0
      %v4064 = vadd.f32 %v4062, %v4063
      %v4065 = vsel %vm566, %v4024, 0.0
      %v4066 = vadd.f32 %v4064, %v4065
      %v4067 = vsel %vm566, %v4025, 0.0
      %v4068 = vadd.f32 %v4066, %v4067
      %v4069 = vsel %vm566, %v4026, 0.0
      %v4070 = vadd.f32 %v4068, %v4069
      %v4071 = vsel %vm566, %v4027, 0.0
      %v4072 = vadd.f32 %v4070, %v4071
      %v4073 = vsel %vm566, %v4028, 0.0
      %v4074 = vadd.f32 %v4072, %v4073
      %v4075 = vsel %vm566, %v4029, 0.0
      %v4076 = vadd.f32 %v4074, %v4075
      %v4077 = vsel %vm566, %v4030, 0.0
      %v4078 = vadd.f32 %v4076, %v4077
      %v4079 = vsel %vm566, %v4031, 0.0
      %v4080 = vadd.f32 %v4078, %v4079
      %v4081 = vsel %vm566, %v4032, 0.0
      %v4082 = vadd.f32 %v4080, %v4081
      %v4083 = vsel %vm566, %v4033, 0.0
      %v4084 = vadd.f32 %v4082, %v4083
      %v4085 = vsel %vm566, %v4034, 0.0
      %v4086 = vadd.f32 %v4084, %v4085
      %v4087 = vsel %vm566, %v4035, 0.0
      %v4088 = vadd.f32 %v4086, %v4087
      %v4089 = vsel %vm566, %v4036, 0.0
      %v4090 = vadd.f32 %v4088, %v4089
      %v4091 = vsel %vm566, %v4037, 0.0
      %v4092 = vadd.f32 %v4090, %v4091
      %v4093 = vsel %vm566, %v4038, 0.0
      %v4094 = vadd.f32 %v4092, %v4093
      %v4095 = vsel %vm566, %v4039, 0.0
      %v4096 = vadd.f32 %v4094, %v4095
      %v4097 = vsel %vm566, %v4040, 0.0
      %v4098 = vadd.f32 %v4096, %v4097
      %v4099 = vsel %vm566, %v4041, 0.0
      %v4100 = vadd.f32 %v4098, %v4099
      %v4101 = vsel %vm566, %v4042, 0.0
      %v4102 = vadd.f32 %v4100, %v4101
      %v4103 = vsel %vm566, %v4043, 0.0
      %v4104 = vadd.f32 %v4102, %v4103
      %v4105 = vsel %vm566, %v4044, 0.0
      %v4106 = vadd.f32 %v4104, %v4105
      %v4107 = vsel %vm566, %v4045, 0.0
      %v4108 = vadd.f32 %v4106, %v4107
      %v4109 = vrot.slane %v4108, 4
      %v4110 = vadd.f32 %v4108, %v4109
      %v4111 = vrot.slane %v4110, 2
      %v4112 = vadd.f32 %v4110, %v4111
      %v4113 = vrot.slane %v4112, 1
      %v4114 = vadd.f32 %v4112, %v4113
      %v4115 = vld [vmem:[%s260] sm:$0x3]
      %vm4116 = vcmask 1040384
      %v4117 = vsel %vm4116, %v4013, %v4114
      %v4118 = vadd.f32 %v4115, %v4117
      %vm4119 = vcmask 25600
      %4120 = vst.msk [vmem:[%s260] sm:$0x3] %vm4119, %v4118
      %4121 = vst.msk [vmem:[%s255] sm:$0xff] %vm566, %v3913
      %4122 = vst.msk [vmem:[%s255 + $0x8] sm:$0xff] %vm566, %v3914
      %4123 = vst.msk [vmem:[%s255 + $0x10] sm:$0xff] %vm566, %v3915
      %4124 = vst.msk [vmem:[%s255 + $0x18] sm:$0xff] %vm566, %v3916
      %4125 = vst.msk [vmem:[%s255 + $0x20] sm:$0xff] %vm566, %v3917
      %4126 = vst.msk [vmem:[%s255 + $0x28] sm:$0xff] %vm566, %v3918
      %4127 = vst.msk [vmem:[%s255 + $0x30] sm:$0xff] %vm566, %v3919
      %4128 = vst.msk [vmem:[%s255 + $0x38] sm:$0xff] %vm566, %v3920
      %4129 = vst.msk [vmem:[%s255 + $0x40] sm:$0xff] %vm566, %v3921
      %4130 = vst.msk [vmem:[%s255 + $0x48] sm:$0xff] %vm566, %v3922
      %4131 = vst.msk [vmem:[%s255 + $0x50] sm:$0xff] %vm566, %v3923
      %4132 = vst.msk [vmem:[%s255 + $0x58] sm:$0xff] %vm566, %v3924
      %4133 = vst.msk [vmem:[%s255 + $0x60] sm:$0xff] %vm566, %v3925
      %4134 = vst.msk [vmem:[%s255 + $0x68] sm:$0xff] %vm566, %v3926
      %4135 = vst.msk [vmem:[%s255 + $0x70] sm:$0xff] %vm566, %v3927
      %4136 = vst.msk [vmem:[%s255 + $0x78] sm:$0xff] %vm566, %v3928
      %4137 = vst.msk [vmem:[%s255 + $0x80] sm:$0xff] %vm566, %v3929
      %4138 = vst.msk [vmem:[%s255 + $0x88] sm:$0xff] %vm566, %v3930
      %4139 = vst.msk [vmem:[%s255 + $0x90] sm:$0xff] %vm566, %v3931
      %4140 = vst.msk [vmem:[%s255 + $0x98] sm:$0xff] %vm566, %v3932
      %4141 = vst.msk [vmem:[%s255 + $0xa0] sm:$0xff] %vm566, %v3933
      %4142 = vst.msk [vmem:[%s255 + $0xa8] sm:$0xff] %vm566, %v3934
      %4143 = vst.msk [vmem:[%s255 + $0xb0] sm:$0xff] %vm566, %v3935
      %4144 = vst.msk [vmem:[%s255 + $0xb8] sm:$0xff] %vm566, %v3936
      %4145 = vst.msk [vmem:[%s255 + $0xc0] sm:$0xff] %vm566, %v3937
      %4146 = vst.msk [vmem:[%s255 + $0xc8] sm:$0xff] %vm566, %v3938
      %4147 = vst.msk [vmem:[%s255 + $0xd0] sm:$0xff] %vm566, %v3939
      %4148 = vst.msk [vmem:[%s255 + $0xd8] sm:$0xff] %vm566, %v3940
      %4149 = vst.msk [vmem:[%s255 + $0xe0] sm:$0xff] %vm566, %v3941
      %4150 = vst.msk [vmem:[%s255 + $0xe8] sm:$0xff] %vm566, %v3942
      %4151 = vst.msk [vmem:[%s255 + $0xf0] sm:$0xff] %vm566, %v3943
      %4152 = vst.msk [vmem:[%s255 + $0xf8] sm:$0xff] %vm566, %v3944
      %s4153 = smul.u32 16, %s22
      %p4154 = scmp.lt.s32.totalorder %s21, 1
      %s4155 = scalar_select %p4154, %s21, 1
      %p4156 = scmp.lt.s32.totalorder %s4153, 15
      %s4157 = scalar_select %p4156, %s4153, 15
      %s4158 = smul.addr %s4157, 2
      %s4159 = smul.addr %s4155, 32
      %s4160 = sadd.s32 %s4158, %s4159
      %s4161 = smul.addr %s4160, 8
      %s4162 = scalar_lea.vmem %s4, %s4161
      %p4163 = scmp.lt.s32.totalorder %s21, 1
      %s4164 = scalar_select %p4163, %s21, 1
      %s4165 = smul.addr %s4164, 2
      %s4166 = scalar_lea.vmem %s5, %s4165
      // Predicated region
      $region41: #{basic_block_forward.4} parent=35 // pred_check
        %p4167 = pneg %p138
      $region42: #{basic_block_forward.4} parent=35 // pred_check_branch
        %4169 = sbr.rel (%p4167) target = $region44
      $region43: #{basic_block_forward.4} parent=35 // pred_region
        %s4170 = smul.u32 16, %s22
      $region44: #{basic_block_forward.4} parent=35 // pred_fallthru
        _
      // Predicated region
      $region45: #{basic_block_forward.4} parent=35 // pred_check
        %p4171 = pneg %p164
      $region46: #{basic_block_forward.4} parent=35 // pred_check_branch
        %4173 = sbr.rel (%p4171) target = $region48
      $region47: #{basic_block_forward.4} parent=35 // pred_region
        _
      $region48: #{basic_block_forward.4} parent=35 // pred_fallthru
        _
    $region36: #{basic_block_forward.4} parent=5 // pred_fallthru
      _
    %p4174 = scmp.le.s32.totalorder 2, %s12
    // Predicated region
    $region49: #{basic_block_forward.4} parent=5 // pred_check
      %p4175 = pneg %p4174
    $region50: #{basic_block_forward.4} parent=5 // pred_check_branch
      %4177 = sbr.rel (%p4175) target = $region52
    $region51: #{basic_block_forward.4} parent=5 // pred_region
      %s4178 = ssub.s32 %s12, 2
      // Predicated region
      $region53: #{basic_block_forward.4} parent=51 // pred_check
        %p4179 = pneg %p144
      $region54: #{basic_block_forward.4} parent=51 // pred_check_branch
        %4181 = sbr.rel (%p4179) target = $region56
      $region55: #{basic_block_forward.4} parent=51 // pred_region
        %s4182 = smul.u32 16, %s24
        %p4183 = scmp.lt.s32.totalorder %s23, 1
        %s4184 = scalar_select %p4183, %s23, 1
        %p4185 = scmp.lt.s32.totalorder %s4182, 15
        %s4186 = scalar_select %p4185, %s4182, 15
        %s4187 = smul.addr %s4186, 2
        %s4188 = smul.addr %s4184, 32
        %s4189 = sadd.s32 %s4187, %s4188
        %s4190 = smul.addr %s4189, 8
        %s4191 = scalar_lea.vmem %s4, %s4190
      $region56: #{basic_block_forward.4} parent=51 // pred_fallthru
        _
      // Predicated region
      $region57: #{basic_block_forward.4} parent=51 // pred_check
        %p4192 = pneg %p170
      $region58: #{basic_block_forward.4} parent=51 // pred_check_branch
        %4194 = sbr.rel (%p4192) target = $region60
      $region59: #{basic_block_forward.4} parent=51 // pred_region
        %p4195 = scmp.lt.s32.totalorder %s23, 1
        %s4196 = scalar_select %p4195, %s23, 1
        %s4197 = smul.addr %s4196, 2
        %s4198 = scalar_lea.vmem %s5, %s4197
      $region60: #{basic_block_forward.4} parent=51 // pred_fallthru
        _
    $region52: #{basic_block_forward.4} parent=5 // pred_fallthru
      _
  $region6: #{basic_block_forward.4} parent=0 // loop_footer
    %s16 = sadd.s32 1, %s12
  $region7: #{basic_block_forward.4} parent=0 // loop_footer_branch
    %11 = sbr.rel target = $region3
  $region8: #{basic_block_forward.4} parent=0 // loop_exit
    _

// kernel: basic_block_forward.3
$region0: #{basic_block_forward.3}
  #allocation0 [shape = 'u32[]', space=smem, size = 0x4, offset = 0x4, fixed_abs, tag = 'smem constant byte address 0x4 - core index']
  #allocation1 [shape = 'u32[144,128]{1,0:T(1,128)}', space=vmem, size = 0x12000, scoped, tag = 'internal scratch']
  #allocation2 [shape = 'f32[18,18,4]{2,1,0:T(8,128)}', space=vmem, size = 0x36000, scoped, tag = 'scratch operand']
  %s0 = inlined_call_operand.vmem [shape: f32[2,16,16,4], index: 0, kind: input, shape index: {}]
  %s1 = inlined_call_operand.vmem [shape: f32[36,4], index: 1, kind: input, shape index: {}]
  %s2 = inlined_call_operand.vmem [shape: f32[2,16,16,4], index: 2, kind: output, shape index: {0}]
  %s3 = inlined_call_operand.vmem [shape: f32[2,2,4], index: 3, kind: output, shape index: {1}]
  %4 = xla_tuple %s2, %s3
  %s5 = sld [smem:[#allocation0]]
  $region53: #{basic_block_forward.3} parent=0
    _
  %s7 = ssub.s32 1, %s5
  %s8 = scalar_select 0, %s7, %s5
  loop: start=0, step=1, limit=4
  $region2: #{basic_block_forward.3} parent=0 // loop_pre_header
    _
  $region3: #{basic_block_forward.3} parent=0 // loop_header
    %s10 = sphi 0, %s14
    %p11 = scmp.ge.s32.totalorder %s10, 4
    %s17 = sphi 0, %s29
    %s18 = sphi 0, %s25
    %s19 = sphi 0, %s17
    %s20 = sphi 0, %s18
    %s21 = sphi 0, %s19
    %s22 = sphi 0, %s20
    %s32 = sphi 0, %s34
    %s35 = sphi 0, %s32
    %s36 = sphi 0, %s35
    %s52 = sphi 0, %s36
    %s56 = sphi 0, %s56
    %s58 = sphi 0, %s56
    %s59 = sphi 0, %s58
    %s73 = sphi 0, %s59
    %s81 = sphi 0, %s83
    %s84 = sphi 0, %s81
    %s85 = sphi 0, %s84
    %s101 = sphi 0, %s85
    %s107 = sphi 0, %s109
    %s110 = sphi 0, %s107
    %s111 = sphi 0, %s110
    %s127 = sphi 0, %s111
  $region4: #{basic_block_forward.3} parent=0 // loop_header_branch
    %13 = sbr.rel (%p11) target = $region8
  $region5: #{basic_block_forward.3} parent=0 // loop_body
    %s15 = ssub.s32 %s10, 1
    %s16 = ssub.s32 %s10, 2
    %s23 = sadd.s32 1, %s18
    %p24 = scmp.ge.s32.totalorder %s23, 1
    %s25 = scalar_select %p24, 0, %s23
    %s26 = sadd.s32 1, %s17
    %s27 = scalar_select %p24, %s26, %s17
    %p28 = scmp.ge.s32.totalorder %s27, 2
    %s29 = scalar_select %p28, 0, %s27
    %s30 = ssub.s32 %s17, %s29
    %p31 = scmp.eq.s32.totalorder %s30, 0
    %s33 = sadd.s32 %s32, 1
    %s34 = scalar_select %p31, %s32, %s33
    %p37 = pneg %p31
    %p38 = scmp.eq.s32.totalorder %s10, 1
    %p39 = por %p37, %p38
    %p40 = scmp.ne.s32.totalorder %s32, %s35
    %p41 = scmp.eq.s32.totalorder %s10, 0
    %p42 = por %p40, %p41
    %p43 = scmp.ne.s32.totalorder %s32, %s35
    %p44 = scmp.eq.s32.totalorder %s15, 1
    %p45 = por %p43, %p44
    %p46 = scmp.ne.s32.totalorder %s35, %s36
    %p47 = scmp.eq.s32.totalorder %s15, 0
    %p48 = por %p46, %p47
    %p49 = scmp.ne.s32.totalorder %s35, %s36
    %p50 = scmp.eq.s32.totalorder %s16, 1
    %p51 = por %p49, %p50
    %p53 = scmp.ne.s32.totalorder %s36, %s52
    %p54 = scmp.eq.s32.totalorder %s16, 0
    %p55 = por %p53, %p54
    %s57 = sadd.s32 %s56, 1
    %p60 = scmp.eq.s32.totalorder %s10, 1
    %p61 = scmp.ne.s32.totalorder %s56, %s58
    %p62 = scmp.eq.s32.totalorder %s10, 0
    %p63 = por %p61, %p62
    %p64 = scmp.ne.s32.totalorder %s56, %s58
    %p65 = scmp.eq.s32.totalorder %s15, 1
    %p66 = por %p64, %p65
    %p67 = scmp.ne.s32.totalorder %s58, %s59
    %p68 = scmp.eq.s32.totalorder %s15, 0
    %p69 = por %p67, %p68
    %p70 = scmp.ne.s32.totalorder %s58, %s59
    %p71 = scmp.eq.s32.totalorder %s16, 1
    %p72 = por %p70, %p71
    %p74 = scmp.ne.s32.totalorder %s59, %s73
    %p75 = scmp.eq.s32.totalorder %s16, 0
    %p76 = por %p74, %p75
    %s77 = ssub.s32 %s17, %s29
    %s78 = ssub.s32 %s18, %s25
    %s79 = sor.u32 %s77, %s78
    %p80 = scmp.eq.s32.totalorder %s79, 0
    %s82 = sadd.s32 %s81, 1
    %s83 = scalar_select %p80, %s81, %s82
    %p86 = pneg %p80
    %p87 = scmp.eq.s32.totalorder %s10, 1
    %p88 = por %p86, %p87
    %p89 = scmp.ne.s32.totalorder %s81, %s84
    %p90 = scmp.eq.s32.totalorder %s10, 0
    %p91 = por %p89, %p90
    %p92 = scmp.ne.s32.totalorder %s81, %s84
    %p93 = scmp.eq.s32.totalorder %s15, 1
    %p94 = por %p92, %p93
    %p95 = scmp.ne.s32.totalorder %s84, %s85
    %p96 = scmp.eq.s32.totalorder %s15, 0
    %p97 = por %p95, %p96
    %p98 = scmp.ne.s32.totalorder %s84, %s85
    %p99 = scmp.eq.s32.totalorder %s16, 1
    %p100 = por %p98, %p99
    %p102 = scmp.ne.s32.totalorder %s85, %s101
    %p103 = scmp.eq.s32.totalorder %s16, 0
    %p104 = por %p102, %p103
    %s105 = ssub.s32 %s17, %s29
    %p106 = scmp.eq.s32.totalorder %s105, 0
    %s108 = sadd.s32 %s107, 1
    %s109 = scalar_select %p106, %s107, %s108
    %p112 = pneg %p106
    %p113 = scmp.eq.s32.totalorder %s10, 1
    %p114 = por %p112, %p113
    %p115 = scmp.ne.s32.totalorder %s107, %s110
    %p116 = scmp.eq.s32.totalorder %s10, 0
    %p117 = por %p115, %p116
    %p118 = scmp.ne.s32.totalorder %s107, %s110
    %p119 = scmp.eq.s32.totalorder %s15, 1
    %p120 = por %p118, %p119
    %p121 = scmp.ne.s32.totalorder %s110, %s111
    %p122 = scmp.eq.s32.totalorder %s15, 0
    %p123 = por %p121, %p122
    %p124 = scmp.ne.s32.totalorder %s110, %s111
    %p125 = scmp.eq.s32.totalorder %s16, 1
    %p126 = por %p124, %p125
    %p128 = scmp.ne.s32.totalorder %s111, %s127
    %p129 = scmp.eq.s32.totalorder %s16, 0
    %p130 = por %p128, %p129
    %p131 = scmp.le.s32.totalorder 1, %s10
    %p132 = scmp.lt.s32.totalorder %s10, 3
    %p133 = pnand %p131, %p132
    %p134 = pneg %p133
    // Predicated region
    $region9: #{basic_block_forward.3} parent=5 // pred_check
      _
    $region10: #{basic_block_forward.3} parent=5 // pred_check_branch
      %136 = sbr.rel (%p133) target = $region12
    $region11: #{basic_block_forward.3} parent=5 // pred_region
      %s137 = ssub.s32 %s10, 1
      // Predicated region
      $region13: #{basic_block_forward.3} parent=11 // pred_check
        %p138 = pneg %p69
      $region14: #{basic_block_forward.3} parent=11 // pred_check_branch
        %140 = sbr.rel (%p138) target = $region16
      $region15: #{basic_block_forward.3} parent=11 // pred_region
        _
      $region16: #{basic_block_forward.3} parent=11 // pred_fallthru
        _
    $region12: #{basic_block_forward.3} parent=5 // pred_fallthru
      _
    %p141 = scmp.lt.s32.totalorder %s10, 2
    // Predicated region
    $region17: #{basic_block_forward.3} parent=5 // pred_check
      %p142 = pneg %p141
    $region18: #{basic_block_forward.3} parent=5 // pred_check_branch
      %144 = sbr.rel (%p142) target = $region20
    $region19: #{basic_block_forward.3} parent=5 // pred_region
      // Predicated region
      $region21: #{basic_block_forward.3} parent=19 // pred_check
        %p145 = pneg %p42
      $region22: #{basic_block_forward.3} parent=19 // pred_check_branch
        %147 = sbr.rel (%p145) target = $region24
      $region23: #{basic_block_forward.3} parent=19 // pred_region
        %p148 = scmp.lt.s32.totalorder %s17, 1
        %s149 = scalar_select %p148, %s17, 1
        %s150 = smul.addr %s149, 32
        %s151 = smul.addr %s150, 8
        %s152 = scalar_lea.vmem %s0, %s151
      $region24: #{basic_block_forward.3} parent=19 // pred_fallthru
        _
    $region20: #{basic_block_forward.3} parent=5 // pred_fallthru
      _
    %p153 = scmp.le.s32.totalorder 1, %s10
    %p154 = scmp.lt.s32.totalorder %s10, 3
    %p155 = pnand %p153, %p154
    %p156 = pneg %p155
    // Predicated region
    $region25: #{basic_block_forward.3} parent=5 // pred_check
      _
    $region26: #{basic_block_forward.3} parent=5 // pred_check_branch
      %158 = sbr.rel (%p155) target = $region28
    $region27: #{basic_block_forward.3} parent=5 // pred_region
      %s159 = ssub.s32 %s10, 1
      %p160 = scmp.lt.s32.totalorder %s19, 1
      %s161 = scalar_select %p160, %s19, 1
      %s162 = smul.addr %s161, 32
      %s163 = smul.addr %s162, 8
      %s164 = scalar_lea.vmem %s0, %s163
      %p165 = pneg %p48
      %p166 = pneg %p45
      %p167 = pneg %p69
      %p168 = pneg %p66
      %p169 = pneg %p97
      %p170 = pneg %p94
      %s171 = smul.u32 16, %s20
      %p172 = scmp.lt.s32.totalorder %s19, 1
      %s173 = scalar_select %p172, %s19, 1
      %p174 = scmp.lt.s32.totalorder %s171, 15
      %s175 = scalar_select %p174, %s171, 15
      %s176 = smul.addr %s175, 2
      %s177 = smul.addr %s173, 32
      %s178 = sadd.s32 %s176, %s177
      %s179 = smul.addr %s178, 8
      %s180 = scalar_lea.vmem %s2, %s179
      %p181 = pneg %p123
      %p182 = pneg %p120
      %p183 = scmp.lt.s32.totalorder %s19, 1
      %s184 = scalar_select %p183, %s19, 1
      %s185 = smul.addr %s184, 2
      %s186 = scalar_lea.vmem %s3, %s185
      %p187 = scmp.lt.s32.totalorder %s19, 1
      %s188 = scalar_select %p187, %s19, 1
      %s189 = smul.addr %s188, 32
      %s190 = smul.addr %s189, 8
      %s191 = scalar_lea.vmem %s0, %s190
      %s192 = smul.u32 16, %s20
      %p193 = scmp.lt.s32.totalorder %s19, 1
      %s194 = scalar_select %p193, %s19, 1
      %p195 = scmp.lt.s32.totalorder %s192, 15
      %s196 = scalar_select %p195, %s192, 15
      %s197 = smul.addr %s196, 2
      %s198 = smul.addr %s194, 32
      %s199 = sadd.s32 %s197, %s198
      %s200 = smul.addr %s199, 8
      %s201 = scalar_lea.vmem %s2, %s200
      %s202 = smul.u32 16, %s20
      %p203 = scmp.lt.s32.totalorder %s19, 1
      %s204 = scalar_select %p203, %s19, 1
      %s205 = smul.addr %s204, 2
      %s206 = scalar_lea.vmem %s3, %s205
      %p207 = scmp.eq.s32.totalorder %s20, 0
      // Predicated region
      $region29: #{basic_block_forward.3} parent=27 // pred_check
        %p208 = pneg %p207
      $region30: #{basic_block_forward.3} parent=27 // pred_check_branch
        %210 = sbr.rel (%p208) target = $region32
      $region31: #{basic_block_forward.3} parent=27 // pred_region
        %v211 = vld [vmem:[%s191] sm:$0xff]
        %v212 = vld [vmem:[%s191 + $0x8] sm:$0xff]
        %v213 = vld [vmem:[%s191 + $0x10] sm:$0xff]
        %v214 = vld [vmem:[%s191 + $0x18] sm:$0xff]
        %v215 = vld [vmem:[%s191 + $0x20] sm:$0xff]
        %v216 = vld [vmem:[%s191 + $0x28] sm:$0xff]
        %v217 = vld [vmem:[%s191 + $0x30] sm:$0xff]
        %v218 = vld [vmem:[%s191 + $0x38] sm:$0xff]
        %v219 = vld [vmem:[%s191 + $0x40] sm:$0xff]
        %v220 = vld [vmem:[%s191 + $0x48] sm:$0xff]
        %v221 = vld [vmem:[%s191 + $0x50] sm:$0xff]
        %v222 = vld [vmem:[%s191 + $0x58] sm:$0xff]
        %v223 = vld [vmem:[%s191 + $0x60] sm:$0xff]
        %v224 = vld [vmem:[%s191 + $0x68] sm:$0xff]
        %v225 = vld [vmem:[%s191 + $0x70] sm:$0xff]
        %v226 = vld [vmem:[%s191 + $0x78] sm:$0xff]
        %v227 = vld [vmem:[%s191 + $0x80] sm:$0xff]
        %v228 = vld [vmem:[%s191 + $0x88] sm:$0xff]
        %v229 = vld [vmem:[%s191 + $0x90] sm:$0xff]
        %v230 = vld [vmem:[%s191 + $0x98] sm:$0xff]
        %v231 = vld [vmem:[%s191 + $0xa0] sm:$0xff]
        %v232 = vld [vmem:[%s191 + $0xa8] sm:$0xff]
        %v233 = vld [vmem:[%s191 + $0xb0] sm:$0xff]
        %v234 = vld [vmem:[%s191 + $0xb8] sm:$0xff]
        %v235 = vld [vmem:[%s191 + $0xc0] sm:$0xff]
        %v236 = vld [vmem:[%s191 + $0xc8] sm:$0xff]
        %v237 = vld [vmem:[%s191 + $0xd0] sm:$0xff]
        %v238 = vld [vmem:[%s191 + $0xd8] sm:$0xff]
        %v239 = vld [vmem:[%s191 + $0xe0] sm:$0xff]
        %v240 = vld [vmem:[%s191 + $0xe8] sm:$0xff]
        %v241 = vld [vmem:[%s191 + $0xf0] sm:$0xff]
        %v242 = vld [vmem:[%s191 + $0xf8] sm:$0xff]
        %vm243 = vcmask 31744
        %244 = vst.msk [vmem:[#allocation2] sm:$0xff] %vm243, 0.0
        %245 = vst.msk [vmem:[#allocation2 + $0x8] sm:$0xff] %vm243, 0.0
        %vm246 = vcmask 25600
        %247 = vst.msk [vmem:[#allocation2 + $0x10] sm:$0x3] %vm246, 0.0
        %248 = vst.msk [vmem:[#allocation2 + $0x18] sm:$0xff] %vm243, 0.0
        %249 = vst.msk [vmem:[#allocation2 + $0x20] sm:$0xff] %vm243, 0.0
        %250 = vst.msk [vmem:[#allocation2 + $0x28] sm:$0x3] %vm246, 0.0
        %251 = vst.msk [vmem:[#allocation2 + $0x30] sm:$0xff] %vm243, 0.0
        %252 = vst.msk [vmem:[#allocation2 + $0x38] sm:$0xff] %vm243, 0.0
        %253 = vst.msk [vmem:[#allocation2 + $0x40] sm:$0x3] %vm246, 0.0
        %254 = vst.msk [vmem:[#allocation2 + $0x48] sm:$0xff] %vm243, 0.0
        %255 = vst.msk [vmem:[#allocation2 + $0x50] sm:$0xff] %vm243, 0.0
        %256 = vst.msk [vmem:[#allocation2 + $0x58] sm:$0x3] %vm246, 0.0
        %257 = vst.msk [vmem:[#allocation2 + $0x60] sm:$0xff] %vm243, 0.0
        %258 = vst.msk [vmem:[#allocation2 + $0x68] sm:$0xff] %vm243, 0.0
        %259 = vst.msk [vmem:[#allocation2 + $0x70] sm:$0x3] %vm246, 0.0
        %260 = vst.msk [vmem:[#allocation2 + $0x78] sm:$0xff] %vm243, 0.0
        %261 = vst.msk [vmem:[#allocation2 + $0x80] sm:$0xff] %vm243, 0.0
        %262 = vst.msk [vmem:[#allocation2 + $0x88] sm:$0x3] %vm246, 0.0
        %263 = vst.msk [vmem:[#allocation2 + $0x90] sm:$0xff] %vm243, 0.0
        %264 = vst.msk [vmem:[#allocation2 + $0x98] sm:$0xff] %vm243, 0.0
        %265 = vst.msk [vmem:[#allocation2 + $0xa0] sm:$0x3] %vm246, 0.0
        %266 = vst.msk [vmem:[#allocation2 + $0xa8] sm:$0xff] %vm243, 0.0
        %267 = vst.msk [vmem:[#allocation2 + $0xb0] sm:$0xff] %vm243, 0.0
        %268 = vst.msk [vmem:[#allocation2 + $0xb8] sm:$0x3] %vm246, 0.0
        %269 = vst.msk [vmem:[#allocation2 + $0xc0] sm:$0xff] %vm243, 0.0
        %270 = vst.msk [vmem:[#allocation2 + $0xc8] sm:$0xff] %vm243, 0.0
        %271 = vst.msk [vmem:[#allocation2 + $0xd0] sm:$0x3] %vm246, 0.0
        %272 = vst.msk [vmem:[#allocation2 + $0xd8] sm:$0xff] %vm243, 0.0
        %273 = vst.msk [vmem:[#allocation2 + $0xe0] sm:$0xff] %vm243, 0.0
        %274 = vst.msk [vmem:[#allocation2 + $0xe8] sm:$0x3] %vm246, 0.0
        %275 = vst.msk [vmem:[#allocation2 + $0xf0] sm:$0xff] %vm243, 0.0
        %276 = vst.msk [vmem:[#allocation2 + $0xf8] sm:$0xff] %vm243, 0.0
        %277 = vst.msk [vmem:[#allocation2 + $0x100] sm:$0x3] %vm246, 0.0
        %278 = vst.msk [vmem:[#allocation2 + $0x108] sm:$0xff] %vm243, 0.0
        %279 = vst.msk [vmem:[#allocation2 + $0x110] sm:$0xff] %vm243, 0.0
        %280 = vst.msk [vmem:[#allocation2 + $0x118] sm:$0x3] %vm246, 0.0
        %281 = vst.msk [vmem:[#allocation2 + $0x120] sm:$0xff] %vm243, 0.0
        %282 = vst.msk [vmem:[#allocation2 + $0x128] sm:$0xff] %vm243, 0.0
        %283 = vst.msk [vmem:[#allocation2 + $0x130] sm:$0x3] %vm246, 0.0
        %284 = vst.msk [vmem:[#allocation2 + $0x138] sm:$0xff] %vm243, 0.0
        %285 = vst.msk [vmem:[#allocation2 + $0x140] sm:$0xff] %vm243, 0.0
        %286 = vst.msk [vmem:[#allocation2 + $0x148] sm:$0x3] %vm246, 0.0
        %287 = vst.msk [vmem:[#allocation2 + $0x150] sm:$0xff] %vm243, 0.0
        %288 = vst.msk [vmem:[#allocation2 + $0x158] sm:$0xff] %vm243, 0.0
        %289 = vst.msk [vmem:[#allocation2 + $0x160] sm:$0x3] %vm246, 0.0
        %290 = vst.msk [vmem:[#allocation2 + $0x168] sm:$0xff] %vm243, 0.0
        %291 = vst.msk [vmem:[#allocation2 + $0x170] sm:$0xff] %vm243, 0.0
        %292 = vst.msk [vmem:[#allocation2 + $0x178] sm:$0x3] %vm246, 0.0
        %293 = vst.msk [vmem:[#allocation2 + $0x180] sm:$0xff] %vm243, 0.0
        %294 = vst.msk [vmem:[#allocation2 + $0x188] sm:$0xff] %vm243, 0.0
        %295 = vst.msk [vmem:[#allocation2 + $0x190] sm:$0x3] %vm246, 0.0
        %296 = vst.msk [vmem:[#allocation2 + $0x198] sm:$0xff] %vm243, 0.0
        %297 = vst.msk [vmem:[#allocation2 + $0x1a0] sm:$0xff] %vm243, 0.0
        %298 = vst.msk [vmem:[#allocation2 + $0x1a8] sm:$0x3] %vm246, 0.0
        %s299 = scalar_lea.vmem [#allocation2], 24
        %300 = vst.msk [vmem:[%s299 + $0x1] sm:$0xff] %vm243, %v211
        %301 = vst.msk [vmem:[%s299 + $0x9] sm:$0xff] %vm243, %v212
        %302 = vst.msk [vmem:[%s299 + $0x19] sm:$0xff] %vm243, %v213
        %303 = vst.msk [vmem:[%s299 + $0x21] sm:$0xff] %vm243, %v214
        %304 = vst.msk [vmem:[%s299 + $0x31] sm:$0xff] %vm243, %v215
        %305 = vst.msk [vmem:[%s299 + $0x39] sm:$0xff] %vm243, %v216
        %306 = vst.msk [vmem:[%s299 + $0x49] sm:$0xff] %vm243, %v217
        %307 = vst.msk [vmem:[%s299 + $0x51] sm:$0xff] %vm243, %v218
        %308 = vst.msk [vmem:[%s299 + $0x61] sm:$0xff] %vm243, %v219
        %309 = vst.msk [vmem:[%s299 + $0x69] sm:$0xff] %vm243, %v220
        %310 = vst.msk [vmem:[%s299 + $0x79] sm:$0xff] %vm243, %v221
        %311 = vst.msk [vmem:[%s299 + $0x81] sm:$0xff] %vm243, %v222
        %312 = vst.msk [vmem:[%s299 + $0x91] sm:$0xff] %vm243, %v223
        %313 = vst.msk [vmem:[%s299 + $0x99] sm:$0xff] %vm243, %v224
        %314 = vst.msk [vmem:[%s299 + $0xa9] sm:$0xff] %vm243, %v225
        %315 = vst.msk [vmem:[%s299 + $0xb1] sm:$0xff] %vm243, %v226
        %316 = vst.msk [vmem:[%s299 + $0xc1] sm:$0xff] %vm243, %v227
        %317 = vst.msk [vmem:[%s299 + $0xc9] sm:$0xff] %vm243, %v228
        %318 = vst.msk [vmem:[%s299 + $0xd9] sm:$0xff] %vm243, %v229
        %319 = vst.msk [vmem:[%s299 + $0xe1] sm:$0xff] %vm243, %v230
        %320 = vst.msk [vmem:[%s299 + $0xf1] sm:$0xff] %vm243, %v231
        %321 = vst.msk [vmem:[%s299 + $0xf9] sm:$0xff] %vm243, %v232
        %322 = vst.msk [vmem:[%s299 + $0x109] sm:$0xff] %vm243, %v233
        %323 = vst.msk [vmem:[%s299 + $0x111] sm:$0xff] %vm243, %v234
        %324 = vst.msk [vmem:[%s299 + $0x121] sm:$0xff] %vm243, %v235
        %325 = vst.msk [vmem:[%s299 + $0x129] sm:$0xff] %vm243, %v236
        %326 = vst.msk [vmem:[%s299 + $0x139] sm:$0xff] %vm243, %v237
        %327 = vst.msk [vmem:[%s299 + $0x141] sm:$0xff] %vm243, %v238
        %328 = vst.msk [vmem:[%s299 + $0x151] sm:$0xff] %vm243, %v239
        %329 = vst.msk [vmem:[%s299 + $0x159] sm:$0xff] %vm243, %v240
        %330 = vst.msk [vmem:[%s299 + $0x169] sm:$0xff] %vm243, %v241
        %331 = vst.msk [vmem:[%s299 + $0x171] sm:$0xff] %vm243, %v242
        %332 = vst.msk [vmem:[%s206] sm:$0x3] %vm246, 0.0
      $region32: #{basic_block_forward.3} parent=27 // pred_fallthru
        _
      %s333 = smul.u32 %s20, 16
      %s334 = smul.u32 %s333, 24
      %s335 = scalar_lea.vmem [#allocation2], %s334
      %v336 = vld [vmem:[%s335] sm:$0xff]
      %v337 = vld [vmem:[%s335 + $0x8] sm:$0xff]
      %v338 = vld [vmem:[%s335 + $0x18] sm:$0xff]
      %v339 = vld [vmem:[%s335 + $0x20] sm:$0xff]
      %v340 = vld [vmem:[%s335 + $0x30] sm:$0xff]
      %v341 = vld [vmem:[%s335 + $0x38] sm:$0xff]
      %v342 = vld [vmem:[%s335 + $0x48] sm:$0xff]
      %v343 = vld [vmem:[%s335 + $0x50] sm:$0xff]
      %v344 = vld [vmem:[%s335 + $0x60] sm:$0xff]
      %v345 = vld [vmem:[%s335 + $0x68] sm:$0xff]
      %v346 = vld [vmem:[%s335 + $0x78] sm:$0xff]
      %v347 = vld [vmem:[%s335 + $0x80] sm:$0xff]
      %v348 = vld [vmem:[%s335 + $0x90] sm:$0xff]
      %v349 = vld [vmem:[%s335 + $0x98] sm:$0xff]
      %v350 = vld [vmem:[%s335 + $0xa8] sm:$0xff]
      %v351 = vld [vmem:[%s335 + $0xb0] sm:$0xff]
      %v352 = vld [vmem:[%s335 + $0xc0] sm:$0xff]
      %v353 = vld [vmem:[%s335 + $0xc8] sm:$0xff]
      %v354 = vld [vmem:[%s335 + $0xd8] sm:$0xff]
      %v355 = vld [vmem:[%s335 + $0xe0] sm:$0xff]
      %v356 = vld [vmem:[%s335 + $0xf0] sm:$0xff]
      %v357 = vld [vmem:[%s335 + $0xf8] sm:$0xff]
      %v358 = vld [vmem:[%s335 + $0x108] sm:$0xff]
      %v359 = vld [vmem:[%s335 + $0x110] sm:$0xff]
      %v360 = vld [vmem:[%s335 + $0x120] sm:$0xff]
      %v361 = vld [vmem:[%s335 + $0x128] sm:$0xff]
      %v362 = vld [vmem:[%s335 + $0x138] sm:$0xff]
      %v363 = vld [vmem:[%s335 + $0x140] sm:$0xff]
      %v364 = vld [vmem:[%s335 + $0x150] sm:$0xff]
      %v365 = vld [vmem:[%s335 + $0x158] sm:$0xff]
      %v366 = vld [vmem:[%s335 + $0x168] sm:$0xff]
      %v367 = vld [vmem:[%s335 + $0x170] sm:$0xff]
      %v368 = vld [vmem:[%s1] sm:$0xf]
      %v369 = vld [vmem:[%s335 + $0x1] sm:$0xff]
      %v370 = vld [vmem:[%s335 + $0x9] sm:$0xff]
      %v371 = vld [vmem:[%s335 + $0x19] sm:$0xff]
      %v372 = vld [vmem:[%s335 + $0x21] sm:$0xff]
      %v373 = vld [vmem:[%s335 + $0x31] sm:$0xff]
      %v374 = vld [vmem:[%s335 + $0x39] sm:$0xff]
      %v375 = vld [vmem:[%s335 + $0x49] sm:$0xff]
      %v376 = vld [vmem:[%s335 + $0x51] sm:$0xff]
      %v377 = vld [vmem:[%s335 + $0x61] sm:$0xff]
      %v378 = vld [vmem:[%s335 + $0x69] sm:$0xff]
      %v379 = vld [vmem:[%s335 + $0x79] sm:$0xff]
      %v380 = vld [vmem:[%s335 + $0x81] sm:$0xff]
      %v381 = vld [vmem:[%s335 + $0x91] sm:$0xff]
      %v382 = vld [vmem:[%s335 + $0x99] sm:$0xff]
      %v383 = vld [vmem:[%s335 + $0xa9] sm:$0xff]
      %v384 = vld [vmem:[%s335 + $0xb1] sm:$0xff]
      %v385 = vld [vmem:[%s335 + $0xc1] sm:$0xff]
      %v386 = vld [vmem:[%s335 + $0xc9] sm:$0xff]
      %v387 = vld [vmem:[%s335 + $0xd9] sm:$0xff]
      %v388 = vld [vmem:[%s335 + $0xe1] sm:$0xff]
      %v389 = vld [vmem:[%s335 + $0xf1] sm:$0xff]
      %v390 = vld [vmem:[%s335 + $0xf9] sm:$0xff]
      %v391 = vld [vmem:[%s335 + $0x109] sm:$0xff]
      %v392 = vld [vmem:[%s335 + $0x111] sm:$0xff]
      %v393 = vld [vmem:[%s335 + $0x121] sm:$0xff]
      %v394 = vld [vmem:[%s335 + $0x129] sm:$0xff]
      %v395 = vld [vmem:[%s335 + $0x139] sm:$0xff]
      %v396 = vld [vmem:[%s335 + $0x141] sm:$0xff]
      %v397 = vld [vmem:[%s335 + $0x151] sm:$0xff]
      %v398 = vld [vmem:[%s335 + $0x159] sm:$0xff]
      %v399 = vld [vmem:[%s335 + $0x169] sm:$0xff]
      %v400 = vld [vmem:[%s335 + $0x171] sm:$0xff]
      %v401 = vld [vmem:[%s1 + $0x4] sm:$0xf]
      %vm402 = vcmask 31744
      %v404 = vsel %vm402, %v369, 0
      %v407 = vsel %vm402, %v370, 0
      %v410 = vsel %vm402, %v371, 0
      %v413 = vsel %vm402, %v372, 0
      %v416 = vsel %vm402, %v373, 0
      %v419 = vsel %vm402, %v374, 0
      %v422 = vsel %vm402, %v375, 0
      %v425 = vsel %vm402, %v376, 0
      %v428 = vsel %vm402, %v377, 0
      %v431 = vsel %vm402, %v378, 0
      %v434 = vsel %vm402, %v379, 0
      %v437 = vsel %vm402, %v380, 0
      %v440 = vsel %vm402, %v381, 0
      %v443 = vsel %vm402, %v382, 0
      %v446 = vsel %vm402, %v383, 0
      %v449 = vsel %vm402, %v384, 0
      %v452 = vsel %vm402, %v385, 0
      %v455 = vsel %vm402, %v386, 0
      %v458 = vsel %vm402, %v387, 0
      %v461 = vsel %vm402, %v388, 0
      %v464 = vsel %vm402, %v389, 0
      %v467 = vsel %vm402, %v390, 0
      %v470 = vsel %vm402, %v391, 0
      %v473 = vsel %vm402, %v392, 0
      %v476 = vsel %vm402, %v393, 0
      %v479 = vsel %vm402, %v394, 0
      %v482 = vsel %vm402, %v395, 0
      %v485 = vsel %vm402, %v396, 0
      %v488 = vsel %vm402, %v397, 0
      %v491 = vsel %vm402, %v398, 0
      %v494 = vsel %vm402, %v399, 0
      %v497 = vsel %vm402, %v400, 0
      %vm499 = vcmask 1043456
      %v501 = vsel %vm499, %v401, 0
      %503 = vmatprep.subr.mxu0 0.0
      %504 = vmatpush1.msra.mxu0 %v501
      %505 = vmatprep.subr.mxu0 0.0
      %506 = vmatpush1.msra.mxu0 0.0
      %507 = vmatprep.subr.mxu0 0.0
      %508 = vmatpush1.msra.mxu0 0.0
      %509 = vmatprep.subr.mxu0 0.0
      %510 = vmatpush1.msra.mxu0 0.0
      %511 = vmatprep.subr.mxu0 0.0
      %512 = vmatpush1.msra.mxu0 0.0
      %513 = vmatprep.subr.mxu0 0.0
      %514 = vmatpush1.msra.mxu0 0.0
      %515 = vmatprep.subr.mxu0 0.0
      %516 = vmatpush1.msra.mxu0 0.0
      %517 = vmatprep.subr.mxu0 0.0
      %518 = vmatpush1.msra.mxu0 0.0
      %519 = vmatprep.subr.mxu0 0.0
      %520 = vmatpush1.msra.mxu0 0.0
      %521 = vmatprep.subr.mxu0 0.0
      %522 = vmatpush1.msra.mxu0 0.0
      %523 = vmatprep.subr.mxu0 0.0
      %524 = vmatpush1.msra.mxu0 0.0
      %525 = vmatprep.subr.mxu0 0.0
      %526 = vmatpush1.msra.mxu0 0.0
      %527 = vmatprep.subr.mxu0 0.0
      %528 = vmatpush1.msra.mxu0 0.0
      %529 = vmatprep.subr.mxu0 0.0
      %530 = vmatpush1.msra.mxu0 0.0
      %531 = vmatprep.subr.mxu0 0.0
      %532 = vmatpush1.msra.mxu0 0.0
      %533 = vmatprep.subr.mxu0 0.0
      %534 = vmatpush1.msra.mxu0 0.0
      %535 = vmatprep.subr.mxu0 0.0
      %536 = vmatpush1.msra.mxu0 0.0
      %537 = vmatprep.subr.mxu0 0.0
      %538 = vmatpush1.msra.mxu0 0.0
      %539 = vmatprep.subr.mxu0 0.0
      %540 = vmatpush1.msra.mxu0 0.0
      %541 = vmatprep.subr.mxu0 0.0
      %542 = vmatpush1.msra.mxu0 0.0
      %543 = vmatprep.subr.mxu0 0.0
      %544 = vmatpush1.msra.mxu0 0.0
      %545 = vmatprep.subr.mxu0 0.0
      %546 = vmatpush1.msra.mxu0 0.0
      %547 = vmatprep.subr.mxu0 0.0
      %548 = vmatpush1.msra.mxu0 0.0
      %549 = vmatprep.subr.mxu0 0.0
      %550 = vmatpush1.msra.mxu0 0.0
      %551 = vmatprep.subr.mxu0 0.0
      %552 = vmatpush1.msra.mxu0 0.0
      %553 = vmatprep.subr.mxu0 0.0
      %554 = vmatpush1.msra.mxu0 0.0
      %555 = vmatprep.subr.mxu0 0.0
      %556 = vmatpush1.msra.mxu0 0.0
      %557 = vmatprep.subr.mxu0 0.0
      %558 = vmatpush1.msra.mxu0 0.0
      %559 = vmatprep.subr.mxu0 0.0
      %560 = vmatpush1.msra.mxu0 0.0
      %561 = vmatprep.subr.mxu0 0.0
      %562 = vmatpush1.msra.mxu0 0.0
      %563 = vmatprep.subr.mxu0 0.0
      %564 = vmatpush1.msra.mxu0 0.0
      %565 = vmatprep.subr.mxu0 0.0
      %566 = vmatpush1.msra.mxu0 0.0
      %567 = vmatprep.mubr.f32.mxu0 0.0
      %568 = vmatmul.mubr.f32.gmra.mrb[0].mxu0 %v404
      %v569 = vpop.f32.mrb[0].mxu0
      %v570 = vadd.f32 0.0, %v569
      %v571 = vpop.f32.mrb[0].mxu0
      %572 = vmatprep.mubr.f32.mxu0 0.0
      %573 = vmatmul.mubr.f32.gmra.mrb[0].mxu0 %v407
      %v574 = vpop.f32.mrb[0].mxu0
      %v575 = vadd.f32 0.0, %v574
      %v576 = vpop.f32.mrb[0].mxu0
      %577 = vmatprep.mubr.f32.mxu0 0.0
      %578 = vmatmul.mubr.f32.gmra.mrb[0].mxu0 %v410
      %v579 = vpop.f32.mrb[0].mxu0
      %v580 = vadd.f32 0.0, %v579
      %v581 = vpop.f32.mrb[0].mxu0
      %582 = vmatprep.mubr.f32.mxu0 0.0
      %583 = vmatmul.mubr.f32.gmra.mrb[0].mxu0 %v413
      %v584 = vpop.f32.mrb[0].mxu0
      %v585 = vadd.f32 0.0, %v584
      %v586 = vpop.f32.mrb[0].mxu0
      %587 = vmatprep.mubr.f32.mxu0 0.0
      %588 = vmatmul.mubr.f32.gmra.mrb[0].mxu0 %v416
      %v589 = vpop.f32.mrb[0].mxu0
      %v590 = vadd.f32 0.0, %v589
      %v591 = vpop.f32.mrb[0].mxu0
      %592 = vmatprep.mubr.f32.mxu0 0.0
      %593 = vmatmul.mubr.f32.gmra.mrb[0].mxu0 %v419
      %v594 = vpop.f32.mrb[0].mxu0
      %v595 = vadd.f32 0.0, %v594
      %v596 = vpop.f32.mrb[0].mxu0
      %597 = vmatprep.mubr.f32.mxu0 0.0
      %598 = vmatmul.mubr.f32.gmra.mrb[0].mxu0 %v422
      %v599 = vpop.f32.mrb[0].mxu0
      %v600 = vadd.f32 0.0, %v599
      %v601 = vpop.f32.mrb[0].mxu0
      %602 = vmatprep.mubr.f32.mxu0 0.0
      %603 = vmatmul.mubr.f32.gmra.mrb[0].mxu0 %v425
      %v604 = vpop.f32.mrb[0].mxu0
      %v605 = vadd.f32 0.0, %v604
      %v606 = vpop.f32.mrb[0].mxu0
      %607 = vmatprep.mubr.f32.mxu0 0.0
      %608 = vmatmul.mubr.f32.gmra.mrb[0].mxu0 %v428
      %v609 = vpop.f32.mrb[0].mxu0
      %v610 = vadd.f32 0.0, %v609
      %v611 = vpop.f32.mrb[0].mxu0
      %612 = vmatprep.mubr.f32.mxu0 0.0
      %613 = vmatmul.mubr.f32.gmra.mrb[0].mxu0 %v431
      %v614 = vpop.f32.mrb[0].mxu0
      %v615 = vadd.f32 0.0, %v614
      %v616 = vpop.f32.mrb[0].mxu0
      %617 = vmatprep.mubr.f32.mxu0 0.0
      %618 = vmatmul.mubr.f32.gmra.mrb[0].mxu0 %v434
      %v619 = vpop.f32.mrb[0].mxu0
      %v620 = vadd.f32 0.0, %v619
      %v621 = vpop.f32.mrb[0].mxu0
      %622 = vmatprep.mubr.f32.mxu0 0.0
      %623 = vmatmul.mubr.f32.gmra.mrb[0].mxu0 %v437
      %v624 = vpop.f32.mrb[0].mxu0
      %v625 = vadd.f32 0.0, %v624
      %v626 = vpop.f32.mrb[0].mxu0
      %627 = vmatprep.mubr.f32.mxu0 0.0
      %628 = vmatmul.mubr.f32.gmra.mrb[0].mxu0 %v440
      %v629 = vpop.f32.mrb[0].mxu0
      %v630 = vadd.f32 0.0, %v629
      %v631 = vpop.f32.mrb[0].mxu0
      %632 = vmatprep.mubr.f32.mxu0 0.0
      %633 = vmatmul.mubr.f32.gmra.mrb[0].mxu0 %v443
      %v634 = vpop.f32.mrb[0].mxu0
      %v635 = vadd.f32 0.0, %v634
      %v636 = vpop.f32.mrb[0].mxu0
      %637 = vmatprep.mubr.f32.mxu0 0.0
      %638 = vmatmul.mubr.f32.gmra.mrb[0].mxu0 %v446
      %v639 = vpop.f32.mrb[0].mxu0
      %v640 = vadd.f32 0.0, %v639
      %v641 = vpop.f32.mrb[0].mxu0
      %642 = vmatprep.mubr.f32.mxu0 0.0
      %643 = vmatmul.mubr.f32.gmra.mrb[0].mxu0 %v449
      %v644 = vpop.f32.mrb[0].mxu0
      %v645 = vadd.f32 0.0, %v644
      %v646 = vpop.f32.mrb[0].mxu0
      %647 = vmatprep.mubr.f32.mxu0 0.0
      %648 = vmatmul.mubr.f32.gmra.mrb[0].mxu0 %v452
      %v649 = vpop.f32.mrb[0].mxu0
      %v650 = vadd.f32 0.0, %v649
      %v651 = vpop.f32.mrb[0].mxu0
      %652 = vmatprep.mubr.f32.mxu0 0.0
      %653 = vmatmul.mubr.f32.gmra.mrb[0].mxu0 %v455
      %v654 = vpop.f32.mrb[0].mxu0
      %v655 = vadd.f32 0.0, %v654
      %v656 = vpop.f32.mrb[0].mxu0
      %657 = vmatprep.mubr.f32.mxu0 0.0
      %658 = vmatmul.mubr.f32.gmra.mrb[0].mxu0 %v458
      %v659 = vpop.f32.mrb[0].mxu0
      %v660 = vadd.f32 0.0, %v659
      %v661 = vpop.f32.mrb[0].mxu0
      %662 = vmatprep.mubr.f32.mxu0 0.0
      %663 = vmatmul.mubr.f32.gmra.mrb[0].mxu0 %v461
      %v664 = vpop.f32.mrb[0].mxu0
      %v665 = vadd.f32 0.0, %v664
      %v666 = vpop.f32.mrb[0].mxu0
      %667 = vmatprep.mubr.f32.mxu0 0.0
      %668 = vmatmul.mubr.f32.gmra.mrb[0].mxu0 %v464
      %v669 = vpop.f32.mrb[0].mxu0
      %v670 = vadd.f32 0.0, %v669
      %v671 = vpop.f32.mrb[0].mxu0
      %672 = vmatprep.mubr.f32.mxu0 0.0
      %673 = vmatmul.mubr.f32.gmra.mrb[0].mxu0 %v467
      %v674 = vpop.f32.mrb[0].mxu0
      %v675 = vadd.f32 0.0, %v674
      %v676 = vpop.f32.mrb[0].mxu0
      %677 = vmatprep.mubr.f32.mxu0 0.0
      %678 = vmatmul.mubr.f32.gmra.mrb[0].mxu0 %v470
      %v679 = vpop.f32.mrb[0].mxu0
      %v680 = vadd.f32 0.0, %v679
      %v681 = vpop.f32.mrb[0].mxu0
      %682 = vmatprep.mubr.f32.mxu0 0.0
      %683 = vmatmul.mubr.f32.gmra.mrb[0].mxu0 %v473
      %v684 = vpop.f32.mrb[0].mxu0
      %v685 = vadd.f32 0.0, %v684
      %v686 = vpop.f32.mrb[0].mxu0
      %687 = vmatprep.mubr.f32.mxu0 0.0
      %688 = vmatmul.mubr.f32.gmra.mrb[0].mxu0 %v476
      %v689 = vpop.f32.mrb[0].mxu0
      %v690 = vadd.f32 0.0, %v689
      %v691 = vpop.f32.mrb[0].mxu0
      %692 = vmatprep.mubr.f32.mxu0 0.0
      %693 = vmatmul.mubr.f32.gmra.mrb[0].mxu0 %v479
      %v694 = vpop.f32.mrb[0].mxu0
      %v695 = vadd.f32 0.0, %v694
      %v696 = vpop.f32.mrb[0].mxu0
      %697 = vmatprep.mubr.f32.mxu0 0.0
      %698 = vmatmul.mubr.f32.gmra.mrb[0].mxu0 %v482
      %v699 = vpop.f32.mrb[0].mxu0
      %v700 = vadd.f32 0.0, %v699
      %v701 = vpop.f32.mrb[0].mxu0
      %702 = vmatprep.mubr.f32.mxu0 0.0
      %703 = vmatmul.mubr.f32.gmra.mrb[0].mxu0 %v485
      %v704 = vpop.f32.mrb[0].mxu0
      %v705 = vadd.f32 0.0, %v704
      %v706 = vpop.f32.mrb[0].mxu0
      %707 = vmatprep.mubr.f32.mxu0 0.0
      %708 = vmatmul.mubr.f32.gmra.mrb[0].mxu0 %v488
      %v709 = vpop.f32.mrb[0].mxu0
      %v710 = vadd.f32 0.0, %v709
      %v711 = vpop.f32.mrb[0].mxu0
      %712 = vmatprep.mubr.f32.mxu0 0.0
      %713 = vmatmul.mubr.f32.gmra.mrb[0].mxu0 %v491
      %v714 = vpop.f32.mrb[0].mxu0
      %v715 = vadd.f32 0.0, %v714
      %v716 = vpop.f32.mrb[0].mxu0
      %717 = vmatprep.mubr.f32.mxu0 0.0
      %718 = vmatmul.mubr.f32.gmra.mrb[0].mxu0 %v494
      %v719 = vpop.f32.mrb[0].mxu0
      %v720 = vadd.f32 0.0, %v719
      %v721 = vpop.f32.mrb[0].mxu0
      %722 = vmatprep.mubr.f32.mxu0 0.0
      %723 = vmatmul.mubr.f32.gmra.mrb[0].mxu0 %v497
      %v724 = vpop.f32.mrb[0].mxu0
      %v725 = vadd.f32 0.0, %v724
      %v726 = vpop.f32.mrb[0].mxu0
      %727 = vdwg.mxu0
      %v729 = vsel %vm402, %v336, 0
      %v732 = vsel %vm402, %v337, 0
      %v735 = vsel %vm402, %v338, 0
      %v738 = vsel %vm402, %v339, 0
      %v741 = vsel %vm402, %v340, 0
      %v744 = vsel %vm402, %v341, 0
      %v747 = vsel %vm402, %v342, 0
      %v750 = vsel %vm402, %v343, 0
      %v753 = vsel %vm402, %v344, 0
      %v756 = vsel %vm402, %v345, 0
      %v759 = vsel %vm402, %v346, 0
      %v762 = vsel %vm402, %v347, 0
      %v765 = vsel %vm402, %v348, 0
      %v768 = vsel %vm402, %v349, 0
      %v771 = vsel %vm402, %v350, 0
      %v774 = vsel %vm402, %v351, 0
      %v777 = vsel %vm402, %v352, 0
      %v780 = vsel %vm402, %v353, 0
      %v783 = vsel %vm402, %v354, 0
      %v786 = vsel %vm402, %v355, 0
      %v789 = vsel %vm402, %v356, 0
      %v792 = vsel %vm402, %v357, 0
      %v795 = vsel %vm402, %v358, 0
      %v798 = vsel %vm402, %v359, 0
      %v801 = vsel %vm402, %v360, 0
      %v804 = vsel %vm402, %v361, 0
      %v807 = vsel %vm402, %v362, 0
      %v810 = vsel %vm402, %v363, 0
      %v813 = vsel %vm402, %v364, 0
      %v816 = vsel %vm402, %v365, 0
      %v819 = vsel %vm402, %v366, 0
      %v822 = vsel %vm402, %v367, 0
      %v825 = vsel %vm499, %v368, 0
      %827 = vmatprep.subr.mxu0 0.0
      %828 = vmatpush1.msra.mxu0 %v825
      %829 = vmatprep.subr.mxu0 0.0
      %830 = vmatpush1.msra.mxu0 0.0
      %831 = vmatprep.subr.mxu0 0.0
      %832 = vmatpush1.msra.mxu0 0.0
      %833 = vmatprep.subr.mxu0 0.0
      %834 = vmatpush1.msra.mxu0 0.0
      %835 = vmatprep.subr.mxu0 0.0
      %836 = vmatpush1.msra.mxu0 0.0
      %837 = vmatprep.subr.mxu0 0.0
      %838 = vmatpush1.msra.mxu0 0.0
      %839 = vmatprep.subr.mxu0 0.0
      %840 = vmatpush1.msra.mxu0 0.0
      %841 = vmatprep.subr.mxu0 0.0
      %842 = vmatpush1.msra.mxu0 0.0
      %843 = vmatprep.subr.mxu0 0.0
      %844 = vmatpush1.msra.mxu0 0.0
      %845 = vmatprep.subr.mxu0 0.0
      %846 = vmatpush1.msra.mxu0 0.0
      %847 = vmatprep.subr.mxu0 0.0
      %848 = vmatpush1.msra.mxu0 0.0
      %849 = vmatprep.subr.mxu0 0.0
      %850 = vmatpush1.msra.mxu0 0.0
      %851 = vmatprep.subr.mxu0 0.0
      %852 = vmatpush1.msra.mxu0 0.0
      %853 = vmatprep.subr.mxu0 0.0
      %854 = vmatpush1.msra.mxu0 0.0
      %855 = vmatprep.subr.mxu0 0.0
      %856 = vmatpush1.msra.mxu0 0.0
      %857 = vmatprep.subr.mxu0 0.0
      %858 = vmatpush1.msra.mxu0 0.0
      %859 = vmatprep.subr.mxu0 0.0
      %860 = vmatpush1.msra.mxu0 0.0
      %861 = vmatprep.subr.mxu0 0.0
      %862 = vmatpush1.msra.mxu0 0.0
      %863 = vmatprep.subr.mxu0 0.0
      %864 = vmatpush1.msra.mxu0 0.0
      %865 = vmatprep.subr.mxu0 0.0
      %866 = vmatpush1.msra.mxu0 0.0
      %867 = vmatprep.subr.mxu0 0.0
      %868 = vmatpush1.msra.mxu0 0.0
      %869 = vmatprep.subr.mxu0 0.0
      %870 = vmatpush1.msra.mxu0 0.0
      %871 = vmatprep.subr.mxu0 0.0
      %872 = vmatpush1.msra.mxu0 0.0
      %873 = vmatprep.subr.mxu0 0.0
      %874 = vmatpush1.msra.mxu0 0.0
      %875 = vmatprep.subr.mxu0 0.0
      %876 = vmatpush1.msra.mxu0 0.0
      %877 = vmatprep.subr.mxu0 0.0
      %878 = vmatpush1.msra.mxu0 0.0
      %879 = vmatprep.subr.mxu0 0.0
      %880 = vmatpush1.msra.mxu0 0.0
      %881 = vmatprep.subr.mxu0 0.0
      %882 = vmatpush1.msra.mxu0 0.0
      %883 = vmatprep.subr.mxu0 0.0
      %884 = vmatpush1.msra.mxu0 0.0
      %885 = vmatprep.subr.mxu0 0.0
      %886 = vmatpush1.msra.mxu0 0.0
      %887 = vmatprep.subr.mxu0 0.0
      %888 = vmatpush1.msra.mxu0 0.0
      %889 = vmatprep.subr.mxu0 0.0
      %890 = vmatpush1.msra.mxu0 0.0
      %891 = vmatprep.mubr.f32.mxu0 0.0
      %892 = vmatmul.mubr.f32.gmra.mrb[0].mxu0 %v729
      %v893 = vpop.f32.mrb[0].mxu0
      %v894 = vadd.f32 %v570, %v893
      %v895 = vpop.f32.mrb[0].mxu0
      %896 = vmatprep.mubr.f32.mxu0 0.0
      %897 = vmatmul.mubr.f32.gmra.mrb[0].mxu0 %v732
      %v898 = vpop.f32.mrb[0].mxu0
      %v899 = vadd.f32 %v575, %v898
      %v900 = vpop.f32.mrb[0].mxu0
      %901 = vmatprep.mubr.f32.mxu0 0.0
      %902 = vmatmul.mubr.f32.gmra.mrb[0].mxu0 %v735
      %v903 = vpop.f32.mrb[0].mxu0
      %v904 = vadd.f32 %v580, %v903
      %v905 = vpop.f32.mrb[0].mxu0
      %906 = vmatprep.mubr.f32.mxu0 0.0
      %907 = vmatmul.mubr.f32.gmra.mrb[0].mxu0 %v738
      %v908 = vpop.f32.mrb[0].mxu0
      %v909 = vadd.f32 %v585, %v908
      %v910 = vpop.f32.mrb[0].mxu0
      %911 = vmatprep.mubr.f32.mxu0 0.0
      %912 = vmatmul.mubr.f32.gmra.mrb[0].mxu0 %v741
      %v913 = vpop.f32.mrb[0].mxu0
      %v914 = vadd.f32 %v590, %v913
      %v915 = vpop.f32.mrb[0].mxu0
      %916 = vmatprep.mubr.f32.mxu0 0.0
      %917 = vmatmul.mubr.f32.gmra.mrb[0].mxu0 %v744
      %v918 = vpop.f32.mrb[0].mxu0
      %v919 = vadd.f32 %v595, %v918
      %v920 = vpop.f32.mrb[0].mxu0
      %921 = vmatprep.mubr.f32.mxu0 0.0
      %922 = vmatmul.mubr.f32.gmra.mrb[0].mxu0 %v747
      %v923 = vpop.f32.mrb[0].mxu0
      %v924 = vadd.f32 %v600, %v923
      %v925 = vpop.f32.mrb[0].mxu0
      %926 = vmatprep.mubr.f32.mxu0 0.0
      %927 = vmatmul.mubr.f32.gmra.mrb[0].mxu0 %v750
      %v928 = vpop.f32.mrb[0].mxu0
      %v929 = vadd.f32 %v605, %v928
      %v930 = vpop.f32.mrb[0].mxu0
      %931 = vmatprep.mubr.f32.mxu0 0.0
      %932 = vmatmul.mubr.f32.gmra.mrb[0].mxu0 %v753
      %v933 = vpop.f32.mrb[0].mxu0
      %v934 = vadd.f32 %v610, %v933
      %v935 = vpop.f32.mrb[0].mxu0
      %936 = vmatprep.mubr.f32.mxu0 0.0
      %937 = vmatmul.mubr.f32.gmra.mrb[0].mxu0 %v756
      %v938 = vpop.f32.mrb[0].mxu0
      %v939 = vadd.f32 %v615, %v938
      %v940 = vpop.f32.mrb[0].mxu0
      %941 = vmatprep.mubr.f32.mxu0 0.0
      %942 = vmatmul.mubr.f32.gmra.mrb[0].mxu0 %v759
      %v943 = vpop.f32.mrb[0].mxu0
      %v944 = vadd.f32 %v620, %v943
      %v945 = vpop.f32.mrb[0].mxu0
      %946 = vmatprep.mubr.f32.mxu0 0.0
      %947 = vmatmul.mubr.f32.gmra.mrb[0].mxu0 %v762
      %v948 = vpop.f32.mrb[0].mxu0
      %v949 = vadd.f32 %v625, %v948
      %v950 = vpop.f32.mrb[0].mxu0
      %951 = vmatprep.mubr.f32.mxu0 0.0
      %952 = vmatmul.mubr.f32.gmra.mrb[0].mxu0 %v765
      %v953 = vpop.f32.mrb[0].mxu0
      %v954 = vadd.f32 %v630, %v953
      %v955 = vpop.f32.mrb[0].mxu0
      %956 = vmatprep.mubr.f32.mxu0 0.0
      %957 = vmatmul.mubr.f32.gmra.mrb[0].mxu0 %v768
      %v958 = vpop.f32.mrb[0].mxu0
      %v959 = vadd.f32 %v635, %v958
      %v960 = vpop.f32.mrb[0].mxu0
      %961 = vmatprep.mubr.f32.mxu0 0.0
      %962 = vmatmul.mubr.f32.gmra.mrb[0].mxu0 %v771
      %v963 = vpop.f32.mrb[0].mxu0
      %v964 = vadd.f32 %v640, %v963
      %v965 = vpop.f32.mrb[0].mxu0
      %966 = vmatprep.mubr.f32.mxu0 0.0
      %967 = vmatmul.mubr.f32.gmra.mrb[0].mxu0 %v774
      %v968 = vpop.f32.mrb[0].mxu0
      %v969 = vadd.f32 %v645, %v968
      %v970 = vpop.f32.mrb[0].mxu0
      %971 = vmatprep.mubr.f32.mxu0 0.0
      %972 = vmatmul.mubr.f32.gmra.mrb[0].mxu0 %v777
      %v973 = vpop.f32.mrb[0].mxu0
      %v974 = vadd.f32 %v650, %v973
      %v975 = vpop.f32.mrb[0].mxu0
      %976 = vmatprep.mubr.f32.mxu0 0.0
      %977 = vmatmul.mubr.f32.gmra.mrb[0].mxu0 %v780
      %v978 = vpop.f32.mrb[0].mxu0
      %v979 = vadd.f32 %v655, %v978
      %v980 = vpop.f32.mrb[0].mxu0
      %981 = vmatprep.mubr.f32.mxu0 0.0
      %982 = vmatmul.mubr.f32.gmra.mrb[0].mxu0 %v783
      %v983 = vpop.f32.mrb[0].mxu0
      %v984 = vadd.f32 %v660, %v983
      %v985 = vpop.f32.mrb[0].mxu0
      %986 = vmatprep.mubr.f32.mxu0 0.0
      %987 = vmatmul.mubr.f32.gmra.mrb[0].mxu0 %v786
      %v988 = vpop.f32.mrb[0].mxu0
      %v989 = vadd.f32 %v665, %v988
      %v990 = vpop.f32.mrb[0].mxu0
      %991 = vmatprep.mubr.f32.mxu0 0.0
      %992 = vmatmul.mubr.f32.gmra.mrb[0].mxu0 %v789
      %v993 = vpop.f32.mrb[0].mxu0
      %v994 = vadd.f32 %v670, %v993
      %v995 = vpop.f32.mrb[0].mxu0
      %996 = vmatprep.mubr.f32.mxu0 0.0
      %997 = vmatmul.mubr.f32.gmra.mrb[0].mxu0 %v792
      %v998 = vpop.f32.mrb[0].mxu0
      %v999 = vadd.f32 %v675, %v998
      %v1000 = vpop.f32.mrb[0].mxu0
      %1001 = vmatprep.mubr.f32.mxu0 0.0
      %1002 = vmatmul.mubr.f32.gmra.mrb[0].mxu0 %v795
      %v1003 = vpop.f32.mrb[0].mxu0
      %v1004 = vadd.f32 %v680, %v1003
      %v1005 = vpop.f32.mrb[0].mxu0
      %1006 = vmatprep.mubr.f32.mxu0 0.0
      %1007 = vmatmul.mubr.f32.gmra.mrb[0].mxu0 %v798
      %v1008 = vpop.f32.mrb[0].mxu0
      %v1009 = vadd.f32 %v685, %v1008
      %v1010 = vpop.f32.mrb[0].mxu0
      %1011 = vmatprep.mubr.f32.mxu0 0.0
      %1012 = vmatmul.mubr.f32.gmra.mrb[0].mxu0 %v801
      %v1013 = vpop.f32.mrb[0].mxu0
      %v1014 = vadd.f32 %v690, %v1013
      %v1015 = vpop.f32.mrb[0].mxu0
      %1016 = vmatprep.mubr.f32.mxu0 0.0
      %1017 = vmatmul.mubr.f32.gmra.mrb[0].mxu0 %v804
      %v1018 = vpop.f32.mrb[0].mxu0
      %v1019 = vadd.f32 %v695, %v1018
      %v1020 = vpop.f32.mrb[0].mxu0
      %1021 = vmatprep.mubr.f32.mxu0 0.0
      %1022 = vmatmul.mubr.f32.gmra.mrb[0].mxu0 %v807
      %v1023 = vpop.f32.mrb[0].mxu0
      %v1024 = vadd.f32 %v700, %v1023
      %v1025 = vpop.f32.mrb[0].mxu0
      %1026 = vmatprep.mubr.f32.mxu0 0.0
      %1027 = vmatmul.mubr.f32.gmra.mrb[0].mxu0 %v810
      %v1028 = vpop.f32.mrb[0].mxu0
      %v1029 = vadd.f32 %v705, %v1028
      %v1030 = vpop.f32.mrb[0].mxu0
      %1031 = vmatprep.mubr.f32.mxu0 0.0
      %1032 = vmatmul.mubr.f32.gmra.mrb[0].mxu0 %v813
      %v1033 = vpop.f32.mrb[0].mxu0
      %v1034 = vadd.f32 %v710, %v1033
      %v1035 = vpop.f32.mrb[0].mxu0
      %1036 = vmatprep.mubr.f32.mxu0 0.0
      %1037 = vmatmul.mubr.f32.gmra.mrb[0].mxu0 %v816
      %v1038 = vpop.f32.mrb[0].mxu0
      %v1039 = vadd.f32 %v715, %v1038
      %v1040 = vpop.f32.mrb[0].mxu0
      %1041 = vmatprep.mubr.f32.mxu0 0.0
      %1042 = vmatmul.mubr.f32.gmra.mrb[0].mxu0 %v819
      %v1043 = vpop.f32.mrb[0].mxu0
      %v1044 = vadd.f32 %v720, %v1043
      %v1045 = vpop.f32.mrb[0].mxu0
      %1046 = vmatprep.mubr.f32.mxu0 0.0
      %1047 = vmatmul.mubr.f32.gmra.mrb[0].mxu0 %v822
      %v1048 = vpop.f32.mrb[0].mxu0
      %v1049 = vadd.f32 %v725, %v1048
      %v1050 = vpop.f32.mrb[0].mxu0
      %1051 = vdwg.mxu0
      %v1052 = vld [vmem:[%s335 + $0x2] sm:$0xff]
      %v1053 = vld [vmem:[%s335 + $0xa] sm:$0xff]
      %v1054 = vld [vmem:[%s335 + $0x1a] sm:$0xff]
      %v1055 = vld [vmem:[%s335 + $0x22] sm:$0xff]
      %v1056 = vld [vmem:[%s335 + $0x32] sm:$0xff]
      %v1057 = vld [vmem:[%s335 + $0x3a] sm:$0xff]
      %v1058 = vld [vmem:[%s335 + $0x4a] sm:$0xff]
      %v1059 = vld [vmem:[%s335 + $0x52] sm:$0xff]
      %v1060 = vld [vmem:[%s335 + $0x62] sm:$0xff]
      %v1061 = vld [vmem:[%s335 + $0x6a] sm:$0xff]
      %v1062 = vld [vmem:[%s335 + $0x7a] sm:$0xff]
      %v1063 = vld [vmem:[%s335 + $0x82] sm:$0xff]
      %v1064 = vld [vmem:[%s335 + $0x92] sm:$0xff]
      %v1065 = vld [vmem:[%s335 + $0x9a] sm:$0xff]
      %v1066 = vld [vmem:[%s335 + $0xaa] sm:$0xff]
      %v1067 = vld [vmem:[%s335 + $0xb2] sm:$0xff]
      %v1068 = vld [vmem:[%s335 + $0xc2] sm:$0xff]
      %v1069 = vld [vmem:[%s335 + $0xca] sm:$0xff]
      %v1070 = vld [vmem:[%s335 + $0xda] sm:$0xff]
      %v1071 = vld [vmem:[%s335 + $0xe2] sm:$0xff]
      %v1072 = vld [vmem:[%s335 + $0xf2] sm:$0xff]
      %v1073 = vld [vmem:[%s335 + $0xfa] sm:$0xff]
      %v1074 = vld [vmem:[%s335 + $0x10a] sm:$0xff]
      %v1075 = vld [vmem:[%s335 + $0x112] sm:$0xff]
      %v1076 = vld [vmem:[%s335 + $0x122] sm:$0xff]
      %v1077 = vld [vmem:[%s335 + $0x12a] sm:$0xff]
      %v1078 = vld [vmem:[%s335 + $0x13a] sm:$0xff]
      %v1079 = vld [vmem:[%s335 + $0x142] sm:$0xff]
      %v1080 = vld [vmem:[%s335 + $0x152] sm:$0xff]
      %v1081 = vld [vmem:[%s335 + $0x15a] sm:$0xff]
      %v1082 = vld [vmem:[%s335 + $0x16a] sm:$0xff]
      %v1083 = vld [vmem:[%s335 + $0x172] sm:$0xff]
      %v1084 = vld [vmem:[%s1 + $0x8] sm:$0xf]
      %v1086 = vsel %vm402, %v1052, 0
      %v1089 = vsel %vm402, %v1053, 0
      %v1092 = vsel %vm402, %v1054, 0
      %v1095 = vsel %vm402, %v1055, 0
      %v1098 = vsel %vm402, %v1056, 0
      %v1101 = vsel %vm402, %v1057, 0
      %v1104 = vsel %vm402, %v1058, 0
      %v1107 = vsel %vm402, %v1059, 0
      %v1110 = vsel %vm402, %v1060, 0
      %v1113 = vsel %vm402, %v1061, 0
      %v1116 = vsel %vm402, %v1062, 0
      %v1119 = vsel %vm402, %v1063, 0
      %v1122 = vsel %vm402, %v1064, 0
      %v1125 = vsel %vm402, %v1065, 0
      %v1128 = vsel %vm402, %v1066, 0
      %v1131 = vsel %vm402, %v1067, 0
      %v1134 = vsel %vm402, %v1068, 0
      %v1137 = vsel %vm402, %v1069, 0
      %v1140 = vsel %vm402, %v1070, 0
      %v1143 = vsel %vm402, %v1071, 0
      %v1146 = vsel %vm402, %v1072, 0
      %v1149 = vsel %vm402, %v1073, 0
      %v1152 = vsel %vm402, %v1074, 0
      %v1155 = vsel %vm402, %v1075, 0
      %v1158 = vsel %vm402, %v1076, 0
      %v1161 = vsel %vm402, %v1077, 0
      %v1164 = vsel %vm402, %v1078, 0
      %v1167 = vsel %vm402, %v1079, 0
      %v1170 = vsel %vm402, %v1080, 0
      %v1173 = vsel %vm402, %v1081, 0
      %v1176 = vsel %vm402, %v1082, 0
      %v1179 = vsel %vm402, %v1083, 0
      %v1182 = vsel %vm499, %v1084, 0
      %1184 = vmatprep.subr.mxu0 0.0
      %1185 = vmatpush1.msra.mxu0 %v1182
      %1186 = vmatprep.subr.mxu0 0.0
      %1187 = vmatpush1.msra.mxu0 0.0
      %1188 = vmatprep.subr.mxu0 0.0
      %1189 = vmatpush1.msra.mxu0 0.0
      %1190 = vmatprep.subr.mxu0 0.0
      %1191 = vmatpush1.msra.mxu0 0.0
      %1192 = vmatprep.subr.mxu0 0.0
      %1193 = vmatpush1.msra.mxu0 0.0
      %1194 = vmatprep.subr.mxu0 0.0
      %1195 = vmatpush1.msra.mxu0 0.0
      %1196 = vmatprep.subr.mxu0 0.0
      %1197 = vmatpush1.msra.mxu0 0.0
      %1198 = vmatprep.subr.mxu0 0.0
      %1199 = vmatpush1.msra.mxu0 0.0
      %1200 = vmatprep.subr.mxu0 0.0
      %1201 = vmatpush1.msra.mxu0 0.0
      %1202 = vmatprep.subr.mxu0 0.0
      %1203 = vmatpush1.msra.mxu0 0.0
      %1204 = vmatprep.subr.mxu0 0.0
      %1205 = vmatpush1.msra.mxu0 0.0
      %1206 = vmatprep.subr.mxu0 0.0
      %1207 = vmatpush1.msra.mxu0 0.0
      %1208 = vmatprep.subr.mxu0 0.0
      %1209 = vmatpush1.msra.mxu0 0.0
      %1210 = vmatprep.subr.mxu0 0.0
      %1211 = vmatpush1.msra.mxu0 0.0
      %1212 = vmatprep.subr.mxu0 0.0
      %1213 = vmatpush1.msra.mxu0 0.0
      %1214 = vmatprep.subr.mxu0 0.0
      %1215 = vmatpush1.msra.mxu0 0.0
      %1216 = vmatprep.subr.mxu0 0.0
      %1217 = vmatpush1.msra.mxu0 0.0
      %1218 = vmatprep.subr.mxu0 0.0
      %1219 = vmatpush1.msra.mxu0 0.0
      %1220 = vmatprep.subr.mxu0 0.0
      %1221 = vmatpush1.msra.mxu0 0.0
      %1222 = vmatprep.subr.mxu0 0.0
      %1223 = vmatpush1.msra.mxu0 0.0
      %1224 = vmatprep.subr.mxu0 0.0
      %1225 = vmatpush1.msra.mxu0 0.0
      %1226 = vmatprep.subr.mxu0 0.0
      %1227 = vmatpush1.msra.mxu0 0.0
      %1228 = vmatprep.subr.mxu0 0.0
      %1229 = vmatpush1.msra.mxu0 0.0
      %1230 = vmatprep.subr.mxu0 0.0
      %1231 = vmatpush1.msra.mxu0 0.0
      %1232 = vmatprep.subr.mxu0 0.0
      %1233 = vmatpush1.msra.mxu0 0.0
      %1234 = vmatprep.subr.mxu0 0.0
      %1235 = vmatpush1.msra.mxu0 0.0
      %1236 = vmatprep.subr.mxu0 0.0
      %1237 = vmatpush1.msra.mxu0 0.0
      %1238 = vmatprep.subr.mxu0 0.0
      %1239 = vmatpush1.msra.mxu0 0.0
      %1240 = vmatprep.subr.mxu0 0.0
      %1241 = vmatpush1.msra.mxu0 0.0
      %1242 = vmatprep.subr.mxu0 0.0
      %1243 = vmatpush1.msra.mxu0 0.0
      %1244 = vmatprep.subr.mxu0 0.0
      %1245 = vmatpush1.msra.mxu0 0.0
      %1246 = vmatprep.subr.mxu0 0.0
      %1247 = vmatpush1.msra.mxu0 0.0
      %1248 = vmatprep.mubr.f32.mxu0 0.0
      %1249 = vmatmul.mubr.f32.gmra.mrb[0].mxu0 %v1086
      %v1250 = vpop.f32.mrb[0].mxu0
      %v1251 = vadd.f32 0.0, %v1250
      %v1252 = vpop.f32.mrb[0].mxu0
      %1253 = vmatprep.mubr.f32.mxu0 0.0
      %1254 = vmatmul.mubr.f32.gmra.mrb[0].mxu0 %v1089
      %v1255 = vpop.f32.mrb[0].mxu0
      %v1256 = vadd.f32 0.0, %v1255
      %v1257 = vpop.f32.mrb[0].mxu0
      %1258 = vmatprep.mubr.f32.mxu0 0.0
      %1259 = vmatmul.mubr.f32.gmra.mrb[0].mxu0 %v1092
      %v1260 = vpop.f32.mrb[0].mxu0
      %v1261 = vadd.f32 0.0, %v1260
      %v1262 = vpop.f32.mrb[0].mxu0
      %1263 = vmatprep.mubr.f32.mxu0 0.0
      %1264 = vmatmul.mubr.f32.gmra.mrb[0].mxu0 %v1095
      %v1265 = vpop.f32.mrb[0].mxu0
      %v1266 = vadd.f32 0.0, %v1265
      %v1267 = vpop.f32.mrb[0].mxu0
      %1268 = vmatprep.mubr.f32.mxu0 0.0
      %1269 = vmatmul.mubr.f32.gmra.mrb[0].mxu0 %v1098
      %v1270 = vpop.f32.mrb[0].mxu0
      %v1271 = vadd.f32 0.0, %v1270
      %v1272 = vpop.f32.mrb[0].mxu0
      %1273 = vmatprep.mubr.f32.mxu0 0.0
      %1274 = vmatmul.mubr.f32.gmra.mrb[0].mxu0 %v1101
      %v1275 = vpop.f32.mrb[0].mxu0
      %v1276 = vadd.f32 0.0, %v1275
      %v1277 = vpop.f32.mrb[0].mxu0
      %1278 = vmatprep.mubr.f32.mxu0 0.0
      %1279 = vmatmul.mubr.f32.gmra.mrb[0].mxu0 %v1104
      %v1280 = vpop.f32.mrb[0].mxu0
      %v1281 = vadd.f32 0.0, %v1280
      %v1282 = vpop.f32.mrb[0].mxu0
      %1283 = vmatprep.mubr.f32.mxu0 0.0
      %1284 = vmatmul.mubr.f32.gmra.mrb[0].mxu0 %v1107
      %v1285 = vpop.f32.mrb[0].mxu0
      %v1286 = vadd.f32 0.0, %v1285
      %v1287 = vpop.f32.mrb[0].mxu0
      %1288 = vmatprep.mubr.f32.mxu0 0.0
      %1289 = vmatmul.mubr.f32.gmra.mrb[0].mxu0 %v1110
      %v1290 = vpop.f32.mrb[0].mxu0
      %v1291 = vadd.f32 0.0, %v1290
      %v1292 = vpop.f32.mrb[0].mxu0
      %1293 = vmatprep.mubr.f32.mxu0 0.0
      %1294 = vmatmul.mubr.f32.gmra.mrb[0].mxu0 %v1113
      %v1295 = vpop.f32.mrb[0].mxu0
      %v1296 = vadd.f32 0.0, %v1295
      %v1297 = vpop.f32.mrb[0].mxu0
      %1298 = vmatprep.mubr.f32.mxu0 0.0
      %1299 = vmatmul.mubr.f32.gmra.mrb[0].mxu0 %v1116
      %v1300 = vpop.f32.mrb[0].mxu0
      %v1301 = vadd.f32 0.0, %v1300
      %v1302 = vpop.f32.mrb[0].mxu0
      %1303 = vmatprep.mubr.f32.mxu0 0.0
      %1304 = vmatmul.mubr.f32.gmra.mrb[0].mxu0 %v1119
      %v1305 = vpop.f32.mrb[0].mxu0
      %v1306 = vadd.f32 0.0, %v1305
      %v1307 = vpop.f32.mrb[0].mxu0
      %1308 = vmatprep.mubr.f32.mxu0 0.0
      %1309 = vmatmul.mubr.f32.gmra.mrb[0].mxu0 %v1122
      %v1310 = vpop.f32.mrb[0].mxu0
      %v1311 = vadd.f32 0.0, %v1310
      %v1312 = vpop.f32.mrb[0].mxu0
      %1313 = vmatprep.mubr.f32.mxu0 0.0
      %1314 = vmatmul.mubr.f32.gmra.mrb[0].mxu0 %v1125
      %v1315 = vpop.f32.mrb[0].mxu0
      %v1316 = vadd.f32 0.0, %v1315
      %v1317 = vpop.f32.mrb[0].mxu0
      %1318 = vmatprep.mubr.f32.mxu0 0.0
      %1319 = vmatmul.mubr.f32.gmra.mrb[0].mxu0 %v1128
      %v1320 = vpop.f32.mrb[0].mxu0
      %v1321 = vadd.f32 0.0, %v1320
      %v1322 = vpop.f32.mrb[0].mxu0
      %1323 = vmatprep.mubr.f32.mxu0 0.0
      %1324 = vmatmul.mubr.f32.gmra.mrb[0].mxu0 %v1131
      %v1325 = vpop.f32.mrb[0].mxu0
      %v1326 = vadd.f32 0.0, %v1325
      %v1327 = vpop.f32.mrb[0].mxu0
      %1328 = vmatprep.mubr.f32.mxu0 0.0
      %1329 = vmatmul.mubr.f32.gmra.mrb[0].mxu0 %v1134
      %v1330 = vpop.f32.mrb[0].mxu0
      %v1331 = vadd.f32 0.0, %v1330
      %v1332 = vpop.f32.mrb[0].mxu0
      %1333 = vmatprep.mubr.f32.mxu0 0.0
      %1334 = vmatmul.mubr.f32.gmra.mrb[0].mxu0 %v1137
      %v1335 = vpop.f32.mrb[0].mxu0
      %v1336 = vadd.f32 0.0, %v1335
      %v1337 = vpop.f32.mrb[0].mxu0
      %1338 = vmatprep.mubr.f32.mxu0 0.0
      %1339 = vmatmul.mubr.f32.gmra.mrb[0].mxu0 %v1140
      %v1340 = vpop.f32.mrb[0].mxu0
      %v1341 = vadd.f32 0.0, %v1340
      %v1342 = vpop.f32.mrb[0].mxu0
      %1343 = vmatprep.mubr.f32.mxu0 0.0
      %1344 = vmatmul.mubr.f32.gmra.mrb[0].mxu0 %v1143
      %v1345 = vpop.f32.mrb[0].mxu0
      %v1346 = vadd.f32 0.0, %v1345
      %v1347 = vpop.f32.mrb[0].mxu0
      %1348 = vmatprep.mubr.f32.mxu0 0.0
      %1349 = vmatmul.mubr.f32.gmra.mrb[0].mxu0 %v1146
      %v1350 = vpop.f32.mrb[0].mxu0
      %v1351 = vadd.f32 0.0, %v1350
      %v1352 = vpop.f32.mrb[0].mxu0
      %1353 = vmatprep.mubr.f32.mxu0 0.0
      %1354 = vmatmul.mubr.f32.gmra.mrb[0].mxu0 %v1149
      %v1355 = vpop.f32.mrb[0].mxu0
      %v1356 = vadd.f32 0.0, %v1355
      %v1357 = vpop.f32.mrb[0].mxu0
      %1358 = vmatprep.mubr.f32.mxu0 0.0
      %1359 = vmatmul.mubr.f32.gmra.mrb[0].mxu0 %v1152
      %v1360 = vpop.f32.mrb[0].mxu0
      %v1361 = vadd.f32 0.0, %v1360
      %v1362 = vpop.f32.mrb[0].mxu0
      %1363 = vmatprep.mubr.f32.mxu0 0.0
      %1364 = vmatmul.mubr.f32.gmra.mrb[0].mxu0 %v1155
      %v1365 = vpop.f32.mrb[0].mxu0
      %v1366 = vadd.f32 0.0, %v1365
      %v1367 = vpop.f32.mrb[0].mxu0
      %1368 = vmatprep.mubr.f32.mxu0 0.0
      %1369 = vmatmul.mubr.f32.gmra.mrb[0].mxu0 %v1158
      %v1370 = vpop.f32.mrb[0].mxu0
      %v1371 = vadd.f32 0.0, %v1370
      %v1372 = vpop.f32.mrb[0].mxu0
      %1373 = vmatprep.mubr.f32.mxu0 0.0
      %1374 = vmatmul.mubr.f32.gmra.mrb[0].mxu0 %v1161
      %v1375 = vpop.f32.mrb[0].mxu0
      %v1376 = vadd.f32 0.0, %v1375
      %v1377 = vpop.f32.mrb[0].mxu0
      %1378 = vmatprep.mubr.f32.mxu0 0.0
      %1379 = vmatmul.mubr.f32.gmra.mrb[0].mxu0 %v1164
      %v1380 = vpop.f32.mrb[0].mxu0
      %v1381 = vadd.f32 0.0, %v1380
      %v1382 = vpop.f32.mrb[0].mxu0
      %1383 = vmatprep.mubr.f32.mxu0 0.0
      %1384 = vmatmul.mubr.f32.gmra.mrb[0].mxu0 %v1167
      %v1385 = vpop.f32.mrb[0].mxu0
      %v1386 = vadd.f32 0.0, %v1385
      %v1387 = vpop.f32.mrb[0].mxu0
      %1388 = vmatprep.mubr.f32.mxu0 0.0
      %1389 = vmatmul.mubr.f32.gmra.mrb[0].mxu0 %v1170
      %v1390 = vpop.f32.mrb[0].mxu0
      %v1391 = vadd.f32 0.0, %v1390
      %v1392 = vpop.f32.mrb[0].mxu0
      %1393 = vmatprep.mubr.f32.mxu0 0.0
      %1394 = vmatmul.mubr.f32.gmra.mrb[0].mxu0 %v1173
      %v1395 = vpop.f32.mrb[0].mxu0
      %v1396 = vadd.f32 0.0, %v1395
      %v1397 = vpop.f32.mrb[0].mxu0
      %1398 = vmatprep.mubr.f32.mxu0 0.0
      %1399 = vmatmul.mubr.f32.gmra.mrb[0].mxu0 %v1176
      %v1400 = vpop.f32.mrb[0].mxu0
      %v1401 = vadd.f32 0.0, %v1400
      %v1402 = vpop.f32.mrb[0].mxu0
      %1403 = vmatprep.mubr.f32.mxu0 0.0
      %1404 = vmatmul.mubr.f32.gmra.mrb[0].mxu0 %v1179
      %v1405 = vpop.f32.mrb[0].mxu0
      %v1406 = vadd.f32 0.0, %v1405
      %v1407 = vpop.f32.mrb[0].mxu0
      %1408 = vdwg.mxu0
      %v1409 = vadd.f32 %v894, %v1251
      %v1410 = vadd.f32 %v899, %v1256
      %v1411 = vadd.f32 %v904, %v1261
      %v1412 = vadd.f32 %v909, %v1266
      %v1413 = vadd.f32 %v914, %v1271
      %v1414 = vadd.f32 %v919, %v1276
      %v1415 = vadd.f32 %v924, %v1281
      %v1416 = vadd.f32 %v929, %v1286
      %v1417 = vadd.f32 %v934, %v1291
      %v1418 = vadd.f32 %v939, %v1296
      %v1419 = vadd.f32 %v944, %v1301
      %v1420 = vadd.f32 %v949, %v1306
      %v1421 = vadd.f32 %v954, %v1311
      %v1422 = vadd.f32 %v959, %v1316
      %v1423 = vadd.f32 %v964, %v1321
      %v1424 = vadd.f32 %v969, %v1326
      %v1425 = vadd.f32 %v974, %v1331
      %v1426 = vadd.f32 %v979, %v1336
      %v1427 = vadd.f32 %v984, %v1341
      %v1428 = vadd.f32 %v989, %v1346
      %v1429 = vadd.f32 %v994, %v1351
      %v1430 = vadd.f32 %v999, %v1356
      %v1431 = vadd.f32 %v1004, %v1361
      %v1432 = vadd.f32 %v1009, %v1366
      %v1433 = vadd.f32 %v1014, %v1371
      %v1434 = vadd.f32 %v1019, %v1376
      %v1435 = vadd.f32 %v1024, %v1381
      %v1436 = vadd.f32 %v1029, %v1386
      %v1437 = vadd.f32 %v1034, %v1391
      %v1438 = vadd.f32 %v1039, %v1396
      %v1439 = vadd.f32 %v1044, %v1401
      %v1440 = vadd.f32 %v1049, %v1406
      %s1441 = sadd.s32 %s333, 1
      %s1442 = smul.u32 %s1441, 24
      %s1443 = scalar_lea.vmem [#allocation2], %s1442
      %v1444 = vld [vmem:[%s1443] sm:$0xff]
      %v1445 = vld [vmem:[%s1443 + $0x8] sm:$0xff]
      %v1446 = vld [vmem:[%s1443 + $0x18] sm:$0xff]
      %v1447 = vld [vmem:[%s1443 + $0x20] sm:$0xff]
      %v1448 = vld [vmem:[%s1443 + $0x30] sm:$0xff]
      %v1449 = vld [vmem:[%s1443 + $0x38] sm:$0xff]
      %v1450 = vld [vmem:[%s1443 + $0x48] sm:$0xff]
      %v1451 = vld [vmem:[%s1443 + $0x50] sm:$0xff]
      %v1452 = vld [vmem:[%s1443 + $0x60] sm:$0xff]
      %v1453 = vld [vmem:[%s1443 + $0x68] sm:$0xff]
      %v1454 = vld [vmem:[%s1443 + $0x78] sm:$0xff]
      %v1455 = vld [vmem:[%s1443 + $0x80] sm:$0xff]
      %v1456 = vld [vmem:[%s1443 + $0x90] sm:$0xff]
      %v1457 = vld [vmem:[%s1443 + $0x98] sm:$0xff]
      %v1458 = vld [vmem:[%s1443 + $0xa8] sm:$0xff]
      %v1459 = vld [vmem:[%s1443 + $0xb0] sm:$0xff]
      %v1460 = vld [vmem:[%s1443 + $0xc0] sm:$0xff]
      %v1461 = vld [vmem:[%s1443 + $0xc8] sm:$0xff]
      %v1462 = vld [vmem:[%s1443 + $0xd8] sm:$0xff]
      %v1463 = vld [vmem:[%s1443 + $0xe0] sm:$0xff]
      %v1464 = vld [vmem:[%s1443 + $0xf0] sm:$0xff]
      %v1465 = vld [vmem:[%s1443 + $0xf8] sm:$0xff]
      %v1466 = vld [vmem:[%s1443 + $0x108] sm:$0xff]
      %v1467 = vld [vmem:[%s1443 + $0x110] sm:$0xff]
      %v1468 = vld [vmem:[%s1443 + $0x120] sm:$0xff]
      %v1469 = vld [vmem:[%s1443 + $0x128] sm:$0xff]
      %v1470 = vld [vmem:[%s1443 + $0x138] sm:$0xff]
      %v1471 = vld [vmem:[%s1443 + $0x140] sm:$0xff]
      %v1472 = vld [vmem:[%s1443 + $0x150] sm:$0xff]
      %v1473 = vld [vmem:[%s1443 + $0x158] sm:$0xff]
      %v1474 = vld [vmem:[%s1443 + $0x168] sm:$0xff]
      %v1475 = vld [vmem:[%s1443 + $0x170] sm:$0xff]
      %v1476 = vld [vmem:[%s1 + $0xc] sm:$0xf]
      %v1478 = vsel %vm402, %v1444, 0
      %v1481 = vsel %vm402, %v1445, 0
      %v1484 = vsel %vm402, %v1446, 0
      %v1487 = vsel %vm402, %v1447, 0
      %v1490 = vsel %vm402, %v1448, 0
      %v1493 = vsel %vm402, %v1449, 0
      %v1496 = vsel %vm402, %v1450, 0
      %v1499 = vsel %vm402, %v1451, 0
      %v1502 = vsel %vm402, %v1452, 0
      %v1505 = vsel %vm402, %v1453, 0
      %v1508 = vsel %vm402, %v1454, 0
      %v1511 = vsel %vm402, %v1455, 0
      %v1514 = vsel %vm402, %v1456, 0
      %v1517 = vsel %vm402, %v1457, 0
      %v1520 = vsel %vm402, %v1458, 0
      %v1523 = vsel %vm402, %v1459, 0
      %v1526 = vsel %vm402, %v1460, 0
      %v1529 = vsel %vm402, %v1461, 0
      %v1532 = vsel %vm402, %v1462, 0
      %v1535 = vsel %vm402, %v1463, 0
      %v1538 = vsel %vm402, %v1464, 0
      %v1541 = vsel %vm402, %v1465, 0
      %v1544 = vsel %vm402, %v1466, 0
      %v1547 = vsel %vm402, %v1467, 0
      %v1550 = vsel %vm402, %v1468, 0
      %v1553 = vsel %vm402, %v1469, 0
      %v1556 = vsel %vm402, %v1470, 0
      %v1559 = vsel %vm402, %v1471, 0
      %v1562 = vsel %vm402, %v1472, 0
      %v1565 = vsel %vm402, %v1473, 0
      %v1568 = vsel %vm402, %v1474, 0
      %v1571 = vsel %vm402, %v1475, 0
      %v1574 = vsel %vm499, %v1476, 0
      %1576 = vmatprep.subr.mxu0 0.0
      %1577 = vmatpush1.msra.mxu0 %v1574
      %1578 = vmatprep.subr.mxu0 0.0
      %1579 = vmatpush1.msra.mxu0 0.0
      %1580 = vmatprep.subr.mxu0 0.0
      %1581 = vmatpush1.msra.mxu0 0.0
      %1582 = vmatprep.subr.mxu0 0.0
      %1583 = vmatpush1.msra.mxu0 0.0
      %1584 = vmatprep.subr.mxu0 0.0
      %1585 = vmatpush1.msra.mxu0 0.0
      %1586 = vmatprep.subr.mxu0 0.0
      %1587 = vmatpush1.msra.mxu0 0.0
      %1588 = vmatprep.subr.mxu0 0.0
      %1589 = vmatpush1.msra.mxu0 0.0
      %1590 = vmatprep.subr.mxu0 0.0
      %1591 = vmatpush1.msra.mxu0 0.0
      %1592 = vmatprep.subr.mxu0 0.0
      %1593 = vmatpush1.msra.mxu0 0.0
      %1594 = vmatprep.subr.mxu0 0.0
      %1595 = vmatpush1.msra.mxu0 0.0
      %1596 = vmatprep.subr.mxu0 0.0
      %1597 = vmatpush1.msra.mxu0 0.0
      %1598 = vmatprep.subr.mxu0 0.0
      %1599 = vmatpush1.msra.mxu0 0.0
      %1600 = vmatprep.subr.mxu0 0.0
      %1601 = vmatpush1.msra.mxu0 0.0
      %1602 = vmatprep.subr.mxu0 0.0
      %1603 = vmatpush1.msra.mxu0 0.0
      %1604 = vmatprep.subr.mxu0 0.0
      %1605 = vmatpush1.msra.mxu0 0.0
      %1606 = vmatprep.subr.mxu0 0.0
      %1607 = vmatpush1.msra.mxu0 0.0
      %1608 = vmatprep.subr.mxu0 0.0
      %1609 = vmatpush1.msra.mxu0 0.0
      %1610 = vmatprep.subr.mxu0 0.0
      %1611 = vmatpush1.msra.mxu0 0.0
      %1612 = vmatprep.subr.mxu0 0.0
      %1613 = vmatpush1.msra.mxu0 0.0
      %1614 = vmatprep.subr.mxu0 0.0
      %1615 = vmatpush1.msra.mxu0 0.0
      %1616 = vmatprep.subr.mxu0 0.0
      %1617 = vmatpush1.msra.mxu0 0.0
      %1618 = vmatprep.subr.mxu0 0.0
      %1619 = vmatpush1.msra.mxu0 0.0
      %1620 = vmatprep.subr.mxu0 0.0
      %1621 = vmatpush1.msra.mxu0 0.0
      %1622 = vmatprep.subr.mxu0 0.0
      %1623 = vmatpush1.msra.mxu0 0.0
      %1624 = vmatprep.subr.mxu0 0.0
      %1625 = vmatpush1.msra.mxu0 0.0
      %1626 = vmatprep.subr.mxu0 0.0
      %1627 = vmatpush1.msra.mxu0 0.0
      %1628 = vmatprep.subr.mxu0 0.0
      %1629 = vmatpush1.msra.mxu0 0.0
      %1630 = vmatprep.subr.mxu0 0.0
      %1631 = vmatpush1.msra.mxu0 0.0
      %1632 = vmatprep.subr.mxu0 0.0
      %1633 = vmatpush1.msra.mxu0 0.0
      %1634 = vmatprep.subr.mxu0 0.0
      %1635 = vmatpush1.msra.mxu0 0.0
      %1636 = vmatprep.subr.mxu0 0.0
      %1637 = vmatpush1.msra.mxu0 0.0
      %1638 = vmatprep.subr.mxu0 0.0
      %1639 = vmatpush1.msra.mxu0 0.0
      %1640 = vmatprep.mubr.f32.mxu0 0.0
      %1641 = vmatmul.mubr.f32.gmra.mrb[0].mxu0 %v1478
      %v1642 = vpop.f32.mrb[0].mxu0
      %v1643 = vadd.f32 0.0, %v1642
      %v1644 = vpop.f32.mrb[0].mxu0
      %1645 = vmatprep.mubr.f32.mxu0 0.0
      %1646 = vmatmul.mubr.f32.gmra.mrb[0].mxu0 %v1481
      %v1647 = vpop.f32.mrb[0].mxu0
      %v1648 = vadd.f32 0.0, %v1647
      %v1649 = vpop.f32.mrb[0].mxu0
      %1650 = vmatprep.mubr.f32.mxu0 0.0
      %1651 = vmatmul.mubr.f32.gmra.mrb[0].mxu0 %v1484
      %v1652 = vpop.f32.mrb[0].mxu0
      %v1653 = vadd.f32 0.0, %v1652
      %v1654 = vpop.f32.mrb[0].mxu0
      %1655 = vmatprep.mubr.f32.mxu0 0.0
      %1656 = vmatmul.mubr.f32.gmra.mrb[0].mxu0 %v1487
      %v1657 = vpop.f32.mrb[0].mxu0
      %v1658 = vadd.f32 0.0, %v1657
      %v1659 = vpop.f32.mrb[0].mxu0
      %1660 = vmatprep.mubr.f32.mxu0 0.0
      %1661 = vmatmul.mubr.f32.gmra.mrb[0].mxu0 %v1490
      %v1662 = vpop.f32.mrb[0].mxu0
      %v1663 = vadd.f32 0.0, %v1662
      %v1664 = vpop.f32.mrb[0].mxu0
      %1665 = vmatprep.mubr.f32.mxu0 0.0
      %1666 = vmatmul.mubr.f32.gmra.mrb[0].mxu0 %v1493
      %v1667 = vpop.f32.mrb[0].mxu0
      %v1668 = vadd.f32 0.0, %v1667
      %v1669 = vpop.f32.mrb[0].mxu0
      %1670 = vmatprep.mubr.f32.mxu0 0.0
      %1671 = vmatmul.mubr.f32.gmra.mrb[0].mxu0 %v1496
      %v1672 = vpop.f32.mrb[0].mxu0
      %v1673 = vadd.f32 0.0, %v1672
      %v1674 = vpop.f32.mrb[0].mxu0
      %1675 = vmatprep.mubr.f32.mxu0 0.0
      %1676 = vmatmul.mubr.f32.gmra.mrb[0].mxu0 %v1499
      %v1677 = vpop.f32.mrb[0].mxu0
      %v1678 = vadd.f32 0.0, %v1677
      %v1679 = vpop.f32.mrb[0].mxu0
      %1680 = vmatprep.mubr.f32.mxu0 0.0
      %1681 = vmatmul.mubr.f32.gmra.mrb[0].mxu0 %v1502
      %v1682 = vpop.f32.mrb[0].mxu0
      %v1683 = vadd.f32 0.0, %v1682
      %v1684 = vpop.f32.mrb[0].mxu0
      %1685 = vmatprep.mubr.f32.mxu0 0.0
      %1686 = vmatmul.mubr.f32.gmra.mrb[0].mxu0 %v1505
      %v1687 = vpop.f32.mrb[0].mxu0
      %v1688 = vadd.f32 0.0, %v1687
      %v1689 = vpop.f32.mrb[0].mxu0
      %1690 = vmatprep.mubr.f32.mxu0 0.0
      %1691 = vmatmul.mubr.f32.gmra.mrb[0].mxu0 %v1508
      %v1692 = vpop.f32.mrb[0].mxu0
      %v1693 = vadd.f32 0.0, %v1692
      %v1694 = vpop.f32.mrb[0].mxu0
      %1695 = vmatprep.mubr.f32.mxu0 0.0
      %1696 = vmatmul.mubr.f32.gmra.mrb[0].mxu0 %v1511
      %v1697 = vpop.f32.mrb[0].mxu0
      %v1698 = vadd.f32 0.0, %v1697
      %v1699 = vpop.f32.mrb[0].mxu0
      %1700 = vmatprep.mubr.f32.mxu0 0.0
      %1701 = vmatmul.mubr.f32.gmra.mrb[0].mxu0 %v1514
      %v1702 = vpop.f32.mrb[0].mxu0
      %v1703 = vadd.f32 0.0, %v1702
      %v1704 = vpop.f32.mrb[0].mxu0
      %1705 = vmatprep.mubr.f32.mxu0 0.0
      %1706 = vmatmul.mubr.f32.gmra.mrb[0].mxu0 %v1517
      %v1707 = vpop.f32.mrb[0].mxu0
      %v1708 = vadd.f32 0.0, %v1707
      %v1709 = vpop.f32.mrb[0].mxu0
      %1710 = vmatprep.mubr.f32.mxu0 0.0
      %1711 = vmatmul.mubr.f32.gmra.mrb[0].mxu0 %v1520
      %v1712 = vpop.f32.mrb[0].mxu0
      %v1713 = vadd.f32 0.0, %v1712
      %v1714 = vpop.f32.mrb[0].mxu0
      %1715 = vmatprep.mubr.f32.mxu0 0.0
      %1716 = vmatmul.mubr.f32.gmra.mrb[0].mxu0 %v1523
      %v1717 = vpop.f32.mrb[0].mxu0
      %v1718 = vadd.f32 0.0, %v1717
      %v1719 = vpop.f32.mrb[0].mxu0
      %1720 = vmatprep.mubr.f32.mxu0 0.0
      %1721 = vmatmul.mubr.f32.gmra.mrb[0].mxu0 %v1526
      %v1722 = vpop.f32.mrb[0].mxu0
      %v1723 = vadd.f32 0.0, %v1722
      %v1724 = vpop.f32.mrb[0].mxu0
      %1725 = vmatprep.mubr.f32.mxu0 0.0
      %1726 = vmatmul.mubr.f32.gmra.mrb[0].mxu0 %v1529
      %v1727 = vpop.f32.mrb[0].mxu0
      %v1728 = vadd.f32 0.0, %v1727
      %v1729 = vpop.f32.mrb[0].mxu0
      %1730 = vmatprep.mubr.f32.mxu0 0.0
      %1731 = vmatmul.mubr.f32.gmra.mrb[0].mxu0 %v1532
      %v1732 = vpop.f32.mrb[0].mxu0
      %v1733 = vadd.f32 0.0, %v1732
      %v1734 = vpop.f32.mrb[0].mxu0
      %1735 = vmatprep.mubr.f32.mxu0 0.0
      %1736 = vmatmul.mubr.f32.gmra.mrb[0].mxu0 %v1535
      %v1737 = vpop.f32.mrb[0].mxu0
      %v1738 = vadd.f32 0.0, %v1737
      %v1739 = vpop.f32.mrb[0].mxu0
      %1740 = vmatprep.mubr.f32.mxu0 0.0
      %1741 = vmatmul.mubr.f32.gmra.mrb[0].mxu0 %v1538
      %v1742 = vpop.f32.mrb[0].mxu0
      %v1743 = vadd.f32 0.0, %v1742
      %v1744 = vpop.f32.mrb[0].mxu0
      %1745 = vmatprep.mubr.f32.mxu0 0.0
      %1746 = vmatmul.mubr.f32.gmra.mrb[0].mxu0 %v1541
      %v1747 = vpop.f32.mrb[0].mxu0
      %v1748 = vadd.f32 0.0, %v1747
      %v1749 = vpop.f32.mrb[0].mxu0
      %1750 = vmatprep.mubr.f32.mxu0 0.0
      %1751 = vmatmul.mubr.f32.gmra.mrb[0].mxu0 %v1544
      %v1752 = vpop.f32.mrb[0].mxu0
      %v1753 = vadd.f32 0.0, %v1752
      %v1754 = vpop.f32.mrb[0].mxu0
      %1755 = vmatprep.mubr.f32.mxu0 0.0
      %1756 = vmatmul.mubr.f32.gmra.mrb[0].mxu0 %v1547
      %v1757 = vpop.f32.mrb[0].mxu0
      %v1758 = vadd.f32 0.0, %v1757
      %v1759 = vpop.f32.mrb[0].mxu0
      %1760 = vmatprep.mubr.f32.mxu0 0.0
      %1761 = vmatmul.mubr.f32.gmra.mrb[0].mxu0 %v1550
      %v1762 = vpop.f32.mrb[0].mxu0
      %v1763 = vadd.f32 0.0, %v1762
      %v1764 = vpop.f32.mrb[0].mxu0
      %1765 = vmatprep.mubr.f32.mxu0 0.0
      %1766 = vmatmul.mubr.f32.gmra.mrb[0].mxu0 %v1553
      %v1767 = vpop.f32.mrb[0].mxu0
      %v1768 = vadd.f32 0.0, %v1767
      %v1769 = vpop.f32.mrb[0].mxu0
      %1770 = vmatprep.mubr.f32.mxu0 0.0
      %1771 = vmatmul.mubr.f32.gmra.mrb[0].mxu0 %v1556
      %v1772 = vpop.f32.mrb[0].mxu0
      %v1773 = vadd.f32 0.0, %v1772
      %v1774 = vpop.f32.mrb[0].mxu0
      %1775 = vmatprep.mubr.f32.mxu0 0.0
      %1776 = vmatmul.mubr.f32.gmra.mrb[0].mxu0 %v1559
      %v1777 = vpop.f32.mrb[0].mxu0
      %v1778 = vadd.f32 0.0, %v1777
      %v1779 = vpop.f32.mrb[0].mxu0
      %1780 = vmatprep.mubr.f32.mxu0 0.0
      %1781 = vmatmul.mubr.f32.gmra.mrb[0].mxu0 %v1562
      %v1782 = vpop.f32.mrb[0].mxu0
      %v1783 = vadd.f32 0.0, %v1782
      %v1784 = vpop.f32.mrb[0].mxu0
      %1785 = vmatprep.mubr.f32.mxu0 0.0
      %1786 = vmatmul.mubr.f32.gmra.mrb[0].mxu0 %v1565
      %v1787 = vpop.f32.mrb[0].mxu0
      %v1788 = vadd.f32 0.0, %v1787
      %v1789 = vpop.f32.mrb[0].mxu0
      %1790 = vmatprep.mubr.f32.mxu0 0.0
      %1791 = vmatmul.mubr.f32.gmra.mrb[0].mxu0 %v1568
      %v1792 = vpop.f32.mrb[0].mxu0
      %v1793 = vadd.f32 0.0, %v1792
      %v1794 = vpop.f32.mrb[0].mxu0
      %1795 = vmatprep.mubr.f32.mxu0 0.0
      %1796 = vmatmul.mubr.f32.gmra.mrb[0].mxu0 %v1571
      %v1797 = vpop.f32.mrb[0].mxu0
      %v1798 = vadd.f32 0.0, %v1797
      %v1799 = vpop.f32.mrb[0].mxu0
      %1800 = vdwg.mxu0
      %v1801 = vadd.f32 %v1409, %v1643
      %v1802 = vadd.f32 %v1410, %v1648
      %v1803 = vadd.f32 %v1411, %v1653
      %v1804 = vadd.f32 %v1412, %v1658
      %v1805 = vadd.f32 %v1413, %v1663
      %v1806 = vadd.f32 %v1414, %v1668
      %v1807 = vadd.f32 %v1415, %v1673
      %v1808 = vadd.f32 %v1416, %v1678
      %v1809 = vadd.f32 %v1417, %v1683
      %v1810 = vadd.f32 %v1418, %v1688
      %v1811 = vadd.f32 %v1419, %v1693
      %v1812 = vadd.f32 %v1420, %v1698
      %v1813 = vadd.f32 %v1421, %v1703
      %v1814 = vadd.f32 %v1422, %v1708
      %v1815 = vadd.f32 %v1423, %v1713
      %v1816 = vadd.f32 %v1424, %v1718
      %v1817 = vadd.f32 %v1425, %v1723
      %v1818 = vadd.f32 %v1426, %v1728
      %v1819 = vadd.f32 %v1427, %v1733
      %v1820 = vadd.f32 %v1428, %v1738
      %v1821 = vadd.f32 %v1429, %v1743
      %v1822 = vadd.f32 %v1430, %v1748
      %v1823 = vadd.f32 %v1431, %v1753
      %v1824 = vadd.f32 %v1432, %v1758
      %v1825 = vadd.f32 %v1433, %v1763
      %v1826 = vadd.f32 %v1434, %v1768
      %v1827 = vadd.f32 %v1435, %v1773
      %v1828 = vadd.f32 %v1436, %v1778
      %v1829 = vadd.f32 %v1437, %v1783
      %v1830 = vadd.f32 %v1438, %v1788
      %v1831 = vadd.f32 %v1439, %v1793
      %v1832 = vadd.f32 %v1440, %v1798
      %v1833 = vld [vmem:[%s1443 + $0x1] sm:$0xff]
      %v1834 = vld [vmem:[%s1443 + $0x9] sm:$0xff]
      %v1835 = vld [vmem:[%s1443 + $0x19] sm:$0xff]
      %v1836 = vld [vmem:[%s1443 + $0x21] sm:$0xff]
      %v1837 = vld [vmem:[%s1443 + $0x31] sm:$0xff]
      %v1838 = vld [vmem:[%s1443 + $0x39] sm:$0xff]
      %v1839 = vld [vmem:[%s1443 + $0x49] sm:$0xff]
      %v1840 = vld [vmem:[%s1443 + $0x51] sm:$0xff]
      %v1841 = vld [vmem:[%s1443 + $0x61] sm:$0xff]
      %v1842 = vld [vmem:[%s1443 + $0x69] sm:$0xff]
      %v1843 = vld [vmem:[%s1443 + $0x79] sm:$0xff]
      %v1844 = vld [vmem:[%s1443 + $0x81] sm:$0xff]
      %v1845 = vld [vmem:[%s1443 + $0x91] sm:$0xff]
      %v1846 = vld [vmem:[%s1443 + $0x99] sm:$0xff]
      %v1847 = vld [vmem:[%s1443 + $0xa9] sm:$0xff]
      %v1848 = vld [vmem:[%s1443 + $0xb1] sm:$0xff]
      %v1849 = vld [vmem:[%s1443 + $0xc1] sm:$0xff]
      %v1850 = vld [vmem:[%s1443 + $0xc9] sm:$0xff]
      %v1851 = vld [vmem:[%s1443 + $0xd9] sm:$0xff]
      %v1852 = vld [vmem:[%s1443 + $0xe1] sm:$0xff]
      %v1853 = vld [vmem:[%s1443 + $0xf1] sm:$0xff]
      %v1854 = vld [vmem:[%s1443 + $0xf9] sm:$0xff]
      %v1855 = vld [vmem:[%s1443 + $0x109] sm:$0xff]
      %v1856 = vld [vmem:[%s1443 + $0x111] sm:$0xff]
      %v1857 = vld [vmem:[%s1443 + $0x121] sm:$0xff]
      %v1858 = vld [vmem:[%s1443 + $0x129] sm:$0xff]
      %v1859 = vld [vmem:[%s1443 + $0x139] sm:$0xff]
      %v1860 = vld [vmem:[%s1443 + $0x141] sm:$0xff]
      %v1861 = vld [vmem:[%s1443 + $0x151] sm:$0xff]
      %v1862 = vld [vmem:[%s1443 + $0x159] sm:$0xff]
      %v1863 = vld [vmem:[%s1443 + $0x169] sm:$0xff]
      %v1864 = vld [vmem:[%s1443 + $0x171] sm:$0xff]
      %v1865 = vld [vmem:[%s1 + $0x10] sm:$0xf]
      %v1867 = vsel %vm402, %v1833, 0
      %v1870 = vsel %vm402, %v1834, 0
      %v1873 = vsel %vm402, %v1835, 0
      %v1876 = vsel %vm402, %v1836, 0
      %v1879 = vsel %vm402, %v1837, 0
      %v1882 = vsel %vm402, %v1838, 0
      %v1885 = vsel %vm402, %v1839, 0
      %v1888 = vsel %vm402, %v1840, 0
      %v1891 = vsel %vm402, %v1841, 0
      %v1894 = vsel %vm402, %v1842, 0
      %v1897 = vsel %vm402, %v1843, 0
      %v1900 = vsel %vm402, %v1844, 0
      %v1903 = vsel %vm402, %v1845, 0
      %v1906 = vsel %vm402, %v1846, 0
      %v1909 = vsel %vm402, %v1847, 0
      %v1912 = vsel %vm402, %v1848, 0
      %v1915 = vsel %vm402, %v1849, 0
      %v1918 = vsel %vm402, %v1850, 0
      %v1921 = vsel %vm402, %v1851, 0
      %v1924 = vsel %vm402, %v1852, 0
      %v1927 = vsel %vm402, %v1853, 0
      %v1930 = vsel %vm402, %v1854, 0
      %v1933 = vsel %vm402, %v1855, 0
      %v1936 = vsel %vm402, %v1856, 0
      %v1939 = vsel %vm402, %v1857, 0
      %v1942 = vsel %vm402, %v1858, 0
      %v1945 = vsel %vm402, %v1859, 0
      %v1948 = vsel %vm402, %v1860, 0
      %v1951 = vsel %vm402, %v1861, 0
      %v1954 = vsel %vm402, %v1862, 0
      %v1957 = vsel %vm402, %v1863, 0
      %v1960 = vsel %vm402, %v1864, 0
      %v1963 = vsel %vm499, %v1865, 0
      %1965 = vmatprep.subr.mxu0 0.0
      %1966 = vmatpush1.msra.mxu0 %v1963
      %1967 = vmatprep.subr.mxu0 0.0
      %1968 = vmatpush1.msra.mxu0 0.0
      %1969 = vmatprep.subr.mxu0 0.0
      %1970 = vmatpush1.msra.mxu0 0.0
      %1971 = vmatprep.subr.mxu0 0.0
      %1972 = vmatpush1.msra.mxu0 0.0
      %1973 = vmatprep.subr.mxu0 0.0
      %1974 = vmatpush1.msra.mxu0 0.0
      %1975 = vmatprep.subr.mxu0 0.0
      %1976 = vmatpush1.msra.mxu0 0.0
      %1977 = vmatprep.subr.mxu0 0.0
      %1978 = vmatpush1.msra.mxu0 0.0
      %1979 = vmatprep.subr.mxu0 0.0
      %1980 = vmatpush1.msra.mxu0 0.0
      %1981 = vmatprep.subr.mxu0 0.0
      %1982 = vmatpush1.msra.mxu0 0.0
      %1983 = vmatprep.subr.mxu0 0.0
      %1984 = vmatpush1.msra.mxu0 0.0
      %1985 = vmatprep.subr.mxu0 0.0
      %1986 = vmatpush1.msra.mxu0 0.0
      %1987 = vmatprep.subr.mxu0 0.0
      %1988 = vmatpush1.msra.mxu0 0.0
      %1989 = vmatprep.subr.mxu0 0.0
      %1990 = vmatpush1.msra.mxu0 0.0
      %1991 = vmatprep.subr.mxu0 0.0
      %1992 = vmatpush1.msra.mxu0 0.0
      %1993 = vmatprep.subr.mxu0 0.0
      %1994 = vmatpush1.msra.mxu0 0.0
      %1995 = vmatprep.subr.mxu0 0.0
      %1996 = vmatpush1.msra.mxu0 0.0
      %1997 = vmatprep.subr.mxu0 0.0
      %1998 = vmatpush1.msra.mxu0 0.0
      %1999 = vmatprep.subr.mxu0 0.0
      %2000 = vmatpush1.msra.mxu0 0.0
      %2001 = vmatprep.subr.mxu0 0.0
      %2002 = vmatpush1.msra.mxu0 0.0
      %2003 = vmatprep.subr.mxu0 0.0
      %2004 = vmatpush1.msra.mxu0 0.0
      %2005 = vmatprep.subr.mxu0 0.0
      %2006 = vmatpush1.msra.mxu0 0.0
      %2007 = vmatprep.subr.mxu0 0.0
      %2008 = vmatpush1.msra.mxu0 0.0
      %2009 = vmatprep.subr.mxu0 0.0
      %2010 = vmatpush1.msra.mxu0 0.0
      %2011 = vmatprep.subr.mxu0 0.0
      %2012 = vmatpush1.msra.mxu0 0.0
      %2013 = vmatprep.subr.mxu0 0.0
      %2014 = vmatpush1.msra.mxu0 0.0
      %2015 = vmatprep.subr.mxu0 0.0
      %2016 = vmatpush1.msra.mxu0 0.0
      %2017 = vmatprep.subr.mxu0 0.0
      %2018 = vmatpush1.msra.mxu0 0.0
      %2019 = vmatprep.subr.mxu0 0.0
      %2020 = vmatpush1.msra.mxu0 0.0
      %2021 = vmatprep.subr.mxu0 0.0
      %2022 = vmatpush1.msra.mxu0 0.0
      %2023 = vmatprep.subr.mxu0 0.0
      %2024 = vmatpush1.msra.mxu0 0.0
      %2025 = vmatprep.subr.mxu0 0.0
      %2026 = vmatpush1.msra.mxu0 0.0
      %2027 = vmatprep.subr.mxu0 0.0
      %2028 = vmatpush1.msra.mxu0 0.0
      %2029 = vmatprep.mubr.f32.mxu0 0.0
      %2030 = vmatmul.mubr.f32.gmra.mrb[0].mxu0 %v1867
      %v2031 = vpop.f32.mrb[0].mxu0
      %v2032 = vadd.f32 0.0, %v2031
      %v2033 = vpop.f32.mrb[0].mxu0
      %2034 = vmatprep.mubr.f32.mxu0 0.0
      %2035 = vmatmul.mubr.f32.gmra.mrb[0].mxu0 %v1870
      %v2036 = vpop.f32.mrb[0].mxu0
      %v2037 = vadd.f32 0.0, %v2036
      %v2038 = vpop.f32.mrb[0].mxu0
      %2039 = vmatprep.mubr.f32.mxu0 0.0
      %2040 = vmatmul.mubr.f32.gmra.mrb[0].mxu0 %v1873
      %v2041 = vpop.f32.mrb[0].mxu0
      %v2042 = vadd.f32 0.0, %v2041
      %v2043 = vpop.f32.mrb[0].mxu0
      %2044 = vmatprep.mubr.f32.mxu0 0.0
      %2045 = vmatmul.mubr.f32.gmra.mrb[0].mxu0 %v1876
      %v2046 = vpop.f32.mrb[0].mxu0
      %v2047 = vadd.f32 0.0, %v2046
      %v2048 = vpop.f32.mrb[0].mxu0
      %2049 = vmatprep.mubr.f32.mxu0 0.0
      %2050 = vmatmul.mubr.f32.gmra.mrb[0].mxu0 %v1879
      %v2051 = vpop.f32.mrb[0].mxu0
      %v2052 = vadd.f32 0.0, %v2051
      %v2053 = vpop.f32.mrb[0].mxu0
      %2054 = vmatprep.mubr.f32.mxu0 0.0
      %2055 = vmatmul.mubr.f32.gmra.mrb[0].mxu0 %v1882
      %v2056 = vpop.f32.mrb[0].mxu0
      %v2057 = vadd.f32 0.0, %v2056
      %v2058 = vpop.f32.mrb[0].mxu0
      %2059 = vmatprep.mubr.f32.mxu0 0.0
      %2060 = vmatmul.mubr.f32.gmra.mrb[0].mxu0 %v1885
      %v2061 = vpop.f32.mrb[0].mxu0
      %v2062 = vadd.f32 0.0, %v2061
      %v2063 = vpop.f32.mrb[0].mxu0
      %2064 = vmatprep.mubr.f32.mxu0 0.0
      %2065 = vmatmul.mubr.f32.gmra.mrb[0].mxu0 %v1888
      %v2066 = vpop.f32.mrb[0].mxu0
      %v2067 = vadd.f32 0.0, %v2066
      %v2068 = vpop.f32.mrb[0].mxu0
      %2069 = vmatprep.mubr.f32.mxu0 0.0
      %2070 = vmatmul.mubr.f32.gmra.mrb[0].mxu0 %v1891
      %v2071 = vpop.f32.mrb[0].mxu0
      %v2072 = vadd.f32 0.0, %v2071
      %v2073 = vpop.f32.mrb[0].mxu0
      %2074 = vmatprep.mubr.f32.mxu0 0.0
      %2075 = vmatmul.mubr.f32.gmra.mrb[0].mxu0 %v1894
      %v2076 = vpop.f32.mrb[0].mxu0
      %v2077 = vadd.f32 0.0, %v2076
      %v2078 = vpop.f32.mrb[0].mxu0
      %2079 = vmatprep.mubr.f32.mxu0 0.0
      %2080 = vmatmul.mubr.f32.gmra.mrb[0].mxu0 %v1897
      %v2081 = vpop.f32.mrb[0].mxu0
      %v2082 = vadd.f32 0.0, %v2081
      %v2083 = vpop.f32.mrb[0].mxu0
      %2084 = vmatprep.mubr.f32.mxu0 0.0
      %2085 = vmatmul.mubr.f32.gmra.mrb[0].mxu0 %v1900
      %v2086 = vpop.f32.mrb[0].mxu0
      %v2087 = vadd.f32 0.0, %v2086
      %v2088 = vpop.f32.mrb[0].mxu0
      %2089 = vmatprep.mubr.f32.mxu0 0.0
      %2090 = vmatmul.mubr.f32.gmra.mrb[0].mxu0 %v1903
      %v2091 = vpop.f32.mrb[0].mxu0
      %v2092 = vadd.f32 0.0, %v2091
      %v2093 = vpop.f32.mrb[0].mxu0
      %2094 = vmatprep.mubr.f32.mxu0 0.0
      %2095 = vmatmul.mubr.f32.gmra.mrb[0].mxu0 %v1906
      %v2096 = vpop.f32.mrb[0].mxu0
      %v2097 = vadd.f32 0.0, %v2096
      %v2098 = vpop.f32.mrb[0].mxu0
      %2099 = vmatprep.mubr.f32.mxu0 0.0
      %2100 = vmatmul.mubr.f32.gmra.mrb[0].mxu0 %v1909
      %v2101 = vpop.f32.mrb[0].mxu0
      %v2102 = vadd.f32 0.0, %v2101
      %v2103 = vpop.f32.mrb[0].mxu0
      %2104 = vmatprep.mubr.f32.mxu0 0.0
      %2105 = vmatmul.mubr.f32.gmra.mrb[0].mxu0 %v1912
      %v2106 = vpop.f32.mrb[0].mxu0
      %v2107 = vadd.f32 0.0, %v2106
      %v2108 = vpop.f32.mrb[0].mxu0
      %2109 = vmatprep.mubr.f32.mxu0 0.0
      %2110 = vmatmul.mubr.f32.gmra.mrb[0].mxu0 %v1915
      %v2111 = vpop.f32.mrb[0].mxu0
      %v2112 = vadd.f32 0.0, %v2111
      %v2113 = vpop.f32.mrb[0].mxu0
      %2114 = vmatprep.mubr.f32.mxu0 0.0
      %2115 = vmatmul.mubr.f32.gmra.mrb[0].mxu0 %v1918
      %v2116 = vpop.f32.mrb[0].mxu0
      %v2117 = vadd.f32 0.0, %v2116
      %v2118 = vpop.f32.mrb[0].mxu0
      %2119 = vmatprep.mubr.f32.mxu0 0.0
      %2120 = vmatmul.mubr.f32.gmra.mrb[0].mxu0 %v1921
      %v2121 = vpop.f32.mrb[0].mxu0
      %v2122 = vadd.f32 0.0, %v2121
      %v2123 = vpop.f32.mrb[0].mxu0
      %2124 = vmatprep.mubr.f32.mxu0 0.0
      %2125 = vmatmul.mubr.f32.gmra.mrb[0].mxu0 %v1924
      %v2126 = vpop.f32.mrb[0].mxu0
      %v2127 = vadd.f32 0.0, %v2126
      %v2128 = vpop.f32.mrb[0].mxu0
      %2129 = vmatprep.mubr.f32.mxu0 0.0
      %2130 = vmatmul.mubr.f32.gmra.mrb[0].mxu0 %v1927
      %v2131 = vpop.f32.mrb[0].mxu0
      %v2132 = vadd.f32 0.0, %v2131
      %v2133 = vpop.f32.mrb[0].mxu0
      %2134 = vmatprep.mubr.f32.mxu0 0.0
      %2135 = vmatmul.mubr.f32.gmra.mrb[0].mxu0 %v1930
      %v2136 = vpop.f32.mrb[0].mxu0
      %v2137 = vadd.f32 0.0, %v2136
      %v2138 = vpop.f32.mrb[0].mxu0
      %2139 = vmatprep.mubr.f32.mxu0 0.0
      %2140 = vmatmul.mubr.f32.gmra.mrb[0].mxu0 %v1933
      %v2141 = vpop.f32.mrb[0].mxu0
      %v2142 = vadd.f32 0.0, %v2141
      %v2143 = vpop.f32.mrb[0].mxu0
      %2144 = vmatprep.mubr.f32.mxu0 0.0
      %2145 = vmatmul.mubr.f32.gmra.mrb[0].mxu0 %v1936
      %v2146 = vpop.f32.mrb[0].mxu0
      %v2147 = vadd.f32 0.0, %v2146
      %v2148 = vpop.f32.mrb[0].mxu0
      %2149 = vmatprep.mubr.f32.mxu0 0.0
      %2150 = vmatmul.mubr.f32.gmra.mrb[0].mxu0 %v1939
      %v2151 = vpop.f32.mrb[0].mxu0
      %v2152 = vadd.f32 0.0, %v2151
      %v2153 = vpop.f32.mrb[0].mxu0
      %2154 = vmatprep.mubr.f32.mxu0 0.0
      %2155 = vmatmul.mubr.f32.gmra.mrb[0].mxu0 %v1942
      %v2156 = vpop.f32.mrb[0].mxu0
      %v2157 = vadd.f32 0.0, %v2156
      %v2158 = vpop.f32.mrb[0].mxu0
      %2159 = vmatprep.mubr.f32.mxu0 0.0
      %2160 = vmatmul.mubr.f32.gmra.mrb[0].mxu0 %v1945
      %v2161 = vpop.f32.mrb[0].mxu0
      %v2162 = vadd.f32 0.0, %v2161
      %v2163 = vpop.f32.mrb[0].mxu0
      %2164 = vmatprep.mubr.f32.mxu0 0.0
      %2165 = vmatmul.mubr.f32.gmra.mrb[0].mxu0 %v1948
      %v2166 = vpop.f32.mrb[0].mxu0
      %v2167 = vadd.f32 0.0, %v2166
      %v2168 = vpop.f32.mrb[0].mxu0
      %2169 = vmatprep.mubr.f32.mxu0 0.0
      %2170 = vmatmul.mubr.f32.gmra.mrb[0].mxu0 %v1951
      %v2171 = vpop.f32.mrb[0].mxu0
      %v2172 = vadd.f32 0.0, %v2171
      %v2173 = vpop.f32.mrb[0].mxu0
      %2174 = vmatprep.mubr.f32.mxu0 0.0
      %2175 = vmatmul.mubr.f32.gmra.mrb[0].mxu0 %v1954
      %v2176 = vpop.f32.mrb[0].mxu0
      %v2177 = vadd.f32 0.0, %v2176
      %v2178 = vpop.f32.mrb[0].mxu0
      %2179 = vmatprep.mubr.f32.mxu0 0.0
      %2180 = vmatmul.mubr.f32.gmra.mrb[0].mxu0 %v1957
      %v2181 = vpop.f32.mrb[0].mxu0
      %v2182 = vadd.f32 0.0, %v2181
      %v2183 = vpop.f32.mrb[0].mxu0
      %2184 = vmatprep.mubr.f32.mxu0 0.0
      %2185 = vmatmul.mubr.f32.gmra.mrb[0].mxu0 %v1960
      %v2186 = vpop.f32.mrb[0].mxu0
      %v2187 = vadd.f32 0.0, %v2186
      %v2188 = vpop.f32.mrb[0].mxu0
      %2189 = vdwg.mxu0
      %v2190 = vadd.f32 %v1801, %v2032
      %v2191 = vadd.f32 %v1802, %v2037
      %v2192 = vadd.f32 %v1803, %v2042
      %v2193 = vadd.f32 %v1804, %v2047
      %v2194 = vadd.f32 %v1805, %v2052
      %v2195 = vadd.f32 %v1806, %v2057
      %v2196 = vadd.f32 %v1807, %v2062
      %v2197 = vadd.f32 %v1808, %v2067
      %v2198 = vadd.f32 %v1809, %v2072
      %v2199 = vadd.f32 %v1810, %v2077
      %v2200 = vadd.f32 %v1811, %v2082
      %v2201 = vadd.f32 %v1812, %v2087
      %v2202 = vadd.f32 %v1813, %v2092
      %v2203 = vadd.f32 %v1814, %v2097
      %v2204 = vadd.f32 %v1815, %v2102
      %v2205 = vadd.f32 %v1816, %v2107
      %v2206 = vadd.f32 %v1817, %v2112
      %v2207 = vadd.f32 %v1818, %v2117
      %v2208 = vadd.f32 %v1819, %v2122
      %v2209 = vadd.f32 %v1820, %v2127
      %v2210 = vadd.f32 %v1821, %v2132
      %v2211 = vadd.f32 %v1822, %v2137
      %v2212 = vadd.f32 %v1823, %v2142
      %v2213 = vadd.f32 %v1824, %v2147
      %v2214 = vadd.f32 %v1825, %v2152
      %v2215 = vadd.f32 %v1826, %v2157
      %v2216 = vadd.f32 %v1827, %v2162
      %v2217 = vadd.f32 %v1828, %v2167
      %v2218 = vadd.f32 %v1829, %v2172
      %v2219 = vadd.f32 %v1830, %v2177
      %v2220 = vadd.f32 %v1831, %v2182
      %v2221 = vadd.f32 %v1832, %v2187
      %v2222 = vld [vmem:[%s1443 + $0x2] sm:$0xff]
      %v2223 = vld [vmem:[%s1443 + $0xa] sm:$0xff]
      %v2224 = vld [vmem:[%s1443 + $0x1a] sm:$0xff]
      %v2225 = vld [vmem:[%s1443 + $0x22] sm:$0xff]
      %v2226 = vld [vmem:[%s1443 + $0x32] sm:$0xff]
      %v2227 = vld [vmem:[%s1443 + $0x3a] sm:$0xff]
      %v2228 = vld [vmem:[%s1443 + $0x4a] sm:$0xff]
      %v2229 = vld [vmem:[%s1443 + $0x52] sm:$0xff]
      %v2230 = vld [vmem:[%s1443 + $0x62] sm:$0xff]
      %v2231 = vld [vmem:[%s1443 + $0x6a] sm:$0xff]
      %v2232 = vld [vmem:[%s1443 + $0x7a] sm:$0xff]
      %v2233 = vld [vmem:[%s1443 + $0x82] sm:$0xff]
      %v2234 = vld [vmem:[%s1443 + $0x92] sm:$0xff]
      %v2235 = vld [vmem:[%s1443 + $0x9a] sm:$0xff]
      %v2236 = vld [vmem:[%s1443 + $0xaa] sm:$0xff]
      %v2237 = vld [vmem:[%s1443 + $0xb2] sm:$0xff]
      %v2238 = vld [vmem:[%s1443 + $0xc2] sm:$0xff]
      %v2239 = vld [vmem:[%s1443 + $0xca] sm:$0xff]
      %v2240 = vld [vmem:[%s1443 + $0xda] sm:$0xff]
      %v2241 = vld [vmem:[%s1443 + $0xe2] sm:$0xff]
      %v2242 = vld [vmem:[%s1443 + $0xf2] sm:$0xff]
      %v2243 = vld [vmem:[%s1443 + $0xfa] sm:$0xff]
      %v2244 = vld [vmem:[%s1443 + $0x10a] sm:$0xff]
      %v2245 = vld [vmem:[%s1443 + $0x112] sm:$0xff]
      %v2246 = vld [vmem:[%s1443 + $0x122] sm:$0xff]
      %v2247 = vld [vmem:[%s1443 + $0x12a] sm:$0xff]
      %v2248 = vld [vmem:[%s1443 + $0x13a] sm:$0xff]
      %v2249 = vld [vmem:[%s1443 + $0x142] sm:$0xff]
      %v2250 = vld [vmem:[%s1443 + $0x152] sm:$0xff]
      %v2251 = vld [vmem:[%s1443 + $0x15a] sm:$0xff]
      %v2252 = vld [vmem:[%s1443 + $0x16a] sm:$0xff]
      %v2253 = vld [vmem:[%s1443 + $0x172] sm:$0xff]
      %v2254 = vld [vmem:[%s1 + $0x14] sm:$0xf]
      %v2256 = vsel %vm402, %v2222, 0
      %v2259 = vsel %vm402, %v2223, 0
      %v2262 = vsel %vm402, %v2224, 0
      %v2265 = vsel %vm402, %v2225, 0
      %v2268 = vsel %vm402, %v2226, 0
      %v2271 = vsel %vm402, %v2227, 0
      %v2274 = vsel %vm402, %v2228, 0
      %v2277 = vsel %vm402, %v2229, 0
      %v2280 = vsel %vm402, %v2230, 0
      %v2283 = vsel %vm402, %v2231, 0
      %v2286 = vsel %vm402, %v2232, 0
      %v2289 = vsel %vm402, %v2233, 0
      %v2292 = vsel %vm402, %v2234, 0
      %v2295 = vsel %vm402, %v2235, 0
      %v2298 = vsel %vm402, %v2236, 0
      %v2301 = vsel %vm402, %v2237, 0
      %v2304 = vsel %vm402, %v2238, 0
      %v2307 = vsel %vm402, %v2239, 0
      %v2310 = vsel %vm402, %v2240, 0
      %v2313 = vsel %vm402, %v2241, 0
      %v2316 = vsel %vm402, %v2242, 0
      %v2319 = vsel %vm402, %v2243, 0
      %v2322 = vsel %vm402, %v2244, 0
      %v2325 = vsel %vm402, %v2245, 0
      %v2328 = vsel %vm402, %v2246, 0
      %v2331 = vsel %vm402, %v2247, 0
      %v2334 = vsel %vm402, %v2248, 0
      %v2337 = vsel %vm402, %v2249, 0
      %v2340 = vsel %vm402, %v2250, 0
      %v2343 = vsel %vm402, %v2251, 0
      %v2346 = vsel %vm402, %v2252, 0
      %v2349 = vsel %vm402, %v2253, 0
      %v2352 = vsel %vm499, %v2254, 0
      %2354 = vmatprep.subr.mxu0 0.0
      %2355 = vmatpush1.msra.mxu0 %v2352
      %2356 = vmatprep.subr.mxu0 0.0
      %2357 = vmatpush1.msra.mxu0 0.0
      %2358 = vmatprep.subr.mxu0 0.0
      %2359 = vmatpush1.msra.mxu0 0.0
      %2360 = vmatprep.subr.mxu0 0.0
      %2361 = vmatpush1.msra.mxu0 0.0
      %2362 = vmatprep.subr.mxu0 0.0
      %2363 = vmatpush1.msra.mxu0 0.0
      %2364 = vmatprep.subr.mxu0 0.0
      %2365 = vmatpush1.msra.mxu0 0.0
      %2366 = vmatprep.subr.mxu0 0.0
      %2367 = vmatpush1.msra.mxu0 0.0
      %2368 = vmatprep.subr.mxu0 0.0
      %2369 = vmatpush1.msra.mxu0 0.0
      %2370 = vmatprep.subr.mxu0 0.0
      %2371 = vmatpush1.msra.mxu0 0.0
      %2372 = vmatprep.subr.mxu0 0.0
      %2373 = vmatpush1.msra.mxu0 0.0
      %2374 = vmatprep.subr.mxu0 0.0
      %2375 = vmatpush1.msra.mxu0 0.0
      %2376 = vmatprep.subr.mxu0 0.0
      %2377 = vmatpush1.msra.mxu0 0.0
      %2378 = vmatprep.subr.mxu0 0.0
      %2379 = vmatpush1.msra.mxu0 0.0
      %2380 = vmatprep.subr.mxu0 0.0
      %2381 = vmatpush1.msra.mxu0 0.0
      %2382 = vmatprep.subr.mxu0 0.0
      %2383 = vmatpush1.msra.mxu0 0.0
      %2384 = vmatprep.subr.mxu0 0.0
      %2385 = vmatpush1.msra.mxu0 0.0
      %2386 = vmatprep.subr.mxu0 0.0
      %2387 = vmatpush1.msra.mxu0 0.0
      %2388 = vmatprep.subr.mxu0 0.0
      %2389 = vmatpush1.msra.mxu0 0.0
      %2390 = vmatprep.subr.mxu0 0.0
      %2391 = vmatpush1.msra.mxu0 0.0
      %2392 = vmatprep.subr.mxu0 0.0
      %2393 = vmatpush1.msra.mxu0 0.0
      %2394 = vmatprep.subr.mxu0 0.0
      %2395 = vmatpush1.msra.mxu0 0.0
      %2396 = vmatprep.subr.mxu0 0.0
      %2397 = vmatpush1.msra.mxu0 0.0
      %2398 = vmatprep.subr.mxu0 0.0
      %2399 = vmatpush1.msra.mxu0 0.0
      %2400 = vmatprep.subr.mxu0 0.0
      %2401 = vmatpush1.msra.mxu0 0.0
      %2402 = vmatprep.subr.mxu0 0.0
      %2403 = vmatpush1.msra.mxu0 0.0
      %2404 = vmatprep.subr.mxu0 0.0
      %2405 = vmatpush1.msra.mxu0 0.0
      %2406 = vmatprep.subr.mxu0 0.0
      %2407 = vmatpush1.msra.mxu0 0.0
      %2408 = vmatprep.subr.mxu0 0.0
      %2409 = vmatpush1.msra.mxu0 0.0
      %2410 = vmatprep.subr.mxu0 0.0
      %2411 = vmatpush1.msra.mxu0 0.0
      %2412 = vmatprep.subr.mxu0 0.0
      %2413 = vmatpush1.msra.mxu0 0.0
      %2414 = vmatprep.subr.mxu0 0.0
      %2415 = vmatpush1.msra.mxu0 0.0
      %2416 = vmatprep.subr.mxu0 0.0
      %2417 = vmatpush1.msra.mxu0 0.0
      %2418 = vmatprep.mubr.f32.mxu0 0.0
      %2419 = vmatmul.mubr.f32.gmra.mrb[0].mxu0 %v2256
      %v2420 = vpop.f32.mrb[0].mxu0
      %v2421 = vadd.f32 0.0, %v2420
      %v2422 = vpop.f32.mrb[0].mxu0
      %2423 = vmatprep.mubr.f32.mxu0 0.0
      %2424 = vmatmul.mubr.f32.gmra.mrb[0].mxu0 %v2259
      %v2425 = vpop.f32.mrb[0].mxu0
      %v2426 = vadd.f32 0.0, %v2425
      %v2427 = vpop.f32.mrb[0].mxu0
      %2428 = vmatprep.mubr.f32.mxu0 0.0
      %2429 = vmatmul.mubr.f32.gmra.mrb[0].mxu0 %v2262
      %v2430 = vpop.f32.mrb[0].mxu0
      %v2431 = vadd.f32 0.0, %v2430
      %v2432 = vpop.f32.mrb[0].mxu0
      %2433 = vmatprep.mubr.f32.mxu0 0.0
      %2434 = vmatmul.mubr.f32.gmra.mrb[0].mxu0 %v2265
      %v2435 = vpop.f32.mrb[0].mxu0
      %v2436 = vadd.f32 0.0, %v2435
      %v2437 = vpop.f32.mrb[0].mxu0
      %2438 = vmatprep.mubr.f32.mxu0 0.0
      %2439 = vmatmul.mubr.f32.gmra.mrb[0].mxu0 %v2268
      %v2440 = vpop.f32.mrb[0].mxu0
      %v2441 = vadd.f32 0.0, %v2440
      %v2442 = vpop.f32.mrb[0].mxu0
      %2443 = vmatprep.mubr.f32.mxu0 0.0
      %2444 = vmatmul.mubr.f32.gmra.mrb[0].mxu0 %v2271
      %v2445 = vpop.f32.mrb[0].mxu0
      %v2446 = vadd.f32 0.0, %v2445
      %v2447 = vpop.f32.mrb[0].mxu0
      %2448 = vmatprep.mubr.f32.mxu0 0.0
      %2449 = vmatmul.mubr.f32.gmra.mrb[0].mxu0 %v2274
      %v2450 = vpop.f32.mrb[0].mxu0
      %v2451 = vadd.f32 0.0, %v2450
      %v2452 = vpop.f32.mrb[0].mxu0
      %2453 = vmatprep.mubr.f32.mxu0 0.0
      %2454 = vmatmul.mubr.f32.gmra.mrb[0].mxu0 %v2277
      %v2455 = vpop.f32.mrb[0].mxu0
      %v2456 = vadd.f32 0.0, %v2455
      %v2457 = vpop.f32.mrb[0].mxu0
      %2458 = vmatprep.mubr.f32.mxu0 0.0
      %2459 = vmatmul.mubr.f32.gmra.mrb[0].mxu0 %v2280
      %v2460 = vpop.f32.mrb[0].mxu0
      %v2461 = vadd.f32 0.0, %v2460
      %v2462 = vpop.f32.mrb[0].mxu0
      %2463 = vmatprep.mubr.f32.mxu0 0.0
      %2464 = vmatmul.mubr.f32.gmra.mrb[0].mxu0 %v2283
      %v2465 = vpop.f32.mrb[0].mxu0
      %v2466 = vadd.f32 0.0, %v2465
      %v2467 = vpop.f32.mrb[0].mxu0
      %2468 = vmatprep.mubr.f32.mxu0 0.0
      %2469 = vmatmul.mubr.f32.gmra.mrb[0].mxu0 %v2286
      %v2470 = vpop.f32.mrb[0].mxu0
      %v2471 = vadd.f32 0.0, %v2470
      %v2472 = vpop.f32.mrb[0].mxu0
      %2473 = vmatprep.mubr.f32.mxu0 0.0
      %2474 = vmatmul.mubr.f32.gmra.mrb[0].mxu0 %v2289
      %v2475 = vpop.f32.mrb[0].mxu0
      %v2476 = vadd.f32 0.0, %v2475
      %v2477 = vpop.f32.mrb[0].mxu0
      %2478 = vmatprep.mubr.f32.mxu0 0.0
      %2479 = vmatmul.mubr.f32.gmra.mrb[0].mxu0 %v2292
      %v2480 = vpop.f32.mrb[0].mxu0
      %v2481 = vadd.f32 0.0, %v2480
      %v2482 = vpop.f32.mrb[0].mxu0
      %2483 = vmatprep.mubr.f32.mxu0 0.0
      %2484 = vmatmul.mubr.f32.gmra.mrb[0].mxu0 %v2295
      %v2485 = vpop.f32.mrb[0].mxu0
      %v2486 = vadd.f32 0.0, %v2485
      %v2487 = vpop.f32.mrb[0].mxu0
      %2488 = vmatprep.mubr.f32.mxu0 0.0
      %2489 = vmatmul.mubr.f32.gmra.mrb[0].mxu0 %v2298
      %v2490 = vpop.f32.mrb[0].mxu0
      %v2491 = vadd.f32 0.0, %v2490
      %v2492 = vpop.f32.mrb[0].mxu0
      %2493 = vmatprep.mubr.f32.mxu0 0.0
      %2494 = vmatmul.mubr.f32.gmra.mrb[0].mxu0 %v2301
      %v2495 = vpop.f32.mrb[0].mxu0
      %v2496 = vadd.f32 0.0, %v2495
      %v2497 = vpop.f32.mrb[0].mxu0
      %2498 = vmatprep.mubr.f32.mxu0 0.0
      %2499 = vmatmul.mubr.f32.gmra.mrb[0].mxu0 %v2304
      %v2500 = vpop.f32.mrb[0].mxu0
      %v2501 = vadd.f32 0.0, %v2500
      %v2502 = vpop.f32.mrb[0].mxu0
      %2503 = vmatprep.mubr.f32.mxu0 0.0
      %2504 = vmatmul.mubr.f32.gmra.mrb[0].mxu0 %v2307
      %v2505 = vpop.f32.mrb[0].mxu0
      %v2506 = vadd.f32 0.0, %v2505
      %v2507 = vpop.f32.mrb[0].mxu0
      %2508 = vmatprep.mubr.f32.mxu0 0.0
      %2509 = vmatmul.mubr.f32.gmra.mrb[0].mxu0 %v2310
      %v2510 = vpop.f32.mrb[0].mxu0
      %v2511 = vadd.f32 0.0, %v2510
      %v2512 = vpop.f32.mrb[0].mxu0
      %2513 = vmatprep.mubr.f32.mxu0 0.0
      %2514 = vmatmul.mubr.f32.gmra.mrb[0].mxu0 %v2313
      %v2515 = vpop.f32.mrb[0].mxu0
      %v2516 = vadd.f32 0.0, %v2515
      %v2517 = vpop.f32.mrb[0].mxu0
      %2518 = vmatprep.mubr.f32.mxu0 0.0
      %2519 = vmatmul.mubr.f32.gmra.mrb[0].mxu0 %v2316
      %v2520 = vpop.f32.mrb[0].mxu0
      %v2521 = vadd.f32 0.0, %v2520
      %v2522 = vpop.f32.mrb[0].mxu0
      %2523 = vmatprep.mubr.f32.mxu0 0.0
      %2524 = vmatmul.mubr.f32.gmra.mrb[0].mxu0 %v2319
      %v2525 = vpop.f32.mrb[0].mxu0
      %v2526 = vadd.f32 0.0, %v2525
      %v2527 = vpop.f32.mrb[0].mxu0
      %2528 = vmatprep.mubr.f32.mxu0 0.0
      %2529 = vmatmul.mubr.f32.gmra.mrb[0].mxu0 %v2322
      %v2530 = vpop.f32.mrb[0].mxu0
      %v2531 = vadd.f32 0.0, %v2530
      %v2532 = vpop.f32.mrb[0].mxu0
      %2533 = vmatprep.mubr.f32.mxu0 0.0
      %2534 = vmatmul.mubr.f32.gmra.mrb[0].mxu0 %v2325
      %v2535 = vpop.f32.mrb[0].mxu0
      %v2536 = vadd.f32 0.0, %v2535
      %v2537 = vpop.f32.mrb[0].mxu0
      %2538 = vmatprep.mubr.f32.mxu0 0.0
      %2539 = vmatmul.mubr.f32.gmra.mrb[0].mxu0 %v2328
      %v2540 = vpop.f32.mrb[0].mxu0
      %v2541 = vadd.f32 0.0, %v2540
      %v2542 = vpop.f32.mrb[0].mxu0
      %2543 = vmatprep.mubr.f32.mxu0 0.0
      %2544 = vmatmul.mubr.f32.gmra.mrb[0].mxu0 %v2331
      %v2545 = vpop.f32.mrb[0].mxu0
      %v2546 = vadd.f32 0.0, %v2545
      %v2547 = vpop.f32.mrb[0].mxu0
      %2548 = vmatprep.mubr.f32.mxu0 0.0
      %2549 = vmatmul.mubr.f32.gmra.mrb[0].mxu0 %v2334
      %v2550 = vpop.f32.mrb[0].mxu0
      %v2551 = vadd.f32 0.0, %v2550
      %v2552 = vpop.f32.mrb[0].mxu0
      %2553 = vmatprep.mubr.f32.mxu0 0.0
      %2554 = vmatmul.mubr.f32.gmra.mrb[0].mxu0 %v2337
      %v2555 = vpop.f32.mrb[0].mxu0
      %v2556 = vadd.f32 0.0, %v2555
      %v2557 = vpop.f32.mrb[0].mxu0
      %2558 = vmatprep.mubr.f32.mxu0 0.0
      %2559 = vmatmul.mubr.f32.gmra.mrb[0].mxu0 %v2340
      %v2560 = vpop.f32.mrb[0].mxu0
      %v2561 = vadd.f32 0.0, %v2560
      %v2562 = vpop.f32.mrb[0].mxu0
      %2563 = vmatprep.mubr.f32.mxu0 0.0
      %2564 = vmatmul.mubr.f32.gmra.mrb[0].mxu0 %v2343
      %v2565 = vpop.f32.mrb[0].mxu0
      %v2566 = vadd.f32 0.0, %v2565
      %v2567 = vpop.f32.mrb[0].mxu0
      %2568 = vmatprep.mubr.f32.mxu0 0.0
      %2569 = vmatmul.mubr.f32.gmra.mrb[0].mxu0 %v2346
      %v2570 = vpop.f32.mrb[0].mxu0
      %v2571 = vadd.f32 0.0, %v2570
      %v2572 = vpop.f32.mrb[0].mxu0
      %2573 = vmatprep.mubr.f32.mxu0 0.0
      %2574 = vmatmul.mubr.f32.gmra.mrb[0].mxu0 %v2349
      %v2575 = vpop.f32.mrb[0].mxu0
      %v2576 = vadd.f32 0.0, %v2575
      %v2577 = vpop.f32.mrb[0].mxu0
      %2578 = vdwg.mxu0
      %v2579 = vadd.f32 %v2190, %v2421
      %v2580 = vadd.f32 %v2191, %v2426
      %v2581 = vadd.f32 %v2192, %v2431
      %v2582 = vadd.f32 %v2193, %v2436
      %v2583 = vadd.f32 %v2194, %v2441
      %v2584 = vadd.f32 %v2195, %v2446
      %v2585 = vadd.f32 %v2196, %v2451
      %v2586 = vadd.f32 %v2197, %v2456
      %v2587 = vadd.f32 %v2198, %v2461
      %v2588 = vadd.f32 %v2199, %v2466
      %v2589 = vadd.f32 %v2200, %v2471
      %v2590 = vadd.f32 %v2201, %v2476
      %v2591 = vadd.f32 %v2202, %v2481
      %v2592 = vadd.f32 %v2203, %v2486
      %v2593 = vadd.f32 %v2204, %v2491
      %v2594 = vadd.f32 %v2205, %v2496
      %v2595 = vadd.f32 %v2206, %v2501
      %v2596 = vadd.f32 %v2207, %v2506
      %v2597 = vadd.f32 %v2208, %v2511
      %v2598 = vadd.f32 %v2209, %v2516
      %v2599 = vadd.f32 %v2210, %v2521
      %v2600 = vadd.f32 %v2211, %v2526
      %v2601 = vadd.f32 %v2212, %v2531
      %v2602 = vadd.f32 %v2213, %v2536
      %v2603 = vadd.f32 %v2214, %v2541
      %v2604 = vadd.f32 %v2215, %v2546
      %v2605 = vadd.f32 %v2216, %v2551
      %v2606 = vadd.f32 %v2217, %v2556
      %v2607 = vadd.f32 %v2218, %v2561
      %v2608 = vadd.f32 %v2219, %v2566
      %v2609 = vadd.f32 %v2220, %v2571
      %v2610 = vadd.f32 %v2221, %v2576
      %s2611 = sadd.s32 %s333, 2
      %s2612 = smul.u32 %s2611, 24
      %s2613 = scalar_lea.vmem [#allocation2], %s2612
      %v2614 = vld [vmem:[%s2613] sm:$0xff]
      %v2615 = vld [vmem:[%s2613 + $0x8] sm:$0xff]
      %v2616 = vld [vmem:[%s2613 + $0x18] sm:$0xff]
      %v2617 = vld [vmem:[%s2613 + $0x20] sm:$0xff]
      %v2618 = vld [vmem:[%s2613 + $0x30] sm:$0xff]
      %v2619 = vld [vmem:[%s2613 + $0x38] sm:$0xff]
      %v2620 = vld [vmem:[%s2613 + $0x48] sm:$0xff]
      %v2621 = vld [vmem:[%s2613 + $0x50] sm:$0xff]
      %v2622 = vld [vmem:[%s2613 + $0x60] sm:$0xff]
      %v2623 = vld [vmem:[%s2613 + $0x68] sm:$0xff]
      %v2624 = vld [vmem:[%s2613 + $0x78] sm:$0xff]
      %v2625 = vld [vmem:[%s2613 + $0x80] sm:$0xff]
      %v2626 = vld [vmem:[%s2613 + $0x90] sm:$0xff]
      %v2627 = vld [vmem:[%s2613 + $0x98] sm:$0xff]
      %v2628 = vld [vmem:[%s2613 + $0xa8] sm:$0xff]
      %v2629 = vld [vmem:[%s2613 + $0xb0] sm:$0xff]
      %v2630 = vld [vmem:[%s2613 + $0xc0] sm:$0xff]
      %v2631 = vld [vmem:[%s2613 + $0xc8] sm:$0xff]
      %v2632 = vld [vmem:[%s2613 + $0xd8] sm:$0xff]
      %v2633 = vld [vmem:[%s2613 + $0xe0] sm:$0xff]
      %v2634 = vld [vmem:[%s2613 + $0xf0] sm:$0xff]
      %v2635 = vld [vmem:[%s2613 + $0xf8] sm:$0xff]
      %v2636 = vld [vmem:[%s2613 + $0x108] sm:$0xff]
      %v2637 = vld [vmem:[%s2613 + $0x110] sm:$0xff]
      %v2638 = vld [vmem:[%s2613 + $0x120] sm:$0xff]
      %v2639 = vld [vmem:[%s2613 + $0x128] sm:$0xff]
      %v2640 = vld [vmem:[%s2613 + $0x138] sm:$0xff]
      %v2641 = vld [vmem:[%s2613 + $0x140] sm:$0xff]
      %v2642 = vld [vmem:[%s2613 + $0x150] sm:$0xff]
      %v2643 = vld [vmem:[%s2613 + $0x158] sm:$0xff]
      %v2644 = vld [vmem:[%s2613 + $0x168] sm:$0xff]
      %v2645 = vld [vmem:[%s2613 + $0x170] sm:$0xff]
      %v2646 = vld [vmem:[%s1 + $0x18] sm:$0xf]
      %v2648 = vsel %vm402, %v2614, 0
      %v2651 = vsel %vm402, %v2615, 0
      %v2654 = vsel %vm402, %v2616, 0
      %v2657 = vsel %vm402, %v2617, 0
      %v2660 = vsel %vm402, %v2618, 0
      %v2663 = vsel %vm402, %v2619, 0
      %v2666 = vsel %vm402, %v2620, 0
      %v2669 = vsel %vm402, %v2621, 0
      %v2672 = vsel %vm402, %v2622, 0
      %v2675 = vsel %vm402, %v2623, 0
      %v2678 = vsel %vm402, %v2624, 0
      %v2681 = vsel %vm402, %v2625, 0
      %v2684 = vsel %vm402, %v2626, 0
      %v2687 = vsel %vm402, %v2627, 0
      %v2690 = vsel %vm402, %v2628, 0
      %v2693 = vsel %vm402, %v2629, 0
      %v2696 = vsel %vm402, %v2630, 0
      %v2699 = vsel %vm402, %v2631, 0
      %v2702 = vsel %vm402, %v2632, 0
      %v2705 = vsel %vm402, %v2633, 0
      %v2708 = vsel %vm402, %v2634, 0
      %v2711 = vsel %vm402, %v2635, 0
      %v2714 = vsel %vm402, %v2636, 0
      %v2717 = vsel %vm402, %v2637, 0
      %v2720 = vsel %vm402, %v2638, 0
      %v2723 = vsel %vm402, %v2639, 0
      %v2726 = vsel %vm402, %v2640, 0
      %v2729 = vsel %vm402, %v2641, 0
      %v2732 = vsel %vm402, %v2642, 0
      %v2735 = vsel %vm402, %v2643, 0
      %v2738 = vsel %vm402, %v2644, 0
      %v2741 = vsel %vm402, %v2645, 0
      %v2744 = vsel %vm499, %v2646, 0
      %2746 = vmatprep.subr.mxu0 0.0
      %2747 = vmatpush1.msra.mxu0 %v2744
      %2748 = vmatprep.subr.mxu0 0.0
      %2749 = vmatpush1.msra.mxu0 0.0
      %2750 = vmatprep.subr.mxu0 0.0
      %2751 = vmatpush1.msra.mxu0 0.0
      %2752 = vmatprep.subr.mxu0 0.0
      %2753 = vmatpush1.msra.mxu0 0.0
      %2754 = vmatprep.subr.mxu0 0.0
      %2755 = vmatpush1.msra.mxu0 0.0
      %2756 = vmatprep.subr.mxu0 0.0
      %2757 = vmatpush1.msra.mxu0 0.0
      %2758 = vmatprep.subr.mxu0 0.0
      %2759 = vmatpush1.msra.mxu0 0.0
      %2760 = vmatprep.subr.mxu0 0.0
      %2761 = vmatpush1.msra.mxu0 0.0
      %2762 = vmatprep.subr.mxu0 0.0
      %2763 = vmatpush1.msra.mxu0 0.0
      %2764 = vmatprep.subr.mxu0 0.0
      %2765 = vmatpush1.msra.mxu0 0.0
      %2766 = vmatprep.subr.mxu0 0.0
      %2767 = vmatpush1.msra.mxu0 0.0
      %2768 = vmatprep.subr.mxu0 0.0
      %2769 = vmatpush1.msra.mxu0 0.0
      %2770 = vmatprep.subr.mxu0 0.0
      %2771 = vmatpush1.msra.mxu0 0.0
      %2772 = vmatprep.subr.mxu0 0.0
      %2773 = vmatpush1.msra.mxu0 0.0
      %2774 = vmatprep.subr.mxu0 0.0
      %2775 = vmatpush1.msra.mxu0 0.0
      %2776 = vmatprep.subr.mxu0 0.0
      %2777 = vmatpush1.msra.mxu0 0.0
      %2778 = vmatprep.subr.mxu0 0.0
      %2779 = vmatpush1.msra.mxu0 0.0
      %2780 = vmatprep.subr.mxu0 0.0
      %2781 = vmatpush1.msra.mxu0 0.0
      %2782 = vmatprep.subr.mxu0 0.0
      %2783 = vmatpush1.msra.mxu0 0.0
      %2784 = vmatprep.subr.mxu0 0.0
      %2785 = vmatpush1.msra.mxu0 0.0
      %2786 = vmatprep.subr.mxu0 0.0
      %2787 = vmatpush1.msra.mxu0 0.0
      %2788 = vmatprep.subr.mxu0 0.0
      %2789 = vmatpush1.msra.mxu0 0.0
      %2790 = vmatprep.subr.mxu0 0.0
      %2791 = vmatpush1.msra.mxu0 0.0
      %2792 = vmatprep.subr.mxu0 0.0
      %2793 = vmatpush1.msra.mxu0 0.0
      %2794 = vmatprep.subr.mxu0 0.0
      %2795 = vmatpush1.msra.mxu0 0.0
      %2796 = vmatprep.subr.mxu0 0.0
      %2797 = vmatpush1.msra.mxu0 0.0
      %2798 = vmatprep.subr.mxu0 0.0
      %2799 = vmatpush1.msra.mxu0 0.0
      %2800 = vmatprep.subr.mxu0 0.0
      %2801 = vmatpush1.msra.mxu0 0.0
      %2802 = vmatprep.subr.mxu0 0.0
      %2803 = vmatpush1.msra.mxu0 0.0
      %2804 = vmatprep.subr.mxu0 0.0
      %2805 = vmatpush1.msra.mxu0 0.0
      %2806 = vmatprep.subr.mxu0 0.0
      %2807 = vmatpush1.msra.mxu0 0.0
      %2808 = vmatprep.subr.mxu0 0.0
      %2809 = vmatpush1.msra.mxu0 0.0
      %2810 = vmatprep.mubr.f32.mxu0 0.0
      %2811 = vmatmul.mubr.f32.gmra.mrb[0].mxu0 %v2648
      %v2812 = vpop.f32.mrb[0].mxu0
      %v2813 = vadd.f32 0.0, %v2812
      %v2814 = vpop.f32.mrb[0].mxu0
      %2815 = vmatprep.mubr.f32.mxu0 0.0
      %2816 = vmatmul.mubr.f32.gmra.mrb[0].mxu0 %v2651
      %v2817 = vpop.f32.mrb[0].mxu0
      %v2818 = vadd.f32 0.0, %v2817
      %v2819 = vpop.f32.mrb[0].mxu0
      %2820 = vmatprep.mubr.f32.mxu0 0.0
      %2821 = vmatmul.mubr.f32.gmra.mrb[0].mxu0 %v2654
      %v2822 = vpop.f32.mrb[0].mxu0
      %v2823 = vadd.f32 0.0, %v2822
      %v2824 = vpop.f32.mrb[0].mxu0
      %2825 = vmatprep.mubr.f32.mxu0 0.0
      %2826 = vmatmul.mubr.f32.gmra.mrb[0].mxu0 %v2657
      %v2827 = vpop.f32.mrb[0].mxu0
      %v2828 = vadd.f32 0.0, %v2827
      %v2829 = vpop.f32.mrb[0].mxu0
      %2830 = vmatprep.mubr.f32.mxu0 0.0
      %2831 = vmatmul.mubr.f32.gmra.mrb[0].mxu0 %v2660
      %v2832 = vpop.f32.mrb[0].mxu0
      %v2833 = vadd.f32 0.0, %v2832
      %v2834 = vpop.f32.mrb[0].mxu0
      %2835 = vmatprep.mubr.f32.mxu0 0.0
      %2836 = vmatmul.mubr.f32.gmra.mrb[0].mxu0 %v2663
      %v2837 = vpop.f32.mrb[0].mxu0
      %v2838 = vadd.f32 0.0, %v2837
      %v2839 = vpop.f32.mrb[0].mxu0
      %2840 = vmatprep.mubr.f32.mxu0 0.0
      %2841 = vmatmul.mubr.f32.gmra.mrb[0].mxu0 %v2666
      %v2842 = vpop.f32.mrb[0].mxu0
      %v2843 = vadd.f32 0.0, %v2842
      %v2844 = vpop.f32.mrb[0].mxu0
      %2845 = vmatprep.mubr.f32.mxu0 0.0
      %2846 = vmatmul.mubr.f32.gmra.mrb[0].mxu0 %v2669
      %v2847 = vpop.f32.mrb[0].mxu0
      %v2848 = vadd.f32 0.0, %v2847
      %v2849 = vpop.f32.mrb[0].mxu0
      %2850 = vmatprep.mubr.f32.mxu0 0.0
      %2851 = vmatmul.mubr.f32.gmra.mrb[0].mxu0 %v2672
      %v2852 = vpop.f32.mrb[0].mxu0
      %v2853 = vadd.f32 0.0, %v2852
      %v2854 = vpop.f32.mrb[0].mxu0
      %2855 = vmatprep.mubr.f32.mxu0 0.0
      %2856 = vmatmul.mubr.f32.gmra.mrb[0].mxu0 %v2675
      %v2857 = vpop.f32.mrb[0].mxu0
      %v2858 = vadd.f32 0.0, %v2857
      %v2859 = vpop.f32.mrb[0].mxu0
      %2860 = vmatprep.mubr.f32.mxu0 0.0
      %2861 = vmatmul.mubr.f32.gmra.mrb[0].mxu0 %v2678
      %v2862 = vpop.f32.mrb[0].mxu0
      %v2863 = vadd.f32 0.0, %v2862
      %v2864 = vpop.f32.mrb[0].mxu0
      %2865 = vmatprep.mubr.f32.mxu0 0.0
      %2866 = vmatmul.mubr.f32.gmra.mrb[0].mxu0 %v2681
      %v2867 = vpop.f32.mrb[0].mxu0
      %v2868 = vadd.f32 0.0, %v2867
      %v2869 = vpop.f32.mrb[0].mxu0
      %2870 = vmatprep.mubr.f32.mxu0 0.0
      %2871 = vmatmul.mubr.f32.gmra.mrb[0].mxu0 %v2684
      %v2872 = vpop.f32.mrb[0].mxu0
      %v2873 = vadd.f32 0.0, %v2872
      %v2874 = vpop.f32.mrb[0].mxu0
      %2875 = vmatprep.mubr.f32.mxu0 0.0
      %2876 = vmatmul.mubr.f32.gmra.mrb[0].mxu0 %v2687
      %v2877 = vpop.f32.mrb[0].mxu0
      %v2878 = vadd.f32 0.0, %v2877
      %v2879 = vpop.f32.mrb[0].mxu0
      %2880 = vmatprep.mubr.f32.mxu0 0.0
      %2881 = vmatmul.mubr.f32.gmra.mrb[0].mxu0 %v2690
      %v2882 = vpop.f32.mrb[0].mxu0
      %v2883 = vadd.f32 0.0, %v2882
      %v2884 = vpop.f32.mrb[0].mxu0
      %2885 = vmatprep.mubr.f32.mxu0 0.0
      %2886 = vmatmul.mubr.f32.gmra.mrb[0].mxu0 %v2693
      %v2887 = vpop.f32.mrb[0].mxu0
      %v2888 = vadd.f32 0.0, %v2887
      %v2889 = vpop.f32.mrb[0].mxu0
      %2890 = vmatprep.mubr.f32.mxu0 0.0
      %2891 = vmatmul.mubr.f32.gmra.mrb[0].mxu0 %v2696
      %v2892 = vpop.f32.mrb[0].mxu0
      %v2893 = vadd.f32 0.0, %v2892
      %v2894 = vpop.f32.mrb[0].mxu0
      %2895 = vmatprep.mubr.f32.mxu0 0.0
      %2896 = vmatmul.mubr.f32.gmra.mrb[0].mxu0 %v2699
      %v2897 = vpop.f32.mrb[0].mxu0
      %v2898 = vadd.f32 0.0, %v2897
      %v2899 = vpop.f32.mrb[0].mxu0
      %2900 = vmatprep.mubr.f32.mxu0 0.0
      %2901 = vmatmul.mubr.f32.gmra.mrb[0].mxu0 %v2702
      %v2902 = vpop.f32.mrb[0].mxu0
      %v2903 = vadd.f32 0.0, %v2902
      %v2904 = vpop.f32.mrb[0].mxu0
      %2905 = vmatprep.mubr.f32.mxu0 0.0
      %2906 = vmatmul.mubr.f32.gmra.mrb[0].mxu0 %v2705
      %v2907 = vpop.f32.mrb[0].mxu0
      %v2908 = vadd.f32 0.0, %v2907
      %v2909 = vpop.f32.mrb[0].mxu0
      %2910 = vmatprep.mubr.f32.mxu0 0.0
      %2911 = vmatmul.mubr.f32.gmra.mrb[0].mxu0 %v2708
      %v2912 = vpop.f32.mrb[0].mxu0
      %v2913 = vadd.f32 0.0, %v2912
      %v2914 = vpop.f32.mrb[0].mxu0
      %2915 = vmatprep.mubr.f32.mxu0 0.0
      %2916 = vmatmul.mubr.f32.gmra.mrb[0].mxu0 %v2711
      %v2917 = vpop.f32.mrb[0].mxu0
      %v2918 = vadd.f32 0.0, %v2917
      %v2919 = vpop.f32.mrb[0].mxu0
      %2920 = vmatprep.mubr.f32.mxu0 0.0
      %2921 = vmatmul.mubr.f32.gmra.mrb[0].mxu0 %v2714
      %v2922 = vpop.f32.mrb[0].mxu0
      %v2923 = vadd.f32 0.0, %v2922
      %v2924 = vpop.f32.mrb[0].mxu0
      %2925 = vmatprep.mubr.f32.mxu0 0.0
      %2926 = vmatmul.mubr.f32.gmra.mrb[0].mxu0 %v2717
      %v2927 = vpop.f32.mrb[0].mxu0
      %v2928 = vadd.f32 0.0, %v2927
      %v2929 = vpop.f32.mrb[0].mxu0
      %2930 = vmatprep.mubr.f32.mxu0 0.0
      %2931 = vmatmul.mubr.f32.gmra.mrb[0].mxu0 %v2720
      %v2932 = vpop.f32.mrb[0].mxu0
      %v2933 = vadd.f32 0.0, %v2932
      %v2934 = vpop.f32.mrb[0].mxu0
      %2935 = vmatprep.mubr.f32.mxu0 0.0
      %2936 = vmatmul.mubr.f32.gmra.mrb[0].mxu0 %v2723
      %v2937 = vpop.f32.mrb[0].mxu0
      %v2938 = vadd.f32 0.0, %v2937
      %v2939 = vpop.f32.mrb[0].mxu0
      %2940 = vmatprep.mubr.f32.mxu0 0.0
      %2941 = vmatmul.mubr.f32.gmra.mrb[0].mxu0 %v2726
      %v2942 = vpop.f32.mrb[0].mxu0
      %v2943 = vadd.f32 0.0, %v2942
      %v2944 = vpop.f32.mrb[0].mxu0
      %2945 = vmatprep.mubr.f32.mxu0 0.0
      %2946 = vmatmul.mubr.f32.gmra.mrb[0].mxu0 %v2729
      %v2947 = vpop.f32.mrb[0].mxu0
      %v2948 = vadd.f32 0.0, %v2947
      %v2949 = vpop.f32.mrb[0].mxu0
      %2950 = vmatprep.mubr.f32.mxu0 0.0
      %2951 = vmatmul.mubr.f32.gmra.mrb[0].mxu0 %v2732
      %v2952 = vpop.f32.mrb[0].mxu0
      %v2953 = vadd.f32 0.0, %v2952
      %v2954 = vpop.f32.mrb[0].mxu0
      %2955 = vmatprep.mubr.f32.mxu0 0.0
      %2956 = vmatmul.mubr.f32.gmra.mrb[0].mxu0 %v2735
      %v2957 = vpop.f32.mrb[0].mxu0
      %v2958 = vadd.f32 0.0, %v2957
      %v2959 = vpop.f32.mrb[0].mxu0
      %2960 = vmatprep.mubr.f32.mxu0 0.0
      %2961 = vmatmul.mubr.f32.gmra.mrb[0].mxu0 %v2738
      %v2962 = vpop.f32.mrb[0].mxu0
      %v2963 = vadd.f32 0.0, %v2962
      %v2964 = vpop.f32.mrb[0].mxu0
      %2965 = vmatprep.mubr.f32.mxu0 0.0
      %2966 = vmatmul.mubr.f32.gmra.mrb[0].mxu0 %v2741
      %v2967 = vpop.f32.mrb[0].mxu0
      %v2968 = vadd.f32 0.0, %v2967
      %v2969 = vpop.f32.mrb[0].mxu0
      %2970 = vdwg.mxu0
      %v2971 = vadd.f32 %v2579, %v2813
      %v2972 = vadd.f32 %v2580, %v2818
      %v2973 = vadd.f32 %v2581, %v2823
      %v2974 = vadd.f32 %v2582, %v2828
      %v2975 = vadd.f32 %v2583, %v2833
      %v2976 = vadd.f32 %v2584, %v2838
      %v2977 = vadd.f32 %v2585, %v2843
      %v2978 = vadd.f32 %v2586, %v2848
      %v2979 = vadd.f32 %v2587, %v2853
      %v2980 = vadd.f32 %v2588, %v2858
      %v2981 = vadd.f32 %v2589, %v2863
      %v2982 = vadd.f32 %v2590, %v2868
      %v2983 = vadd.f32 %v2591, %v2873
      %v2984 = vadd.f32 %v2592, %v2878
      %v2985 = vadd.f32 %v2593, %v2883
      %v2986 = vadd.f32 %v2594, %v2888
      %v2987 = vadd.f32 %v2595, %v2893
      %v2988 = vadd.f32 %v2596, %v2898
      %v2989 = vadd.f32 %v2597, %v2903
      %v2990 = vadd.f32 %v2598, %v2908
      %v2991 = vadd.f32 %v2599, %v2913
      %v2992 = vadd.f32 %v2600, %v2918
      %v2993 = vadd.f32 %v2601, %v2923
      %v2994 = vadd.f32 %v2602, %v2928
      %v2995 = vadd.f32 %v2603, %v2933
      %v2996 = vadd.f32 %v2604, %v2938
      %v2997 = vadd.f32 %v2605, %v2943
      %v2998 = vadd.f32 %v2606, %v2948
      %v2999 = vadd.f32 %v2607, %v2953
      %v3000 = vadd.f32 %v2608, %v2958
      %v3001 = vadd.f32 %v2609, %v2963
      %v3002 = vadd.f32 %v2610, %v2968
      %v3003 = vld [vmem:[%s2613 + $0x1] sm:$0xff]
      %v3004 = vld [vmem:[%s2613 + $0x9] sm:$0xff]
      %v3005 = vld [vmem:[%s2613 + $0x19] sm:$0xff]
      %v3006 = vld [vmem:[%s2613 + $0x21] sm:$0xff]
      %v3007 = vld [vmem:[%s2613 + $0x31] sm:$0xff]
      %v3008 = vld [vmem:[%s2613 + $0x39] sm:$0xff]
      %v3009 = vld [vmem:[%s2613 + $0x49] sm:$0xff]
      %v3010 = vld [vmem:[%s2613 + $0x51] sm:$0xff]
      %v3011 = vld [vmem:[%s2613 + $0x61] sm:$0xff]
      %v3012 = vld [vmem:[%s2613 + $0x69] sm:$0xff]
      %v3013 = vld [vmem:[%s2613 + $0x79] sm:$0xff]
      %v3014 = vld [vmem:[%s2613 + $0x81] sm:$0xff]
      %v3015 = vld [vmem:[%s2613 + $0x91] sm:$0xff]
      %v3016 = vld [vmem:[%s2613 + $0x99] sm:$0xff]
      %v3017 = vld [vmem:[%s2613 + $0xa9] sm:$0xff]
      %v3018 = vld [vmem:[%s2613 + $0xb1] sm:$0xff]
      %v3019 = vld [vmem:[%s2613 + $0xc1] sm:$0xff]
      %v3020 = vld [vmem:[%s2613 + $0xc9] sm:$0xff]
      %v3021 = vld [vmem:[%s2613 + $0xd9] sm:$0xff]
      %v3022 = vld [vmem:[%s2613 + $0xe1] sm:$0xff]
      %v3023 = vld [vmem:[%s2613 + $0xf1] sm:$0xff]
      %v3024 = vld [vmem:[%s2613 + $0xf9] sm:$0xff]
      %v3025 = vld [vmem:[%s2613 + $0x109] sm:$0xff]
      %v3026 = vld [vmem:[%s2613 + $0x111] sm:$0xff]
      %v3027 = vld [vmem:[%s2613 + $0x121] sm:$0xff]
      %v3028 = vld [vmem:[%s2613 + $0x129] sm:$0xff]
      %v3029 = vld [vmem:[%s2613 + $0x139] sm:$0xff]
      %v3030 = vld [vmem:[%s2613 + $0x141] sm:$0xff]
      %v3031 = vld [vmem:[%s2613 + $0x151] sm:$0xff]
      %v3032 = vld [vmem:[%s2613 + $0x159] sm:$0xff]
      %v3033 = vld [vmem:[%s2613 + $0x169] sm:$0xff]
      %v3034 = vld [vmem:[%s2613 + $0x171] sm:$0xff]
      %v3035 = vld [vmem:[%s1 + $0x1c] sm:$0xf]
      %v3037 = vsel %vm402, %v3003, 0
      %v3040 = vsel %vm402, %v3004, 0
      %v3043 = vsel %vm402, %v3005, 0
      %v3046 = vsel %vm402, %v3006, 0
      %v3049 = vsel %vm402, %v3007, 0
      %v3052 = vsel %vm402, %v3008, 0
      %v3055 = vsel %vm402, %v3009, 0
      %v3058 = vsel %vm402, %v3010, 0
      %v3061 = vsel %vm402, %v3011, 0
      %v3064 = vsel %vm402, %v3012, 0
      %v3067 = vsel %vm402, %v3013, 0
      %v3070 = vsel %vm402, %v3014, 0
      %v3073 = vsel %vm402, %v3015, 0
      %v3076 = vsel %vm402, %v3016, 0
      %v3079 = vsel %vm402, %v3017, 0
      %v3082 = vsel %vm402, %v3018, 0
      %v3085 = vsel %vm402, %v3019, 0
      %v3088 = vsel %vm402, %v3020, 0
      %v3091 = vsel %vm402, %v3021, 0
      %v3094 = vsel %vm402, %v3022, 0
      %v3097 = vsel %vm402, %v3023, 0
      %v3100 = vsel %vm402, %v3024, 0
      %v3103 = vsel %vm402, %v3025, 0
      %v3106 = vsel %vm402, %v3026, 0
      %v3109 = vsel %vm402, %v3027, 0
      %v3112 = vsel %vm402, %v3028, 0
      %v3115 = vsel %vm402, %v3029, 0
      %v3118 = vsel %vm402, %v3030, 0
      %v3121 = vsel %vm402, %v3031, 0
      %v3124 = vsel %vm402, %v3032, 0
      %v3127 = vsel %vm402, %v3033, 0
      %v3130 = vsel %vm402, %v3034, 0
      %v3133 = vsel %vm499, %v3035, 0
      %3135 = vmatprep.subr.mxu0 0.0
      %3136 = vmatpush1.msra.mxu0 %v3133
      %3137 = vmatprep.subr.mxu0 0.0
      %3138 = vmatpush1.msra.mxu0 0.0
      %3139 = vmatprep.subr.mxu0 0.0
      %3140 = vmatpush1.msra.mxu0 0.0
      %3141 = vmatprep.subr.mxu0 0.0
      %3142 = vmatpush1.msra.mxu0 0.0
      %3143 = vmatprep.subr.mxu0 0.0
      %3144 = vmatpush1.msra.mxu0 0.0
      %3145 = vmatprep.subr.mxu0 0.0
      %3146 = vmatpush1.msra.mxu0 0.0
      %3147 = vmatprep.subr.mxu0 0.0
      %3148 = vmatpush1.msra.mxu0 0.0
      %3149 = vmatprep.subr.mxu0 0.0
      %3150 = vmatpush1.msra.mxu0 0.0
      %3151 = vmatprep.subr.mxu0 0.0
      %3152 = vmatpush1.msra.mxu0 0.0
      %3153 = vmatprep.subr.mxu0 0.0
      %3154 = vmatpush1.msra.mxu0 0.0
      %3155 = vmatprep.subr.mxu0 0.0
      %3156 = vmatpush1.msra.mxu0 0.0
      %3157 = vmatprep.subr.mxu0 0.0
      %3158 = vmatpush1.msra.mxu0 0.0
      %3159 = vmatprep.subr.mxu0 0.0
      %3160 = vmatpush1.msra.mxu0 0.0
      %3161 = vmatprep.subr.mxu0 0.0
      %3162 = vmatpush1.msra.mxu0 0.0
      %3163 = vmatprep.subr.mxu0 0.0
      %3164 = vmatpush1.msra.mxu0 0.0
      %3165 = vmatprep.subr.mxu0 0.0
      %3166 = vmatpush1.msra.mxu0 0.0
      %3167 = vmatprep.subr.mxu0 0.0
      %3168 = vmatpush1.msra.mxu0 0.0
      %3169 = vmatprep.subr.mxu0 0.0
      %3170 = vmatpush1.msra.mxu0 0.0
      %3171 = vmatprep.subr.mxu0 0.0
      %3172 = vmatpush1.msra.mxu0 0.0
      %3173 = vmatprep.subr.mxu0 0.0
      %3174 = vmatpush1.msra.mxu0 0.0
      %3175 = vmatprep.subr.mxu0 0.0
      %3176 = vmatpush1.msra.mxu0 0.0
      %3177 = vmatprep.subr.mxu0 0.0
      %3178 = vmatpush1.msra.mxu0 0.0
      %3179 = vmatprep.subr.mxu0 0.0
      %3180 = vmatpush1.msra.mxu0 0.0
      %3181 = vmatprep.subr.mxu0 0.0
      %3182 = vmatpush1.msra.mxu0 0.0
      %3183 = vmatprep.subr.mxu0 0.0
      %3184 = vmatpush1.msra.mxu0 0.0
      %3185 = vmatprep.subr.mxu0 0.0
      %3186 = vmatpush1.msra.mxu0 0.0
      %3187 = vmatprep.subr.mxu0 0.0
      %3188 = vmatpush1.msra.mxu0 0.0
      %3189 = vmatprep.subr.mxu0 0.0
      %3190 = vmatpush1.msra.mxu0 0.0
      %3191 = vmatprep.subr.mxu0 0.0
      %3192 = vmatpush1.msra.mxu0 0.0
      %3193 = vmatprep.subr.mxu0 0.0
      %3194 = vmatpush1.msra.mxu0 0.0
      %3195 = vmatprep.subr.mxu0 0.0
      %3196 = vmatpush1.msra.mxu0 0.0
      %3197 = vmatprep.subr.mxu0 0.0
      %3198 = vmatpush1.msra.mxu0 0.0
      %3199 = vmatprep.mubr.f32.mxu0 0.0
      %3200 = vmatmul.mubr.f32.gmra.mrb[0].mxu0 %v3037
      %v3201 = vpop.f32.mrb[0].mxu0
      %v3202 = vadd.f32 0.0, %v3201
      %v3203 = vpop.f32.mrb[0].mxu0
      %3204 = vmatprep.mubr.f32.mxu0 0.0
      %3205 = vmatmul.mubr.f32.gmra.mrb[0].mxu0 %v3040
      %v3206 = vpop.f32.mrb[0].mxu0
      %v3207 = vadd.f32 0.0, %v3206
      %v3208 = vpop.f32.mrb[0].mxu0
      %3209 = vmatprep.mubr.f32.mxu0 0.0
      %3210 = vmatmul.mubr.f32.gmra.mrb[0].mxu0 %v3043
      %v3211 = vpop.f32.mrb[0].mxu0
      %v3212 = vadd.f32 0.0, %v3211
      %v3213 = vpop.f32.mrb[0].mxu0
      %3214 = vmatprep.mubr.f32.mxu0 0.0
      %3215 = vmatmul.mubr.f32.gmra.mrb[0].mxu0 %v3046
      %v3216 = vpop.f32.mrb[0].mxu0
      %v3217 = vadd.f32 0.0, %v3216
      %v3218 = vpop.f32.mrb[0].mxu0
      %3219 = vmatprep.mubr.f32.mxu0 0.0
      %3220 = vmatmul.mubr.f32.gmra.mrb[0].mxu0 %v3049
      %v3221 = vpop.f32.mrb[0].mxu0
      %v3222 = vadd.f32 0.0, %v3221
      %v3223 = vpop.f32.mrb[0].mxu0
      %3224 = vmatprep.mubr.f32.mxu0 0.0
      %3225 = vmatmul.mubr.f32.gmra.mrb[0].mxu0 %v3052
      %v3226 = vpop.f32.mrb[0].mxu0
      %v3227 = vadd.f32 0.0, %v3226
      %v3228 = vpop.f32.mrb[0].mxu0
      %3229 = vmatprep.mubr.f32.mxu0 0.0
      %3230 = vmatmul.mubr.f32.gmra.mrb[0].mxu0 %v3055
      %v3231 = vpop.f32.mrb[0].mxu0
      %v3232 = vadd.f32 0.0, %v3231
      %v3233 = vpop.f32.mrb[0].mxu0
      %3234 = vmatprep.mubr.f32.mxu0 0.0
      %3235 = vmatmul.mubr.f32.gmra.mrb[0].mxu0 %v3058
      %v3236 = vpop.f32.mrb[0].mxu0
      %v3237 = vadd.f32 0.0, %v3236
      %v3238 = vpop.f32.mrb[0].mxu0
      %3239 = vmatprep.mubr.f32.mxu0 0.0
      %3240 = vmatmul.mubr.f32.gmra.mrb[0].mxu0 %v3061
      %v3241 = vpop.f32.mrb[0].mxu0
      %v3242 = vadd.f32 0.0, %v3241
      %v3243 = vpop.f32.mrb[0].mxu0
      %3244 = vmatprep.mubr.f32.mxu0 0.0
      %3245 = vmatmul.mubr.f32.gmra.mrb[0].mxu0 %v3064
      %v3246 = vpop.f32.mrb[0].mxu0
      %v3247 = vadd.f32 0.0, %v3246
      %v3248 = vpop.f32.mrb[0].mxu0
      %3249 = vmatprep.mubr.f32.mxu0 0.0
      %3250 = vmatmul.mubr.f32.gmra.mrb[0].mxu0 %v3067
      %v3251 = vpop.f32.mrb[0].mxu0
      %v3252 = vadd.f32 0.0, %v3251
      %v3253 = vpop.f32.mrb[0].mxu0
      %3254 = vmatprep.mubr.f32.mxu0 0.0
      %3255 = vmatmul.mubr.f32.gmra.mrb[0].mxu0 %v3070
      %v3256 = vpop.f32.mrb[0].mxu0
      %v3257 = vadd.f32 0.0, %v3256
      %v3258 = vpop.f32.mrb[0].mxu0
      %3259 = vmatprep.mubr.f32.mxu0 0.0
      %3260 = vmatmul.mubr.f32.gmra.mrb[0].mxu0 %v3073
      %v3261 = vpop.f32.mrb[0].mxu0
      %v3262 = vadd.f32 0.0, %v3261
      %v3263 = vpop.f32.mrb[0].mxu0
      %3264 = vmatprep.mubr.f32.mxu0 0.0
      %3265 = vmatmul.mubr.f32.gmra.mrb[0].mxu0 %v3076
      %v3266 = vpop.f32.mrb[0].mxu0
      %v3267 = vadd.f32 0.0, %v3266
      %v3268 = vpop.f32.mrb[0].mxu0
      %3269 = vmatprep.mubr.f32.mxu0 0.0
      %3270 = vmatmul.mubr.f32.gmra.mrb[0].mxu0 %v3079
      %v3271 = vpop.f32.mrb[0].mxu0
      %v3272 = vadd.f32 0.0, %v3271
      %v3273 = vpop.f32.mrb[0].mxu0
      %3274 = vmatprep.mubr.f32.mxu0 0.0
      %3275 = vmatmul.mubr.f32.gmra.mrb[0].mxu0 %v3082
      %v3276 = vpop.f32.mrb[0].mxu0
      %v3277 = vadd.f32 0.0, %v3276
      %v3278 = vpop.f32.mrb[0].mxu0
      %3279 = vmatprep.mubr.f32.mxu0 0.0
      %3280 = vmatmul.mubr.f32.gmra.mrb[0].mxu0 %v3085
      %v3281 = vpop.f32.mrb[0].mxu0
      %v3282 = vadd.f32 0.0, %v3281
      %v3283 = vpop.f32.mrb[0].mxu0
      %3284 = vmatprep.mubr.f32.mxu0 0.0
      %3285 = vmatmul.mubr.f32.gmra.mrb[0].mxu0 %v3088
      %v3286 = vpop.f32.mrb[0].mxu0
      %v3287 = vadd.f32 0.0, %v3286
      %v3288 = vpop.f32.mrb[0].mxu0
      %3289 = vmatprep.mubr.f32.mxu0 0.0
      %3290 = vmatmul.mubr.f32.gmra.mrb[0].mxu0 %v3091
      %v3291 = vpop.f32.mrb[0].mxu0
      %v3292 = vadd.f32 0.0, %v3291
      %v3293 = vpop.f32.mrb[0].mxu0
      %3294 = vmatprep.mubr.f32.mxu0 0.0
      %3295 = vmatmul.mubr.f32.gmra.mrb[0].mxu0 %v3094
      %v3296 = vpop.f32.mrb[0].mxu0
      %v3297 = vadd.f32 0.0, %v3296
      %v3298 = vpop.f32.mrb[0].mxu0
      %3299 = vmatprep.mubr.f32.mxu0 0.0
      %3300 = vmatmul.mubr.f32.gmra.mrb[0].mxu0 %v3097
      %v3301 = vpop.f32.mrb[0].mxu0
      %v3302 = vadd.f32 0.0, %v3301
      %v3303 = vpop.f32.mrb[0].mxu0
      %3304 = vmatprep.mubr.f32.mxu0 0.0
      %3305 = vmatmul.mubr.f32.gmra.mrb[0].mxu0 %v3100
      %v3306 = vpop.f32.mrb[0].mxu0
      %v3307 = vadd.f32 0.0, %v3306
      %v3308 = vpop.f32.mrb[0].mxu0
      %3309 = vmatprep.mubr.f32.mxu0 0.0
      %3310 = vmatmul.mubr.f32.gmra.mrb[0].mxu0 %v3103
      %v3311 = vpop.f32.mrb[0].mxu0
      %v3312 = vadd.f32 0.0, %v3311
      %v3313 = vpop.f32.mrb[0].mxu0
      %3314 = vmatprep.mubr.f32.mxu0 0.0
      %3315 = vmatmul.mubr.f32.gmra.mrb[0].mxu0 %v3106
      %v3316 = vpop.f32.mrb[0].mxu0
      %v3317 = vadd.f32 0.0, %v3316
      %v3318 = vpop.f32.mrb[0].mxu0
      %3319 = vmatprep.mubr.f32.mxu0 0.0
      %3320 = vmatmul.mubr.f32.gmra.mrb[0].mxu0 %v3109
      %v3321 = vpop.f32.mrb[0].mxu0
      %v3322 = vadd.f32 0.0, %v3321
      %v3323 = vpop.f32.mrb[0].mxu0
      %3324 = vmatprep.mubr.f32.mxu0 0.0
      %3325 = vmatmul.mubr.f32.gmra.mrb[0].mxu0 %v3112
      %v3326 = vpop.f32.mrb[0].mxu0
      %v3327 = vadd.f32 0.0, %v3326
      %v3328 = vpop.f32.mrb[0].mxu0
      %3329 = vmatprep.mubr.f32.mxu0 0.0
      %3330 = vmatmul.mubr.f32.gmra.mrb[0].mxu0 %v3115
      %v3331 = vpop.f32.mrb[0].mxu0
      %v3332 = vadd.f32 0.0, %v3331
      %v3333 = vpop.f32.mrb[0].mxu0
      %3334 = vmatprep.mubr.f32.mxu0 0.0
      %3335 = vmatmul.mubr.f32.gmra.mrb[0].mxu0 %v3118
      %v3336 = vpop.f32.mrb[0].mxu0
      %v3337 = vadd.f32 0.0, %v3336
      %v3338 = vpop.f32.mrb[0].mxu0
      %3339 = vmatprep.mubr.f32.mxu0 0.0
      %3340 = vmatmul.mubr.f32.gmra.mrb[0].mxu0 %v3121
      %v3341 = vpop.f32.mrb[0].mxu0
      %v3342 = vadd.f32 0.0, %v3341
      %v3343 = vpop.f32.mrb[0].mxu0
      %3344 = vmatprep.mubr.f32.mxu0 0.0
      %3345 = vmatmul.mubr.f32.gmra.mrb[0].mxu0 %v3124
      %v3346 = vpop.f32.mrb[0].mxu0
      %v3347 = vadd.f32 0.0, %v3346
      %v3348 = vpop.f32.mrb[0].mxu0
      %3349 = vmatprep.mubr.f32.mxu0 0.0
      %3350 = vmatmul.mubr.f32.gmra.mrb[0].mxu0 %v3127
      %v3351 = vpop.f32.mrb[0].mxu0
      %v3352 = vadd.f32 0.0, %v3351
      %v3353 = vpop.f32.mrb[0].mxu0
      %3354 = vmatprep.mubr.f32.mxu0 0.0
      %3355 = vmatmul.mubr.f32.gmra.mrb[0].mxu0 %v3130
      %v3356 = vpop.f32.mrb[0].mxu0
      %v3357 = vadd.f32 0.0, %v3356
      %v3358 = vpop.f32.mrb[0].mxu0
      %3359 = vdwg.mxu0
      %v3360 = vadd.f32 %v2971, %v3202
      %v3361 = vadd.f32 %v2972, %v3207
      %v3362 = vadd.f32 %v2973, %v3212
      %v3363 = vadd.f32 %v2974, %v3217
      %v3364 = vadd.f32 %v2975, %v3222
      %v3365 = vadd.f32 %v2976, %v3227
      %v3366 = vadd.f32 %v2977, %v3232
      %v3367 = vadd.f32 %v2978, %v3237
      %v3368 = vadd.f32 %v2979, %v3242
      %v3369 = vadd.f32 %v2980, %v3247
      %v3370 = vadd.f32 %v2981, %v3252
      %v3371 = vadd.f32 %v2982, %v3257
      %v3372 = vadd.f32 %v2983, %v3262
      %v3373 = vadd.f32 %v2984, %v3267
      %v3374 = vadd.f32 %v2985, %v3272
      %v3375 = vadd.f32 %v2986, %v3277
      %v3376 = vadd.f32 %v2987, %v3282
      %v3377 = vadd.f32 %v2988, %v3287
      %v3378 = vadd.f32 %v2989, %v3292
      %v3379 = vadd.f32 %v2990, %v3297
      %v3380 = vadd.f32 %v2991, %v3302
      %v3381 = vadd.f32 %v2992, %v3307
      %v3382 = vadd.f32 %v2993, %v3312
      %v3383 = vadd.f32 %v2994, %v3317
      %v3384 = vadd.f32 %v2995, %v3322
      %v3385 = vadd.f32 %v2996, %v3327
      %v3386 = vadd.f32 %v2997, %v3332
      %v3387 = vadd.f32 %v2998, %v3337
      %v3388 = vadd.f32 %v2999, %v3342
      %v3389 = vadd.f32 %v3000, %v3347
      %v3390 = vadd.f32 %v3001, %v3352
      %v3391 = vadd.f32 %v3002, %v3357
      %v3392 = vld [vmem:[%s2613 + $0x2] sm:$0xff]
      %v3393 = vld [vmem:[%s2613 + $0xa] sm:$0xff]
      %v3394 = vld [vmem:[%s2613 + $0x1a] sm:$0xff]
      %v3395 = vld [vmem:[%s2613 + $0x22] sm:$0xff]
      %v3396 = vld [vmem:[%s2613 + $0x32] sm:$0xff]
      %v3397 = vld [vmem:[%s2613 + $0x3a] sm:$0xff]
      %v3398 = vld [vmem:[%s2613 + $0x4a] sm:$0xff]
      %v3399 = vld [vmem:[%s2613 + $0x52] sm:$0xff]
      %v3400 = vld [vmem:[%s2613 + $0x62] sm:$0xff]
      %v3401 = vld [vmem:[%s2613 + $0x6a] sm:$0xff]
      %v3402 = vld [vmem:[%s2613 + $0x7a] sm:$0xff]
      %v3403 = vld [vmem:[%s2613 + $0x82] sm:$0xff]
      %v3404 = vld [vmem:[%s2613 + $0x92] sm:$0xff]
      %v3405 = vld [vmem:[%s2613 + $0x9a] sm:$0xff]
      %v3406 = vld [vmem:[%s2613 + $0xaa] sm:$0xff]
      %v3407 = vld [vmem:[%s2613 + $0xb2] sm:$0xff]
      %v3408 = vld [vmem:[%s2613 + $0xc2] sm:$0xff]
      %v3409 = vld [vmem:[%s2613 + $0xca] sm:$0xff]
      %v3410 = vld [vmem:[%s2613 + $0xda] sm:$0xff]
      %v3411 = vld [vmem:[%s2613 + $0xe2] sm:$0xff]
      %v3412 = vld [vmem:[%s2613 + $0xf2] sm:$0xff]
      %v3413 = vld [vmem:[%s2613 + $0xfa] sm:$0xff]
      %v3414 = vld [vmem:[%s2613 + $0x10a] sm:$0xff]
      %v3415 = vld [vmem:[%s2613 + $0x112] sm:$0xff]
      %v3416 = vld [vmem:[%s2613 + $0x122] sm:$0xff]
      %v3417 = vld [vmem:[%s2613 + $0x12a] sm:$0xff]
      %v3418 = vld [vmem:[%s2613 + $0x13a] sm:$0xff]
      %v3419 = vld [vmem:[%s2613 + $0x142] sm:$0xff]
      %v3420 = vld [vmem:[%s2613 + $0x152] sm:$0xff]
      %v3421 = vld [vmem:[%s2613 + $0x15a] sm:$0xff]
      %v3422 = vld [vmem:[%s2613 + $0x16a] sm:$0xff]
      %v3423 = vld [vmem:[%s2613 + $0x172] sm:$0xff]
      %v3424 = vld [vmem:[%s1 + $0x20] sm:$0xf]
      %v3426 = vsel %vm402, %v3392, 0
      %v3429 = vsel %vm402, %v3393, 0
      %v3432 = vsel %vm402, %v3394, 0
      %v3435 = vsel %vm402, %v3395, 0
      %v3438 = vsel %vm402, %v3396, 0
      %v3441 = vsel %vm402, %v3397, 0
      %v3444 = vsel %vm402, %v3398, 0
      %v3447 = vsel %vm402, %v3399, 0
      %v3450 = vsel %vm402, %v3400, 0
      %v3453 = vsel %vm402, %v3401, 0
      %v3456 = vsel %vm402, %v3402, 0
      %v3459 = vsel %vm402, %v3403, 0
      %v3462 = vsel %vm402, %v3404, 0
      %v3465 = vsel %vm402, %v3405, 0
      %v3468 = vsel %vm402, %v3406, 0
      %v3471 = vsel %vm402, %v3407, 0
      %v3474 = vsel %vm402, %v3408, 0
      %v3477 = vsel %vm402, %v3409, 0
      %v3480 = vsel %vm402, %v3410, 0
      %v3483 = vsel %vm402, %v3411, 0
      %v3486 = vsel %vm402, %v3412, 0
      %v3489 = vsel %vm402, %v3413, 0
      %v3492 = vsel %vm402, %v3414, 0
      %v3495 = vsel %vm402, %v3415, 0
      %v3498 = vsel %vm402, %v3416, 0
      %v3501 = vsel %vm402, %v3417, 0
      %v3504 = vsel %vm402, %v3418, 0
      %v3507 = vsel %vm402, %v3419, 0
      %v3510 = vsel %vm402, %v3420, 0
      %v3513 = vsel %vm402, %v3421, 0
      %v3516 = vsel %vm402, %v3422, 0
      %v3519 = vsel %vm402, %v3423, 0
      %v3522 = vsel %vm499, %v3424, 0
      %3524 = vmatprep.subr.mxu0 0.0
      %3525 = vmatpush1.msra.mxu0 %v3522
      %3526 = vmatprep.subr.mxu0 0.0
      %3527 = vmatpush1.msra.mxu0 0.0
      %3528 = vmatprep.subr.mxu0 0.0
      %3529 = vmatpush1.msra.mxu0 0.0
      %3530 = vmatprep.subr.mxu0 0.0
      %3531 = vmatpush1.msra.mxu0 0.0
      %3532 = vmatprep.subr.mxu0 0.0
      %3533 = vmatpush1.msra.mxu0 0.0
      %3534 = vmatprep.subr.mxu0 0.0
      %3535 = vmatpush1.msra.mxu0 0.0
      %3536 = vmatprep.subr.mxu0 0.0
      %3537 = vmatpush1.msra.mxu0 0.0
      %3538 = vmatprep.subr.mxu0 0.0
      %3539 = vmatpush1.msra.mxu0 0.0
      %3540 = vmatprep.subr.mxu0 0.0
      %3541 = vmatpush1.msra.mxu0 0.0
      %3542 = vmatprep.subr.mxu0 0.0
      %3543 = vmatpush1.msra.mxu0 0.0
      %3544 = vmatprep.subr.mxu0 0.0
      %3545 = vmatpush1.msra.mxu0 0.0
      %3546 = vmatprep.subr.mxu0 0.0
      %3547 = vmatpush1.msra.mxu0 0.0
      %3548 = vmatprep.subr.mxu0 0.0
      %3549 = vmatpush1.msra.mxu0 0.0
      %3550 = vmatprep.subr.mxu0 0.0
      %3551 = vmatpush1.msra.mxu0 0.0
      %3552 = vmatprep.subr.mxu0 0.0
      %3553 = vmatpush1.msra.mxu0 0.0
      %3554 = vmatprep.subr.mxu0 0.0
      %3555 = vmatpush1.msra.mxu0 0.0
      %3556 = vmatprep.subr.mxu0 0.0
      %3557 = vmatpush1.msra.mxu0 0.0
      %3558 = vmatprep.subr.mxu0 0.0
      %3559 = vmatpush1.msra.mxu0 0.0
      %3560 = vmatprep.subr.mxu0 0.0
      %3561 = vmatpush1.msra.mxu0 0.0
      %3562 = vmatprep.subr.mxu0 0.0
      %3563 = vmatpush1.msra.mxu0 0.0
      %3564 = vmatprep.subr.mxu0 0.0
      %3565 = vmatpush1.msra.mxu0 0.0
      %3566 = vmatprep.subr.mxu0 0.0
      %3567 = vmatpush1.msra.mxu0 0.0
      %3568 = vmatprep.subr.mxu0 0.0
      %3569 = vmatpush1.msra.mxu0 0.0
      %3570 = vmatprep.subr.mxu0 0.0
      %3571 = vmatpush1.msra.mxu0 0.0
      %3572 = vmatprep.subr.mxu0 0.0
      %3573 = vmatpush1.msra.mxu0 0.0
      %3574 = vmatprep.subr.mxu0 0.0
      %3575 = vmatpush1.msra.mxu0 0.0
      %3576 = vmatprep.subr.mxu0 0.0
      %3577 = vmatpush1.msra.mxu0 0.0
      %3578 = vmatprep.subr.mxu0 0.0
      %3579 = vmatpush1.msra.mxu0 0.0
      %3580 = vmatprep.subr.mxu0 0.0
      %3581 = vmatpush1.msra.mxu0 0.0
      %3582 = vmatprep.subr.mxu0 0.0
      %3583 = vmatpush1.msra.mxu0 0.0
      %3584 = vmatprep.subr.mxu0 0.0
      %3585 = vmatpush1.msra.mxu0 0.0
      %3586 = vmatprep.subr.mxu0 0.0
      %3587 = vmatpush1.msra.mxu0 0.0
      %3588 = vmatprep.mubr.f32.mxu0 0.0
      %3589 = vmatmul.mubr.f32.gmra.mrb[0].mxu0 %v3426
      %v3590 = vpop.f32.mrb[0].mxu0
      %v3591 = vadd.f32 0.0, %v3590
      %v3592 = vpop.f32.mrb[0].mxu0
      %3593 = vmatprep.mubr.f32.mxu0 0.0
      %3594 = vmatmul.mubr.f32.gmra.mrb[0].mxu0 %v3429
      %v3595 = vpop.f32.mrb[0].mxu0
      %v3596 = vadd.f32 0.0, %v3595
      %v3597 = vpop.f32.mrb[0].mxu0
      %3598 = vmatprep.mubr.f32.mxu0 0.0
      %3599 = vmatmul.mubr.f32.gmra.mrb[0].mxu0 %v3432
      %v3600 = vpop.f32.mrb[0].mxu0
      %v3601 = vadd.f32 0.0, %v3600
      %v3602 = vpop.f32.mrb[0].mxu0
      %3603 = vmatprep.mubr.f32.mxu0 0.0
      %3604 = vmatmul.mubr.f32.gmra.mrb[0].mxu0 %v3435
      %v3605 = vpop.f32.mrb[0].mxu0
      %v3606 = vadd.f32 0.0, %v3605
      %v3607 = vpop.f32.mrb[0].mxu0
      %3608 = vmatprep.mubr.f32.mxu0 0.0
      %3609 = vmatmul.mubr.f32.gmra.mrb[0].mxu0 %v3438
      %v3610 = vpop.f32.mrb[0].mxu0
      %v3611 = vadd.f32 0.0, %v3610
      %v3612 = vpop.f32.mrb[0].mxu0
      %3613 = vmatprep.mubr.f32.mxu0 0.0
      %3614 = vmatmul.mubr.f32.gmra.mrb[0].mxu0 %v3441
      %v3615 = vpop.f32.mrb[0].mxu0
      %v3616 = vadd.f32 0.0, %v3615
      %v3617 = vpop.f32.mrb[0].mxu0
      %3618 = vmatprep.mubr.f32.mxu0 0.0
      %3619 = vmatmul.mubr.f32.gmra.mrb[0].mxu0 %v3444
      %v3620 = vpop.f32.mrb[0].mxu0
      %v3621 = vadd.f32 0.0, %v3620
      %v3622 = vpop.f32.mrb[0].mxu0
      %3623 = vmatprep.mubr.f32.mxu0 0.0
      %3624 = vmatmul.mubr.f32.gmra.mrb[0].mxu0 %v3447
      %v3625 = vpop.f32.mrb[0].mxu0
      %v3626 = vadd.f32 0.0, %v3625
      %v3627 = vpop.f32.mrb[0].mxu0
      %3628 = vmatprep.mubr.f32.mxu0 0.0
      %3629 = vmatmul.mubr.f32.gmra.mrb[0].mxu0 %v3450
      %v3630 = vpop.f32.mrb[0].mxu0
      %v3631 = vadd.f32 0.0, %v3630
      %v3632 = vpop.f32.mrb[0].mxu0
      %3633 = vmatprep.mubr.f32.mxu0 0.0
      %3634 = vmatmul.mubr.f32.gmra.mrb[0].mxu0 %v3453
      %v3635 = vpop.f32.mrb[0].mxu0
      %v3636 = vadd.f32 0.0, %v3635
      %v3637 = vpop.f32.mrb[0].mxu0
      %3638 = vmatprep.mubr.f32.mxu0 0.0
      %3639 = vmatmul.mubr.f32.gmra.mrb[0].mxu0 %v3456
      %v3640 = vpop.f32.mrb[0].mxu0
      %v3641 = vadd.f32 0.0, %v3640
      %v3642 = vpop.f32.mrb[0].mxu0
      %3643 = vmatprep.mubr.f32.mxu0 0.0
      %3644 = vmatmul.mubr.f32.gmra.mrb[0].mxu0 %v3459
      %v3645 = vpop.f32.mrb[0].mxu0
      %v3646 = vadd.f32 0.0, %v3645
      %v3647 = vpop.f32.mrb[0].mxu0
      %3648 = vmatprep.mubr.f32.mxu0 0.0
      %3649 = vmatmul.mubr.f32.gmra.mrb[0].mxu0 %v3462
      %v3650 = vpop.f32.mrb[0].mxu0
      %v3651 = vadd.f32 0.0, %v3650
      %v3652 = vpop.f32.mrb[0].mxu0
      %3653 = vmatprep.mubr.f32.mxu0 0.0
      %3654 = vmatmul.mubr.f32.gmra.mrb[0].mxu0 %v3465
      %v3655 = vpop.f32.mrb[0].mxu0
      %v3656 = vadd.f32 0.0, %v3655
      %v3657 = vpop.f32.mrb[0].mxu0
      %3658 = vmatprep.mubr.f32.mxu0 0.0
      %3659 = vmatmul.mubr.f32.gmra.mrb[0].mxu0 %v3468
      %v3660 = vpop.f32.mrb[0].mxu0
      %v3661 = vadd.f32 0.0, %v3660
      %v3662 = vpop.f32.mrb[0].mxu0
      %3663 = vmatprep.mubr.f32.mxu0 0.0
      %3664 = vmatmul.mubr.f32.gmra.mrb[0].mxu0 %v3471
      %v3665 = vpop.f32.mrb[0].mxu0
      %v3666 = vadd.f32 0.0, %v3665
      %v3667 = vpop.f32.mrb[0].mxu0
      %3668 = vmatprep.mubr.f32.mxu0 0.0
      %3669 = vmatmul.mubr.f32.gmra.mrb[0].mxu0 %v3474
      %v3670 = vpop.f32.mrb[0].mxu0
      %v3671 = vadd.f32 0.0, %v3670
      %v3672 = vpop.f32.mrb[0].mxu0
      %3673 = vmatprep.mubr.f32.mxu0 0.0
      %3674 = vmatmul.mubr.f32.gmra.mrb[0].mxu0 %v3477
      %v3675 = vpop.f32.mrb[0].mxu0
      %v3676 = vadd.f32 0.0, %v3675
      %v3677 = vpop.f32.mrb[0].mxu0
      %3678 = vmatprep.mubr.f32.mxu0 0.0
      %3679 = vmatmul.mubr.f32.gmra.mrb[0].mxu0 %v3480
      %v3680 = vpop.f32.mrb[0].mxu0
      %v3681 = vadd.f32 0.0, %v3680
      %v3682 = vpop.f32.mrb[0].mxu0
      %3683 = vmatprep.mubr.f32.mxu0 0.0
      %3684 = vmatmul.mubr.f32.gmra.mrb[0].mxu0 %v3483
      %v3685 = vpop.f32.mrb[0].mxu0
      %v3686 = vadd.f32 0.0, %v3685
      %v3687 = vpop.f32.mrb[0].mxu0
      %3688 = vmatprep.mubr.f32.mxu0 0.0
      %3689 = vmatmul.mubr.f32.gmra.mrb[0].mxu0 %v3486
      %v3690 = vpop.f32.mrb[0].mxu0
      %v3691 = vadd.f32 0.0, %v3690
      %v3692 = vpop.f32.mrb[0].mxu0
      %3693 = vmatprep.mubr.f32.mxu0 0.0
      %3694 = vmatmul.mubr.f32.gmra.mrb[0].mxu0 %v3489
      %v3695 = vpop.f32.mrb[0].mxu0
      %v3696 = vadd.f32 0.0, %v3695
      %v3697 = vpop.f32.mrb[0].mxu0
      %3698 = vmatprep.mubr.f32.mxu0 0.0
      %3699 = vmatmul.mubr.f32.gmra.mrb[0].mxu0 %v3492
      %v3700 = vpop.f32.mrb[0].mxu0
      %v3701 = vadd.f32 0.0, %v3700
      %v3702 = vpop.f32.mrb[0].mxu0
      %3703 = vmatprep.mubr.f32.mxu0 0.0
      %3704 = vmatmul.mubr.f32.gmra.mrb[0].mxu0 %v3495
      %v3705 = vpop.f32.mrb[0].mxu0
      %v3706 = vadd.f32 0.0, %v3705
      %v3707 = vpop.f32.mrb[0].mxu0
      %3708 = vmatprep.mubr.f32.mxu0 0.0
      %3709 = vmatmul.mubr.f32.gmra.mrb[0].mxu0 %v3498
      %v3710 = vpop.f32.mrb[0].mxu0
      %v3711 = vadd.f32 0.0, %v3710
      %v3712 = vpop.f32.mrb[0].mxu0
      %3713 = vmatprep.mubr.f32.mxu0 0.0
      %3714 = vmatmul.mubr.f32.gmra.mrb[0].mxu0 %v3501
      %v3715 = vpop.f32.mrb[0].mxu0
      %v3716 = vadd.f32 0.0, %v3715
      %v3717 = vpop.f32.mrb[0].mxu0
      %3718 = vmatprep.mubr.f32.mxu0 0.0
      %3719 = vmatmul.mubr.f32.gmra.mrb[0].mxu0 %v3504
      %v3720 = vpop.f32.mrb[0].mxu0
      %v3721 = vadd.f32 0.0, %v3720
      %v3722 = vpop.f32.mrb[0].mxu0
      %3723 = vmatprep.mubr.f32.mxu0 0.0
      %3724 = vmatmul.mubr.f32.gmra.mrb[0].mxu0 %v3507
      %v3725 = vpop.f32.mrb[0].mxu0
      %v3726 = vadd.f32 0.0, %v3725
      %v3727 = vpop.f32.mrb[0].mxu0
      %3728 = vmatprep.mubr.f32.mxu0 0.0
      %3729 = vmatmul.mubr.f32.gmra.mrb[0].mxu0 %v3510
      %v3730 = vpop.f32.mrb[0].mxu0
      %v3731 = vadd.f32 0.0, %v3730
      %v3732 = vpop.f32.mrb[0].mxu0
      %3733 = vmatprep.mubr.f32.mxu0 0.0
      %3734 = vmatmul.mubr.f32.gmra.mrb[0].mxu0 %v3513
      %v3735 = vpop.f32.mrb[0].mxu0
      %v3736 = vadd.f32 0.0, %v3735
      %v3737 = vpop.f32.mrb[0].mxu0
      %3738 = vmatprep.mubr.f32.mxu0 0.0
      %3739 = vmatmul.mubr.f32.gmra.mrb[0].mxu0 %v3516
      %v3740 = vpop.f32.mrb[0].mxu0
      %v3741 = vadd.f32 0.0, %v3740
      %v3742 = vpop.f32.mrb[0].mxu0
      %3743 = vmatprep.mubr.f32.mxu0 0.0
      %3744 = vmatmul.mubr.f32.gmra.mrb[0].mxu0 %v3519
      %v3745 = vpop.f32.mrb[0].mxu0
      %v3746 = vadd.f32 0.0, %v3745
      %v3747 = vpop.f32.mrb[0].mxu0
      %3748 = vdwg.mxu0
      %v3749 = vadd.f32 %v3360, %v3591
      %v3750 = vadd.f32 %v3361, %v3596
      %v3751 = vadd.f32 %v3362, %v3601
      %v3752 = vadd.f32 %v3363, %v3606
      %v3753 = vadd.f32 %v3364, %v3611
      %v3754 = vadd.f32 %v3365, %v3616
      %v3755 = vadd.f32 %v3366, %v3621
      %v3756 = vadd.f32 %v3367, %v3626
      %v3757 = vadd.f32 %v3368, %v3631
      %v3758 = vadd.f32 %v3369, %v3636
      %v3759 = vadd.f32 %v3370, %v3641
      %v3760 = vadd.f32 %v3371, %v3646
      %v3761 = vadd.f32 %v3372, %v3651
      %v3762 = vadd.f32 %v3373, %v3656
      %v3763 = vadd.f32 %v3374, %v3661
      %v3764 = vadd.f32 %v3375, %v3666
      %v3765 = vadd.f32 %v3376, %v3671
      %v3766 = vadd.f32 %v3377, %v3676
      %v3767 = vadd.f32 %v3378, %v3681
      %v3768 = vadd.f32 %v3379, %v3686
      %v3769 = vadd.f32 %v3380, %v3691
      %v3770 = vadd.f32 %v3381, %v3696
      %v3771 = vadd.f32 %v3382, %v3701
      %v3772 = vadd.f32 %v3383, %v3706
      %v3773 = vadd.f32 %v3384, %v3711
      %v3774 = vadd.f32 %v3385, %v3716
      %v3775 = vadd.f32 %v3386, %v3721
      %v3776 = vadd.f32 %v3387, %v3726
      %v3777 = vadd.f32 %v3388, %v3731
      %v3778 = vadd.f32 %v3389, %v3736
      %v3779 = vadd.f32 %v3390, %v3741
      %v3780 = vadd.f32 %v3391, %v3746
      %v3781 = vsel %vm402, %v3749, 0.0
      %v3782 = vsel %vm402, %v3750, 0.0
      %v3783 = vadd.f32 %v3781, %v3782
      %v3784 = vsel %vm402, %v3751, 0.0
      %v3785 = vadd.f32 %v3783, %v3784
      %v3786 = vsel %vm402, %v3752, 0.0
      %v3787 = vadd.f32 %v3785, %v3786
      %v3788 = vsel %vm402, %v3753, 0.0
      %v3789 = vadd.f32 %v3787, %v3788
      %v3790 = vsel %vm402, %v3754, 0.0
      %v3791 = vadd.f32 %v3789, %v3790
      %v3792 = vsel %vm402, %v3755, 0.0
      %v3793 = vadd.f32 %v3791, %v3792
      %v3794 = vsel %vm402, %v3756, 0.0
      %v3795 = vadd.f32 %v3793, %v3794
      %v3796 = vsel %vm402, %v3757, 0.0
      %v3797 = vadd.f32 %v3795, %v3796
      %v3798 = vsel %vm402, %v3758, 0.0
      %v3799 = vadd.f32 %v3797, %v3798
      %v3800 = vsel %vm402, %v3759, 0.0
      %v3801 = vadd.f32 %v3799, %v3800
      %v3802 = vsel %vm402, %v3760, 0.0
      %v3803 = vadd.f32 %v3801, %v3802
      %v3804 = vsel %vm402, %v3761, 0.0
      %v3805 = vadd.f32 %v3803, %v3804
      %v3806 = vsel %vm402, %v3762, 0.0
      %v3807 = vadd.f32 %v3805, %v3806
      %v3808 = vsel %vm402, %v3763, 0.0
      %v3809 = vadd.f32 %v3807, %v3808
      %v3810 = vsel %vm402, %v3764, 0.0
      %v3811 = vadd.f32 %v3809, %v3810
      %v3812 = vsel %vm402, %v3765, 0.0
      %v3813 = vadd.f32 %v3811, %v3812
      %v3814 = vsel %vm402, %v3766, 0.0
      %v3815 = vadd.f32 %v3813, %v3814
      %v3816 = vsel %vm402, %v3767, 0.0
      %v3817 = vadd.f32 %v3815, %v3816
      %v3818 = vsel %vm402, %v3768, 0.0
      %v3819 = vadd.f32 %v3817, %v3818
      %v3820 = vsel %vm402, %v3769, 0.0
      %v3821 = vadd.f32 %v3819, %v3820
      %v3822 = vsel %vm402, %v3770, 0.0
      %v3823 = vadd.f32 %v3821, %v3822
      %v3824 = vsel %vm402, %v3771, 0.0
      %v3825 = vadd.f32 %v3823, %v3824
      %v3826 = vsel %vm402, %v3772, 0.0
      %v3827 = vadd.f32 %v3825, %v3826
      %v3828 = vsel %vm402, %v3773, 0.0
      %v3829 = vadd.f32 %v3827, %v3828
      %v3830 = vsel %vm402, %v3774, 0.0
      %v3831 = vadd.f32 %v3829, %v3830
      %v3832 = vsel %vm402, %v3775, 0.0
      %v3833 = vadd.f32 %v3831, %v3832
      %v3834 = vsel %vm402, %v3776, 0.0
      %v3835 = vadd.f32 %v3833, %v3834
      %v3836 = vsel %vm402, %v3777, 0.0
      %v3837 = vadd.f32 %v3835, %v3836
      %v3838 = vsel %vm402, %v3778, 0.0
      %v3839 = vadd.f32 %v3837, %v3838
      %v3840 = vsel %vm402, %v3779, 0.0
      %v3841 = vadd.f32 %v3839, %v3840
      %v3842 = vsel %vm402, %v3780, 0.0
      %v3843 = vadd.f32 %v3841, %v3842
      %v3844 = vrot.slane %v3843, 4
      %v3845 = vadd.f32 %v3843, %v3844
      %v3846 = vrot.slane %v3845, 2
      %v3847 = vadd.f32 %v3845, %v3846
      %v3848 = vrot.slane %v3847, 1
      %v3849 = vadd.f32 %v3847, %v3848
      %v3850 = vmul.f32 %v3749, %v3749
      %v3851 = vmul.f32 %v3750, %v3750
      %v3852 = vmul.f32 %v3751, %v3751
      %v3853 = vmul.f32 %v3752, %v3752
      %v3854 = vmul.f32 %v3753, %v3753
      %v3855 = vmul.f32 %v3754, %v3754
      %v3856 = vmul.f32 %v3755, %v3755
      %v3857 = vmul.f32 %v3756, %v3756
      %v3858 = vmul.f32 %v3757, %v3757
      %v3859 = vmul.f32 %v3758, %v3758
      %v3860 = vmul.f32 %v3759, %v3759
      %v3861 = vmul.f32 %v3760, %v3760
      %v3862 = vmul.f32 %v3761, %v3761
      %v3863 = vmul.f32 %v3762, %v3762
      %v3864 = vmul.f32 %v3763, %v3763
      %v3865 = vmul.f32 %v3764, %v3764
      %v3866 = vmul.f32 %v3765, %v3765
      %v3867 = vmul.f32 %v3766, %v3766
      %v3868 = vmul.f32 %v3767, %v3767
      %v3869 = vmul.f32 %v3768, %v3768
      %v3870 = vmul.f32 %v3769, %v3769
      %v3871 = vmul.f32 %v3770, %v3770
      %v3872 = vmul.f32 %v3771, %v3771
      %v3873 = vmul.f32 %v3772, %v3772
      %v3874 = vmul.f32 %v3773, %v3773
      %v3875 = vmul.f32 %v3774, %v3774
      %v3876 = vmul.f32 %v3775, %v3775
      %v3877 = vmul.f32 %v3776, %v3776
      %v3878 = vmul.f32 %v3777, %v3777
      %v3879 = vmul.f32 %v3778, %v3778
      %v3880 = vmul.f32 %v3779, %v3779
      %v3881 = vmul.f32 %v3780, %v3780
      %v3882 = vsel %vm402, %v3850, 0.0
      %v3883 = vsel %vm402, %v3851, 0.0
      %v3884 = vadd.f32 %v3882, %v3883
      %v3885 = vsel %vm402, %v3852, 0.0
      %v3886 = vadd.f32 %v3884, %v3885
      %v3887 = vsel %vm402, %v3853, 0.0
      %v3888 = vadd.f32 %v3886, %v3887
      %v3889 = vsel %vm402, %v3854, 0.0
      %v3890 = vadd.f32 %v3888, %v3889
      %v3891 = vsel %vm402, %v3855, 0.0
      %v3892 = vadd.f32 %v3890, %v3891
      %v3893 = vsel %vm402, %v3856, 0.0
      %v3894 = vadd.f32 %v3892, %v3893
      %v3895 = vsel %vm402, %v3857, 0.0
      %v3896 = vadd.f32 %v3894, %v3895
      %v3897 = vsel %vm402, %v3858, 0.0
      %v3898 = vadd.f32 %v3896, %v3897
      %v3899 = vsel %vm402, %v3859, 0.0
      %v3900 = vadd.f32 %v3898, %v3899
      %v3901 = vsel %vm402, %v3860, 0.0
      %v3902 = vadd.f32 %v3900, %v3901
      %v3903 = vsel %vm402, %v3861, 0.0
      %v3904 = vadd.f32 %v3902, %v3903
      %v3905 = vsel %vm402, %v3862, 0.0
      %v3906 = vadd.f32 %v3904, %v3905
      %v3907 = vsel %vm402, %v3863, 0.0
      %v3908 = vadd.f32 %v3906, %v3907
      %v3909 = vsel %vm402, %v3864, 0.0
      %v3910 = vadd.f32 %v3908, %v3909
      %v3911 = vsel %vm402, %v3865, 0.0
      %v3912 = vadd.f32 %v3910, %v3911
      %v3913 = vsel %vm402, %v3866, 0.0
      %v3914 = vadd.f32 %v3912, %v3913
      %v3915 = vsel %vm402, %v3867, 0.0
      %v3916 = vadd.f32 %v3914, %v3915
      %v3917 = vsel %vm402, %v3868, 0.0
      %v3918 = vadd.f32 %v3916, %v3917
      %v3919 = vsel %vm402, %v3869, 0.0
      %v3920 = vadd.f32 %v3918, %v3919
      %v3921 = vsel %vm402, %v3870, 0.0
      %v3922 = vadd.f32 %v3920, %v3921
      %v3923 = vsel %vm402, %v3871, 0.0
      %v3924 = vadd.f32 %v3922, %v3923
      %v3925 = vsel %vm402, %v3872, 0.0
      %v3926 = vadd.f32 %v3924, %v3925
      %v3927 = vsel %vm402, %v3873, 0.0
      %v3928 = vadd.f32 %v3926, %v3927
      %v3929 = vsel %vm402, %v3874, 0.0
      %v3930 = vadd.f32 %v3928, %v3929
      %v3931 = vsel %vm402, %v3875, 0.0
      %v3932 = vadd.f32 %v3930, %v3931
      %v3933 = vsel %vm402, %v3876, 0.0
      %v3934 = vadd.f32 %v3932, %v3933
      %v3935 = vsel %vm402, %v3877, 0.0
      %v3936 = vadd.f32 %v3934, %v3935
      %v3937 = vsel %vm402, %v3878, 0.0
      %v3938 = vadd.f32 %v3936, %v3937
      %v3939 = vsel %vm402, %v3879, 0.0
      %v3940 = vadd.f32 %v3938, %v3939
      %v3941 = vsel %vm402, %v3880, 0.0
      %v3942 = vadd.f32 %v3940, %v3941
      %v3943 = vsel %vm402, %v3881, 0.0
      %v3944 = vadd.f32 %v3942, %v3943
      %v3945 = vrot.slane %v3944, 4
      %v3946 = vadd.f32 %v3944, %v3945
      %v3947 = vrot.slane %v3946, 2
      %v3948 = vadd.f32 %v3946, %v3947
      %v3949 = vrot.slane %v3948, 1
      %v3950 = vadd.f32 %v3948, %v3949
      %v3951 = vld [vmem:[%s206] sm:$0x3]
      %vm3952 = vcmask 1040384
      %v3953 = vsel %vm3952, %v3849, %v3950
      %v3954 = vadd.f32 %v3951, %v3953
      %vm3955 = vcmask 25600
      %3956 = vst.msk [vmem:[%s206] sm:$0x3] %vm3955, %v3954
      %3957 = vst.msk [vmem:[%s201] sm:$0xff] %vm402, %v3749
      %3958 = vst.msk [vmem:[%s201 + $0x8] sm:$0xff] %vm402, %v3750
      %3959 = vst.msk [vmem:[%s201 + $0x10] sm:$0xff] %vm402, %v3751
      %3960 = vst.msk [vmem:[%s201 + $0x18] sm:$0xff] %vm402, %v3752
      %3961 = vst.msk [vmem:[%s201 + $0x20] sm:$0xff] %vm402, %v3753
      %3962 = vst.msk [vmem:[%s201 + $0x28] sm:$0xff] %vm402, %v3754
      %3963 = vst.msk [vmem:[%s201 + $0x30] sm:$0xff] %vm402, %v3755
      %3964 = vst.msk [vmem:[%s201 + $0x38] sm:$0xff] %vm402, %v3756
      %3965 = vst.msk [vmem:[%s201 + $0x40] sm:$0xff] %vm402, %v3757
      %3966 = vst.msk [vmem:[%s201 + $0x48] sm:$0xff] %vm402, %v3758
      %3967 = vst.msk [vmem:[%s201 + $0x50] sm:$0xff] %vm402, %v3759
      %3968 = vst.msk [vmem:[%s201 + $0x58] sm:$0xff] %vm402, %v3760
      %3969 = vst.msk [vmem:[%s201 + $0x60] sm:$0xff] %vm402, %v3761
      %3970 = vst.msk [vmem:[%s201 + $0x68] sm:$0xff] %vm402, %v3762
      %3971 = vst.msk [vmem:[%s201 + $0x70] sm:$0xff] %vm402, %v3763
      %3972 = vst.msk [vmem:[%s201 + $0x78] sm:$0xff] %vm402, %v3764
      %3973 = vst.msk [vmem:[%s201 + $0x80] sm:$0xff] %vm402, %v3765
      %3974 = vst.msk [vmem:[%s201 + $0x88] sm:$0xff] %vm402, %v3766
      %3975 = vst.msk [vmem:[%s201 + $0x90] sm:$0xff] %vm402, %v3767
      %3976 = vst.msk [vmem:[%s201 + $0x98] sm:$0xff] %vm402, %v3768
      %3977 = vst.msk [vmem:[%s201 + $0xa0] sm:$0xff] %vm402, %v3769
      %3978 = vst.msk [vmem:[%s201 + $0xa8] sm:$0xff] %vm402, %v3770
      %3979 = vst.msk [vmem:[%s201 + $0xb0] sm:$0xff] %vm402, %v3771
      %3980 = vst.msk [vmem:[%s201 + $0xb8] sm:$0xff] %vm402, %v3772
      %3981 = vst.msk [vmem:[%s201 + $0xc0] sm:$0xff] %vm402, %v3773
      %3982 = vst.msk [vmem:[%s201 + $0xc8] sm:$0xff] %vm402, %v3774
      %3983 = vst.msk [vmem:[%s201 + $0xd0] sm:$0xff] %vm402, %v3775
      %3984 = vst.msk [vmem:[%s201 + $0xd8] sm:$0xff] %vm402, %v3776
      %3985 = vst.msk [vmem:[%s201 + $0xe0] sm:$0xff] %vm402, %v3777
      %3986 = vst.msk [vmem:[%s201 + $0xe8] sm:$0xff] %vm402, %v3778
      %3987 = vst.msk [vmem:[%s201 + $0xf0] sm:$0xff] %vm402, %v3779
      %3988 = vst.msk [vmem:[%s201 + $0xf8] sm:$0xff] %vm402, %v3780
      %s3989 = smul.u32 16, %s20
      %p3990 = scmp.lt.s32.totalorder %s19, 1
      %s3991 = scalar_select %p3990, %s19, 1
      %p3992 = scmp.lt.s32.totalorder %s3989, 15
      %s3993 = scalar_select %p3992, %s3989, 15
      %s3994 = smul.addr %s3993, 2
      %s3995 = smul.addr %s3991, 32
      %s3996 = sadd.s32 %s3994, %s3995
      %s3997 = smul.addr %s3996, 8
      %s3998 = scalar_lea.vmem %s2, %s3997
      %p3999 = scmp.lt.s32.totalorder %s19, 1
      %s4000 = scalar_select %p3999, %s19, 1
      %s4001 = smul.addr %s4000, 2
      %s4002 = scalar_lea.vmem %s3, %s4001
      // Predicated region
      $region33: #{basic_block_forward.3} parent=27 // pred_check
        %p4003 = pneg %p94
      $region34: #{basic_block_forward.3} parent=27 // pred_check_branch
        %4005 = sbr.rel (%p4003) target = $region36
      $region35: #{basic_block_forward.3} parent=27 // pred_region
        %s4006 = smul.u32 16, %s20
      $region36: #{basic_block_forward.3} parent=27 // pred_fallthru
        _
      // Predicated region
      $region37: #{basic_block_forward.3} parent=27 // pred_check
        %p4007 = pneg %p120
      $region38: #{basic_block_forward.3} parent=27 // pred_check_branch
        %4009 = sbr.rel (%p4007) target = $region40
      $region39: #{basic_block_forward.3} parent=27 // pred_region
        _
      $region40: #{basic_block_forward.3} parent=27 // pred_fallthru
        _
    $region28: #{basic_block_forward.3} parent=5 // pred_fallthru
      _
    %p4010 = scmp.le.s32.totalorder 2, %s10
    // Predicated region
    $region41: #{basic_block_forward.3} parent=5 // pred_check
      %p4011 = pneg %p4010
    $region42: #{basic_block_forward.3} parent=5 // pred_check_branch
      %4013 = sbr.rel (%p4011) target = $region44
    $region43: #{basic_block_forward.3} parent=5 // pred_region
      %s4014 = ssub.s32 %s10, 2
      // Predicated region
      $region45: #{basic_block_forward.3} parent=43 // pred_check
        %p4015 = pneg %p100
      $region46: #{basic_block_forward.3} parent=43 // pred_check_branch
        %4017 = sbr.rel (%p4015) target = $region48
      $region47: #{basic_block_forward.3} parent=43 // pred_region
        %s4018 = smul.u32 16, %s22
        %p4019 = scmp.lt.s32.totalorder %s21, 1
        %s4020 = scalar_select %p4019, %s21, 1
        %p4021 = scmp.lt.s32.totalorder %s4018, 15
        %s4022 = scalar_select %p4021, %s4018, 15
        %s4023 = smul.addr %s4022, 2
        %s4024 = smul.addr %s4020, 32
        %s4025 = sadd.s32 %s4023, %s4024
        %s4026 = smul.addr %s4025, 8
        %s4027 = scalar_lea.vmem %s2, %s4026
      $region48: #{basic_block_forward.3} parent=43 // pred_fallthru
        _
      // Predicated region
      $region49: #{basic_block_forward.3} parent=43 // pred_check
        %p4028 = pneg %p126
      $region50: #{basic_block_forward.3} parent=43 // pred_check_branch
        %4030 = sbr.rel (%p4028) target = $region52
      $region51: #{basic_block_forward.3} parent=43 // pred_region
        %p4031 = scmp.lt.s32.totalorder %s21, 1
        %s4032 = scalar_select %p4031, %s21, 1
        %s4033 = smul.addr %s4032, 2
        %s4034 = scalar_lea.vmem %s3, %s4033
      $region52: #{basic_block_forward.3} parent=43 // pred_fallthru
        _
    $region44: #{basic_block_forward.3} parent=5 // pred_fallthru
      _
  $region6: #{basic_block_forward.3} parent=0 // loop_footer
    %s14 = sadd.s32 1, %s10
  $region7: #{basic_block_forward.3} parent=0 // loop_footer_branch
    %9 = sbr.rel target = $region3
  $region8: #{basic_block_forward.3} parent=0 // loop_exit
    _

</llo_original>
